<compile_context>
chip_gen: v7x
topology: tpu7x:2x2x1
jax: 0.10.0
libtpu: 0.0.40
codegen_flags: <defaults>
</compile_context>

<pallas_src>
import functools

import jax
import jax.numpy as jnp
from jax.experimental import pallas as pl
from jax.experimental.pallas import tpu as pltpu

F32 = jnp.float32
BF = jnp.bfloat16      # MXU feed dtype (accumulation stays f32)


# ------------------------------------------------------------------- kernel --

def _gwnet_fused_kernel(x_ref, bd_ref,
                        sw_ref, sb_ref,
                        wfg_ref, bfg_ref,
                        wskip_ref, bskip_ref,
                        wmlp_ref, bmlp_ref, bnsc_ref,
                        e1w_ref, e1b_ref, e2w_ref, e2b_ref,
                        o_ref,
                        *, V, dilations, Lf, n_hops, cin_is_one):
    """Whole Graph-WaveNet forward for ONE batch element (grid=(N,)).

    Layouts (time-major rows, channels on lanes):
      x_ref   : (1, L*V, Cin)            raw input
      bd_ref  : (1, H, Lmax*V, Lmax*V)   kron(I, A^k) hop matrices, bf16
      wfg_ref : (NL, 2C, 2Cd)            packed [tap0;tap1] x [filter|gate], bf16
      wmlp_ref: (NL, (1+H)*Cd, C)        GCN MLP with BN scale folded, bf16
      o_ref   : (1, Lf*V, out_dim)
    """
    LV = x_ref.shape[1]
    L = LV // V
    LfV = Lf * V

    # ---- start_conv: in_dim == 1 -> pure VPU scale + bias (no MXU, and no
    #      HBM round trip of the expanded (L*V, C) activation).
    x_in = x_ref[0]                                           # (L*V, Cin) f32
    if cin_is_one:
        x = x_in * sw_ref[...] + sb_ref[...]                  # (L*V, C)
    else:
        x = (jnp.dot(x_in.astype(BF), sw_ref[...],
                     preferred_element_type=jnp.float32) + sb_ref[...])

    bd_all = bd_ref[0]                                        # (H, Lmax*V, Lmax*V) bf16

    skip = None
    for li, d in enumerate(dilations):
        Lo = L - d
        LoV = Lo * V

        # ---- dilated (1,2) temporal conv: taps packed along K (K = 2C) ------
        xa = x[:LoV, :]                                       # tap 0 rows
        xb = x[d * V:, :]                                     # tap 1 rows (shift d*V)
        packed = jnp.concatenate([xa, xb], axis=1).astype(BF)           # (LoV, 2C)
        fg = (jnp.dot(packed, wfg_ref[li],
                      preferred_element_type=jnp.float32) + bfg_ref[li])  # (LoV, 2Cd)
        Cd = fg.shape[1] // 2
        gated = jnp.tanh(fg[:, :Cd]) * jax.nn.sigmoid(fg[:, Cd:])       # (LoV, Cd) f32
        g_bf = gated.astype(BF)                               # MXU feed, cast once

        # ---- skip conv on the final Lf time steps, accumulated in VMEM ------
        tail = gated[LoV - LfV:, :].astype(BF)                # tiny, f32-aligned slice
        sk = (jnp.dot(tail, wskip_ref[li],
                      preferred_element_type=jnp.float32) + bskip_ref[li])
        skip = sk if skip is None else skip + sk

        # ---- graph convolution: each hop is ONE block-diagonal matmul -------
        #      (A powers precomputed outside, so no chained bf16 hops)
        outs = [g_bf]
        for h in range(n_hops):
            bdh = bd_all[h, :LoV, :LoV]                       # kron(I_Lo, A^k) bf16
            outs.append(jnp.dot(bdh, g_bf,
                                preferred_element_type=jnp.float32).astype(BF))
        hcat = jnp.concatenate(outs, axis=1)                  # (LoV, (1+H)*Cd) bf16
        gc = jnp.dot(hcat, wmlp_ref[li],                      # BN scale pre-folded
                     preferred_element_type=jnp.float32)      # (LoV, C)

        # ---- residual add + inference BatchNorm (scale/shift folded) --------
        res = x[d * V:, :]                                    # (LoV, C) f32
        x = gc + res * bnsc_ref[li] + bmlp_ref[li]
        L = Lo

    # ---- head: relu(skip) -> relu(end_conv_1) -> end_conv_2 -----------------
    h = jnp.maximum(skip, 0.0)
    h = jnp.maximum(jnp.dot(h.astype(BF), e1w_ref[...],
                            preferred_element_type=jnp.float32) + e1b_ref[...], 0.0)
    o_ref[0] = (jnp.dot(h.astype(BF), e2w_ref[...],
                        preferred_element_type=jnp.float32) + e2b_ref[...])


# ----------------------------------------------------------- pallas wrapper --

def _resident_spec(shape):
    nd = len(shape)
    return pl.BlockSpec(shape, lambda n, _nd=nd: (0,) * _nd)


def _build_block_diag_hops(supports, order, Lmax, V):
    """A, A^2, ..., A^order per support, expanded to kron(I_Lmax, A^k).

    Returns (N, H, Lmax*V, Lmax*V) bf16.  Computed once per forward in plain
    JAX (trivial cost); inside the kernel each GCN hop becomes a single
    matmul on the leading (Lo*V, Lo*V) sub-block (tile-aligned prefix slice).
    """
    hops = []
    for a in supports:
        a32 = jnp.asarray(a, F32)
        p = a32
        for _ in range(order):
            hops.append(p)
            p = jnp.matmul(a32, p)
    ast = jnp.stack(hops, axis=1)                             # (N, H, V, V)
    n, h = ast.shape[0], ast.shape[1]
    eye = jnp.eye(Lmax, dtype=F32)
    bd = eye[None, None, :, None, :, None] * ast[:, :, None, :, None, :]
    return bd.reshape(n, h, Lmax * V, Lmax * V).astype(BF)


def gwnet_forward(packed, inputs, supports):
    """inputs: (N, V, L, in_dim); supports: list of (N, V, V).

    Returns ((N, V, out_dim), supports) -- matches the torch forward output."""
    if not isinstance(supports, (list, tuple)):
        supports = [supports]
    x = jnp.asarray(inputs, F32)                              # (N, V, L, in_dim)
    N, V, L, Cin = x.shape
    rf = packed["receptive_field"]
    dilations = packed["dilations"]

    # canonical layout: time-major rows, channels last -> (N, L*V, Cin)
    x = jnp.transpose(x, (0, 2, 1, 3))                        # (N, L, V, Cin)
    if L < rf:
        x = jnp.pad(x, ((0, 0), (rf - L, 0), (0, 0), (0, 0)))
        L = rf
    Lf = L - (rf - 1)                                         # final / skip time length
    if Lf != 1:
        # TODO(synk): torch module uses an undefined self.final_conv on this path.
        raise NotImplementedError("time dim > 1 path relies on undefined final_conv")
    x = x.reshape(N, L * V, Cin)

    # per-layer output lengths -> max length for the block-diag hop matrices
    lens, cur = [], L
    for d in dilations:
        cur -= d
        lens.append(cur)
    Lmax = max(lens)

    bd = _build_block_diag_hops(supports, packed["order"], Lmax, V)
    H = bd.shape[1]
    out_dim = packed["end2_w"].shape[1]

    kern = functools.partial(
        _gwnet_fused_kernel, V=V, dilations=tuple(dilations), Lf=Lf,
        n_hops=H, cin_is_one=(Cin == 1))

    weights = (packed["start_w"], packed["start_b"],
               packed["wfg"], packed["bfg"],
               packed["wskip"], packed["bskip"],
               packed["wmlp"], packed["bmlp"], packed["bn_scale"],
               packed["end1_w"], packed["end1_b"],
               packed["end2_w"], packed["end2_b"])

    in_specs = [pl.BlockSpec((1, L * V, Cin), lambda n: (n, 0, 0)),
                pl.BlockSpec((1, H, Lmax * V, Lmax * V), lambda n: (n, 0, 0, 0))]
    in_specs += [_resident_spec(w.shape) for w in weights]

    out = pl.pallas_call(
        kern,
        grid=(N,),
        in_specs=in_specs,
        out_specs=pl.BlockSpec((1, Lf * V, out_dim), lambda n: (n, 0, 0)),
        out_shape=jax.ShapeDtypeStruct((N, Lf * V, out_dim), F32),
        compiler_params=pltpu.CompilerParams(dimension_semantics=("parallel",)),
    )(x, bd, *weights)

    out = out.reshape(N, Lf, V, out_dim)
    return out[:, 0], supports                                # (N, V, out_dim)


# --------------------------------------------------------------- parameters --

def init_params(key, *, in_dim=1, out_dim=12, residual_channels=32,
                dilation_channels=32, skip_channels=256, end_channels=512,
                kernel_size=2, blocks=4, layers=2, supports_len=2, order=2,
                w_scale=0.1):
    n_layers = blocks * layers
    keys = iter(jax.random.split(key, 16 + 8 * n_layers))

    def rnd(shape):
        return jax.random.normal(next(keys), shape, F32) * w_scale

    receptive_field = 1
    dilations = []
    for _b in range(blocks):
        additional_scope = kernel_size - 1
        d = 1
        for _i in range(layers):
            dilations.append(d)
            receptive_field += additional_scope
            additional_scope *= 2
            d *= 2

    eps = 1e-5
    # fresh nn.BatchNorm2d in eval(): gamma=1, beta=0, mean=0, var=1
    bn_scale = jnp.ones((residual_channels,), F32) / jnp.sqrt(1.0 + eps)
    bn_shift = jnp.zeros((residual_channels,), F32)

    gcn_c_in = (order * supports_len + 1) * dilation_channels
    layer_params = []
    for d in dilations:
        layer_params.append(dict(
            dilation=d,
            wf=rnd((residual_channels, dilation_channels, kernel_size)),
            bf=rnd((dilation_channels,)),
            wg=rnd((residual_channels, dilation_channels, kernel_size)),
            bg=rnd((dilation_channels,)),
            wskip=rnd((dilation_channels, skip_channels)),
            bskip=rnd((skip_channels,)),
            wmlp=rnd((gcn_c_in, residual_channels)),
            bmlp=rnd((residual_channels,)),
            bn_scale=bn_scale,
            bn_shift=bn_shift,
        ))

    return dict(
        in_dim=in_dim, out_dim=out_dim, blocks=blocks, layers=layers,
        order=order, skip_channels=skip_channels,
        receptive_field=receptive_field,
        start_w=rnd((in_dim, residual_channels)),
        start_b=rnd((residual_channels,)),
        end1_w=rnd((skip_channels, end_channels)),
        end1_b=rnd((end_channels,)),
        end2_w=rnd((end_channels, out_dim)),
        end2_b=rnd((out_dim,)),
        layer_params=layer_params,
    )


def pack_params(params):
    """One-time weight preparation (hoisted out of the forward pass):
    fold inference-mode BatchNorm into the GCN MLP, pack the two filter/gate
    taps into one (2C, 2Cd) weight, stack per-layer weights along a leading
    layer axis and pre-cast MXU operands to bf16."""
    lps = params["layer_params"]

    def stack(fn):
        return jnp.stack([fn(lp) for lp in lps], axis=0)

    wfg = stack(lambda lp: jnp.concatenate(
        [jnp.concatenate([lp["wf"][:, :, 0], lp["wg"][:, :, 0]], axis=1),
         jnp.concatenate([lp["wf"][:, :, 1], lp["wg"][:, :, 1]], axis=1)],
        axis=0)).astype(BF)                                             # (NL, 2C, 2Cd)
    bfg = stack(lambda lp: jnp.concatenate([lp["bf"], lp["bg"]])[None, :])
    wskip = stack(lambda lp: lp["wskip"]).astype(BF)                    # (NL, Cd, S)
    bskip = stack(lambda lp: lp["bskip"][None, :])
    wmlp = stack(lambda lp: lp["wmlp"] * lp["bn_scale"][None, :]).astype(BF)
    bmlp = stack(lambda lp: (lp["bmlp"] * lp["bn_scale"] + lp["bn_shift"])[None, :])
    bnsc = stack(lambda lp: lp["bn_scale"][None, :])

    cin = params["start_w"].shape[0]
    start_w = params["start_w"] if cin == 1 else params["start_w"].astype(BF)

    return dict(
        receptive_field=params["receptive_field"],
        order=params["order"],
        dilations=tuple(int(lp["dilation"]) for lp in lps),
        start_w=start_w,
        start_b=params["start_b"][None, :],
        wfg=wfg, bfg=bfg, wskip=wskip, bskip=bskip,
        wmlp=wmlp, bmlp=bmlp, bn_scale=bnsc,
        end1_w=params["end1_w"].astype(BF),
        end1_b=params["end1_b"][None, :],
        end2_w=params["end2_w"].astype(BF),
        end2_b=params["end2_b"][None, :],
    )


# ------------------------------------------------- pure-JAX reference (check) --

def reference_forward(params, inputs, supports):
    hp = jax.lax.Precision.HIGHEST

    def conv1x1(x, w, b):
        return jnp.einsum("ncvl,co->novl", x, w, precision=hp) + b[None, :, None, None]

    x = jnp.transpose(inputs, (0, 3, 1, 2)).astype(F32)
    N, _, V, L = x.shape
    rf = params["receptive_field"]
    if L < rf:
        x = jnp.pad(x, ((0, 0), (0, 0), (0, 0), (rf - L, 0)))
    x = conv1x1(x, params["start_w"], params["start_b"])
    skip = None
    for lp in params["layer_params"]:
        d = lp["dilation"]
        residual = x
        xa, xb = residual[:, :, :, :-d], residual[:, :, :, d:]
        filt = (jnp.einsum("ncvl,co->novl", xa, lp["wf"][:, :, 0], precision=hp)
                + jnp.einsum("ncvl,co->novl", xb, lp["wf"][:, :, 1], precision=hp)
                + lp["bf"][None, :, None, None])
        gate = (jnp.einsum("ncvl,co->novl", xa, lp["wg"][:, :, 0], precision=hp)
                + jnp.einsum("ncvl,co->novl", xb, lp["wg"][:, :, 1], precision=hp)
                + lp["bg"][None, :, None, None])
        x = jnp.tanh(filt) * jax.nn.sigmoid(gate)
        s = conv1x1(x, lp["wskip"], lp["bskip"])
        skip = s if skip is None else s + skip[:, :, :, -s.shape[3]:]
        outs = [x]
        for a in supports:
            x1 = jnp.einsum("ncvl,nwv->ncwl", x, a, precision=hp)
            outs.append(x1)
            for _ in range(2, params["order"] + 1):
                x2 = jnp.einsum("ncvl,nwv->ncwl", x1, a, precision=hp)
                outs.append(x2)
                x1 = x2
        h = jnp.concatenate(outs, axis=1)
        x = conv1x1(h, lp["wmlp"], lp["bmlp"])
        Lo = x.shape[3]
        x = ((x + residual[:, :, :, -Lo:]) * lp["bn_scale"][None, :, None, None]
             + lp["bn_shift"][None, :, None, None])
    h = jax.nn.relu(skip)
    h = jax.nn.relu(conv1x1(h, params["end1_w"], params["end1_b"]))
    out = conv1x1(h, params["end2_w"], params["end2_b"])
    return jnp.transpose(out[:, :, :, 0], (0, 2, 1))


# --------------------------------------------------------------------- main --

if __name__ == "__main__":
    root = jax.random.PRNGKey(0)
    kp, kx, ka1, ka2 = jax.random.split(root, 4)

    # input layout fed to the torch module: (batch, num_nodes, seq_len, in_dim)
    N, V, L, in_dim = 2, 8, 13, 1          # L == receptive_field (13) -> final time dim = 1
    params = init_params(kp)
    packed = pack_params(params)           # one-time weight fold / pack / bf16 cast
    inputs = jax.random.normal(kx, (N, V, L, in_dim), F32)
    supports = [
        jax.nn.softmax(jax.random.normal(ka1, (N, V, V), F32), axis=-1),
        jax.nn.softmax(jax.random.normal(ka2, (N, V, V), F32), axis=-1),
    ]

    out, sup_out = gwnet_forward(packed, inputs, supports)
    out = jax.block_until_ready(out)
    assert out.shape == (N, V, 12), out.shape

    ref = reference_forward(params, inputs, supports)
    max_err = float(jnp.max(jnp.abs(out - ref)))
    if max_err > 5e-2:
        raise SystemExit(f"Pallas vs reference mismatch: max abs err = {max_err}")

    print("KERNEL_OK")
</pallas_src>

<mosaic_0001>
module attributes {stable_mosaic.version = 11 : i64} {
  func.func @_gwnet_fused_kernel(%arg0: i32, %arg1: memref<1x104x1xf32, #tpu.memory_space<vmem>>, %arg2: memref<1x4x96x96xbf16, #tpu.memory_space<vmem>>, %arg3: memref<1x32xf32, #tpu.memory_space<vmem>>, %arg4: memref<1x32xf32, #tpu.memory_space<vmem>>, %arg5: memref<8x64x64xbf16, #tpu.memory_space<vmem>>, %arg6: memref<8x1x64xf32, #tpu.memory_space<vmem>>, %arg7: memref<8x32x256xbf16, #tpu.memory_space<vmem>>, %arg8: memref<8x1x256xf32, #tpu.memory_space<vmem>>, %arg9: memref<8x160x32xbf16, #tpu.memory_space<vmem>>, %arg10: memref<8x1x32xf32, #tpu.memory_space<vmem>>, %arg11: memref<8x1x32xf32, #tpu.memory_space<vmem>>, %arg12: memref<256x512xbf16, #tpu.memory_space<vmem>>, %arg13: memref<1x512xf32, #tpu.memory_space<vmem>>, %arg14: memref<512x12xbf16, #tpu.memory_space<vmem>>, %arg15: memref<1x12xf32, #tpu.memory_space<vmem>>, %arg16: memref<1x8x12xf32, #tpu.memory_space<vmem>>) attributes {dimension_semantics = [#tpu.dimension_semantics<parallel>], iteration_bounds = array<i64: 2>, scalar_prefetch = 0 : i64, scratch_operands = 0 : i64, tpu.core_type = #tpu.core_type<tc>, window_params = [{transform_indices = @transform_0, window_bounds = array<i64: 1, 104, 1>}, {transform_indices = @transform_1, window_bounds = array<i64: 1, 4, 96, 96>}, {pipeline_mode = #tpu.pipeline_mode<synchronous>, transform_indices = @transform_2, window_bounds = array<i64: 1, 32>}, {pipeline_mode = #tpu.pipeline_mode<synchronous>, transform_indices = @transform_3, window_bounds = array<i64: 1, 32>}, {pipeline_mode = #tpu.pipeline_mode<synchronous>, transform_indices = @transform_4, window_bounds = array<i64: 8, 64, 64>}, {pipeline_mode = #tpu.pipeline_mode<synchronous>, transform_indices = @transform_5, window_bounds = array<i64: 8, 1, 64>}, {pipeline_mode = #tpu.pipeline_mode<synchronous>, transform_indices = @transform_6, window_bounds = array<i64: 8, 32, 256>}, {pipeline_mode = #tpu.pipeline_mode<synchronous>, transform_indices = @transform_7, window_bounds = array<i64: 8, 1, 256>}, {pipeline_mode = #tpu.pipeline_mode<synchronous>, transform_indices = @transform_8, window_bounds = array<i64: 8, 160, 32>}, {pipeline_mode = #tpu.pipeline_mode<synchronous>, transform_indices = @transform_9, window_bounds = array<i64: 8, 1, 32>}, {pipeline_mode = #tpu.pipeline_mode<synchronous>, transform_indices = @transform_10, window_bounds = array<i64: 8, 1, 32>}, {pipeline_mode = #tpu.pipeline_mode<synchronous>, transform_indices = @transform_11, window_bounds = array<i64: 256, 512>}, {pipeline_mode = #tpu.pipeline_mode<synchronous>, transform_indices = @transform_12, window_bounds = array<i64: 1, 512>}, {pipeline_mode = #tpu.pipeline_mode<synchronous>, transform_indices = @transform_13, window_bounds = array<i64: 512, 12>}, {pipeline_mode = #tpu.pipeline_mode<synchronous>, transform_indices = @transform_14, window_bounds = array<i64: 1, 12>}, {transform_indices = @transform_15, window_bounds = array<i64: 1, 8, 12>}]} {
    %c0 = arith.constant 0 : index
    %c0_0 = arith.constant 0 : index
    %c0_1 = arith.constant 0 : index
    %0 = vector.load %arg1[%c0, %c0_0, %c0_1] : memref<1x104x1xf32, #tpu.memory_space<vmem>>, vector<1x104x1xf32>
    %1 = vector.shape_cast %0 : vector<1x104x1xf32> to vector<104x1xf32>
    %c0_2 = arith.constant 0 : index
    %c0_3 = arith.constant 0 : index
    %2 = vector.load %arg3[%c0_2, %c0_3] : memref<1x32xf32, #tpu.memory_space<vmem>>, vector<1x32xf32>
    %3 = vector.broadcast %1 : vector<104x1xf32> to vector<104x32xf32>
    %4 = vector.broadcast %2 : vector<1x32xf32> to vector<104x32xf32>
    %5 = arith.mulf %3, %4 : vector<104x32xf32>
    %c0_4 = arith.constant 0 : index
    %c0_5 = arith.constant 0 : index
    %6 = vector.load %arg4[%c0_4, %c0_5] : memref<1x32xf32, #tpu.memory_space<vmem>>, vector<1x32xf32>
    %7 = vector.broadcast %6 : vector<1x32xf32> to vector<104x32xf32>
    %8 = arith.addf %5, %7 : vector<104x32xf32>
    %c0_6 = arith.constant 0 : index
    %c0_7 = arith.constant 0 : index
    %c0_8 = arith.constant 0 : index
    %c0_9 = arith.constant 0 : index
    %9 = vector.load %arg2[%c0_6, %c0_7, %c0_8, %c0_9] : memref<1x4x96x96xbf16, #tpu.memory_space<vmem>>, vector<1x4x96x96xbf16>
    %10 = vector.shape_cast %9 : vector<1x4x96x96xbf16> to vector<4x96x96xbf16>
    %11 = vector.extract_strided_slice %8 {offsets = [0, 0], sizes = [96, 32], strides = [1, 1]} : vector<104x32xf32> to vector<96x32xf32>
    %12 = vector.extract_strided_slice %8 {offsets = [8, 0], sizes = [96, 32], strides = [1, 1]} : vector<104x32xf32> to vector<96x32xf32>
    %13 = tpu.concatenate %11, %12 in 1 : vector<96x32xf32>, vector<96x32xf32> -> vector<96x64xf32>
    %14 = arith.truncf %13 : vector<96x64xf32> to vector<96x64xbf16>
    %c0_10 = arith.constant 0 : index
    %c0_11 = arith.constant 0 : index
    %c0_12 = arith.constant 0 : index
    %15 = vector.load %arg5[%c0_10, %c0_11, %c0_12] : memref<8x64x64xbf16, #tpu.memory_space<vmem>>, vector<1x64x64xbf16>
    %16 = vector.shape_cast %15 : vector<1x64x64xbf16> to vector<64x64xbf16>
    %cst = arith.constant dense<0.000000e+00> : vector<96x64xf32>
    %17 = tpu.matmul %14, %16, %cst {dimension_numbers = #tpu.dot_dimension_numbers<[1], [0], [0], [1], [0, 0, 1, 1], [], []>} : vector<96x64xbf16>, vector<64x64xbf16>, vector<96x64xf32> -> vector<96x64xf32>
    %c0_13 = arith.constant 0 : index
    %c0_14 = arith.constant 0 : index
    %c0_15 = arith.constant 0 : index
    %18 = vector.load %arg6[%c0_13, %c0_14, %c0_15] : memref<8x1x64xf32, #tpu.memory_space<vmem>>, vector<1x1x64xf32>
    %19 = vector.shape_cast %18 : vector<1x1x64xf32> to vector<1x64xf32>
    %20 = vector.broadcast %19 : vector<1x64xf32> to vector<96x64xf32>
    %21 = arith.addf %17, %20 : vector<96x64xf32>
    %22 = vector.extract_strided_slice %21 {offsets = [0, 0], sizes = [96, 32], strides = [1, 1]} : vector<96x64xf32> to vector<96x32xf32>
    %23 = math.tanh %22 : vector<96x32xf32>
    %24 = vector.extract_strided_slice %21 {offsets = [0, 32], sizes = [96, 32], strides = [1, 1]} : vector<96x64xf32> to vector<96x32xf32>
    %25 = arith.negf %24 : vector<96x32xf32>
    %26 = math.exp %25 : vector<96x32xf32>
    %cst_16 = arith.constant 1.000000e+00 : f32
    %27 = vector.broadcast %cst_16 : f32 to vector<96x32xf32>
    %28 = arith.addf %27, %26 : vector<96x32xf32>
    %29 = arith.divf %27, %28 : vector<96x32xf32>
    %30 = arith.mulf %23, %29 : vector<96x32xf32>
    %31 = arith.truncf %30 : vector<96x32xf32> to vector<96x32xbf16>
    %32 = vector.extract_strided_slice %30 {offsets = [88, 0], sizes = [8, 32], strides = [1, 1]} : vector<96x32xf32> to vector<8x32xf32>
    %33 = arith.truncf %32 : vector<8x32xf32> to vector<8x32xbf16>
    %c0_17 = arith.constant 0 : index
    %c0_18 = arith.constant 0 : index
    %c0_19 = arith.constant 0 : index
    %34 = vector.load %arg7[%c0_17, %c0_18, %c0_19] : memref<8x32x256xbf16, #tpu.memory_space<vmem>>, vector<1x32x256xbf16>
    %35 = vector.shape_cast %34 : vector<1x32x256xbf16> to vector<32x256xbf16>
    %cst_20 = arith.constant dense<0.000000e+00> : vector<8x256xf32>
    %36 = tpu.matmul %33, %35, %cst_20 {dimension_numbers = #tpu.dot_dimension_numbers<[1], [0], [0], [1], [0, 0, 1, 1], [], []>} : vector<8x32xbf16>, vector<32x256xbf16>, vector<8x256xf32> -> vector<8x256xf32>
    %c0_21 = arith.constant 0 : index
    %c0_22 = arith.constant 0 : index
    %c0_23 = arith.constant 0 : index
    %37 = vector.load %arg8[%c0_21, %c0_22, %c0_23] : memref<8x1x256xf32, #tpu.memory_space<vmem>>, vector<1x1x256xf32>
    %38 = vector.shape_cast %37 : vector<1x1x256xf32> to vector<1x256xf32>
    %39 = vector.broadcast %38 : vector<1x256xf32> to vector<8x256xf32>
    %40 = arith.addf %36, %39 : vector<8x256xf32>
    %41 = vector.extract_strided_slice %10 {offsets = [0, 0, 0], sizes = [1, 96, 96], strides = [1, 1, 1]} : vector<4x96x96xbf16> to vector<1x96x96xbf16>
    %42 = vector.shape_cast %41 : vector<1x96x96xbf16> to vector<96x96xbf16>
    %cst_24 = arith.constant dense<0.000000e+00> : vector<96x32xf32>
    %43 = tpu.matmul %42, %31, %cst_24 {dimension_numbers = #tpu.dot_dimension_numbers<[1], [0], [0], [1], [0, 0, 1, 1], [], []>} : vector<96x96xbf16>, vector<96x32xbf16>, vector<96x32xf32> -> vector<96x32xf32>
    %44 = arith.truncf %43 : vector<96x32xf32> to vector<96x32xbf16>
    %45 = vector.extract_strided_slice %10 {offsets = [1, 0, 0], sizes = [1, 96, 96], strides = [1, 1, 1]} : vector<4x96x96xbf16> to vector<1x96x96xbf16>
    %46 = vector.shape_cast %45 : vector<1x96x96xbf16> to vector<96x96xbf16>
    %cst_25 = arith.constant dense<0.000000e+00> : vector<96x32xf32>
    %47 = tpu.matmul %46, %31, %cst_25 {dimension_numbers = #tpu.dot_dimension_numbers<[1], [0], [0], [1], [0, 0, 1, 1], [], []>} : vector<96x96xbf16>, vector<96x32xbf16>, vector<96x32xf32> -> vector<96x32xf32>
    %48 = arith.truncf %47 : vector<96x32xf32> to vector<96x32xbf16>
    %49 = vector.extract_strided_slice %10 {offsets = [2, 0, 0], sizes = [1, 96, 96], strides = [1, 1, 1]} : vector<4x96x96xbf16> to vector<1x96x96xbf16>
    %50 = vector.shape_cast %49 : vector<1x96x96xbf16> to vector<96x96xbf16>
    %cst_26 = arith.constant dense<0.000000e+00> : vector<96x32xf32>
    %51 = tpu.matmul %50, %31, %cst_26 {dimension_numbers = #tpu.dot_dimension_numbers<[1], [0], [0], [1], [0, 0, 1, 1], [], []>} : vector<96x96xbf16>, vector<96x32xbf16>, vector<96x32xf32> -> vector<96x32xf32>
    %52 = arith.truncf %51 : vector<96x32xf32> to vector<96x32xbf16>
    %53 = vector.extract_strided_slice %10 {offsets = [3, 0, 0], sizes = [1, 96, 96], strides = [1, 1, 1]} : vector<4x96x96xbf16> to vector<1x96x96xbf16>
    %54 = vector.shape_cast %53 : vector<1x96x96xbf16> to vector<96x96xbf16>
    %cst_27 = arith.constant dense<0.000000e+00> : vector<96x32xf32>
    %55 = tpu.matmul %54, %31, %cst_27 {dimension_numbers = #tpu.dot_dimension_numbers<[1], [0], [0], [1], [0, 0, 1, 1], [], []>} : vector<96x96xbf16>, vector<96x32xbf16>, vector<96x32xf32> -> vector<96x32xf32>
    %56 = arith.truncf %55 : vector<96x32xf32> to vector<96x32xbf16>
    %57 = tpu.concatenate %31, %44, %48, %52, %56 in 1 : vector<96x32xbf16>, vector<96x32xbf16>, vector<96x32xbf16>, vector<96x32xbf16>, vector<96x32xbf16> -> vector<96x160xbf16>
    %c0_28 = arith.constant 0 : index
    %c0_29 = arith.constant 0 : index
    %c0_30 = arith.constant 0 : index
    %58 = vector.load %arg9[%c0_28, %c0_29, %c0_30] : memref<8x160x32xbf16, #tpu.memory_space<vmem>>, vector<1x160x32xbf16>
    %59 = vector.shape_cast %58 : vector<1x160x32xbf16> to vector<160x32xbf16>
    %cst_31 = arith.constant dense<0.000000e+00> : vector<96x32xf32>
    %60 = tpu.matmul %57, %59, %cst_31 {dimension_numbers = #tpu.dot_dimension_numbers<[1], [0], [0], [1], [0, 0, 1, 1], [], []>} : vector<96x160xbf16>, vector<160x32xbf16>, vector<96x32xf32> -> vector<96x32xf32>
    %61 = vector.extract_strided_slice %8 {offsets = [8, 0], sizes = [96, 32], strides = [1, 1]} : vector<104x32xf32> to vector<96x32xf32>
    %c0_32 = arith.constant 0 : index
    %c0_33 = arith.constant 0 : index
    %c0_34 = arith.constant 0 : index
    %62 = vector.load %arg11[%c0_32, %c0_33, %c0_34] : memref<8x1x32xf32, #tpu.memory_space<vmem>>, vector<1x1x32xf32>
    %63 = vector.shape_cast %62 : vector<1x1x32xf32> to vector<1x32xf32>
    %64 = vector.broadcast %63 : vector<1x32xf32> to vector<96x32xf32>
    %65 = arith.mulf %61, %64 : vector<96x32xf32>
    %66 = arith.addf %60, %65 : vector<96x32xf32>
    %c0_35 = arith.constant 0 : index
    %c0_36 = arith.constant 0 : index
    %c0_37 = arith.constant 0 : index
    %67 = vector.load %arg10[%c0_35, %c0_36, %c0_37] : memref<8x1x32xf32, #tpu.memory_space<vmem>>, vector<1x1x32xf32>
    %68 = vector.shape_cast %67 : vector<1x1x32xf32> to vector<1x32xf32>
    %69 = vector.broadcast %68 : vector<1x32xf32> to vector<96x32xf32>
    %70 = arith.addf %66, %69 : vector<96x32xf32>
    %71 = vector.extract_strided_slice %70 {offsets = [0, 0], sizes = [80, 32], strides = [1, 1]} : vector<96x32xf32> to vector<80x32xf32>
    %72 = vector.extract_strided_slice %70 {offsets = [16, 0], sizes = [80, 32], strides = [1, 1]} : vector<96x32xf32> to vector<80x32xf32>
    %73 = tpu.concatenate %71, %72 in 1 : vector<80x32xf32>, vector<80x32xf32> -> vector<80x64xf32>
    %74 = arith.truncf %73 : vector<80x64xf32> to vector<80x64xbf16>
    %c1 = arith.constant 1 : index
    %c0_38 = arith.constant 0 : index
    %c0_39 = arith.constant 0 : index
    %75 = vector.load %arg5[%c1, %c0_38, %c0_39] : memref<8x64x64xbf16, #tpu.memory_space<vmem>>, vector<1x64x64xbf16>
    %76 = vector.shape_cast %75 : vector<1x64x64xbf16> to vector<64x64xbf16>
    %cst_40 = arith.constant dense<0.000000e+00> : vector<80x64xf32>
    %77 = tpu.matmul %74, %76, %cst_40 {dimension_numbers = #tpu.dot_dimension_numbers<[1], [0], [0], [1], [0, 0, 1, 1], [], []>} : vector<80x64xbf16>, vector<64x64xbf16>, vector<80x64xf32> -> vector<80x64xf32>
    %c1_41 = arith.constant 1 : index
    %c0_42 = arith.constant 0 : index
    %c0_43 = arith.constant 0 : index
    %78 = vector.load %arg6[%c1_41, %c0_42, %c0_43] : memref<8x1x64xf32, #tpu.memory_space<vmem>>, vector<1x1x64xf32>
    %79 = vector.shape_cast %78 : vector<1x1x64xf32> to vector<1x64xf32>
    %80 = vector.broadcast %79 : vector<1x64xf32> to vector<80x64xf32>
    %81 = arith.addf %77, %80 : vector<80x64xf32>
    %82 = vector.extract_strided_slice %81 {offsets = [0, 0], sizes = [80, 32], strides = [1, 1]} : vector<80x64xf32> to vector<80x32xf32>
    %83 = math.tanh %82 : vector<80x32xf32>
    %84 = vector.extract_strided_slice %81 {offsets = [0, 32], sizes = [80, 32], strides = [1, 1]} : vector<80x64xf32> to vector<80x32xf32>
    %85 = arith.negf %84 : vector<80x32xf32>
    %86 = math.exp %85 : vector<80x32xf32>
    %cst_44 = arith.constant 1.000000e+00 : f32
    %87 = vector.broadcast %cst_44 : f32 to vector<80x32xf32>
    %88 = arith.addf %87, %86 : vector<80x32xf32>
    %89 = arith.divf %87, %88 : vector<80x32xf32>
    %90 = arith.mulf %83, %89 : vector<80x32xf32>
    %91 = arith.truncf %90 : vector<80x32xf32> to vector<80x32xbf16>
    %92 = vector.extract_strided_slice %90 {offsets = [72, 0], sizes = [8, 32], strides = [1, 1]} : vector<80x32xf32> to vector<8x32xf32>
    %93 = arith.truncf %92 : vector<8x32xf32> to vector<8x32xbf16>
    %c1_45 = arith.constant 1 : index
    %c0_46 = arith.constant 0 : index
    %c0_47 = arith.constant 0 : index
    %94 = vector.load %arg7[%c1_45, %c0_46, %c0_47] : memref<8x32x256xbf16, #tpu.memory_space<vmem>>, vector<1x32x256xbf16>
    %95 = vector.shape_cast %94 : vector<1x32x256xbf16> to vector<32x256xbf16>
    %cst_48 = arith.constant dense<0.000000e+00> : vector<8x256xf32>
    %96 = tpu.matmul %93, %95, %cst_48 {dimension_numbers = #tpu.dot_dimension_numbers<[1], [0], [0], [1], [0, 0, 1, 1], [], []>} : vector<8x32xbf16>, vector<32x256xbf16>, vector<8x256xf32> -> vector<8x256xf32>
    %c1_49 = arith.constant 1 : index
    %c0_50 = arith.constant 0 : index
    %c0_51 = arith.constant 0 : index
    %97 = vector.load %arg8[%c1_49, %c0_50, %c0_51] : memref<8x1x256xf32, #tpu.memory_space<vmem>>, vector<1x1x256xf32>
    %98 = vector.shape_cast %97 : vector<1x1x256xf32> to vector<1x256xf32>
    %99 = vector.broadcast %98 : vector<1x256xf32> to vector<8x256xf32>
    %100 = arith.addf %96, %99 : vector<8x256xf32>
    %101 = arith.addf %40, %100 : vector<8x256xf32>
    %102 = vector.extract_strided_slice %10 {offsets = [0, 0, 0], sizes = [1, 80, 80], strides = [1, 1, 1]} : vector<4x96x96xbf16> to vector<1x80x80xbf16>
    %103 = vector.shape_cast %102 : vector<1x80x80xbf16> to vector<80x80xbf16>
    %cst_52 = arith.constant dense<0.000000e+00> : vector<80x32xf32>
    %104 = tpu.matmul %103, %91, %cst_52 {dimension_numbers = #tpu.dot_dimension_numbers<[1], [0], [0], [1], [0, 0, 1, 1], [], []>} : vector<80x80xbf16>, vector<80x32xbf16>, vector<80x32xf32> -> vector<80x32xf32>
    %105 = arith.truncf %104 : vector<80x32xf32> to vector<80x32xbf16>
    %106 = vector.extract_strided_slice %10 {offsets = [1, 0, 0], sizes = [1, 80, 80], strides = [1, 1, 1]} : vector<4x96x96xbf16> to vector<1x80x80xbf16>
    %107 = vector.shape_cast %106 : vector<1x80x80xbf16> to vector<80x80xbf16>
    %cst_53 = arith.constant dense<0.000000e+00> : vector<80x32xf32>
    %108 = tpu.matmul %107, %91, %cst_53 {dimension_numbers = #tpu.dot_dimension_numbers<[1], [0], [0], [1], [0, 0, 1, 1], [], []>} : vector<80x80xbf16>, vector<80x32xbf16>, vector<80x32xf32> -> vector<80x32xf32>
    %109 = arith.truncf %108 : vector<80x32xf32> to vector<80x32xbf16>
    %110 = vector.extract_strided_slice %10 {offsets = [2, 0, 0], sizes = [1, 80, 80], strides = [1, 1, 1]} : vector<4x96x96xbf16> to vector<1x80x80xbf16>
    %111 = vector.shape_cast %110 : vector<1x80x80xbf16> to vector<80x80xbf16>
    %cst_54 = arith.constant dense<0.000000e+00> : vector<80x32xf32>
    %112 = tpu.matmul %111, %91, %cst_54 {dimension_numbers = #tpu.dot_dimension_numbers<[1], [0], [0], [1], [0, 0, 1, 1], [], []>} : vector<80x80xbf16>, vector<80x32xbf16>, vector<80x32xf32> -> vector<80x32xf32>
    %113 = arith.truncf %112 : vector<80x32xf32> to vector<80x32xbf16>
    %114 = vector.extract_strided_slice %10 {offsets = [3, 0, 0], sizes = [1, 80, 80], strides = [1, 1, 1]} : vector<4x96x96xbf16> to vector<1x80x80xbf16>
    %115 = vector.shape_cast %114 : vector<1x80x80xbf16> to vector<80x80xbf16>
    %cst_55 = arith.constant dense<0.000000e+00> : vector<80x32xf32>
    %116 = tpu.matmul %115, %91, %cst_55 {dimension_numbers = #tpu.dot_dimension_numbers<[1], [0], [0], [1], [0, 0, 1, 1], [], []>} : vector<80x80xbf16>, vector<80x32xbf16>, vector<80x32xf32> -> vector<80x32xf32>
    %117 = arith.truncf %116 : vector<80x32xf32> to vector<80x32xbf16>
    %118 = tpu.concatenate %91, %105, %109, %113, %117 in 1 : vector<80x32xbf16>, vector<80x32xbf16>, vector<80x32xbf16>, vector<80x32xbf16>, vector<80x32xbf16> -> vector<80x160xbf16>
    %c1_56 = arith.constant 1 : index
    %c0_57 = arith.constant 0 : index
    %c0_58 = arith.constant 0 : index
    %119 = vector.load %arg9[%c1_56, %c0_57, %c0_58] : memref<8x160x32xbf16, #tpu.memory_space<vmem>>, vector<1x160x32xbf16>
    %120 = vector.shape_cast %119 : vector<1x160x32xbf16> to vector<160x32xbf16>
    %cst_59 = arith.constant dense<0.000000e+00> : vector<80x32xf32>
    %121 = tpu.matmul %118, %120, %cst_59 {dimension_numbers = #tpu.dot_dimension_numbers<[1], [0], [0], [1], [0, 0, 1, 1], [], []>} : vector<80x160xbf16>, vector<160x32xbf16>, vector<80x32xf32> -> vector<80x32xf32>
    %122 = vector.extract_strided_slice %70 {offsets = [16, 0], sizes = [80, 32], strides = [1, 1]} : vector<96x32xf32> to vector<80x32xf32>
    %c1_60 = arith.constant 1 : index
    %c0_61 = arith.constant 0 : index
    %c0_62 = arith.constant 0 : index
    %123 = vector.load %arg11[%c1_60, %c0_61, %c0_62] : memref<8x1x32xf32, #tpu.memory_space<vmem>>, vector<1x1x32xf32>
    %124 = vector.shape_cast %123 : vector<1x1x32xf32> to vector<1x32xf32>
    %125 = vector.broadcast %124 : vector<1x32xf32> to vector<80x32xf32>
    %126 = arith.mulf %122, %125 : vector<80x32xf32>
    %127 = arith.addf %121, %126 : vector<80x32xf32>
    %c1_63 = arith.constant 1 : index
    %c0_64 = arith.constant 0 : index
    %c0_65 = arith.constant 0 : index
    %128 = vector.load %arg10[%c1_63, %c0_64, %c0_65] : memref<8x1x32xf32, #tpu.memory_space<vmem>>, vector<1x1x32xf32>
    %129 = vector.shape_cast %128 : vector<1x1x32xf32> to vector<1x32xf32>
    %130 = vector.broadcast %129 : vector<1x32xf32> to vector<80x32xf32>
    %131 = arith.addf %127, %130 : vector<80x32xf32>
    %132 = vector.extract_strided_slice %131 {offsets = [0, 0], sizes = [72, 32], strides = [1, 1]} : vector<80x32xf32> to vector<72x32xf32>
    %133 = vector.extract_strided_slice %131 {offsets = [8, 0], sizes = [72, 32], strides = [1, 1]} : vector<80x32xf32> to vector<72x32xf32>
    %134 = tpu.concatenate %132, %133 in 1 : vector<72x32xf32>, vector<72x32xf32> -> vector<72x64xf32>
    %135 = arith.truncf %134 : vector<72x64xf32> to vector<72x64xbf16>
    %c2 = arith.constant 2 : index
    %c0_66 = arith.constant 0 : index
    %c0_67 = arith.constant 0 : index
    %136 = vector.load %arg5[%c2, %c0_66, %c0_67] : memref<8x64x64xbf16, #tpu.memory_space<vmem>>, vector<1x64x64xbf16>
    %137 = vector.shape_cast %136 : vector<1x64x64xbf16> to vector<64x64xbf16>
    %cst_68 = arith.constant dense<0.000000e+00> : vector<72x64xf32>
    %138 = tpu.matmul %135, %137, %cst_68 {dimension_numbers = #tpu.dot_dimension_numbers<[1], [0], [0], [1], [0, 0, 1, 1], [], []>} : vector<72x64xbf16>, vector<64x64xbf16>, vector<72x64xf32> -> vector<72x64xf32>
    %c2_69 = arith.constant 2 : index
    %c0_70 = arith.constant 0 : index
    %c0_71 = arith.constant 0 : index
    %139 = vector.load %arg6[%c2_69, %c0_70, %c0_71] : memref<8x1x64xf32, #tpu.memory_space<vmem>>, vector<1x1x64xf32>
    %140 = vector.shape_cast %139 : vector<1x1x64xf32> to vector<1x64xf32>
    %141 = vector.broadcast %140 : vector<1x64xf32> to vector<72x64xf32>
    %142 = arith.addf %138, %141 : vector<72x64xf32>
    %143 = vector.extract_strided_slice %142 {offsets = [0, 0], sizes = [72, 32], strides = [1, 1]} : vector<72x64xf32> to vector<72x32xf32>
    %144 = math.tanh %143 : vector<72x32xf32>
    %145 = vector.extract_strided_slice %142 {offsets = [0, 32], sizes = [72, 32], strides = [1, 1]} : vector<72x64xf32> to vector<72x32xf32>
    %146 = arith.negf %145 : vector<72x32xf32>
    %147 = math.exp %146 : vector<72x32xf32>
    %cst_72 = arith.constant 1.000000e+00 : f32
    %148 = vector.broadcast %cst_72 : f32 to vector<72x32xf32>
    %149 = arith.addf %148, %147 : vector<72x32xf32>
    %150 = arith.divf %148, %149 : vector<72x32xf32>
    %151 = arith.mulf %144, %150 : vector<72x32xf32>
    %152 = arith.truncf %151 : vector<72x32xf32> to vector<72x32xbf16>
    %153 = vector.extract_strided_slice %151 {offsets = [64, 0], sizes = [8, 32], strides = [1, 1]} : vector<72x32xf32> to vector<8x32xf32>
    %154 = arith.truncf %153 : vector<8x32xf32> to vector<8x32xbf16>
    %c2_73 = arith.constant 2 : index
    %c0_74 = arith.constant 0 : index
    %c0_75 = arith.constant 0 : index
    %155 = vector.load %arg7[%c2_73, %c0_74, %c0_75] : memref<8x32x256xbf16, #tpu.memory_space<vmem>>, vector<1x32x256xbf16>
    %156 = vector.shape_cast %155 : vector<1x32x256xbf16> to vector<32x256xbf16>
    %cst_76 = arith.constant dense<0.000000e+00> : vector<8x256xf32>
    %157 = tpu.matmul %154, %156, %cst_76 {dimension_numbers = #tpu.dot_dimension_numbers<[1], [0], [0], [1], [0, 0, 1, 1], [], []>} : vector<8x32xbf16>, vector<32x256xbf16>, vector<8x256xf32> -> vector<8x256xf32>
    %c2_77 = arith.constant 2 : index
    %c0_78 = arith.constant 0 : index
    %c0_79 = arith.constant 0 : index
    %158 = vector.load %arg8[%c2_77, %c0_78, %c0_79] : memref<8x1x256xf32, #tpu.memory_space<vmem>>, vector<1x1x256xf32>
    %159 = vector.shape_cast %158 : vector<1x1x256xf32> to vector<1x256xf32>
    %160 = vector.broadcast %159 : vector<1x256xf32> to vector<8x256xf32>
    %161 = arith.addf %157, %160 : vector<8x256xf32>
    %162 = arith.addf %101, %161 : vector<8x256xf32>
    %163 = vector.extract_strided_slice %10 {offsets = [0, 0, 0], sizes = [1, 72, 72], strides = [1, 1, 1]} : vector<4x96x96xbf16> to vector<1x72x72xbf16>
    %164 = vector.shape_cast %163 : vector<1x72x72xbf16> to vector<72x72xbf16>
    %cst_80 = arith.constant dense<0.000000e+00> : vector<72x32xf32>
    %165 = tpu.matmul %164, %152, %cst_80 {dimension_numbers = #tpu.dot_dimension_numbers<[1], [0], [0], [1], [0, 0, 1, 1], [], []>} : vector<72x72xbf16>, vector<72x32xbf16>, vector<72x32xf32> -> vector<72x32xf32>
    %166 = arith.truncf %165 : vector<72x32xf32> to vector<72x32xbf16>
    %167 = vector.extract_strided_slice %10 {offsets = [1, 0, 0], sizes = [1, 72, 72], strides = [1, 1, 1]} : vector<4x96x96xbf16> to vector<1x72x72xbf16>
    %168 = vector.shape_cast %167 : vector<1x72x72xbf16> to vector<72x72xbf16>
    %cst_81 = arith.constant dense<0.000000e+00> : vector<72x32xf32>
    %169 = tpu.matmul %168, %152, %cst_81 {dimension_numbers = #tpu.dot_dimension_numbers<[1], [0], [0], [1], [0, 0, 1, 1], [], []>} : vector<72x72xbf16>, vector<72x32xbf16>, vector<72x32xf32> -> vector<72x32xf32>
    %170 = arith.truncf %169 : vector<72x32xf32> to vector<72x32xbf16>
    %171 = vector.extract_strided_slice %10 {offsets = [2, 0, 0], sizes = [1, 72, 72], strides = [1, 1, 1]} : vector<4x96x96xbf16> to vector<1x72x72xbf16>
    %172 = vector.shape_cast %171 : vector<1x72x72xbf16> to vector<72x72xbf16>
    %cst_82 = arith.constant dense<0.000000e+00> : vector<72x32xf32>
    %173 = tpu.matmul %172, %152, %cst_82 {dimension_numbers = #tpu.dot_dimension_numbers<[1], [0], [0], [1], [0, 0, 1, 1], [], []>} : vector<72x72xbf16>, vector<72x32xbf16>, vector<72x32xf32> -> vector<72x32xf32>
    %174 = arith.truncf %173 : vector<72x32xf32> to vector<72x32xbf16>
    %175 = vector.extract_strided_slice %10 {offsets = [3, 0, 0], sizes = [1, 72, 72], strides = [1, 1, 1]} : vector<4x96x96xbf16> to vector<1x72x72xbf16>
    %176 = vector.shape_cast %175 : vector<1x72x72xbf16> to vector<72x72xbf16>
    %cst_83 = arith.constant dense<0.000000e+00> : vector<72x32xf32>
    %177 = tpu.matmul %176, %152, %cst_83 {dimension_numbers = #tpu.dot_dimension_numbers<[1], [0], [0], [1], [0, 0, 1, 1], [], []>} : vector<72x72xbf16>, vector<72x32xbf16>, vector<72x32xf32> -> vector<72x32xf32>
    %178 = arith.truncf %177 : vector<72x32xf32> to vector<72x32xbf16>
    %179 = tpu.concatenate %152, %166, %170, %174, %178 in 1 : vector<72x32xbf16>, vector<72x32xbf16>, vector<72x32xbf16>, vector<72x32xbf16>, vector<72x32xbf16> -> vector<72x160xbf16>
    %c2_84 = arith.constant 2 : index
    %c0_85 = arith.constant 0 : index
    %c0_86 = arith.constant 0 : index
    %180 = vector.load %arg9[%c2_84, %c0_85, %c0_86] : memref<8x160x32xbf16, #tpu.memory_space<vmem>>, vector<1x160x32xbf16>
    %181 = vector.shape_cast %180 : vector<1x160x32xbf16> to vector<160x32xbf16>
    %cst_87 = arith.constant dense<0.000000e+00> : vector<72x32xf32>
    %182 = tpu.matmul %179, %181, %cst_87 {dimension_numbers = #tpu.dot_dimension_numbers<[1], [0], [0], [1], [0, 0, 1, 1], [], []>} : vector<72x160xbf16>, vector<160x32xbf16>, vector<72x32xf32> -> vector<72x32xf32>
    %183 = vector.extract_strided_slice %131 {offsets = [8, 0], sizes = [72, 32], strides = [1, 1]} : vector<80x32xf32> to vector<72x32xf32>
    %c2_88 = arith.constant 2 : index
    %c0_89 = arith.constant 0 : index
    %c0_90 = arith.constant 0 : index
    %184 = vector.load %arg11[%c2_88, %c0_89, %c0_90] : memref<8x1x32xf32, #tpu.memory_space<vmem>>, vector<1x1x32xf32>
    %185 = vector.shape_cast %184 : vector<1x1x32xf32> to vector<1x32xf32>
    %186 = vector.broadcast %185 : vector<1x32xf32> to vector<72x32xf32>
    %187 = arith.mulf %183, %186 : vector<72x32xf32>
    %188 = arith.addf %182, %187 : vector<72x32xf32>
    %c2_91 = arith.constant 2 : index
    %c0_92 = arith.constant 0 : index
    %c0_93 = arith.constant 0 : index
    %189 = vector.load %arg10[%c2_91, %c0_92, %c0_93] : memref<8x1x32xf32, #tpu.memory_space<vmem>>, vector<1x1x32xf32>
    %190 = vector.shape_cast %189 : vector<1x1x32xf32> to vector<1x32xf32>
    %191 = vector.broadcast %190 : vector<1x32xf32> to vector<72x32xf32>
    %192 = arith.addf %188, %191 : vector<72x32xf32>
    %193 = vector.extract_strided_slice %192 {offsets = [0, 0], sizes = [56, 32], strides = [1, 1]} : vector<72x32xf32> to vector<56x32xf32>
    %194 = vector.extract_strided_slice %192 {offsets = [16, 0], sizes = [56, 32], strides = [1, 1]} : vector<72x32xf32> to vector<56x32xf32>
    %195 = tpu.concatenate %193, %194 in 1 : vector<56x32xf32>, vector<56x32xf32> -> vector<56x64xf32>
    %196 = arith.truncf %195 : vector<56x64xf32> to vector<56x64xbf16>
    %c3 = arith.constant 3 : index
    %c0_94 = arith.constant 0 : index
    %c0_95 = arith.constant 0 : index
    %197 = vector.load %arg5[%c3, %c0_94, %c0_95] : memref<8x64x64xbf16, #tpu.memory_space<vmem>>, vector<1x64x64xbf16>
    %198 = vector.shape_cast %197 : vector<1x64x64xbf16> to vector<64x64xbf16>
    %cst_96 = arith.constant dense<0.000000e+00> : vector<56x64xf32>
    %199 = tpu.matmul %196, %198, %cst_96 {dimension_numbers = #tpu.dot_dimension_numbers<[1], [0], [0], [1], [0, 0, 1, 1], [], []>} : vector<56x64xbf16>, vector<64x64xbf16>, vector<56x64xf32> -> vector<56x64xf32>
    %c3_97 = arith.constant 3 : index
    %c0_98 = arith.constant 0 : index
    %c0_99 = arith.constant 0 : index
    %200 = vector.load %arg6[%c3_97, %c0_98, %c0_99] : memref<8x1x64xf32, #tpu.memory_space<vmem>>, vector<1x1x64xf32>
    %201 = vector.shape_cast %200 : vector<1x1x64xf32> to vector<1x64xf32>
    %202 = vector.broadcast %201 : vector<1x64xf32> to vector<56x64xf32>
    %203 = arith.addf %199, %202 : vector<56x64xf32>
    %204 = vector.extract_strided_slice %203 {offsets = [0, 0], sizes = [56, 32], strides = [1, 1]} : vector<56x64xf32> to vector<56x32xf32>
    %205 = math.tanh %204 : vector<56x32xf32>
    %206 = vector.extract_strided_slice %203 {offsets = [0, 32], sizes = [56, 32], strides = [1, 1]} : vector<56x64xf32> to vector<56x32xf32>
    %207 = arith.negf %206 : vector<56x32xf32>
    %208 = math.exp %207 : vector<56x32xf32>
    %cst_100 = arith.constant 1.000000e+00 : f32
    %209 = vector.broadcast %cst_100 : f32 to vector<56x32xf32>
    %210 = arith.addf %209, %208 : vector<56x32xf32>
    %211 = arith.divf %209, %210 : vector<56x32xf32>
    %212 = arith.mulf %205, %211 : vector<56x32xf32>
    %213 = arith.truncf %212 : vector<56x32xf32> to vector<56x32xbf16>
    %214 = vector.extract_strided_slice %212 {offsets = [48, 0], sizes = [8, 32], strides = [1, 1]} : vector<56x32xf32> to vector<8x32xf32>
    %215 = arith.truncf %214 : vector<8x32xf32> to vector<8x32xbf16>
    %c3_101 = arith.constant 3 : index
    %c0_102 = arith.constant 0 : index
    %c0_103 = arith.constant 0 : index
    %216 = vector.load %arg7[%c3_101, %c0_102, %c0_103] : memref<8x32x256xbf16, #tpu.memory_space<vmem>>, vector<1x32x256xbf16>
    %217 = vector.shape_cast %216 : vector<1x32x256xbf16> to vector<32x256xbf16>
    %cst_104 = arith.constant dense<0.000000e+00> : vector<8x256xf32>
    %218 = tpu.matmul %215, %217, %cst_104 {dimension_numbers = #tpu.dot_dimension_numbers<[1], [0], [0], [1], [0, 0, 1, 1], [], []>} : vector<8x32xbf16>, vector<32x256xbf16>, vector<8x256xf32> -> vector<8x256xf32>
    %c3_105 = arith.constant 3 : index
    %c0_106 = arith.constant 0 : index
    %c0_107 = arith.constant 0 : index
    %219 = vector.load %arg8[%c3_105, %c0_106, %c0_107] : memref<8x1x256xf32, #tpu.memory_space<vmem>>, vector<1x1x256xf32>
    %220 = vector.shape_cast %219 : vector<1x1x256xf32> to vector<1x256xf32>
    %221 = vector.broadcast %220 : vector<1x256xf32> to vector<8x256xf32>
    %222 = arith.addf %218, %221 : vector<8x256xf32>
    %223 = arith.addf %162, %222 : vector<8x256xf32>
    %224 = vector.extract_strided_slice %10 {offsets = [0, 0, 0], sizes = [1, 56, 56], strides = [1, 1, 1]} : vector<4x96x96xbf16> to vector<1x56x56xbf16>
    %225 = vector.shape_cast %224 : vector<1x56x56xbf16> to vector<56x56xbf16>
    %cst_108 = arith.constant dense<0.000000e+00> : vector<56x32xf32>
    %226 = tpu.matmul %225, %213, %cst_108 {dimension_numbers = #tpu.dot_dimension_numbers<[1], [0], [0], [1], [0, 0, 1, 1], [], []>} : vector<56x56xbf16>, vector<56x32xbf16>, vector<56x32xf32> -> vector<56x32xf32>
    %227 = arith.truncf %226 : vector<56x32xf32> to vector<56x32xbf16>
    %228 = vector.extract_strided_slice %10 {offsets = [1, 0, 0], sizes = [1, 56, 56], strides = [1, 1, 1]} : vector<4x96x96xbf16> to vector<1x56x56xbf16>
    %229 = vector.shape_cast %228 : vector<1x56x56xbf16> to vector<56x56xbf16>
    %cst_109 = arith.constant dense<0.000000e+00> : vector<56x32xf32>
    %230 = tpu.matmul %229, %213, %cst_109 {dimension_numbers = #tpu.dot_dimension_numbers<[1], [0], [0], [1], [0, 0, 1, 1], [], []>} : vector<56x56xbf16>, vector<56x32xbf16>, vector<56x32xf32> -> vector<56x32xf32>
    %231 = arith.truncf %230 : vector<56x32xf32> to vector<56x32xbf16>
    %232 = vector.extract_strided_slice %10 {offsets = [2, 0, 0], sizes = [1, 56, 56], strides = [1, 1, 1]} : vector<4x96x96xbf16> to vector<1x56x56xbf16>
    %233 = vector.shape_cast %232 : vector<1x56x56xbf16> to vector<56x56xbf16>
    %cst_110 = arith.constant dense<0.000000e+00> : vector<56x32xf32>
    %234 = tpu.matmul %233, %213, %cst_110 {dimension_numbers = #tpu.dot_dimension_numbers<[1], [0], [0], [1], [0, 0, 1, 1], [], []>} : vector<56x56xbf16>, vector<56x32xbf16>, vector<56x32xf32> -> vector<56x32xf32>
    %235 = arith.truncf %234 : vector<56x32xf32> to vector<56x32xbf16>
    %236 = vector.extract_strided_slice %10 {offsets = [3, 0, 0], sizes = [1, 56, 56], strides = [1, 1, 1]} : vector<4x96x96xbf16> to vector<1x56x56xbf16>
    %237 = vector.shape_cast %236 : vector<1x56x56xbf16> to vector<56x56xbf16>
    %cst_111 = arith.constant dense<0.000000e+00> : vector<56x32xf32>
    %238 = tpu.matmul %237, %213, %cst_111 {dimension_numbers = #tpu.dot_dimension_numbers<[1], [0], [0], [1], [0, 0, 1, 1], [], []>} : vector<56x56xbf16>, vector<56x32xbf16>, vector<56x32xf32> -> vector<56x32xf32>
    %239 = arith.truncf %238 : vector<56x32xf32> to vector<56x32xbf16>
    %240 = tpu.concatenate %213, %227, %231, %235, %239 in 1 : vector<56x32xbf16>, vector<56x32xbf16>, vector<56x32xbf16>, vector<56x32xbf16>, vector<56x32xbf16> -> vector<56x160xbf16>
    %c3_112 = arith.constant 3 : index
    %c0_113 = arith.constant 0 : index
    %c0_114 = arith.constant 0 : index
    %241 = vector.load %arg9[%c3_112, %c0_113, %c0_114] : memref<8x160x32xbf16, #tpu.memory_space<vmem>>, vector<1x160x32xbf16>
    %242 = vector.shape_cast %241 : vector<1x160x32xbf16> to vector<160x32xbf16>
    %cst_115 = arith.constant dense<0.000000e+00> : vector<56x32xf32>
    %243 = tpu.matmul %240, %242, %cst_115 {dimension_numbers = #tpu.dot_dimension_numbers<[1], [0], [0], [1], [0, 0, 1, 1], [], []>} : vector<56x160xbf16>, vector<160x32xbf16>, vector<56x32xf32> -> vector<56x32xf32>
    %244 = vector.extract_strided_slice %192 {offsets = [16, 0], sizes = [56, 32], strides = [1, 1]} : vector<72x32xf32> to vector<56x32xf32>
    %c3_116 = arith.constant 3 : index
    %c0_117 = arith.constant 0 : index
    %c0_118 = arith.constant 0 : index
    %245 = vector.load %arg11[%c3_116, %c0_117, %c0_118] : memref<8x1x32xf32, #tpu.memory_space<vmem>>, vector<1x1x32xf32>
    %246 = vector.shape_cast %245 : vector<1x1x32xf32> to vector<1x32xf32>
    %247 = vector.broadcast %246 : vector<1x32xf32> to vector<56x32xf32>
    %248 = arith.mulf %244, %247 : vector<56x32xf32>
    %249 = arith.addf %243, %248 : vector<56x32xf32>
    %c3_119 = arith.constant 3 : index
    %c0_120 = arith.constant 0 : index
    %c0_121 = arith.constant 0 : index
    %250 = vector.load %arg10[%c3_119, %c0_120, %c0_121] : memref<8x1x32xf32, #tpu.memory_space<vmem>>, vector<1x1x32xf32>
    %251 = vector.shape_cast %250 : vector<1x1x32xf32> to vector<1x32xf32>
    %252 = vector.broadcast %251 : vector<1x32xf32> to vector<56x32xf32>
    %253 = arith.addf %249, %252 : vector<56x32xf32>
    %254 = vector.extract_strided_slice %253 {offsets = [0, 0], sizes = [48, 32], strides = [1, 1]} : vector<56x32xf32> to vector<48x32xf32>
    %255 = vector.extract_strided_slice %253 {offsets = [8, 0], sizes = [48, 32], strides = [1, 1]} : vector<56x32xf32> to vector<48x32xf32>
    %256 = tpu.concatenate %254, %255 in 1 : vector<48x32xf32>, vector<48x32xf32> -> vector<48x64xf32>
    %257 = arith.truncf %256 : vector<48x64xf32> to vector<48x64xbf16>
    %c4 = arith.constant 4 : index
    %c0_122 = arith.constant 0 : index
    %c0_123 = arith.constant 0 : index
    %258 = vector.load %arg5[%c4, %c0_122, %c0_123] : memref<8x64x64xbf16, #tpu.memory_space<vmem>>, vector<1x64x64xbf16>
    %259 = vector.shape_cast %258 : vector<1x64x64xbf16> to vector<64x64xbf16>
    %cst_124 = arith.constant dense<0.000000e+00> : vector<48x64xf32>
    %260 = tpu.matmul %257, %259, %cst_124 {dimension_numbers = #tpu.dot_dimension_numbers<[1], [0], [0], [1], [0, 0, 1, 1], [], []>} : vector<48x64xbf16>, vector<64x64xbf16>, vector<48x64xf32> -> vector<48x64xf32>
    %c4_125 = arith.constant 4 : index
    %c0_126 = arith.constant 0 : index
    %c0_127 = arith.constant 0 : index
    %261 = vector.load %arg6[%c4_125, %c0_126, %c0_127] : memref<8x1x64xf32, #tpu.memory_space<vmem>>, vector<1x1x64xf32>
    %262 = vector.shape_cast %261 : vector<1x1x64xf32> to vector<1x64xf32>
    %263 = vector.broadcast %262 : vector<1x64xf32> to vector<48x64xf32>
    %264 = arith.addf %260, %263 : vector<48x64xf32>
    %265 = vector.extract_strided_slice %264 {offsets = [0, 0], sizes = [48, 32], strides = [1, 1]} : vector<48x64xf32> to vector<48x32xf32>
    %266 = math.tanh %265 : vector<48x32xf32>
    %267 = vector.extract_strided_slice %264 {offsets = [0, 32], sizes = [48, 32], strides = [1, 1]} : vector<48x64xf32> to vector<48x32xf32>
    %268 = arith.negf %267 : vector<48x32xf32>
    %269 = math.exp %268 : vector<48x32xf32>
    %cst_128 = arith.constant 1.000000e+00 : f32
    %270 = vector.broadcast %cst_128 : f32 to vector<48x32xf32>
    %271 = arith.addf %270, %269 : vector<48x32xf32>
    %272 = arith.divf %270, %271 : vector<48x32xf32>
    %273 = arith.mulf %266, %272 : vector<48x32xf32>
    %274 = arith.truncf %273 : vector<48x32xf32> to vector<48x32xbf16>
    %275 = vector.extract_strided_slice %273 {offsets = [40, 0], sizes = [8, 32], strides = [1, 1]} : vector<48x32xf32> to vector<8x32xf32>
    %276 = arith.truncf %275 : vector<8x32xf32> to vector<8x32xbf16>
    %c4_129 = arith.constant 4 : index
    %c0_130 = arith.constant 0 : index
    %c0_131 = arith.constant 0 : index
    %277 = vector.load %arg7[%c4_129, %c0_130, %c0_131] : memref<8x32x256xbf16, #tpu.memory_space<vmem>>, vector<1x32x256xbf16>
    %278 = vector.shape_cast %277 : vector<1x32x256xbf16> to vector<32x256xbf16>
    %cst_132 = arith.constant dense<0.000000e+00> : vector<8x256xf32>
    %279 = tpu.matmul %276, %278, %cst_132 {dimension_numbers = #tpu.dot_dimension_numbers<[1], [0], [0], [1], [0, 0, 1, 1], [], []>} : vector<8x32xbf16>, vector<32x256xbf16>, vector<8x256xf32> -> vector<8x256xf32>
    %c4_133 = arith.constant 4 : index
    %c0_134 = arith.constant 0 : index
    %c0_135 = arith.constant 0 : index
    %280 = vector.load %arg8[%c4_133, %c0_134, %c0_135] : memref<8x1x256xf32, #tpu.memory_space<vmem>>, vector<1x1x256xf32>
    %281 = vector.shape_cast %280 : vector<1x1x256xf32> to vector<1x256xf32>
    %282 = vector.broadcast %281 : vector<1x256xf32> to vector<8x256xf32>
    %283 = arith.addf %279, %282 : vector<8x256xf32>
    %284 = arith.addf %223, %283 : vector<8x256xf32>
    %285 = vector.extract_strided_slice %10 {offsets = [0, 0, 0], sizes = [1, 48, 48], strides = [1, 1, 1]} : vector<4x96x96xbf16> to vector<1x48x48xbf16>
    %286 = vector.shape_cast %285 : vector<1x48x48xbf16> to vector<48x48xbf16>
    %cst_136 = arith.constant dense<0.000000e+00> : vector<48x32xf32>
    %287 = tpu.matmul %286, %274, %cst_136 {dimension_numbers = #tpu.dot_dimension_numbers<[1], [0], [0], [1], [0, 0, 1, 1], [], []>} : vector<48x48xbf16>, vector<48x32xbf16>, vector<48x32xf32> -> vector<48x32xf32>
    %288 = arith.truncf %287 : vector<48x32xf32> to vector<48x32xbf16>
    %289 = vector.extract_strided_slice %10 {offsets = [1, 0, 0], sizes = [1, 48, 48], strides = [1, 1, 1]} : vector<4x96x96xbf16> to vector<1x48x48xbf16>
    %290 = vector.shape_cast %289 : vector<1x48x48xbf16> to vector<48x48xbf16>
    %cst_137 = arith.constant dense<0.000000e+00> : vector<48x32xf32>
    %291 = tpu.matmul %290, %274, %cst_137 {dimension_numbers = #tpu.dot_dimension_numbers<[1], [0], [0], [1], [0, 0, 1, 1], [], []>} : vector<48x48xbf16>, vector<48x32xbf16>, vector<48x32xf32> -> vector<48x32xf32>
    %292 = arith.truncf %291 : vector<48x32xf32> to vector<48x32xbf16>
    %293 = vector.extract_strided_slice %10 {offsets = [2, 0, 0], sizes = [1, 48, 48], strides = [1, 1, 1]} : vector<4x96x96xbf16> to vector<1x48x48xbf16>
    %294 = vector.shape_cast %293 : vector<1x48x48xbf16> to vector<48x48xbf16>
    %cst_138 = arith.constant dense<0.000000e+00> : vector<48x32xf32>
    %295 = tpu.matmul %294, %274, %cst_138 {dimension_numbers = #tpu.dot_dimension_numbers<[1], [0], [0], [1], [0, 0, 1, 1], [], []>} : vector<48x48xbf16>, vector<48x32xbf16>, vector<48x32xf32> -> vector<48x32xf32>
    %296 = arith.truncf %295 : vector<48x32xf32> to vector<48x32xbf16>
    %297 = vector.extract_strided_slice %10 {offsets = [3, 0, 0], sizes = [1, 48, 48], strides = [1, 1, 1]} : vector<4x96x96xbf16> to vector<1x48x48xbf16>
    %298 = vector.shape_cast %297 : vector<1x48x48xbf16> to vector<48x48xbf16>
    %cst_139 = arith.constant dense<0.000000e+00> : vector<48x32xf32>
    %299 = tpu.matmul %298, %274, %cst_139 {dimension_numbers = #tpu.dot_dimension_numbers<[1], [0], [0], [1], [0, 0, 1, 1], [], []>} : vector<48x48xbf16>, vector<48x32xbf16>, vector<48x32xf32> -> vector<48x32xf32>
    %300 = arith.truncf %299 : vector<48x32xf32> to vector<48x32xbf16>
    %301 = tpu.concatenate %274, %288, %292, %296, %300 in 1 : vector<48x32xbf16>, vector<48x32xbf16>, vector<48x32xbf16>, vector<48x32xbf16>, vector<48x32xbf16> -> vector<48x160xbf16>
    %c4_140 = arith.constant 4 : index
    %c0_141 = arith.constant 0 : index
    %c0_142 = arith.constant 0 : index
    %302 = vector.load %arg9[%c4_140, %c0_141, %c0_142] : memref<8x160x32xbf16, #tpu.memory_space<vmem>>, vector<1x160x32xbf16>
    %303 = vector.shape_cast %302 : vector<1x160x32xbf16> to vector<160x32xbf16>
    %cst_143 = arith.constant dense<0.000000e+00> : vector<48x32xf32>
    %304 = tpu.matmul %301, %303, %cst_143 {dimension_numbers = #tpu.dot_dimension_numbers<[1], [0], [0], [1], [0, 0, 1, 1], [], []>} : vector<48x160xbf16>, vector<160x32xbf16>, vector<48x32xf32> -> vector<48x32xf32>
    %305 = vector.extract_strided_slice %253 {offsets = [8, 0], sizes = [48, 32], strides = [1, 1]} : vector<56x32xf32> to vector<48x32xf32>
    %c4_144 = arith.constant 4 : index
    %c0_145 = arith.constant 0 : index
    %c0_146 = arith.constant 0 : index
    %306 = vector.load %arg11[%c4_144, %c0_145, %c0_146] : memref<8x1x32xf32, #tpu.memory_space<vmem>>, vector<1x1x32xf32>
    %307 = vector.shape_cast %306 : vector<1x1x32xf32> to vector<1x32xf32>
    %308 = vector.broadcast %307 : vector<1x32xf32> to vector<48x32xf32>
    %309 = arith.mulf %305, %308 : vector<48x32xf32>
    %310 = arith.addf %304, %309 : vector<48x32xf32>
    %c4_147 = arith.constant 4 : index
    %c0_148 = arith.constant 0 : index
    %c0_149 = arith.constant 0 : index
    %311 = vector.load %arg10[%c4_147, %c0_148, %c0_149] : memref<8x1x32xf32, #tpu.memory_space<vmem>>, vector<1x1x32xf32>
    %312 = vector.shape_cast %311 : vector<1x1x32xf32> to vector<1x32xf32>
    %313 = vector.broadcast %312 : vector<1x32xf32> to vector<48x32xf32>
    %314 = arith.addf %310, %313 : vector<48x32xf32>
    %315 = vector.extract_strided_slice %314 {offsets = [0, 0], sizes = [32, 32], strides = [1, 1]} : vector<48x32xf32> to vector<32x32xf32>
    %316 = vector.extract_strided_slice %314 {offsets = [16, 0], sizes = [32, 32], strides = [1, 1]} : vector<48x32xf32> to vector<32x32xf32>
    %317 = tpu.concatenate %315, %316 in 1 : vector<32x32xf32>, vector<32x32xf32> -> vector<32x64xf32>
    %318 = arith.truncf %317 : vector<32x64xf32> to vector<32x64xbf16>
    %c5 = arith.constant 5 : index
    %c0_150 = arith.constant 0 : index
    %c0_151 = arith.constant 0 : index
    %319 = vector.load %arg5[%c5, %c0_150, %c0_151] : memref<8x64x64xbf16, #tpu.memory_space<vmem>>, vector<1x64x64xbf16>
    %320 = vector.shape_cast %319 : vector<1x64x64xbf16> to vector<64x64xbf16>
    %cst_152 = arith.constant dense<0.000000e+00> : vector<32x64xf32>
    %321 = tpu.matmul %318, %320, %cst_152 {dimension_numbers = #tpu.dot_dimension_numbers<[1], [0], [0], [1], [0, 0, 1, 1], [], []>} : vector<32x64xbf16>, vector<64x64xbf16>, vector<32x64xf32> -> vector<32x64xf32>
    %c5_153 = arith.constant 5 : index
    %c0_154 = arith.constant 0 : index
    %c0_155 = arith.constant 0 : index
    %322 = vector.load %arg6[%c5_153, %c0_154, %c0_155] : memref<8x1x64xf32, #tpu.memory_space<vmem>>, vector<1x1x64xf32>
    %323 = vector.shape_cast %322 : vector<1x1x64xf32> to vector<1x64xf32>
    %324 = vector.broadcast %323 : vector<1x64xf32> to vector<32x64xf32>
    %325 = arith.addf %321, %324 : vector<32x64xf32>
    %326 = vector.extract_strided_slice %325 {offsets = [0, 0], sizes = [32, 32], strides = [1, 1]} : vector<32x64xf32> to vector<32x32xf32>
    %327 = math.tanh %326 : vector<32x32xf32>
    %328 = vector.extract_strided_slice %325 {offsets = [0, 32], sizes = [32, 32], strides = [1, 1]} : vector<32x64xf32> to vector<32x32xf32>
    %329 = arith.negf %328 : vector<32x32xf32>
    %330 = math.exp %329 : vector<32x32xf32>
    %cst_156 = arith.constant 1.000000e+00 : f32
    %331 = vector.broadcast %cst_156 : f32 to vector<32x32xf32>
    %332 = arith.addf %331, %330 : vector<32x32xf32>
    %333 = arith.divf %331, %332 : vector<32x32xf32>
    %334 = arith.mulf %327, %333 : vector<32x32xf32>
    %335 = arith.truncf %334 : vector<32x32xf32> to vector<32x32xbf16>
    %336 = vector.extract_strided_slice %334 {offsets = [24, 0], sizes = [8, 32], strides = [1, 1]} : vector<32x32xf32> to vector<8x32xf32>
    %337 = arith.truncf %336 : vector<8x32xf32> to vector<8x32xbf16>
    %c5_157 = arith.constant 5 : index
    %c0_158 = arith.constant 0 : index
    %c0_159 = arith.constant 0 : index
    %338 = vector.load %arg7[%c5_157, %c0_158, %c0_159] : memref<8x32x256xbf16, #tpu.memory_space<vmem>>, vector<1x32x256xbf16>
    %339 = vector.shape_cast %338 : vector<1x32x256xbf16> to vector<32x256xbf16>
    %cst_160 = arith.constant dense<0.000000e+00> : vector<8x256xf32>
    %340 = tpu.matmul %337, %339, %cst_160 {dimension_numbers = #tpu.dot_dimension_numbers<[1], [0], [0], [1], [0, 0, 1, 1], [], []>} : vector<8x32xbf16>, vector<32x256xbf16>, vector<8x256xf32> -> vector<8x256xf32>
    %c5_161 = arith.constant 5 : index
    %c0_162 = arith.constant 0 : index
    %c0_163 = arith.constant 0 : index
    %341 = vector.load %arg8[%c5_161, %c0_162, %c0_163] : memref<8x1x256xf32, #tpu.memory_space<vmem>>, vector<1x1x256xf32>
    %342 = vector.shape_cast %341 : vector<1x1x256xf32> to vector<1x256xf32>
    %343 = vector.broadcast %342 : vector<1x256xf32> to vector<8x256xf32>
    %344 = arith.addf %340, %343 : vector<8x256xf32>
    %345 = arith.addf %284, %344 : vector<8x256xf32>
    %346 = vector.extract_strided_slice %10 {offsets = [0, 0, 0], sizes = [1, 32, 32], strides = [1, 1, 1]} : vector<4x96x96xbf16> to vector<1x32x32xbf16>
    %347 = vector.shape_cast %346 : vector<1x32x32xbf16> to vector<32x32xbf16>
    %cst_164 = arith.constant dense<0.000000e+00> : vector<32x32xf32>
    %348 = tpu.matmul %347, %335, %cst_164 {dimension_numbers = #tpu.dot_dimension_numbers<[1], [0], [0], [1], [0, 0, 1, 1], [], []>} : vector<32x32xbf16>, vector<32x32xbf16>, vector<32x32xf32> -> vector<32x32xf32>
    %349 = arith.truncf %348 : vector<32x32xf32> to vector<32x32xbf16>
    %350 = vector.extract_strided_slice %10 {offsets = [1, 0, 0], sizes = [1, 32, 32], strides = [1, 1, 1]} : vector<4x96x96xbf16> to vector<1x32x32xbf16>
    %351 = vector.shape_cast %350 : vector<1x32x32xbf16> to vector<32x32xbf16>
    %cst_165 = arith.constant dense<0.000000e+00> : vector<32x32xf32>
    %352 = tpu.matmul %351, %335, %cst_165 {dimension_numbers = #tpu.dot_dimension_numbers<[1], [0], [0], [1], [0, 0, 1, 1], [], []>} : vector<32x32xbf16>, vector<32x32xbf16>, vector<32x32xf32> -> vector<32x32xf32>
    %353 = arith.truncf %352 : vector<32x32xf32> to vector<32x32xbf16>
    %354 = vector.extract_strided_slice %10 {offsets = [2, 0, 0], sizes = [1, 32, 32], strides = [1, 1, 1]} : vector<4x96x96xbf16> to vector<1x32x32xbf16>
    %355 = vector.shape_cast %354 : vector<1x32x32xbf16> to vector<32x32xbf16>
    %cst_166 = arith.constant dense<0.000000e+00> : vector<32x32xf32>
    %356 = tpu.matmul %355, %335, %cst_166 {dimension_numbers = #tpu.dot_dimension_numbers<[1], [0], [0], [1], [0, 0, 1, 1], [], []>} : vector<32x32xbf16>, vector<32x32xbf16>, vector<32x32xf32> -> vector<32x32xf32>
    %357 = arith.truncf %356 : vector<32x32xf32> to vector<32x32xbf16>
    %358 = vector.extract_strided_slice %10 {offsets = [3, 0, 0], sizes = [1, 32, 32], strides = [1, 1, 1]} : vector<4x96x96xbf16> to vector<1x32x32xbf16>
    %359 = vector.shape_cast %358 : vector<1x32x32xbf16> to vector<32x32xbf16>
    %cst_167 = arith.constant dense<0.000000e+00> : vector<32x32xf32>
    %360 = tpu.matmul %359, %335, %cst_167 {dimension_numbers = #tpu.dot_dimension_numbers<[1], [0], [0], [1], [0, 0, 1, 1], [], []>} : vector<32x32xbf16>, vector<32x32xbf16>, vector<32x32xf32> -> vector<32x32xf32>
    %361 = arith.truncf %360 : vector<32x32xf32> to vector<32x32xbf16>
    %362 = tpu.concatenate %335, %349, %353, %357, %361 in 1 : vector<32x32xbf16>, vector<32x32xbf16>, vector<32x32xbf16>, vector<32x32xbf16>, vector<32x32xbf16> -> vector<32x160xbf16>
    %c5_168 = arith.constant 5 : index
    %c0_169 = arith.constant 0 : index
    %c0_170 = arith.constant 0 : index
    %363 = vector.load %arg9[%c5_168, %c0_169, %c0_170] : memref<8x160x32xbf16, #tpu.memory_space<vmem>>, vector<1x160x32xbf16>
    %364 = vector.shape_cast %363 : vector<1x160x32xbf16> to vector<160x32xbf16>
    %cst_171 = arith.constant dense<0.000000e+00> : vector<32x32xf32>
    %365 = tpu.matmul %362, %364, %cst_171 {dimension_numbers = #tpu.dot_dimension_numbers<[1], [0], [0], [1], [0, 0, 1, 1], [], []>} : vector<32x160xbf16>, vector<160x32xbf16>, vector<32x32xf32> -> vector<32x32xf32>
    %366 = vector.extract_strided_slice %314 {offsets = [16, 0], sizes = [32, 32], strides = [1, 1]} : vector<48x32xf32> to vector<32x32xf32>
    %c5_172 = arith.constant 5 : index
    %c0_173 = arith.constant 0 : index
    %c0_174 = arith.constant 0 : index
    %367 = vector.load %arg11[%c5_172, %c0_173, %c0_174] : memref<8x1x32xf32, #tpu.memory_space<vmem>>, vector<1x1x32xf32>
    %368 = vector.shape_cast %367 : vector<1x1x32xf32> to vector<1x32xf32>
    %369 = vector.broadcast %368 : vector<1x32xf32> to vector<32x32xf32>
    %370 = arith.mulf %366, %369 : vector<32x32xf32>
    %371 = arith.addf %365, %370 : vector<32x32xf32>
    %c5_175 = arith.constant 5 : index
    %c0_176 = arith.constant 0 : index
    %c0_177 = arith.constant 0 : index
    %372 = vector.load %arg10[%c5_175, %c0_176, %c0_177] : memref<8x1x32xf32, #tpu.memory_space<vmem>>, vector<1x1x32xf32>
    %373 = vector.shape_cast %372 : vector<1x1x32xf32> to vector<1x32xf32>
    %374 = vector.broadcast %373 : vector<1x32xf32> to vector<32x32xf32>
    %375 = arith.addf %371, %374 : vector<32x32xf32>
    %376 = vector.extract_strided_slice %375 {offsets = [0, 0], sizes = [24, 32], strides = [1, 1]} : vector<32x32xf32> to vector<24x32xf32>
    %377 = vector.extract_strided_slice %375 {offsets = [8, 0], sizes = [24, 32], strides = [1, 1]} : vector<32x32xf32> to vector<24x32xf32>
    %378 = tpu.concatenate %376, %377 in 1 : vector<24x32xf32>, vector<24x32xf32> -> vector<24x64xf32>
    %379 = arith.truncf %378 : vector<24x64xf32> to vector<24x64xbf16>
    %c6 = arith.constant 6 : index
    %c0_178 = arith.constant 0 : index
    %c0_179 = arith.constant 0 : index
    %380 = vector.load %arg5[%c6, %c0_178, %c0_179] : memref<8x64x64xbf16, #tpu.memory_space<vmem>>, vector<1x64x64xbf16>
    %381 = vector.shape_cast %380 : vector<1x64x64xbf16> to vector<64x64xbf16>
    %cst_180 = arith.constant dense<0.000000e+00> : vector<24x64xf32>
    %382 = tpu.matmul %379, %381, %cst_180 {dimension_numbers = #tpu.dot_dimension_numbers<[1], [0], [0], [1], [0, 0, 1, 1], [], []>} : vector<24x64xbf16>, vector<64x64xbf16>, vector<24x64xf32> -> vector<24x64xf32>
    %c6_181 = arith.constant 6 : index
    %c0_182 = arith.constant 0 : index
    %c0_183 = arith.constant 0 : index
    %383 = vector.load %arg6[%c6_181, %c0_182, %c0_183] : memref<8x1x64xf32, #tpu.memory_space<vmem>>, vector<1x1x64xf32>
    %384 = vector.shape_cast %383 : vector<1x1x64xf32> to vector<1x64xf32>
    %385 = vector.broadcast %384 : vector<1x64xf32> to vector<24x64xf32>
    %386 = arith.addf %382, %385 : vector<24x64xf32>
    %387 = vector.extract_strided_slice %386 {offsets = [0, 0], sizes = [24, 32], strides = [1, 1]} : vector<24x64xf32> to vector<24x32xf32>
    %388 = math.tanh %387 : vector<24x32xf32>
    %389 = vector.extract_strided_slice %386 {offsets = [0, 32], sizes = [24, 32], strides = [1, 1]} : vector<24x64xf32> to vector<24x32xf32>
    %390 = arith.negf %389 : vector<24x32xf32>
    %391 = math.exp %390 : vector<24x32xf32>
    %cst_184 = arith.constant 1.000000e+00 : f32
    %392 = vector.broadcast %cst_184 : f32 to vector<24x32xf32>
    %393 = arith.addf %392, %391 : vector<24x32xf32>
    %394 = arith.divf %392, %393 : vector<24x32xf32>
    %395 = arith.mulf %388, %394 : vector<24x32xf32>
    %396 = arith.truncf %395 : vector<24x32xf32> to vector<24x32xbf16>
    %397 = vector.extract_strided_slice %395 {offsets = [16, 0], sizes = [8, 32], strides = [1, 1]} : vector<24x32xf32> to vector<8x32xf32>
    %398 = arith.truncf %397 : vector<8x32xf32> to vector<8x32xbf16>
    %c6_185 = arith.constant 6 : index
    %c0_186 = arith.constant 0 : index
    %c0_187 = arith.constant 0 : index
    %399 = vector.load %arg7[%c6_185, %c0_186, %c0_187] : memref<8x32x256xbf16, #tpu.memory_space<vmem>>, vector<1x32x256xbf16>
    %400 = vector.shape_cast %399 : vector<1x32x256xbf16> to vector<32x256xbf16>
    %cst_188 = arith.constant dense<0.000000e+00> : vector<8x256xf32>
    %401 = tpu.matmul %398, %400, %cst_188 {dimension_numbers = #tpu.dot_dimension_numbers<[1], [0], [0], [1], [0, 0, 1, 1], [], []>} : vector<8x32xbf16>, vector<32x256xbf16>, vector<8x256xf32> -> vector<8x256xf32>
    %c6_189 = arith.constant 6 : index
    %c0_190 = arith.constant 0 : index
    %c0_191 = arith.constant 0 : index
    %402 = vector.load %arg8[%c6_189, %c0_190, %c0_191] : memref<8x1x256xf32, #tpu.memory_space<vmem>>, vector<1x1x256xf32>
    %403 = vector.shape_cast %402 : vector<1x1x256xf32> to vector<1x256xf32>
    %404 = vector.broadcast %403 : vector<1x256xf32> to vector<8x256xf32>
    %405 = arith.addf %401, %404 : vector<8x256xf32>
    %406 = arith.addf %345, %405 : vector<8x256xf32>
    %407 = vector.extract_strided_slice %10 {offsets = [0, 0, 0], sizes = [1, 24, 24], strides = [1, 1, 1]} : vector<4x96x96xbf16> to vector<1x24x24xbf16>
    %408 = vector.shape_cast %407 : vector<1x24x24xbf16> to vector<24x24xbf16>
    %cst_192 = arith.constant dense<0.000000e+00> : vector<24x32xf32>
    %409 = tpu.matmul %408, %396, %cst_192 {dimension_numbers = #tpu.dot_dimension_numbers<[1], [0], [0], [1], [0, 0, 1, 1], [], []>} : vector<24x24xbf16>, vector<24x32xbf16>, vector<24x32xf32> -> vector<24x32xf32>
    %410 = arith.truncf %409 : vector<24x32xf32> to vector<24x32xbf16>
    %411 = vector.extract_strided_slice %10 {offsets = [1, 0, 0], sizes = [1, 24, 24], strides = [1, 1, 1]} : vector<4x96x96xbf16> to vector<1x24x24xbf16>
    %412 = vector.shape_cast %411 : vector<1x24x24xbf16> to vector<24x24xbf16>
    %cst_193 = arith.constant dense<0.000000e+00> : vector<24x32xf32>
    %413 = tpu.matmul %412, %396, %cst_193 {dimension_numbers = #tpu.dot_dimension_numbers<[1], [0], [0], [1], [0, 0, 1, 1], [], []>} : vector<24x24xbf16>, vector<24x32xbf16>, vector<24x32xf32> -> vector<24x32xf32>
    %414 = arith.truncf %413 : vector<24x32xf32> to vector<24x32xbf16>
    %415 = vector.extract_strided_slice %10 {offsets = [2, 0, 0], sizes = [1, 24, 24], strides = [1, 1, 1]} : vector<4x96x96xbf16> to vector<1x24x24xbf16>
    %416 = vector.shape_cast %415 : vector<1x24x24xbf16> to vector<24x24xbf16>
    %cst_194 = arith.constant dense<0.000000e+00> : vector<24x32xf32>
    %417 = tpu.matmul %416, %396, %cst_194 {dimension_numbers = #tpu.dot_dimension_numbers<[1], [0], [0], [1], [0, 0, 1, 1], [], []>} : vector<24x24xbf16>, vector<24x32xbf16>, vector<24x32xf32> -> vector<24x32xf32>
    %418 = arith.truncf %417 : vector<24x32xf32> to vector<24x32xbf16>
    %419 = vector.extract_strided_slice %10 {offsets = [3, 0, 0], sizes = [1, 24, 24], strides = [1, 1, 1]} : vector<4x96x96xbf16> to vector<1x24x24xbf16>
    %420 = vector.shape_cast %419 : vector<1x24x24xbf16> to vector<24x24xbf16>
    %cst_195 = arith.constant dense<0.000000e+00> : vector<24x32xf32>
    %421 = tpu.matmul %420, %396, %cst_195 {dimension_numbers = #tpu.dot_dimension_numbers<[1], [0], [0], [1], [0, 0, 1, 1], [], []>} : vector<24x24xbf16>, vector<24x32xbf16>, vector<24x32xf32> -> vector<24x32xf32>
    %422 = arith.truncf %421 : vector<24x32xf32> to vector<24x32xbf16>
    %423 = tpu.concatenate %396, %410, %414, %418, %422 in 1 : vector<24x32xbf16>, vector<24x32xbf16>, vector<24x32xbf16>, vector<24x32xbf16>, vector<24x32xbf16> -> vector<24x160xbf16>
    %c6_196 = arith.constant 6 : index
    %c0_197 = arith.constant 0 : index
    %c0_198 = arith.constant 0 : index
    %424 = vector.load %arg9[%c6_196, %c0_197, %c0_198] : memref<8x160x32xbf16, #tpu.memory_space<vmem>>, vector<1x160x32xbf16>
    %425 = vector.shape_cast %424 : vector<1x160x32xbf16> to vector<160x32xbf16>
    %cst_199 = arith.constant dense<0.000000e+00> : vector<24x32xf32>
    %426 = tpu.matmul %423, %425, %cst_199 {dimension_numbers = #tpu.dot_dimension_numbers<[1], [0], [0], [1], [0, 0, 1, 1], [], []>} : vector<24x160xbf16>, vector<160x32xbf16>, vector<24x32xf32> -> vector<24x32xf32>
    %427 = vector.extract_strided_slice %375 {offsets = [8, 0], sizes = [24, 32], strides = [1, 1]} : vector<32x32xf32> to vector<24x32xf32>
    %c6_200 = arith.constant 6 : index
    %c0_201 = arith.constant 0 : index
    %c0_202 = arith.constant 0 : index
    %428 = vector.load %arg11[%c6_200, %c0_201, %c0_202] : memref<8x1x32xf32, #tpu.memory_space<vmem>>, vector<1x1x32xf32>
    %429 = vector.shape_cast %428 : vector<1x1x32xf32> to vector<1x32xf32>
    %430 = vector.broadcast %429 : vector<1x32xf32> to vector<24x32xf32>
    %431 = arith.mulf %427, %430 : vector<24x32xf32>
    %432 = arith.addf %426, %431 : vector<24x32xf32>
    %c6_203 = arith.constant 6 : index
    %c0_204 = arith.constant 0 : index
    %c0_205 = arith.constant 0 : index
    %433 = vector.load %arg10[%c6_203, %c0_204, %c0_205] : memref<8x1x32xf32, #tpu.memory_space<vmem>>, vector<1x1x32xf32>
    %434 = vector.shape_cast %433 : vector<1x1x32xf32> to vector<1x32xf32>
    %435 = vector.broadcast %434 : vector<1x32xf32> to vector<24x32xf32>
    %436 = arith.addf %432, %435 : vector<24x32xf32>
    %437 = vector.extract_strided_slice %436 {offsets = [0, 0], sizes = [8, 32], strides = [1, 1]} : vector<24x32xf32> to vector<8x32xf32>
    %438 = vector.extract_strided_slice %436 {offsets = [16, 0], sizes = [8, 32], strides = [1, 1]} : vector<24x32xf32> to vector<8x32xf32>
    %439 = tpu.concatenate %437, %438 in 1 : vector<8x32xf32>, vector<8x32xf32> -> vector<8x64xf32>
    %440 = arith.truncf %439 : vector<8x64xf32> to vector<8x64xbf16>
    %c7 = arith.constant 7 : index
    %c0_206 = arith.constant 0 : index
    %c0_207 = arith.constant 0 : index
    %441 = vector.load %arg5[%c7, %c0_206, %c0_207] : memref<8x64x64xbf16, #tpu.memory_space<vmem>>, vector<1x64x64xbf16>
    %442 = vector.shape_cast %441 : vector<1x64x64xbf16> to vector<64x64xbf16>
    %cst_208 = arith.constant dense<0.000000e+00> : vector<8x64xf32>
    %443 = tpu.matmul %440, %442, %cst_208 {dimension_numbers = #tpu.dot_dimension_numbers<[1], [0], [0], [1], [0, 0, 1, 1], [], []>} : vector<8x64xbf16>, vector<64x64xbf16>, vector<8x64xf32> -> vector<8x64xf32>
    %c7_209 = arith.constant 7 : index
    %c0_210 = arith.constant 0 : index
    %c0_211 = arith.constant 0 : index
    %444 = vector.load %arg6[%c7_209, %c0_210, %c0_211] : memref<8x1x64xf32, #tpu.memory_space<vmem>>, vector<1x1x64xf32>
    %445 = vector.shape_cast %444 : vector<1x1x64xf32> to vector<1x64xf32>
    %446 = vector.broadcast %445 : vector<1x64xf32> to vector<8x64xf32>
    %447 = arith.addf %443, %446 : vector<8x64xf32>
    %448 = vector.extract_strided_slice %447 {offsets = [0, 0], sizes = [8, 32], strides = [1, 1]} : vector<8x64xf32> to vector<8x32xf32>
    %449 = math.tanh %448 : vector<8x32xf32>
    %450 = vector.extract_strided_slice %447 {offsets = [0, 32], sizes = [8, 32], strides = [1, 1]} : vector<8x64xf32> to vector<8x32xf32>
    %451 = arith.negf %450 : vector<8x32xf32>
    %452 = math.exp %451 : vector<8x32xf32>
    %cst_212 = arith.constant 1.000000e+00 : f32
    %453 = vector.broadcast %cst_212 : f32 to vector<8x32xf32>
    %454 = arith.addf %453, %452 : vector<8x32xf32>
    %455 = arith.divf %453, %454 : vector<8x32xf32>
    %456 = arith.mulf %449, %455 : vector<8x32xf32>
    %457 = arith.truncf %456 : vector<8x32xf32> to vector<8x32xbf16>
    %c7_213 = arith.constant 7 : index
    %c0_214 = arith.constant 0 : index
    %c0_215 = arith.constant 0 : index
    %458 = vector.load %arg7[%c7_213, %c0_214, %c0_215] : memref<8x32x256xbf16, #tpu.memory_space<vmem>>, vector<1x32x256xbf16>
    %459 = vector.shape_cast %458 : vector<1x32x256xbf16> to vector<32x256xbf16>
    %cst_216 = arith.constant dense<0.000000e+00> : vector<8x256xf32>
    %460 = tpu.matmul %457, %459, %cst_216 {dimension_numbers = #tpu.dot_dimension_numbers<[1], [0], [0], [1], [0, 0, 1, 1], [], []>} : vector<8x32xbf16>, vector<32x256xbf16>, vector<8x256xf32> -> vector<8x256xf32>
    %c7_217 = arith.constant 7 : index
    %c0_218 = arith.constant 0 : index
    %c0_219 = arith.constant 0 : index
    %461 = vector.load %arg8[%c7_217, %c0_218, %c0_219] : memref<8x1x256xf32, #tpu.memory_space<vmem>>, vector<1x1x256xf32>
    %462 = vector.shape_cast %461 : vector<1x1x256xf32> to vector<1x256xf32>
    %463 = vector.broadcast %462 : vector<1x256xf32> to vector<8x256xf32>
    %464 = arith.addf %460, %463 : vector<8x256xf32>
    %465 = arith.addf %406, %464 : vector<8x256xf32>
    %cst_220 = arith.constant 0.000000e+00 : f32
    %466 = vector.broadcast %cst_220 : f32 to vector<8x256xf32>
    %467 = arith.maximumf %465, %466 : vector<8x256xf32>
    %468 = arith.truncf %467 : vector<8x256xf32> to vector<8x256xbf16>
    %c0_221 = arith.constant 0 : index
    %c0_222 = arith.constant 0 : index
    %469 = vector.load %arg12[%c0_221, %c0_222] : memref<256x512xbf16, #tpu.memory_space<vmem>>, vector<256x512xbf16>
    %cst_223 = arith.constant dense<0.000000e+00> : vector<8x512xf32>
    %470 = tpu.matmul %468, %469, %cst_223 {dimension_numbers = #tpu.dot_dimension_numbers<[1], [0], [0], [1], [0, 0, 1, 1], [], []>} : vector<8x256xbf16>, vector<256x512xbf16>, vector<8x512xf32> -> vector<8x512xf32>
    %c0_224 = arith.constant 0 : index
    %c0_225 = arith.constant 0 : index
    %471 = vector.load %arg13[%c0_224, %c0_225] : memref<1x512xf32, #tpu.memory_space<vmem>>, vector<1x512xf32>
    %472 = vector.broadcast %471 : vector<1x512xf32> to vector<8x512xf32>
    %473 = arith.addf %470, %472 : vector<8x512xf32>
    %cst_226 = arith.constant 0.000000e+00 : f32
    %474 = vector.broadcast %cst_226 : f32 to vector<8x512xf32>
    %475 = arith.maximumf %473, %474 : vector<8x512xf32>
    %476 = arith.truncf %475 : vector<8x512xf32> to vector<8x512xbf16>
    %c0_227 = arith.constant 0 : index
    %c0_228 = arith.constant 0 : index
    %477 = vector.load %arg14[%c0_227, %c0_228] : memref<512x12xbf16, #tpu.memory_space<vmem>>, vector<512x12xbf16>
    %cst_229 = arith.constant dense<0.000000e+00> : vector<8x12xf32>
    %478 = tpu.matmul %476, %477, %cst_229 {dimension_numbers = #tpu.dot_dimension_numbers<[1], [0], [0], [1], [0, 0, 1, 1], [], []>} : vector<8x512xbf16>, vector<512x12xbf16>, vector<8x12xf32> -> vector<8x12xf32>
    %c0_230 = arith.constant 0 : index
    %c0_231 = arith.constant 0 : index
    %479 = vector.load %arg15[%c0_230, %c0_231] : memref<1x12xf32, #tpu.memory_space<vmem>>, vector<1x12xf32>
    %480 = vector.broadcast %479 : vector<1x12xf32> to vector<8x12xf32>
    %481 = arith.addf %478, %480 : vector<8x12xf32>
    %c0_232 = arith.constant 0 : index
    %c0_233 = arith.constant 0 : index
    %c0_234 = arith.constant 0 : index
    %482 = vector.load %arg16[%c0_232, %c0_233, %c0_234] : memref<1x8x12xf32, #tpu.memory_space<vmem>>, vector<1x8x12xf32>
    %483 = vector.shape_cast %482 : vector<1x8x12xf32> to vector<8x12xf32>
    %484 = vector.shape_cast %481 : vector<8x12xf32> to vector<1x8x12xf32>
    tpu.vector_store %arg16[%c0_232, %c0_233, %c0_234], %484 {strides = array<i32>} : memref<1x8x12xf32, #tpu.memory_space<vmem>>, vector<1x8x12xf32>,
    return
  }
  func.func @transform_0(%arg0: i32) -> (i32, i32, i32) {
    %c0_i32 = arith.constant 0 : i32
    %c0_i32_0 = arith.constant 0 : i32
    %c0_i32_1 = arith.constant 0 : i32
    return %arg0, %c0_i32, %c0_i32_0 : i32, i32, i32
  }
  func.func @transform_1(%arg0: i32) -> (i32, i32, i32, i32) {
    %c0_i32 = arith.constant 0 : i32
    %c0_i32_0 = arith.constant 0 : i32
    %c0_i32_1 = arith.constant 0 : i32
    %c0_i32_2 = arith.constant 0 : i32
    return %arg0, %c0_i32, %c0_i32_0, %c0_i32_1 : i32, i32, i32, i32
  }
  func.func @transform_2(%arg0: i32) -> (i32, i32) {
    %c0_i32 = arith.constant 0 : i32
    %c0_i32_0 = arith.constant 0 : i32
    %c0_i32_1 = arith.constant 0 : i32
    return %c0_i32, %c0_i32_0 : i32, i32
  }
  func.func @transform_3(%arg0: i32) -> (i32, i32) {
    %c0_i32 = arith.constant 0 : i32
    %c0_i32_0 = arith.constant 0 : i32
    %c0_i32_1 = arith.constant 0 : i32
    return %c0_i32, %c0_i32_0 : i32, i32
  }
  func.func @transform_4(%arg0: i32) -> (i32, i32, i32) {
    %c0_i32 = arith.constant 0 : i32
    %c0_i32_0 = arith.constant 0 : i32
    %c0_i32_1 = arith.constant 0 : i32
    %c0_i32_2 = arith.constant 0 : i32
    return %c0_i32, %c0_i32_0, %c0_i32_1 : i32, i32, i32
  }
  func.func @transform_5(%arg0: i32) -> (i32, i32, i32) {
    %c0_i32 = arith.constant 0 : i32
    %c0_i32_0 = arith.constant 0 : i32
    %c0_i32_1 = arith.constant 0 : i32
    %c0_i32_2 = arith.constant 0 : i32
    return %c0_i32, %c0_i32_0, %c0_i32_1 : i32, i32, i32
  }
  func.func @transform_6(%arg0: i32) -> (i32, i32, i32) {
    %c0_i32 = arith.constant 0 : i32
    %c0_i32_0 = arith.constant 0 : i32
    %c0_i32_1 = arith.constant 0 : i32
    %c0_i32_2 = arith.constant 0 : i32
    return %c0_i32, %c0_i32_0, %c0_i32_1 : i32, i32, i32
  }
  func.func @transform_7(%arg0: i32) -> (i32, i32, i32) {
    %c0_i32 = arith.constant 0 : i32
    %c0_i32_0 = arith.constant 0 : i32
    %c0_i32_1 = arith.constant 0 : i32
    %c0_i32_2 = arith.constant 0 : i32
    return %c0_i32, %c0_i32_0, %c0_i32_1 : i32, i32, i32
  }
  func.func @transform_8(%arg0: i32) -> (i32, i32, i32) {
    %c0_i32 = arith.constant 0 : i32
    %c0_i32_0 = arith.constant 0 : i32
    %c0_i32_1 = arith.constant 0 : i32
    %c0_i32_2 = arith.constant 0 : i32
    return %c0_i32, %c0_i32_0, %c0_i32_1 : i32, i32, i32
  }
  func.func @transform_9(%arg0: i32) -> (i32, i32, i32) {
    %c0_i32 = arith.constant 0 : i32
    %c0_i32_0 = arith.constant 0 : i32
    %c0_i32_1 = arith.constant 0 : i32
    %c0_i32_2 = arith.constant 0 : i32
    return %c0_i32, %c0_i32_0, %c0_i32_1 : i32, i32, i32
  }
  func.func @transform_10(%arg0: i32) -> (i32, i32, i32) {
    %c0_i32 = arith.constant 0 : i32
    %c0_i32_0 = arith.constant 0 : i32
    %c0_i32_1 = arith.constant 0 : i32
    %c0_i32_2 = arith.constant 0 : i32
    return %c0_i32, %c0_i32_0, %c0_i32_1 : i32, i32, i32
  }
  func.func @transform_11(%arg0: i32) -> (i32, i32) {
    %c0_i32 = arith.constant 0 : i32
    %c0_i32_0 = arith.constant 0 : i32
    %c0_i32_1 = arith.constant 0 : i32
    return %c0_i32, %c0_i32_0 : i32, i32
  }
  func.func @transform_12(%arg0: i32) -> (i32, i32) {
    %c0_i32 = arith.constant 0 : i32
    %c0_i32_0 = arith.constant 0 : i32
    %c0_i32_1 = arith.constant 0 : i32
    return %c0_i32, %c0_i32_0 : i32, i32
  }
  func.func @transform_13(%arg0: i32) -> (i32, i32) {
    %c0_i32 = arith.constant 0 : i32
    %c0_i32_0 = arith.constant 0 : i32
    %c0_i32_1 = arith.constant 0 : i32
    return %c0_i32, %c0_i32_0 : i32, i32
  }
  func.func @transform_14(%arg0: i32) -> (i32, i32) {
    %c0_i32 = arith.constant 0 : i32
    %c0_i32_0 = arith.constant 0 : i32
    %c0_i32_1 = arith.constant 0 : i32
    return %c0_i32, %c0_i32_0 : i32, i32
  }
  func.func @transform_15(%arg0: i32) -> (i32, i32, i32) {
    %c0_i32 = arith.constant 0 : i32
    %c0_i32_0 = arith.constant 0 : i32
    %c0_i32_1 = arith.constant 0 : i32
    return %arg0, %c0_i32, %c0_i32_0 : i32, i32, i32
  }
}

</mosaic_0001>

<llo_original>
// kernel: tpu_custom_call.1
$region0: #{tpu_custom_call.1}
  #allocation0 [shape = 'u32[]', space=smem, size = 0x4, offset = 0x4, fixed_abs, tag = 'smem constant byte address 0x4 - core index']
  #allocation1 [shape = 'u32[144,128]{1,0:T(1,128)}', space=vmem, size = 0x12000, scoped, tag = 'internal scratch']
  %s0 = inlined_call_operand.vmem [shape: f32[2,104,1], index: 0, kind: input, shape index: {}]
  %s1 = inlined_call_operand.vmem [shape: bf16[2,4,96,96], index: 1, kind: input, shape index: {}]
  %s2 = inlined_call_operand.vmem [shape: f32[1,32], index: 2, kind: input, shape index: {}]
  %s3 = inlined_call_operand.hbm [shape: f32[1,32], index: 3, kind: input, shape index: {}]
  %s4 = inlined_call_operand.vmem [shape: bf16[8,64,64], index: 4, kind: input, shape index: {}]
  %s5 = inlined_call_operand.hbm [shape: f32[8,1,64], index: 5, kind: input, shape index: {}]
  %s6 = inlined_call_operand.hbm [shape: bf16[8,32,256], index: 6, kind: input, shape index: {}]
  %s7 = inlined_call_operand.hbm [shape: f32[8,1,256], index: 7, kind: input, shape index: {}]
  %s8 = inlined_call_operand.vmem [shape: bf16[8,160,32], index: 8, kind: input, shape index: {}]
  %s9 = inlined_call_operand.hbm [shape: f32[8,1,32], index: 9, kind: input, shape index: {}]
  %s10 = inlined_call_operand.hbm [shape: f32[8,1,32], index: 10, kind: input, shape index: {}]
  %s11 = inlined_call_operand.vmem [shape: bf16[256,512], index: 11, kind: input, shape index: {}]
  %s12 = inlined_call_operand.hbm [shape: f32[1,512], index: 12, kind: input, shape index: {}]
  %s13 = inlined_call_operand.vmem [shape: bf16[512,12], index: 13, kind: input, shape index: {}]
  %s14 = inlined_call_operand.vmem [shape: f32[1,12], index: 14, kind: input, shape index: {}]
  %s15 = inlined_call_operand.hbm [shape: f32[2,8,12], index: 15, kind: output, shape index: {}]
  %s16 = sld [smem:[#allocation0]]
  $region121: #{tpu_custom_call.1} parent=0
    _
  %s18 = ssub.s32 1, %s16
  %s19 = scalar_select 0, %s18, %s16
  $region1: #{tpu_custom_call.1} parent=0
    #allocation2 [shape = 'u8[512]{0}', space=vmem, size = 0x400, scoped, tag = 'input window, operand 3, single buffered']
    #allocation3 [shape = 's32[2]{0}', space=sflag, size = 0x8, scoped, tag = 'scoped memory for tpu_custom_call.1']
    #allocation4 [shape = 's32[2]{0}', space=sflag, size = 0x8, scoped, tag = 'scoped memory for tpu_custom_call.1']
    #allocation5 [shape = 'u8[4096]{0}', space=vmem, size = 0x1000, scoped, tag = 'input window, operand 5, single buffered']
    #allocation6 [shape = 's32[1]{0}', space=sflag, size = 0x4, scoped, tag = 'scoped memory for tpu_custom_call.1']
    #allocation7 [shape = 'u8[131072]{0}', space=vmem, size = 0x20000, scoped, tag = 'input window, operand 6, single buffered']
    #allocation8 [shape = 'u8[8192]{0}', space=vmem, size = 0x2000, scoped, tag = 'input window, operand 7, single buffered']
    #allocation9 [shape = 's32[1]{0}', space=sflag, size = 0x4, scoped, tag = 'scoped memory for tpu_custom_call.1']
    #allocation10 [shape = 'u8[4096]{0}', space=vmem, size = 0x1000, scoped, tag = 'input window, operand 9, single buffered']
    #allocation11 [shape = 'u8[4096]{0}', space=vmem, size = 0x1000, scoped, tag = 'input window, operand 10, single buffered']
    #allocation12 [shape = 's32[1]{0}', space=sflag, size = 0x4, scoped, tag = 'scoped memory for tpu_custom_call.1']
    #allocation13 [shape = 'u8[2048]{0}', space=vmem, size = 0x800, scoped, tag = 'input window, operand 12, single buffered']
    #allocation14 [shape = 'u8[8192]{0}', space=vmem, size = 0x2000, scoped, tag = 'output window, operand 0']
    %20 = vsyncpa [#allocation3], 0
    %21 = vsyncpa [#allocation6], 0
    %22 = vsyncpa [#allocation9], 0
    %23 = vsyncpa [#allocation12], 0
    %24 = vsyncpa [#allocation4], 0
    %s25 = scalar_lea.sflag [#allocation4], 1
    %26 = vsyncpa %s25, 0
    loop: start=0, step=1, limit=4
    $region2: #{tpu_custom_call.1} parent=1 // loop_pre_header
      _
    $region3: #{tpu_custom_call.1} parent=1 // loop_header
      %s28 = sphi 0, %s32
      %p29 = scmp.ge.s32.totalorder %s28, 4
      %s38 = sphi 0, %s40
      %s41 = sphi 0, %s38
      %s42 = sphi 0, %s41
      %s58 = sphi 0, %s42
      %s64 = sphi 0, %s66
      %s67 = sphi 0, %s64
      %s68 = sphi 0, %s67
      %s84 = sphi 0, %s68
      %s88 = sphi 0, %s88
      %s90 = sphi 0, %s88
      %s91 = sphi 0, %s90
      %s105 = sphi 0, %s91
      %s109 = sphi 0, %s109
      %s111 = sphi 0, %s109
      %s112 = sphi 0, %s111
      %s126 = sphi 0, %s112
      %s130 = sphi 0, %s130
      %s132 = sphi 0, %s130
      %s133 = sphi 0, %s132
      %s147 = sphi 0, %s133
      %s151 = sphi 0, %s151
      %s153 = sphi 0, %s151
      %s154 = sphi 0, %s153
      %s168 = sphi 0, %s154
      %s172 = sphi 0, %s172
      %s174 = sphi 0, %s172
      %s175 = sphi 0, %s174
      %s189 = sphi 0, %s175
      %s193 = sphi 0, %s193
      %s195 = sphi 0, %s193
      %s196 = sphi 0, %s195
      %s210 = sphi 0, %s196
      %s214 = sphi 0, %s214
      %s216 = sphi 0, %s214
      %s217 = sphi 0, %s216
      %s231 = sphi 0, %s217
      %s235 = sphi 0, %s235
      %s237 = sphi 0, %s235
      %s238 = sphi 0, %s237
      %s252 = sphi 0, %s238
      %s256 = sphi 0, %s256
      %s258 = sphi 0, %s256
      %s259 = sphi 0, %s258
      %s273 = sphi 0, %s259
      %s277 = sphi 0, %s277
      %s279 = sphi 0, %s277
      %s280 = sphi 0, %s279
      %s294 = sphi 0, %s280
      %s298 = sphi 0, %s298
      %s300 = sphi 0, %s298
      %s301 = sphi 0, %s300
      %s315 = sphi 0, %s301
      %s319 = sphi 0, %s319
      %s321 = sphi 0, %s319
      %s322 = sphi 0, %s321
      %s336 = sphi 0, %s322
      %s340 = sphi 0, %s340
      %s342 = sphi 0, %s340
      %s343 = sphi 0, %s342
      %s357 = sphi 0, %s343
      %s363 = sphi 0, %s365
      %s366 = sphi 0, %s363
      %s367 = sphi 0, %s366
      %s383 = sphi 0, %s367
    $region4: #{tpu_custom_call.1} parent=1 // loop_header_branch
      %31 = sbr.rel (%p29) target = $region8
    $region5: #{tpu_custom_call.1} parent=1 // loop_body
      %s33 = ssub.s32 %s28, 1
      %s34 = ssub.s32 %s28, 2
      %s35 = sadd.s32 %s28, 1
      %s36 = ssub.s32 %s28, %s35
      %p37 = scmp.eq.s32.totalorder %s36, 0
      %s39 = sadd.s32 %s38, 1
      %s40 = scalar_select %p37, %s38, %s39
      %p43 = pneg %p37
      %p44 = scmp.eq.s32.totalorder %s28, 1
      %p45 = por %p43, %p44
      %p46 = scmp.ne.s32.totalorder %s38, %s41
      %p47 = scmp.eq.s32.totalorder %s28, 0
      %p48 = por %p46, %p47
      %p49 = scmp.ne.s32.totalorder %s38, %s41
      %p50 = scmp.eq.s32.totalorder %s33, 1
      %p51 = por %p49, %p50
      %p52 = scmp.ne.s32.totalorder %s41, %s42
      %p53 = scmp.eq.s32.totalorder %s33, 0
      %p54 = por %p52, %p53
      %p55 = scmp.ne.s32.totalorder %s41, %s42
      %p56 = scmp.eq.s32.totalorder %s34, 1
      %p57 = por %p55, %p56
      %p59 = scmp.ne.s32.totalorder %s42, %s58
      %p60 = scmp.eq.s32.totalorder %s34, 0
      %p61 = por %p59, %p60
      %s62 = ssub.s32 %s28, %s35
      %p63 = scmp.eq.s32.totalorder %s62, 0
      %s65 = sadd.s32 %s64, 1
      %s66 = scalar_select %p63, %s64, %s65
      %p69 = pneg %p63
      %p70 = scmp.eq.s32.totalorder %s28, 1
      %p71 = por %p69, %p70
      %p72 = scmp.ne.s32.totalorder %s64, %s67
      %p73 = scmp.eq.s32.totalorder %s28, 0
      %p74 = por %p72, %p73
      %p75 = scmp.ne.s32.totalorder %s64, %s67
      %p76 = scmp.eq.s32.totalorder %s33, 1
      %p77 = por %p75, %p76
      %p78 = scmp.ne.s32.totalorder %s67, %s68
      %p79 = scmp.eq.s32.totalorder %s33, 0
      %p80 = por %p78, %p79
      %p81 = scmp.ne.s32.totalorder %s67, %s68
      %p82 = scmp.eq.s32.totalorder %s34, 1
      %p83 = por %p81, %p82
      %p85 = scmp.ne.s32.totalorder %s68, %s84
      %p86 = scmp.eq.s32.totalorder %s34, 0
      %p87 = por %p85, %p86
      %s89 = sadd.s32 %s88, 1
      %p92 = scmp.eq.s32.totalorder %s28, 1
      %p93 = scmp.ne.s32.totalorder %s88, %s90
      %p94 = scmp.eq.s32.totalorder %s28, 0
      %p95 = por %p93, %p94
      %p96 = scmp.ne.s32.totalorder %s88, %s90
      %p97 = scmp.eq.s32.totalorder %s33, 1
      %p98 = por %p96, %p97
      %p99 = scmp.ne.s32.totalorder %s90, %s91
      %p100 = scmp.eq.s32.totalorder %s33, 0
      %p101 = por %p99, %p100
      %p102 = scmp.ne.s32.totalorder %s90, %s91
      %p103 = scmp.eq.s32.totalorder %s34, 1
      %p104 = por %p102, %p103
      %p106 = scmp.ne.s32.totalorder %s91, %s105
      %p107 = scmp.eq.s32.totalorder %s34, 0
      %p108 = por %p106, %p107
      %s110 = sadd.s32 %s109, 1
      %p113 = scmp.eq.s32.totalorder %s28, 1
      %p114 = scmp.ne.s32.totalorder %s109, %s111
      %p115 = scmp.eq.s32.totalorder %s28, 0
      %p116 = por %p114, %p115
      %p117 = scmp.ne.s32.totalorder %s109, %s111
      %p118 = scmp.eq.s32.totalorder %s33, 1
      %p119 = por %p117, %p118
      %p120 = scmp.ne.s32.totalorder %s111, %s112
      %p121 = scmp.eq.s32.totalorder %s33, 0
      %p122 = por %p120, %p121
      %p123 = scmp.ne.s32.totalorder %s111, %s112
      %p124 = scmp.eq.s32.totalorder %s34, 1
      %p125 = por %p123, %p124
      %p127 = scmp.ne.s32.totalorder %s112, %s126
      %p128 = scmp.eq.s32.totalorder %s34, 0
      %p129 = por %p127, %p128
      %s131 = sadd.s32 %s130, 1
      %p134 = scmp.eq.s32.totalorder %s28, 1
      %p135 = scmp.ne.s32.totalorder %s130, %s132
      %p136 = scmp.eq.s32.totalorder %s28, 0
      %p137 = por %p135, %p136
      %p138 = scmp.ne.s32.totalorder %s130, %s132
      %p139 = scmp.eq.s32.totalorder %s33, 1
      %p140 = por %p138, %p139
      %p141 = scmp.ne.s32.totalorder %s132, %s133
      %p142 = scmp.eq.s32.totalorder %s33, 0
      %p143 = por %p141, %p142
      %p144 = scmp.ne.s32.totalorder %s132, %s133
      %p145 = scmp.eq.s32.totalorder %s34, 1
      %p146 = por %p144, %p145
      %p148 = scmp.ne.s32.totalorder %s133, %s147
      %p149 = scmp.eq.s32.totalorder %s34, 0
      %p150 = por %p148, %p149
      %s152 = sadd.s32 %s151, 1
      %p155 = scmp.eq.s32.totalorder %s28, 1
      %p156 = scmp.ne.s32.totalorder %s151, %s153
      %p157 = scmp.eq.s32.totalorder %s28, 0
      %p158 = por %p156, %p157
      %p159 = scmp.ne.s32.totalorder %s151, %s153
      %p160 = scmp.eq.s32.totalorder %s33, 1
      %p161 = por %p159, %p160
      %p162 = scmp.ne.s32.totalorder %s153, %s154
      %p163 = scmp.eq.s32.totalorder %s33, 0
      %p164 = por %p162, %p163
      %p165 = scmp.ne.s32.totalorder %s153, %s154
      %p166 = scmp.eq.s32.totalorder %s34, 1
      %p167 = por %p165, %p166
      %p169 = scmp.ne.s32.totalorder %s154, %s168
      %p170 = scmp.eq.s32.totalorder %s34, 0
      %p171 = por %p169, %p170
      %s173 = sadd.s32 %s172, 1
      %p176 = scmp.eq.s32.totalorder %s28, 1
      %p177 = scmp.ne.s32.totalorder %s172, %s174
      %p178 = scmp.eq.s32.totalorder %s28, 0
      %p179 = por %p177, %p178
      %p180 = scmp.ne.s32.totalorder %s172, %s174
      %p181 = scmp.eq.s32.totalorder %s33, 1
      %p182 = por %p180, %p181
      %p183 = scmp.ne.s32.totalorder %s174, %s175
      %p184 = scmp.eq.s32.totalorder %s33, 0
      %p185 = por %p183, %p184
      %p186 = scmp.ne.s32.totalorder %s174, %s175
      %p187 = scmp.eq.s32.totalorder %s34, 1
      %p188 = por %p186, %p187
      %p190 = scmp.ne.s32.totalorder %s175, %s189
      %p191 = scmp.eq.s32.totalorder %s34, 0
      %p192 = por %p190, %p191
      %s194 = sadd.s32 %s193, 1
      %p197 = scmp.eq.s32.totalorder %s28, 1
      %p198 = scmp.ne.s32.totalorder %s193, %s195
      %p199 = scmp.eq.s32.totalorder %s28, 0
      %p200 = por %p198, %p199
      %p201 = scmp.ne.s32.totalorder %s193, %s195
      %p202 = scmp.eq.s32.totalorder %s33, 1
      %p203 = por %p201, %p202
      %p204 = scmp.ne.s32.totalorder %s195, %s196
      %p205 = scmp.eq.s32.totalorder %s33, 0
      %p206 = por %p204, %p205
      %p207 = scmp.ne.s32.totalorder %s195, %s196
      %p208 = scmp.eq.s32.totalorder %s34, 1
      %p209 = por %p207, %p208
      %p211 = scmp.ne.s32.totalorder %s196, %s210
      %p212 = scmp.eq.s32.totalorder %s34, 0
      %p213 = por %p211, %p212
      %s215 = sadd.s32 %s214, 1
      %p218 = scmp.eq.s32.totalorder %s28, 1
      %p219 = scmp.ne.s32.totalorder %s214, %s216
      %p220 = scmp.eq.s32.totalorder %s28, 0
      %p221 = por %p219, %p220
      %p222 = scmp.ne.s32.totalorder %s214, %s216
      %p223 = scmp.eq.s32.totalorder %s33, 1
      %p224 = por %p222, %p223
      %p225 = scmp.ne.s32.totalorder %s216, %s217
      %p226 = scmp.eq.s32.totalorder %s33, 0
      %p227 = por %p225, %p226
      %p228 = scmp.ne.s32.totalorder %s216, %s217
      %p229 = scmp.eq.s32.totalorder %s34, 1
      %p230 = por %p228, %p229
      %p232 = scmp.ne.s32.totalorder %s217, %s231
      %p233 = scmp.eq.s32.totalorder %s34, 0
      %p234 = por %p232, %p233
      %s236 = sadd.s32 %s235, 1
      %p239 = scmp.eq.s32.totalorder %s28, 1
      %p240 = scmp.ne.s32.totalorder %s235, %s237
      %p241 = scmp.eq.s32.totalorder %s28, 0
      %p242 = por %p240, %p241
      %p243 = scmp.ne.s32.totalorder %s235, %s237
      %p244 = scmp.eq.s32.totalorder %s33, 1
      %p245 = por %p243, %p244
      %p246 = scmp.ne.s32.totalorder %s237, %s238
      %p247 = scmp.eq.s32.totalorder %s33, 0
      %p248 = por %p246, %p247
      %p249 = scmp.ne.s32.totalorder %s237, %s238
      %p250 = scmp.eq.s32.totalorder %s34, 1
      %p251 = por %p249, %p250
      %p253 = scmp.ne.s32.totalorder %s238, %s252
      %p254 = scmp.eq.s32.totalorder %s34, 0
      %p255 = por %p253, %p254
      %s257 = sadd.s32 %s256, 1
      %p260 = scmp.eq.s32.totalorder %s28, 1
      %p261 = scmp.ne.s32.totalorder %s256, %s258
      %p262 = scmp.eq.s32.totalorder %s28, 0
      %p263 = por %p261, %p262
      %p264 = scmp.ne.s32.totalorder %s256, %s258
      %p265 = scmp.eq.s32.totalorder %s33, 1
      %p266 = por %p264, %p265
      %p267 = scmp.ne.s32.totalorder %s258, %s259
      %p268 = scmp.eq.s32.totalorder %s33, 0
      %p269 = por %p267, %p268
      %p270 = scmp.ne.s32.totalorder %s258, %s259
      %p271 = scmp.eq.s32.totalorder %s34, 1
      %p272 = por %p270, %p271
      %p274 = scmp.ne.s32.totalorder %s259, %s273
      %p275 = scmp.eq.s32.totalorder %s34, 0
      %p276 = por %p274, %p275
      %s278 = sadd.s32 %s277, 1
      %p281 = scmp.eq.s32.totalorder %s28, 1
      %p282 = scmp.ne.s32.totalorder %s277, %s279
      %p283 = scmp.eq.s32.totalorder %s28, 0
      %p284 = por %p282, %p283
      %p285 = scmp.ne.s32.totalorder %s277, %s279
      %p286 = scmp.eq.s32.totalorder %s33, 1
      %p287 = por %p285, %p286
      %p288 = scmp.ne.s32.totalorder %s279, %s280
      %p289 = scmp.eq.s32.totalorder %s33, 0
      %p290 = por %p288, %p289
      %p291 = scmp.ne.s32.totalorder %s279, %s280
      %p292 = scmp.eq.s32.totalorder %s34, 1
      %p293 = por %p291, %p292
      %p295 = scmp.ne.s32.totalorder %s280, %s294
      %p296 = scmp.eq.s32.totalorder %s34, 0
      %p297 = por %p295, %p296
      %s299 = sadd.s32 %s298, 1
      %p302 = scmp.eq.s32.totalorder %s28, 1
      %p303 = scmp.ne.s32.totalorder %s298, %s300
      %p304 = scmp.eq.s32.totalorder %s28, 0
      %p305 = por %p303, %p304
      %p306 = scmp.ne.s32.totalorder %s298, %s300
      %p307 = scmp.eq.s32.totalorder %s33, 1
      %p308 = por %p306, %p307
      %p309 = scmp.ne.s32.totalorder %s300, %s301
      %p310 = scmp.eq.s32.totalorder %s33, 0
      %p311 = por %p309, %p310
      %p312 = scmp.ne.s32.totalorder %s300, %s301
      %p313 = scmp.eq.s32.totalorder %s34, 1
      %p314 = por %p312, %p313
      %p316 = scmp.ne.s32.totalorder %s301, %s315
      %p317 = scmp.eq.s32.totalorder %s34, 0
      %p318 = por %p316, %p317
      %s320 = sadd.s32 %s319, 1
      %p323 = scmp.eq.s32.totalorder %s28, 1
      %p324 = scmp.ne.s32.totalorder %s319, %s321
      %p325 = scmp.eq.s32.totalorder %s28, 0
      %p326 = por %p324, %p325
      %p327 = scmp.ne.s32.totalorder %s319, %s321
      %p328 = scmp.eq.s32.totalorder %s33, 1
      %p329 = por %p327, %p328
      %p330 = scmp.ne.s32.totalorder %s321, %s322
      %p331 = scmp.eq.s32.totalorder %s33, 0
      %p332 = por %p330, %p331
      %p333 = scmp.ne.s32.totalorder %s321, %s322
      %p334 = scmp.eq.s32.totalorder %s34, 1
      %p335 = por %p333, %p334
      %p337 = scmp.ne.s32.totalorder %s322, %s336
      %p338 = scmp.eq.s32.totalorder %s34, 0
      %p339 = por %p337, %p338
      %s341 = sadd.s32 %s340, 1
      %p344 = scmp.eq.s32.totalorder %s28, 1
      %p345 = scmp.ne.s32.totalorder %s340, %s342
      %p346 = scmp.eq.s32.totalorder %s28, 0
      %p347 = por %p345, %p346
      %p348 = scmp.ne.s32.totalorder %s340, %s342
      %p349 = scmp.eq.s32.totalorder %s33, 1
      %p350 = por %p348, %p349
      %p351 = scmp.ne.s32.totalorder %s342, %s343
      %p352 = scmp.eq.s32.totalorder %s33, 0
      %p353 = por %p351, %p352
      %p354 = scmp.ne.s32.totalorder %s342, %s343
      %p355 = scmp.eq.s32.totalorder %s34, 1
      %p356 = por %p354, %p355
      %p358 = scmp.ne.s32.totalorder %s343, %s357
      %p359 = scmp.eq.s32.totalorder %s34, 0
      %p360 = por %p358, %p359
      %s361 = ssub.s32 %s28, %s35
      %p362 = scmp.eq.s32.totalorder %s361, 0
      %s364 = sadd.s32 %s363, 1
      %s365 = scalar_select %p362, %s363, %s364
      %p368 = pneg %p362
      %p369 = scmp.eq.s32.totalorder %s28, 1
      %p370 = por %p368, %p369
      %p371 = scmp.ne.s32.totalorder %s363, %s366
      %p372 = scmp.eq.s32.totalorder %s28, 0
      %p373 = por %p371, %p372
      %p374 = scmp.ne.s32.totalorder %s363, %s366
      %p375 = scmp.eq.s32.totalorder %s33, 1
      %p376 = por %p374, %p375
      %p377 = scmp.ne.s32.totalorder %s366, %s367
      %p378 = scmp.eq.s32.totalorder %s33, 0
      %p379 = por %p377, %p378
      %p380 = scmp.ne.s32.totalorder %s366, %s367
      %p381 = scmp.eq.s32.totalorder %s34, 1
      %p382 = por %p380, %p381
      %p384 = scmp.ne.s32.totalorder %s367, %s383
      %p385 = scmp.eq.s32.totalorder %s34, 0
      %p386 = por %p384, %p385
      %p387 = scmp.le.s32.totalorder 1, %s28
      %p388 = scmp.lt.s32.totalorder %s28, 3
      %p389 = pnand %p387, %p388
      %p390 = pneg %p389
      // Predicated region
      $region9: #{tpu_custom_call.1} parent=5 // pred_check
        _
      $region10: #{tpu_custom_call.1} parent=5 // pred_check_branch
        %392 = sbr.rel (%p389) target = $region12
      $region11: #{tpu_custom_call.1} parent=5 // pred_region
        %s393 = ssub.s32 %s28, 1
        // Predicated region
        $region13: #{tpu_custom_call.1} parent=11 // pred_check
          %p394 = pneg %p101
        $region14: #{tpu_custom_call.1} parent=11 // pred_check_branch
          %396 = sbr.rel (%p394) target = $region16
        $region15: #{tpu_custom_call.1} parent=11 // pred_region
          _
        $region16: #{tpu_custom_call.1} parent=11 // pred_fallthru
          _
        // Predicated region
        $region17: #{tpu_custom_call.1} parent=11 // pred_check
          %p397 = pneg %p122
        $region18: #{tpu_custom_call.1} parent=11 // pred_check_branch
          %399 = sbr.rel (%p397) target = $region20
        $region19: #{tpu_custom_call.1} parent=11 // pred_region
          %s401 = ssub.s32 16, 16
          %402 = vsyncadd [#allocation3], %s401
          %s404 = sshll.u32 [#allocation2], 4
          %s405 = int_to_ptr.vmem [resolvable:$true] %s404
          %407 = dma.hbm_to_vmem [thread:$0]  %s3, 16, %s405, [#allocation3]
        $region20: #{tpu_custom_call.1} parent=11 // pred_fallthru
          _
        // Predicated region
        $region21: #{tpu_custom_call.1} parent=11 // pred_check
          %p408 = pneg %p143
        $region22: #{tpu_custom_call.1} parent=11 // pred_check_branch
          %410 = sbr.rel (%p408) target = $region24
        $region23: #{tpu_custom_call.1} parent=11 // pred_region
          _
        $region24: #{tpu_custom_call.1} parent=11 // pred_fallthru
          _
        // Predicated region
        $region25: #{tpu_custom_call.1} parent=11 // pred_check
          %p411 = pneg %p164
        $region26: #{tpu_custom_call.1} parent=11 // pred_check_branch
          %413 = sbr.rel (%p411) target = $region28
        $region27: #{tpu_custom_call.1} parent=11 // pred_region
          %s415 = ssub.s32 128, 128
          %416 = vsyncadd [#allocation6], %s415
          %s417 = sshll.u32 [#allocation5], 4
          %s418 = int_to_ptr.vmem [resolvable:$true] %s417
          %423 = dma.hbm_to_vmem [thread:$0]  %s5, 128, %s418, [#allocation6], 16, 16, 1
        $region28: #{tpu_custom_call.1} parent=11 // pred_fallthru
          _
        // Predicated region
        $region29: #{tpu_custom_call.1} parent=11 // pred_check
          %p424 = pneg %p185
        $region30: #{tpu_custom_call.1} parent=11 // pred_check_branch
          %426 = sbr.rel (%p424) target = $region32
        $region31: #{tpu_custom_call.1} parent=11 // pred_region
          %s428 = ssub.s32 4096, 4096
          %429 = vsyncadd [#allocation6], %s428
          %s430 = sshll.u32 [#allocation7], 4
          %s431 = int_to_ptr.vmem [resolvable:$true] %s430
          %436 = dma.hbm_to_vmem [thread:$0]  %s6, 4096, %s431, [#allocation6], 128, 128, 8
        $region32: #{tpu_custom_call.1} parent=11 // pred_fallthru
          _
        // Predicated region
        $region33: #{tpu_custom_call.1} parent=11 // pred_check
          %p437 = pneg %p206
        $region34: #{tpu_custom_call.1} parent=11 // pred_check_branch
          %439 = sbr.rel (%p437) target = $region36
        $region35: #{tpu_custom_call.1} parent=11 // pred_region
          %s441 = ssub.s32 256, 256
          %442 = vsyncadd [#allocation9], %s441
          %s443 = sshll.u32 [#allocation8], 4
          %s444 = int_to_ptr.vmem [resolvable:$true] %s443
          %449 = dma.hbm_to_vmem [thread:$0]  %s7, 256, %s444, [#allocation9], 32, 32, 2
        $region36: #{tpu_custom_call.1} parent=11 // pred_fallthru
          _
        // Predicated region
        $region37: #{tpu_custom_call.1} parent=11 // pred_check
          %p450 = pneg %p227
        $region38: #{tpu_custom_call.1} parent=11 // pred_check_branch
          %452 = sbr.rel (%p450) target = $region40
        $region39: #{tpu_custom_call.1} parent=11 // pred_region
          _
        $region40: #{tpu_custom_call.1} parent=11 // pred_fallthru
          _
        // Predicated region
        $region41: #{tpu_custom_call.1} parent=11 // pred_check
          %p453 = pneg %p248
        $region42: #{tpu_custom_call.1} parent=11 // pred_check_branch
          %455 = sbr.rel (%p453) target = $region44
        $region43: #{tpu_custom_call.1} parent=11 // pred_region
          %s457 = ssub.s32 128, 128
          %458 = vsyncadd [#allocation9], %s457
          %s459 = sshll.u32 [#allocation10], 4
          %s460 = int_to_ptr.vmem [resolvable:$true] %s459
          %465 = dma.hbm_to_vmem [thread:$0]  %s9, 128, %s460, [#allocation9], 16, 16, 1
        $region44: #{tpu_custom_call.1} parent=11 // pred_fallthru
          _
        // Predicated region
        $region45: #{tpu_custom_call.1} parent=11 // pred_check
          %p466 = pneg %p269
        $region46: #{tpu_custom_call.1} parent=11 // pred_check_branch
          %468 = sbr.rel (%p466) target = $region48
        $region47: #{tpu_custom_call.1} parent=11 // pred_region
          %s470 = ssub.s32 128, 128
          %471 = vsyncadd [#allocation12], %s470
          %s472 = sshll.u32 [#allocation11], 4
          %s473 = int_to_ptr.vmem [resolvable:$true] %s472
          %478 = dma.hbm_to_vmem [thread:$0]  %s10, 128, %s473, [#allocation12], 16, 16, 1
        $region48: #{tpu_custom_call.1} parent=11 // pred_fallthru
          _
        // Predicated region
        $region49: #{tpu_custom_call.1} parent=11 // pred_check
          %p479 = pneg %p290
        $region50: #{tpu_custom_call.1} parent=11 // pred_check_branch
          %481 = sbr.rel (%p479) target = $region52
        $region51: #{tpu_custom_call.1} parent=11 // pred_region
          _
        $region52: #{tpu_custom_call.1} parent=11 // pred_fallthru
          _
        // Predicated region
        $region53: #{tpu_custom_call.1} parent=11 // pred_check
          %p482 = pneg %p311
        $region54: #{tpu_custom_call.1} parent=11 // pred_check_branch
          %484 = sbr.rel (%p482) target = $region56
        $region55: #{tpu_custom_call.1} parent=11 // pred_region
          %s486 = ssub.s32 64, 64
          %487 = vsyncadd [#allocation12], %s486
          %s489 = sshll.u32 [#allocation13], 4
          %s490 = int_to_ptr.vmem [resolvable:$true] %s489
          %492 = dma.hbm_to_vmem [thread:$0]  %s12, 64, %s490, [#allocation12]
        $region56: #{tpu_custom_call.1} parent=11 // pred_fallthru
          _
        // Predicated region
        $region57: #{tpu_custom_call.1} parent=11 // pred_check
          %p493 = pneg %p332
        $region58: #{tpu_custom_call.1} parent=11 // pred_check_branch
          %495 = sbr.rel (%p493) target = $region60
        $region59: #{tpu_custom_call.1} parent=11 // pred_region
          _
        $region60: #{tpu_custom_call.1} parent=11 // pred_fallthru
          _
        // Predicated region
        $region61: #{tpu_custom_call.1} parent=11 // pred_check
          %p496 = pneg %p353
        $region62: #{tpu_custom_call.1} parent=11 // pred_check_branch
          %498 = sbr.rel (%p496) target = $region64
        $region63: #{tpu_custom_call.1} parent=11 // pred_region
          _
        $region64: #{tpu_custom_call.1} parent=11 // pred_fallthru
          _
      $region12: #{tpu_custom_call.1} parent=5 // pred_fallthru
        _
      %p499 = scmp.lt.s32.totalorder %s28, 2
      // Predicated region
      $region65: #{tpu_custom_call.1} parent=5 // pred_check
        %p500 = pneg %p499
      $region66: #{tpu_custom_call.1} parent=5 // pred_check_branch
        %502 = sbr.rel (%p500) target = $region68
      $region67: #{tpu_custom_call.1} parent=5 // pred_region
        // Predicated region
        $region69: #{tpu_custom_call.1} parent=67 // pred_check
          %p503 = pneg %p48
        $region70: #{tpu_custom_call.1} parent=67 // pred_check_branch
          %505 = sbr.rel (%p503) target = $region72
        $region71: #{tpu_custom_call.1} parent=67 // pred_region
          %p506 = scmp.lt.s32.totalorder %s28, 1
          %s507 = scalar_select %p506, %s28, 1
          %s508 = smul.addr %s507, 13
          %s509 = smul.addr %s508, 8
          %s510 = scalar_lea.vmem %s0, %s509
        $region72: #{tpu_custom_call.1} parent=67 // pred_fallthru
          _
        // Predicated region
        $region73: #{tpu_custom_call.1} parent=67 // pred_check
          %p511 = pneg %p74
        $region74: #{tpu_custom_call.1} parent=67 // pred_check_branch
          %513 = sbr.rel (%p511) target = $region76
        $region75: #{tpu_custom_call.1} parent=67 // pred_region
          %p514 = scmp.lt.s32.totalorder %s28, 1
          %s515 = scalar_select %p514, %s28, 1
          %s516 = smul.addr %s515, 48
          %s517 = smul.addr %s516, 4
          %s518 = scalar_lea.vmem %s1, %s517
        $region76: #{tpu_custom_call.1} parent=67 // pred_fallthru
          _
      $region68: #{tpu_custom_call.1} parent=5 // pred_fallthru
        _
      %p519 = scmp.le.s32.totalorder 1, %s28
      %p520 = scmp.lt.s32.totalorder %s28, 3
      %p521 = pnand %p519, %p520
      %p522 = pneg %p521
      // Predicated region
      $region77: #{tpu_custom_call.1} parent=5 // pred_check
        _
      $region78: #{tpu_custom_call.1} parent=5 // pred_check_branch
        %524 = sbr.rel (%p521) target = $region80
      $region79: #{tpu_custom_call.1} parent=5 // pred_region
        %s525 = ssub.s32 %s28, 1
        // Predicated region
        $region81: #{tpu_custom_call.1} parent=79 // pred_check
          %p526 = pneg %p122
        $region82: #{tpu_custom_call.1} parent=79 // pred_check_branch
          %528 = sbr.rel (%p526) target = $region84
        $region83: #{tpu_custom_call.1} parent=79 // pred_region
          %529 = dma.done [#allocation3], 16
        $region84: #{tpu_custom_call.1} parent=79 // pred_fallthru
          _
        // Predicated region
        $region85: #{tpu_custom_call.1} parent=79 // pred_check
          %p530 = pneg %p164
        $region86: #{tpu_custom_call.1} parent=79 // pred_check_branch
          %532 = sbr.rel (%p530) target = $region88
        $region87: #{tpu_custom_call.1} parent=79 // pred_region
          %533 = dma.done [#allocation6], 128
        $region88: #{tpu_custom_call.1} parent=79 // pred_fallthru
          _
        // Predicated region
        $region89: #{tpu_custom_call.1} parent=79 // pred_check
          %p534 = pneg %p185
        $region90: #{tpu_custom_call.1} parent=79 // pred_check_branch
          %536 = sbr.rel (%p534) target = $region92
        $region91: #{tpu_custom_call.1} parent=79 // pred_region
          %537 = dma.done [#allocation6], 4096
        $region92: #{tpu_custom_call.1} parent=79 // pred_fallthru
          _
        // Predicated region
        $region93: #{tpu_custom_call.1} parent=79 // pred_check
          %p538 = pneg %p206
        $region94: #{tpu_custom_call.1} parent=79 // pred_check_branch
          %540 = sbr.rel (%p538) target = $region96
        $region95: #{tpu_custom_call.1} parent=79 // pred_region
          %541 = dma.done [#allocation9], 256
        $region96: #{tpu_custom_call.1} parent=79 // pred_fallthru
          _
        // Predicated region
        $region97: #{tpu_custom_call.1} parent=79 // pred_check
          %p542 = pneg %p248
        $region98: #{tpu_custom_call.1} parent=79 // pred_check_branch
          %544 = sbr.rel (%p542) target = $region100
        $region99: #{tpu_custom_call.1} parent=79 // pred_region
          %545 = dma.done [#allocation9], 128
        $region100: #{tpu_custom_call.1} parent=79 // pred_fallthru
          _
        // Predicated region
        $region101: #{tpu_custom_call.1} parent=79 // pred_check
          %p546 = pneg %p269
        $region102: #{tpu_custom_call.1} parent=79 // pred_check_branch
          %548 = sbr.rel (%p546) target = $region104
        $region103: #{tpu_custom_call.1} parent=79 // pred_region
          %549 = dma.done [#allocation12], 128
        $region104: #{tpu_custom_call.1} parent=79 // pred_fallthru
          _
        // Predicated region
        $region105: #{tpu_custom_call.1} parent=79 // pred_check
          %p550 = pneg %p311
        $region106: #{tpu_custom_call.1} parent=79 // pred_check_branch
          %552 = sbr.rel (%p550) target = $region108
        $region107: #{tpu_custom_call.1} parent=79 // pred_region
          %553 = dma.done [#allocation12], 64
        $region108: #{tpu_custom_call.1} parent=79 // pred_fallthru
          _
        %p554 = scmp.lt.s32.totalorder %s33, 1
        %s555 = scalar_select %p554, %s33, 1
        %s556 = smul.addr %s555, 13
        %s557 = smul.addr %s556, 8
        %s558 = scalar_lea.vmem %s0, %s557
        %p559 = pneg %p54
        %p560 = pneg %p51
        %p561 = scmp.lt.s32.totalorder %s33, 1
        %s562 = scalar_select %p561, %s33, 1
        %s563 = smul.addr %s562, 48
        %s564 = smul.addr %s563, 4
        %s565 = scalar_lea.vmem %s1, %s564
        %p566 = pneg %p80
        %p567 = pneg %p77
        %p568 = pneg %p101
        %p569 = pneg %p98
        %p570 = pneg %p122
        %p571 = pneg %p119
        %p572 = pneg %p143
        %p573 = pneg %p140
        %p574 = pneg %p164
        %p575 = pneg %p161
        %p576 = pneg %p185
        %p577 = pneg %p182
        %p578 = pneg %p206
        %p579 = pneg %p203
        %p580 = pneg %p227
        %p581 = pneg %p224
        %p582 = pneg %p248
        %p583 = pneg %p245
        %p584 = pneg %p269
        %p585 = pneg %p266
        %p586 = pneg %p290
        %p587 = pneg %p287
        %p588 = pneg %p311
        %p589 = pneg %p308
        %p590 = pneg %p332
        %p591 = pneg %p329
        %p592 = pneg %p353
        %p593 = pneg %p350
        %p594 = pneg %p379
        %p595 = pneg %p376
        %s596 = sand.u32 %s366, 1
        %s597 = scalar_lea.sflag [#allocation4], %s596
        %s598 = sand.u32 %s366, 1
        %s599 = smul.addr %s598, 8
        %s600 = scalar_lea.vmem [#allocation14], %s599
        %p601 = scmp.lt.s32.totalorder %s33, 1
        %s602 = scalar_select %p601, %s33, 1
        %s603 = smul.addr %s602, 13
        %s604 = smul.addr %s603, 8
        %s605 = scalar_lea.vmem %s0, %s604
        %p606 = scmp.lt.s32.totalorder %s33, 1
        %s607 = scalar_select %p606, %s33, 1
        %s608 = smul.addr %s607, 48
        %s609 = smul.addr %s608, 4
        %s610 = scalar_lea.vmem %s1, %s609
        %v612 = vld [vmem:[%s605] sm:$0xff]
        %v613 = vld [vmem:[%s605 + $0x8] sm:$0xff]
        %v614 = vld [vmem:[%s605 + $0x10] sm:$0xff]
        %v615 = vld [vmem:[%s605 + $0x18] sm:$0xff]
        %v616 = vld [vmem:[%s605 + $0x20] sm:$0xff]
        %v617 = vld [vmem:[%s605 + $0x28] sm:$0xff]
        %v618 = vld [vmem:[%s605 + $0x30] sm:$0xff]
        %v619 = vld [vmem:[%s605 + $0x38] sm:$0xff]
        %v620 = vld [vmem:[%s605 + $0x40] sm:$0xff]
        %v621 = vld [vmem:[%s605 + $0x48] sm:$0xff]
        %v622 = vld [vmem:[%s605 + $0x50] sm:$0xff]
        %v623 = vld [vmem:[%s605 + $0x58] sm:$0xff]
        %v624 = vld [vmem:[%s605 + $0x60] sm:$0xff]
        %v625 = vld [vmem:[%s2] sm:$0x1]
        %627 = vset.pattern.permute.xlu0 0
        %628 = vperm.xlu0 %627, %v612
        %v629 = vpop.permute.xlu0 %628
        %632 = vset.pattern.permute.xlu0 0
        %633 = vperm.xlu0 %632, %v613
        %v634 = vpop.permute.xlu0 %633
        %637 = vset.pattern.permute.xlu0 0
        %638 = vperm.xlu0 %637, %v614
        %v639 = vpop.permute.xlu0 %638
        %642 = vset.pattern.permute.xlu0 0
        %643 = vperm.xlu0 %642, %v615
        %v644 = vpop.permute.xlu0 %643
        %647 = vset.pattern.permute.xlu0 0
        %648 = vperm.xlu0 %647, %v616
        %v649 = vpop.permute.xlu0 %648
        %652 = vset.pattern.permute.xlu0 0
        %653 = vperm.xlu0 %652, %v617
        %v654 = vpop.permute.xlu0 %653
        %657 = vset.pattern.permute.xlu0 0
        %658 = vperm.xlu0 %657, %v618
        %v659 = vpop.permute.xlu0 %658
        %662 = vset.pattern.permute.xlu0 0
        %663 = vperm.xlu0 %662, %v619
        %v664 = vpop.permute.xlu0 %663
        %667 = vset.pattern.permute.xlu0 0
        %668 = vperm.xlu0 %667, %v620
        %v669 = vpop.permute.xlu0 %668
        %672 = vset.pattern.permute.xlu0 0
        %673 = vperm.xlu0 %672, %v621
        %v674 = vpop.permute.xlu0 %673
        %677 = vset.pattern.permute.xlu0 0
        %678 = vperm.xlu0 %677, %v622
        %v679 = vpop.permute.xlu0 %678
        %682 = vset.pattern.permute.xlu0 0
        %683 = vperm.xlu0 %682, %v623
        %v684 = vpop.permute.xlu0 %683
        %687 = vset.pattern.permute.xlu0 0
        %688 = vperm.xlu0 %687, %v624
        %v689 = vpop.permute.xlu0 %688
        %v692 = vlaneseq
        %v693 = vshrl.u32 %v692, 7
        %v694 = vsub.s32 0, %v693
        %v695 = vrot.slane %v625, %v694
        %v697 = vmul.f32 %v629, %v695
        %v698 = vmul.f32 %v634, %v695
        %v699 = vmul.f32 %v639, %v695
        %v700 = vmul.f32 %v644, %v695
        %v701 = vmul.f32 %v649, %v695
        %v702 = vmul.f32 %v654, %v695
        %v703 = vmul.f32 %v659, %v695
        %v704 = vmul.f32 %v664, %v695
        %v705 = vmul.f32 %v669, %v695
        %v706 = vmul.f32 %v674, %v695
        %v707 = vmul.f32 %v679, %v695
        %v708 = vmul.f32 %v684, %v695
        %v709 = vmul.f32 %v689, %v695
        %v710 = vld [vmem:[#allocation2] sm:$0x1]
        %v712 = vlaneseq
        %v713 = vshrl.u32 %v712, 7
        %v714 = vsub.s32 0, %v713
        %v715 = vrot.slane %v710, %v714
        %v717 = vadd.f32 %v697, %v715
        %v718 = vadd.f32 %v698, %v715
        %v719 = vadd.f32 %v699, %v715
        %v720 = vadd.f32 %v700, %v715
        %v721 = vadd.f32 %v701, %v715
        %v722 = vadd.f32 %v702, %v715
        %v723 = vadd.f32 %v703, %v715
        %v724 = vadd.f32 %v704, %v715
        %v725 = vadd.f32 %v705, %v715
        %v726 = vadd.f32 %v706, %v715
        %v727 = vadd.f32 %v707, %v715
        %v728 = vadd.f32 %v708, %v715
        %v729 = vadd.f32 %v709, %v715
        %v730 = vld [vmem:[%s610] sm:$0xf]
        %v731 = vld [vmem:[%s610 + $0x4] sm:$0xf]
        %v732 = vld [vmem:[%s610 + $0x8] sm:$0xf]
        %v733 = vld [vmem:[%s610 + $0xc] sm:$0xf]
        %v734 = vld [vmem:[%s610 + $0x10] sm:$0xf]
        %v735 = vld [vmem:[%s610 + $0x14] sm:$0xf]
        %v736 = vld [vmem:[%s610 + $0x18] sm:$0xf]
        %v737 = vld [vmem:[%s610 + $0x1c] sm:$0xf]
        %v738 = vld [vmem:[%s610 + $0x20] sm:$0xf]
        %v739 = vld [vmem:[%s610 + $0x24] sm:$0xf]
        %v740 = vld [vmem:[%s610 + $0x28] sm:$0xf]
        %v741 = vld [vmem:[%s610 + $0x2c] sm:$0xf]
        %v742 = vld [vmem:[%s610 + $0x30] sm:$0xf]
        %v743 = vld [vmem:[%s610 + $0x34] sm:$0xf]
        %v744 = vld [vmem:[%s610 + $0x38] sm:$0xf]
        %v745 = vld [vmem:[%s610 + $0x3c] sm:$0xf]
        %v746 = vld [vmem:[%s610 + $0x40] sm:$0xf]
        %v747 = vld [vmem:[%s610 + $0x44] sm:$0xf]
        %v748 = vld [vmem:[%s610 + $0x48] sm:$0xf]
        %v749 = vld [vmem:[%s610 + $0x4c] sm:$0xf]
        %v750 = vld [vmem:[%s610 + $0x50] sm:$0xf]
        %v751 = vld [vmem:[%s610 + $0x54] sm:$0xf]
        %v752 = vld [vmem:[%s610 + $0x58] sm:$0xf]
        %v753 = vld [vmem:[%s610 + $0x5c] sm:$0xf]
        %v754 = vld [vmem:[%s610 + $0x60] sm:$0xf]
        %v755 = vld [vmem:[%s610 + $0x64] sm:$0xf]
        %v756 = vld [vmem:[%s610 + $0x68] sm:$0xf]
        %v757 = vld [vmem:[%s610 + $0x6c] sm:$0xf]
        %v758 = vld [vmem:[%s610 + $0x70] sm:$0xf]
        %v759 = vld [vmem:[%s610 + $0x74] sm:$0xf]
        %v760 = vld [vmem:[%s610 + $0x78] sm:$0xf]
        %v761 = vld [vmem:[%s610 + $0x7c] sm:$0xf]
        %v762 = vld [vmem:[%s610 + $0x80] sm:$0xf]
        %v763 = vld [vmem:[%s610 + $0x84] sm:$0xf]
        %v764 = vld [vmem:[%s610 + $0x88] sm:$0xf]
        %v765 = vld [vmem:[%s610 + $0x8c] sm:$0xf]
        %v766 = vld [vmem:[%s610 + $0x90] sm:$0xf]
        %v767 = vld [vmem:[%s610 + $0x94] sm:$0xf]
        %v768 = vld [vmem:[%s610 + $0x98] sm:$0xf]
        %v769 = vld [vmem:[%s610 + $0x9c] sm:$0xf]
        %v770 = vld [vmem:[%s610 + $0xa0] sm:$0xf]
        %v771 = vld [vmem:[%s610 + $0xa4] sm:$0xf]
        %v772 = vld [vmem:[%s610 + $0xa8] sm:$0xf]
        %v773 = vld [vmem:[%s610 + $0xac] sm:$0xf]
        %v774 = vld [vmem:[%s610 + $0xb0] sm:$0xf]
        %v775 = vld [vmem:[%s610 + $0xb4] sm:$0xf]
        %v776 = vld [vmem:[%s610 + $0xb8] sm:$0xf]
        %v777 = vld [vmem:[%s610 + $0xbc] sm:$0xf]
        %790 = vrot.lane.b32.xlu0 %v718, 32
        %v791 = vpop.permute.xlu0 %790
        %792 = vrot.lane.b32.xlu0 %v719, 32
        %v793 = vpop.permute.xlu0 %792
        %794 = vrot.lane.b32.xlu0 %v720, 32
        %v795 = vpop.permute.xlu0 %794
        %796 = vrot.lane.b32.xlu0 %v721, 32
        %v797 = vpop.permute.xlu0 %796
        %798 = vrot.lane.b32.xlu0 %v722, 32
        %v799 = vpop.permute.xlu0 %798
        %800 = vrot.lane.b32.xlu0 %v723, 32
        %v801 = vpop.permute.xlu0 %800
        %802 = vrot.lane.b32.xlu0 %v724, 32
        %v803 = vpop.permute.xlu0 %802
        %804 = vrot.lane.b32.xlu0 %v725, 32
        %v805 = vpop.permute.xlu0 %804
        %806 = vrot.lane.b32.xlu0 %v726, 32
        %v807 = vpop.permute.xlu0 %806
        %808 = vrot.lane.b32.xlu0 %v727, 32
        %v809 = vpop.permute.xlu0 %808
        %810 = vrot.lane.b32.xlu0 %v728, 32
        %v811 = vpop.permute.xlu0 %810
        %812 = vrot.lane.b32.xlu0 %v729, 32
        %v813 = vpop.permute.xlu0 %812
        %vm826 = vcmask 261120
        %v827 = vsel %vm826, %v717, %v791
        %v828 = vsel %vm826, %v718, %v793
        %v829 = vsel %vm826, %v719, %v795
        %v830 = vsel %vm826, %v720, %v797
        %v831 = vsel %vm826, %v721, %v799
        %v832 = vsel %vm826, %v722, %v801
        %v833 = vsel %vm826, %v723, %v803
        %v834 = vsel %vm826, %v724, %v805
        %v835 = vsel %vm826, %v725, %v807
        %v836 = vsel %vm826, %v726, %v809
        %v837 = vsel %vm826, %v727, %v811
        %v838 = vsel %vm826, %v728, %v813
        %v839 = vpack.c.bf16 %v828, %v827
        %v840 = vpack.c.bf16 %v830, %v829
        %v841 = vpack.c.bf16 %v832, %v831
        %v842 = vpack.c.bf16 %v834, %v833
        %v843 = vpack.c.bf16 %v836, %v835
        %v844 = vpack.c.bf16 %v838, %v837
        %v845 = vld [vmem:[%s4] sm:$0xf]
        %v846 = vld [vmem:[%s4 + $0x4] sm:$0xf]
        %v847 = vld [vmem:[%s4 + $0x8] sm:$0xf]
        %v848 = vld [vmem:[%s4 + $0xc] sm:$0xf]
        %v849 = vld [vmem:[%s4 + $0x10] sm:$0xf]
        %v850 = vld [vmem:[%s4 + $0x14] sm:$0xf]
        %v851 = vld [vmem:[%s4 + $0x18] sm:$0xf]
        %v852 = vld [vmem:[%s4 + $0x1c] sm:$0xf]
        %v853 = vld [vmem:[#allocation5] sm:$0x1]
        %v855 = vlaneseq
        %v856 = vshrl.u32 %v855, 7
        %v857 = vsub.s32 0, %v856
        %v858 = vrot.slane %v853, %v857
        %v868 = vunpack.c.l.b16 %v845
        %v869 = vunpack.c.l.b16 %v846
        %v870 = vunpack.c.l.b16 %v847
        %v871 = vunpack.c.l.b16 %v848
        %v872 = vunpack.c.l.b16 %v849
        %v873 = vunpack.c.l.b16 %v850
        %v874 = vunpack.c.l.b16 %v851
        %v875 = vunpack.c.l.b16 %v852
        %v876 = vpack.c.b16 %v869, %v868
        %v877 = vpack.c.b16 %v871, %v870
        %v878 = vpack.c.b16 %v873, %v872
        %v879 = vpack.c.b16 %v875, %v874
        %vm884 = vcmask 523264
        %v886 = vsel %vm884, %v839, 0
        %v889 = vsel %vm884, %v840, 0
        %v892 = vsel %vm884, %v841, 0
        %v895 = vsel %vm884, %v842, 0
        %v898 = vsel %vm884, %v843, 0
        %v901 = vsel %vm884, %v844, 0
        %903 = vmatprep.subr.bf16.mxu0 0
        %904 = vmatpush1.bf16.msra.mxu0 %v876
        %905 = vmatprep.subr.bf16.mxu0 0
        %906 = vmatpush1.bf16.msra.mxu0 %v877
        %907 = vmatprep.subr.bf16.mxu0 0
        %908 = vmatpush1.bf16.msra.mxu0 %v878
        %909 = vmatprep.subr.bf16.mxu0 0
        %910 = vmatpush1.bf16.msra.mxu0 %v879
        %911 = vmatprep.subr.bf16.mxu0 0
        %912 = vmatpush1.bf16.msra.mxu0 0
        %913 = vmatprep.subr.bf16.mxu0 0
        %914 = vmatpush1.bf16.msra.mxu0 0
        %915 = vmatprep.subr.bf16.mxu0 0
        %916 = vmatpush1.bf16.msra.mxu0 0
        %917 = vmatprep.subr.bf16.mxu0 0
        %918 = vmatpush1.bf16.msra.mxu0 0
        %919 = vmatprep.subr.bf16.mxu0 0
        %920 = vmatpush1.bf16.msra.mxu0 0
        %921 = vmatprep.subr.bf16.mxu0 0
        %922 = vmatpush1.bf16.msra.mxu0 0
        %923 = vmatprep.subr.bf16.mxu0 0
        %924 = vmatpush1.bf16.msra.mxu0 0
        %925 = vmatprep.subr.bf16.mxu0 0
        %926 = vmatpush1.bf16.msra.mxu0 0
        %927 = vmatprep.subr.bf16.mxu0 0
        %928 = vmatpush1.bf16.msra.mxu0 0
        %929 = vmatprep.subr.bf16.mxu0 0
        %930 = vmatpush1.bf16.msra.mxu0 0
        %931 = vmatprep.subr.bf16.mxu0 0
        %932 = vmatpush1.bf16.msra.mxu0 0
        %933 = vmatprep.subr.bf16.mxu0 0
        %934 = vmatpush1.bf16.msra.mxu0 0
        %935 = vmatprep.mubr.bf16.mxu0 0
        %936 = vmatmul.mubr.bf16.gmra.mrb[0].mxu0 %v886
        %v937 = vpop.f32.mrb[0].mxu0
        %v938 = vadd.f32 %v858, %v937
        %v939 = vpop.f32.mrb[0].mxu0
        %v940 = vpop.f32.mrb[0].mxu0
        %v941 = vadd.f32 %v858, %v940
        %v942 = vpop.f32.mrb[0].mxu0
        %943 = vmatprep.mubr.bf16.mxu0 0
        %944 = vmatmul.mubr.bf16.gmra.mrb[0].mxu0 %v889
        %v945 = vpop.f32.mrb[0].mxu0
        %v946 = vadd.f32 %v858, %v945
        %v947 = vpop.f32.mrb[0].mxu0
        %v948 = vpop.f32.mrb[0].mxu0
        %v949 = vadd.f32 %v858, %v948
        %v950 = vpop.f32.mrb[0].mxu0
        %951 = vmatprep.mubr.bf16.mxu0 0
        %952 = vmatmul.mubr.bf16.gmra.mrb[0].mxu0 %v892
        %v953 = vpop.f32.mrb[0].mxu0
        %v954 = vadd.f32 %v858, %v953
        %v955 = vpop.f32.mrb[0].mxu0
        %v956 = vpop.f32.mrb[0].mxu0
        %v957 = vadd.f32 %v858, %v956
        %v958 = vpop.f32.mrb[0].mxu0
        %959 = vmatprep.mubr.bf16.mxu0 0
        %960 = vmatmul.mubr.bf16.gmra.mrb[0].mxu0 %v895
        %v961 = vpop.f32.mrb[0].mxu0
        %v962 = vadd.f32 %v858, %v961
        %v963 = vpop.f32.mrb[0].mxu0
        %v964 = vpop.f32.mrb[0].mxu0
        %v965 = vadd.f32 %v858, %v964
        %v966 = vpop.f32.mrb[0].mxu0
        %967 = vmatprep.mubr.bf16.mxu0 0
        %968 = vmatmul.mubr.bf16.gmra.mrb[0].mxu0 %v898
        %v969 = vpop.f32.mrb[0].mxu0
        %v970 = vadd.f32 %v858, %v969
        %v971 = vpop.f32.mrb[0].mxu0
        %v972 = vpop.f32.mrb[0].mxu0
        %v973 = vadd.f32 %v858, %v972
        %v974 = vpop.f32.mrb[0].mxu0
        %975 = vmatprep.mubr.bf16.mxu0 0
        %976 = vmatmul.mubr.bf16.gmra.mrb[0].mxu0 %v901
        %v977 = vpop.f32.mrb[0].mxu0
        %v978 = vadd.f32 %v858, %v977
        %v979 = vpop.f32.mrb[0].mxu0
        %v980 = vpop.f32.mrb[0].mxu0
        %v981 = vadd.f32 %v858, %v980
        %v982 = vpop.f32.mrb[0].mxu0
        %983 = vdwg.mxu0
        %v984 = vtanh.pop %v938
        %v985 = vtanh.pop %v941
        %v986 = vtanh.pop %v946
        %v987 = vtanh.pop %v949
        %v988 = vtanh.pop %v954
        %v989 = vtanh.pop %v957
        %v990 = vtanh.pop %v962
        %v991 = vtanh.pop %v965
        %v992 = vtanh.pop %v970
        %v993 = vtanh.pop %v973
        %v994 = vtanh.pop %v978
        %v995 = vtanh.pop %v981
        %v996 = vxor.u32 %v938, 2147483648
        %v997 = vxor.u32 %v941, 2147483648
        %v998 = vxor.u32 %v946, 2147483648
        %v999 = vxor.u32 %v949, 2147483648
        %v1000 = vxor.u32 %v954, 2147483648
        %v1001 = vxor.u32 %v957, 2147483648
        %v1002 = vxor.u32 %v962, 2147483648
        %v1003 = vxor.u32 %v965, 2147483648
        %v1004 = vxor.u32 %v970, 2147483648
        %v1005 = vxor.u32 %v973, 2147483648
        %v1006 = vxor.u32 %v978, 2147483648
        %v1007 = vxor.u32 %v981, 2147483648
        %v1008 = vmul.f32 %v996, 1.442695
        %v1009 = vpow.pop %v1008
        %v1010 = vmul.f32 %v997, 1.442695
        %v1011 = vpow.pop %v1010
        %v1012 = vmul.f32 %v998, 1.442695
        %v1013 = vpow.pop %v1012
        %v1014 = vmul.f32 %v999, 1.442695
        %v1015 = vpow.pop %v1014
        %v1016 = vmul.f32 %v1000, 1.442695
        %v1017 = vpow.pop %v1016
        %v1018 = vmul.f32 %v1001, 1.442695
        %v1019 = vpow.pop %v1018
        %v1020 = vmul.f32 %v1002, 1.442695
        %v1021 = vpow.pop %v1020
        %v1022 = vmul.f32 %v1003, 1.442695
        %v1023 = vpow.pop %v1022
        %v1024 = vmul.f32 %v1004, 1.442695
        %v1025 = vpow.pop %v1024
        %v1026 = vmul.f32 %v1005, 1.442695
        %v1027 = vpow.pop %v1026
        %v1028 = vmul.f32 %v1006, 1.442695
        %v1029 = vpow.pop %v1028
        %v1030 = vmul.f32 %v1007, 1.442695
        %v1031 = vpow.pop %v1030
        %v1032 = vadd.f32 %v1009, 1.0
        %v1033 = vadd.f32 %v1011, 1.0
        %v1034 = vadd.f32 %v1013, 1.0
        %v1035 = vadd.f32 %v1015, 1.0
        %v1036 = vadd.f32 %v1017, 1.0
        %v1037 = vadd.f32 %v1019, 1.0
        %v1038 = vadd.f32 %v1021, 1.0
        %v1039 = vadd.f32 %v1023, 1.0
        %v1040 = vadd.f32 %v1025, 1.0
        %v1041 = vadd.f32 %v1027, 1.0
        %v1042 = vadd.f32 %v1029, 1.0
        %v1043 = vadd.f32 %v1031, 1.0
        %v1044 = vrcp.pop %v1032
        %v1045 = vmul.f32 1.0, %v1044
        %v1046 = vrcp.pop %v1033
        %v1047 = vmul.f32 1.0, %v1046
        %v1048 = vrcp.pop %v1034
        %v1049 = vmul.f32 1.0, %v1048
        %v1050 = vrcp.pop %v1035
        %v1051 = vmul.f32 1.0, %v1050
        %v1052 = vrcp.pop %v1036
        %v1053 = vmul.f32 1.0, %v1052
        %v1054 = vrcp.pop %v1037
        %v1055 = vmul.f32 1.0, %v1054
        %v1056 = vrcp.pop %v1038
        %v1057 = vmul.f32 1.0, %v1056
        %v1058 = vrcp.pop %v1039
        %v1059 = vmul.f32 1.0, %v1058
        %v1060 = vrcp.pop %v1040
        %v1061 = vmul.f32 1.0, %v1060
        %v1062 = vrcp.pop %v1041
        %v1063 = vmul.f32 1.0, %v1062
        %v1064 = vrcp.pop %v1042
        %v1065 = vmul.f32 1.0, %v1064
        %v1066 = vrcp.pop %v1043
        %v1067 = vmul.f32 1.0, %v1066
        %1080 = vrot.lane.b32.xlu0 %v1045, 96
        %v1081 = vpop.permute.xlu0 %1080
        %1082 = vrot.lane.b32.xlu0 %v1047, 96
        %v1083 = vpop.permute.xlu0 %1082
        %1084 = vrot.lane.b32.xlu0 %v1049, 96
        %v1085 = vpop.permute.xlu0 %1084
        %1086 = vrot.lane.b32.xlu0 %v1051, 96
        %v1087 = vpop.permute.xlu0 %1086
        %1088 = vrot.lane.b32.xlu0 %v1053, 96
        %v1089 = vpop.permute.xlu0 %1088
        %1090 = vrot.lane.b32.xlu0 %v1055, 96
        %v1091 = vpop.permute.xlu0 %1090
        %1092 = vrot.lane.b32.xlu0 %v1057, 96
        %v1093 = vpop.permute.xlu0 %1092
        %1094 = vrot.lane.b32.xlu0 %v1059, 96
        %v1095 = vpop.permute.xlu0 %1094
        %1096 = vrot.lane.b32.xlu0 %v1061, 96
        %v1097 = vpop.permute.xlu0 %1096
        %1098 = vrot.lane.b32.xlu0 %v1063, 96
        %v1099 = vpop.permute.xlu0 %1098
        %1100 = vrot.lane.b32.xlu0 %v1065, 96
        %v1101 = vpop.permute.xlu0 %1100
        %1102 = vrot.lane.b32.xlu0 %v1067, 96
        %v1103 = vpop.permute.xlu0 %1102
        %v1116 = vmul.f32 %v984, %v1081
        %v1117 = vmul.f32 %v985, %v1083
        %v1118 = vmul.f32 %v986, %v1085
        %v1119 = vmul.f32 %v987, %v1087
        %v1120 = vmul.f32 %v988, %v1089
        %v1121 = vmul.f32 %v989, %v1091
        %v1122 = vmul.f32 %v990, %v1093
        %v1123 = vmul.f32 %v991, %v1095
        %v1124 = vmul.f32 %v992, %v1097
        %v1125 = vmul.f32 %v993, %v1099
        %v1126 = vmul.f32 %v994, %v1101
        %v1127 = vmul.f32 %v995, %v1103
        %v1128 = vpack.c.bf16 %v1117, %v1116
        %v1129 = vpack.c.bf16 %v1119, %v1118
        %v1130 = vpack.c.bf16 %v1121, %v1120
        %v1131 = vpack.c.bf16 %v1123, %v1122
        %v1132 = vpack.c.bf16 %v1125, %v1124
        %v1133 = vpack.c.bf16 %v1127, %v1126
        %v1134 = vpack.c.bf16 %v1127, %v1127
        %v1135 = vld [vmem:[#allocation7] sm:$0xff]
        %v1136 = vld [vmem:[#allocation7 + $0x8] sm:$0xff]
        %v1137 = vld [vmem:[#allocation7 + $0x10] sm:$0xff]
        %v1138 = vld [vmem:[#allocation7 + $0x18] sm:$0xff]
        %v1139 = vld [vmem:[#allocation8] sm:$0x3]
        %v1141 = vlaneseq
        %v1142 = vshrl.u32 %v1141, 7
        %v1143 = vsub.s32 0, %v1142
        %v1144 = vrot.slane %v1139, %v1143
        %v1145 = vlaneseq
        %v1146 = vshrl.u32 %v1145, 7
        %v1147 = vsub.s32 1, %v1146
        %v1148 = vrot.slane %v1139, %v1147
        %v1155 = vunpack.c.l.b16 %v1135
        %v1156 = vunpack.c.h.b16 %v1135
        %v1157 = vunpack.c.l.b16 %v1136
        %v1158 = vunpack.c.h.b16 %v1136
        %v1159 = vunpack.c.l.b16 %v1137
        %v1160 = vunpack.c.h.b16 %v1137
        %v1161 = vunpack.c.l.b16 %v1138
        %v1162 = vunpack.c.h.b16 %v1138
        %v1163 = vpack.c.b16 %v1157, %v1155
        %v1164 = vpack.c.b16 %v1158, %v1156
        %v1165 = vpack.c.b16 %v1161, %v1159
        %v1166 = vpack.c.b16 %v1162, %v1160
        %v1172 = vsel %vm826, %v1134, 0
        %1174 = vmatprep.subr.bf16.mxu0 %v1164
        %1175 = vmatpush1.bf16.msra.mxu0 %v1163
        %1176 = vmatprep.subr.bf16.mxu0 %v1166
        %1177 = vmatpush1.bf16.msra.mxu0 %v1165
        %1178 = vmatprep.subr.bf16.mxu0 0
        %1179 = vmatpush1.bf16.msra.mxu0 0
        %1180 = vmatprep.subr.bf16.mxu0 0
        %1181 = vmatpush1.bf16.msra.mxu0 0
        %1182 = vmatprep.subr.bf16.mxu0 0
        %1183 = vmatpush1.bf16.msra.mxu0 0
        %1184 = vmatprep.subr.bf16.mxu0 0
        %1185 = vmatpush1.bf16.msra.mxu0 0
        %1186 = vmatprep.subr.bf16.mxu0 0
        %1187 = vmatpush1.bf16.msra.mxu0 0
        %1188 = vmatprep.subr.bf16.mxu0 0
        %1189 = vmatpush1.bf16.msra.mxu0 0
        %1190 = vmatprep.subr.bf16.mxu0 0
        %1191 = vmatpush1.bf16.msra.mxu0 0
        %1192 = vmatprep.subr.bf16.mxu0 0
        %1193 = vmatpush1.bf16.msra.mxu0 0
        %1194 = vmatprep.subr.bf16.mxu0 0
        %1195 = vmatpush1.bf16.msra.mxu0 0
        %1196 = vmatprep.subr.bf16.mxu0 0
        %1197 = vmatpush1.bf16.msra.mxu0 0
        %1198 = vmatprep.subr.bf16.mxu0 0
        %1199 = vmatpush1.bf16.msra.mxu0 0
        %1200 = vmatprep.subr.bf16.mxu0 0
        %1201 = vmatpush1.bf16.msra.mxu0 0
        %1202 = vmatprep.subr.bf16.mxu0 0
        %1203 = vmatpush1.bf16.msra.mxu0 0
        %1204 = vmatprep.subr.bf16.mxu0 0
        %1205 = vmatpush1.bf16.msra.mxu0 0
        %1206 = vmatprep.mubr.bf16.mxu0 0
        %1207 = vmatmul.mubr.bf16.gmra.mrb[0].mxu0 %v1172
        %v1208 = vpop.f32.mrb[0].mxu0
        %v1209 = vadd.f32 %v1144, %v1208
        %v1210 = vpop.f32.mrb[0].mxu0
        %v1211 = vadd.f32 %v1148, %v1210
        %v1212 = vpop.f32.mrb[0].mxu0
        %v1213 = vpop.f32.mrb[0].mxu0
        %1214 = vdwg.mxu0
        %v1227 = vunpack.c.l.b16 %v730
        %v1228 = vunpack.c.l.b16 %v731
        %v1229 = vunpack.c.l.b16 %v732
        %v1230 = vunpack.c.l.b16 %v733
        %v1231 = vunpack.c.l.b16 %v734
        %v1232 = vunpack.c.l.b16 %v735
        %v1233 = vunpack.c.l.b16 %v736
        %v1234 = vunpack.c.l.b16 %v737
        %v1235 = vunpack.c.l.b16 %v738
        %v1236 = vunpack.c.l.b16 %v739
        %v1237 = vunpack.c.l.b16 %v740
        %v1238 = vunpack.c.l.b16 %v741
        %v1239 = vpack.c.b16 %v1228, %v1227
        %v1240 = vpack.c.b16 %v1230, %v1229
        %v1241 = vpack.c.b16 %v1232, %v1231
        %v1242 = vpack.c.b16 %v1234, %v1233
        %v1243 = vpack.c.b16 %v1236, %v1235
        %v1244 = vpack.c.b16 %v1238, %v1237
        %vm1245 = vcmask 785408
        %v1247 = vsel %vm1245, %v1239, 0
        %v1250 = vsel %vm1245, %v1240, 0
        %v1253 = vsel %vm1245, %v1241, 0
        %v1256 = vsel %vm1245, %v1242, 0
        %v1259 = vsel %vm1245, %v1243, 0
        %v1262 = vsel %vm1245, %v1244, 0
        %1264 = vmatprep.subr.bf16.mxu0 0
        %1265 = vmatpush1.bf16.msra.mxu0 %v1128
        %1266 = vmatprep.subr.bf16.mxu0 0
        %1267 = vmatpush1.bf16.msra.mxu0 %v1129
        %1268 = vmatprep.subr.bf16.mxu0 0
        %1269 = vmatpush1.bf16.msra.mxu0 %v1130
        %1270 = vmatprep.subr.bf16.mxu0 0
        %1271 = vmatpush1.bf16.msra.mxu0 %v1131
        %1272 = vmatprep.subr.bf16.mxu0 0
        %1273 = vmatpush1.bf16.msra.mxu0 %v1132
        %1274 = vmatprep.subr.bf16.mxu0 0
        %1275 = vmatpush1.bf16.msra.mxu0 %v1133
        %1276 = vmatprep.subr.bf16.mxu0 0
        %1277 = vmatpush1.bf16.msra.mxu0 0
        %1278 = vmatprep.subr.bf16.mxu0 0
        %1279 = vmatpush1.bf16.msra.mxu0 0
        %1280 = vmatprep.subr.bf16.mxu0 0
        %1281 = vmatpush1.bf16.msra.mxu0 0
        %1282 = vmatprep.subr.bf16.mxu0 0
        %1283 = vmatpush1.bf16.msra.mxu0 0
        %1284 = vmatprep.subr.bf16.mxu0 0
        %1285 = vmatpush1.bf16.msra.mxu0 0
        %1286 = vmatprep.subr.bf16.mxu0 0
        %1287 = vmatpush1.bf16.msra.mxu0 0
        %1288 = vmatprep.subr.bf16.mxu0 0
        %1289 = vmatpush1.bf16.msra.mxu0 0
        %1290 = vmatprep.subr.bf16.mxu0 0
        %1291 = vmatpush1.bf16.msra.mxu0 0
        %1292 = vmatprep.subr.bf16.mxu0 0
        %1293 = vmatpush1.bf16.msra.mxu0 0
        %1294 = vmatprep.subr.bf16.mxu0 0
        %1295 = vmatpush1.bf16.msra.mxu0 0
        %1296 = vmatprep.mubr.bf16.mxu0 0
        %1297 = vmatmul.mubr.bf16.gmra.mrb[0].mxu0 %v1247
        %v1298 = vpop.f32.mrb[0].mxu0
        %v1299 = vadd.f32 0.0, %v1298
        %v1300 = vpop.f32.mrb[0].mxu0
        %v1301 = vpop.f32.mrb[0].mxu0
        %v1302 = vadd.f32 0.0, %v1301
        %v1303 = vpop.f32.mrb[0].mxu0
        %1304 = vmatprep.mubr.bf16.mxu0 0
        %1305 = vmatmul.mubr.bf16.gmra.mrb[0].mxu0 %v1250
        %v1306 = vpop.f32.mrb[0].mxu0
        %v1307 = vadd.f32 0.0, %v1306
        %v1308 = vpop.f32.mrb[0].mxu0
        %v1309 = vpop.f32.mrb[0].mxu0
        %v1310 = vadd.f32 0.0, %v1309
        %v1311 = vpop.f32.mrb[0].mxu0
        %1312 = vmatprep.mubr.bf16.mxu0 0
        %1313 = vmatmul.mubr.bf16.gmra.mrb[0].mxu0 %v1253
        %v1314 = vpop.f32.mrb[0].mxu0
        %v1315 = vadd.f32 0.0, %v1314
        %v1316 = vpop.f32.mrb[0].mxu0
        %v1317 = vpop.f32.mrb[0].mxu0
        %v1318 = vadd.f32 0.0, %v1317
        %v1319 = vpop.f32.mrb[0].mxu0
        %1320 = vmatprep.mubr.bf16.mxu0 0
        %1321 = vmatmul.mubr.bf16.gmra.mrb[0].mxu0 %v1256
        %v1322 = vpop.f32.mrb[0].mxu0
        %v1323 = vadd.f32 0.0, %v1322
        %v1324 = vpop.f32.mrb[0].mxu0
        %v1325 = vpop.f32.mrb[0].mxu0
        %v1326 = vadd.f32 0.0, %v1325
        %v1327 = vpop.f32.mrb[0].mxu0
        %1328 = vmatprep.mubr.bf16.mxu0 0
        %1329 = vmatmul.mubr.bf16.gmra.mrb[0].mxu0 %v1259
        %v1330 = vpop.f32.mrb[0].mxu0
        %v1331 = vadd.f32 0.0, %v1330
        %v1332 = vpop.f32.mrb[0].mxu0
        %v1333 = vpop.f32.mrb[0].mxu0
        %v1334 = vadd.f32 0.0, %v1333
        %v1335 = vpop.f32.mrb[0].mxu0
        %1336 = vmatprep.mubr.bf16.mxu0 0
        %1337 = vmatmul.mubr.bf16.gmra.mrb[0].mxu0 %v1262
        %v1338 = vpop.f32.mrb[0].mxu0
        %v1339 = vadd.f32 0.0, %v1338
        %v1340 = vpop.f32.mrb[0].mxu0
        %v1341 = vpop.f32.mrb[0].mxu0
        %v1342 = vadd.f32 0.0, %v1341
        %v1343 = vpop.f32.mrb[0].mxu0
        %1344 = vdwg.mxu0
        %v1345 = vpack.c.bf16 %v1302, %v1299
        %v1346 = vpack.c.bf16 %v1310, %v1307
        %v1347 = vpack.c.bf16 %v1318, %v1315
        %v1348 = vpack.c.bf16 %v1326, %v1323
        %v1349 = vpack.c.bf16 %v1334, %v1331
        %v1350 = vpack.c.bf16 %v1342, %v1339
        %v1363 = vunpack.c.l.b16 %v742
        %v1364 = vunpack.c.l.b16 %v743
        %v1365 = vunpack.c.l.b16 %v744
        %v1366 = vunpack.c.l.b16 %v745
        %v1367 = vunpack.c.l.b16 %v746
        %v1368 = vunpack.c.l.b16 %v747
        %v1369 = vunpack.c.l.b16 %v748
        %v1370 = vunpack.c.l.b16 %v749
        %v1371 = vunpack.c.l.b16 %v750
        %v1372 = vunpack.c.l.b16 %v751
        %v1373 = vunpack.c.l.b16 %v752
        %v1374 = vunpack.c.l.b16 %v753
        %v1375 = vpack.c.b16 %v1364, %v1363
        %v1376 = vpack.c.b16 %v1366, %v1365
        %v1377 = vpack.c.b16 %v1368, %v1367
        %v1378 = vpack.c.b16 %v1370, %v1369
        %v1379 = vpack.c.b16 %v1372, %v1371
        %v1380 = vpack.c.b16 %v1374, %v1373
        %v1382 = vsel %vm1245, %v1375, 0
        %v1385 = vsel %vm1245, %v1376, 0
        %v1388 = vsel %vm1245, %v1377, 0
        %v1391 = vsel %vm1245, %v1378, 0
        %v1394 = vsel %vm1245, %v1379, 0
        %v1397 = vsel %vm1245, %v1380, 0
        %1399 = vmatprep.subr.bf16.mxu0 0
        %1400 = vmatpush1.bf16.msra.mxu0 %v1128
        %1401 = vmatprep.subr.bf16.mxu0 0
        %1402 = vmatpush1.bf16.msra.mxu0 %v1129
        %1403 = vmatprep.subr.bf16.mxu0 0
        %1404 = vmatpush1.bf16.msra.mxu0 %v1130
        %1405 = vmatprep.subr.bf16.mxu0 0
        %1406 = vmatpush1.bf16.msra.mxu0 %v1131
        %1407 = vmatprep.subr.bf16.mxu0 0
        %1408 = vmatpush1.bf16.msra.mxu0 %v1132
        %1409 = vmatprep.subr.bf16.mxu0 0
        %1410 = vmatpush1.bf16.msra.mxu0 %v1133
        %1411 = vmatprep.subr.bf16.mxu0 0
        %1412 = vmatpush1.bf16.msra.mxu0 0
        %1413 = vmatprep.subr.bf16.mxu0 0
        %1414 = vmatpush1.bf16.msra.mxu0 0
        %1415 = vmatprep.subr.bf16.mxu0 0
        %1416 = vmatpush1.bf16.msra.mxu0 0
        %1417 = vmatprep.subr.bf16.mxu0 0
        %1418 = vmatpush1.bf16.msra.mxu0 0
        %1419 = vmatprep.subr.bf16.mxu0 0
        %1420 = vmatpush1.bf16.msra.mxu0 0
        %1421 = vmatprep.subr.bf16.mxu0 0
        %1422 = vmatpush1.bf16.msra.mxu0 0
        %1423 = vmatprep.subr.bf16.mxu0 0
        %1424 = vmatpush1.bf16.msra.mxu0 0
        %1425 = vmatprep.subr.bf16.mxu0 0
        %1426 = vmatpush1.bf16.msra.mxu0 0
        %1427 = vmatprep.subr.bf16.mxu0 0
        %1428 = vmatpush1.bf16.msra.mxu0 0
        %1429 = vmatprep.subr.bf16.mxu0 0
        %1430 = vmatpush1.bf16.msra.mxu0 0
        %1431 = vmatprep.mubr.bf16.mxu0 0
        %1432 = vmatmul.mubr.bf16.gmra.mrb[0].mxu0 %v1382
        %v1433 = vpop.f32.mrb[0].mxu0
        %v1434 = vadd.f32 0.0, %v1433
        %v1435 = vpop.f32.mrb[0].mxu0
        %v1436 = vpop.f32.mrb[0].mxu0
        %v1437 = vadd.f32 0.0, %v1436
        %v1438 = vpop.f32.mrb[0].mxu0
        %1439 = vmatprep.mubr.bf16.mxu0 0
        %1440 = vmatmul.mubr.bf16.gmra.mrb[0].mxu0 %v1385
        %v1441 = vpop.f32.mrb[0].mxu0
        %v1442 = vadd.f32 0.0, %v1441
        %v1443 = vpop.f32.mrb[0].mxu0
        %v1444 = vpop.f32.mrb[0].mxu0
        %v1445 = vadd.f32 0.0, %v1444
        %v1446 = vpop.f32.mrb[0].mxu0
        %1447 = vmatprep.mubr.bf16.mxu0 0
        %1448 = vmatmul.mubr.bf16.gmra.mrb[0].mxu0 %v1388
        %v1449 = vpop.f32.mrb[0].mxu0
        %v1450 = vadd.f32 0.0, %v1449
        %v1451 = vpop.f32.mrb[0].mxu0
        %v1452 = vpop.f32.mrb[0].mxu0
        %v1453 = vadd.f32 0.0, %v1452
        %v1454 = vpop.f32.mrb[0].mxu0
        %1455 = vmatprep.mubr.bf16.mxu0 0
        %1456 = vmatmul.mubr.bf16.gmra.mrb[0].mxu0 %v1391
        %v1457 = vpop.f32.mrb[0].mxu0
        %v1458 = vadd.f32 0.0, %v1457
        %v1459 = vpop.f32.mrb[0].mxu0
        %v1460 = vpop.f32.mrb[0].mxu0
        %v1461 = vadd.f32 0.0, %v1460
        %v1462 = vpop.f32.mrb[0].mxu0
        %1463 = vmatprep.mubr.bf16.mxu0 0
        %1464 = vmatmul.mubr.bf16.gmra.mrb[0].mxu0 %v1394
        %v1465 = vpop.f32.mrb[0].mxu0
        %v1466 = vadd.f32 0.0, %v1465
        %v1467 = vpop.f32.mrb[0].mxu0
        %v1468 = vpop.f32.mrb[0].mxu0
        %v1469 = vadd.f32 0.0, %v1468
        %v1470 = vpop.f32.mrb[0].mxu0
        %1471 = vmatprep.mubr.bf16.mxu0 0
        %1472 = vmatmul.mubr.bf16.gmra.mrb[0].mxu0 %v1397
        %v1473 = vpop.f32.mrb[0].mxu0
        %v1474 = vadd.f32 0.0, %v1473
        %v1475 = vpop.f32.mrb[0].mxu0
        %v1476 = vpop.f32.mrb[0].mxu0
        %v1477 = vadd.f32 0.0, %v1476
        %v1478 = vpop.f32.mrb[0].mxu0
        %1479 = vdwg.mxu0
        %v1480 = vpack.c.bf16 %v1437, %v1434
        %v1481 = vpack.c.bf16 %v1445, %v1442
        %v1482 = vpack.c.bf16 %v1453, %v1450
        %v1483 = vpack.c.bf16 %v1461, %v1458
        %v1484 = vpack.c.bf16 %v1469, %v1466
        %v1485 = vpack.c.bf16 %v1477, %v1474
        %v1498 = vunpack.c.l.b16 %v754
        %v1499 = vunpack.c.l.b16 %v755
        %v1500 = vunpack.c.l.b16 %v756
        %v1501 = vunpack.c.l.b16 %v757
        %v1502 = vunpack.c.l.b16 %v758
        %v1503 = vunpack.c.l.b16 %v759
        %v1504 = vunpack.c.l.b16 %v760
        %v1505 = vunpack.c.l.b16 %v761
        %v1506 = vunpack.c.l.b16 %v762
        %v1507 = vunpack.c.l.b16 %v763
        %v1508 = vunpack.c.l.b16 %v764
        %v1509 = vunpack.c.l.b16 %v765
        %v1510 = vpack.c.b16 %v1499, %v1498
        %v1511 = vpack.c.b16 %v1501, %v1500
        %v1512 = vpack.c.b16 %v1503, %v1502
        %v1513 = vpack.c.b16 %v1505, %v1504
        %v1514 = vpack.c.b16 %v1507, %v1506
        %v1515 = vpack.c.b16 %v1509, %v1508
        %v1517 = vsel %vm1245, %v1510, 0
        %v1520 = vsel %vm1245, %v1511, 0
        %v1523 = vsel %vm1245, %v1512, 0
        %v1526 = vsel %vm1245, %v1513, 0
        %v1529 = vsel %vm1245, %v1514, 0
        %v1532 = vsel %vm1245, %v1515, 0
        %1534 = vmatprep.subr.bf16.mxu0 0
        %1535 = vmatpush1.bf16.msra.mxu0 %v1128
        %1536 = vmatprep.subr.bf16.mxu0 0
        %1537 = vmatpush1.bf16.msra.mxu0 %v1129
        %1538 = vmatprep.subr.bf16.mxu0 0
        %1539 = vmatpush1.bf16.msra.mxu0 %v1130
        %1540 = vmatprep.subr.bf16.mxu0 0
        %1541 = vmatpush1.bf16.msra.mxu0 %v1131
        %1542 = vmatprep.subr.bf16.mxu0 0
        %1543 = vmatpush1.bf16.msra.mxu0 %v1132
        %1544 = vmatprep.subr.bf16.mxu0 0
        %1545 = vmatpush1.bf16.msra.mxu0 %v1133
        %1546 = vmatprep.subr.bf16.mxu0 0
        %1547 = vmatpush1.bf16.msra.mxu0 0
        %1548 = vmatprep.subr.bf16.mxu0 0
        %1549 = vmatpush1.bf16.msra.mxu0 0
        %1550 = vmatprep.subr.bf16.mxu0 0
        %1551 = vmatpush1.bf16.msra.mxu0 0
        %1552 = vmatprep.subr.bf16.mxu0 0
        %1553 = vmatpush1.bf16.msra.mxu0 0
        %1554 = vmatprep.subr.bf16.mxu0 0
        %1555 = vmatpush1.bf16.msra.mxu0 0
        %1556 = vmatprep.subr.bf16.mxu0 0
        %1557 = vmatpush1.bf16.msra.mxu0 0
        %1558 = vmatprep.subr.bf16.mxu0 0
        %1559 = vmatpush1.bf16.msra.mxu0 0
        %1560 = vmatprep.subr.bf16.mxu0 0
        %1561 = vmatpush1.bf16.msra.mxu0 0
        %1562 = vmatprep.subr.bf16.mxu0 0
        %1563 = vmatpush1.bf16.msra.mxu0 0
        %1564 = vmatprep.subr.bf16.mxu0 0
        %1565 = vmatpush1.bf16.msra.mxu0 0
        %1566 = vmatprep.mubr.bf16.mxu0 0
        %1567 = vmatmul.mubr.bf16.gmra.mrb[0].mxu0 %v1517
        %v1568 = vpop.f32.mrb[0].mxu0
        %v1569 = vadd.f32 0.0, %v1568
        %v1570 = vpop.f32.mrb[0].mxu0
        %v1571 = vpop.f32.mrb[0].mxu0
        %v1572 = vadd.f32 0.0, %v1571
        %v1573 = vpop.f32.mrb[0].mxu0
        %1574 = vmatprep.mubr.bf16.mxu0 0
        %1575 = vmatmul.mubr.bf16.gmra.mrb[0].mxu0 %v1520
        %v1576 = vpop.f32.mrb[0].mxu0
        %v1577 = vadd.f32 0.0, %v1576
        %v1578 = vpop.f32.mrb[0].mxu0
        %v1579 = vpop.f32.mrb[0].mxu0
        %v1580 = vadd.f32 0.0, %v1579
        %v1581 = vpop.f32.mrb[0].mxu0
        %1582 = vmatprep.mubr.bf16.mxu0 0
        %1583 = vmatmul.mubr.bf16.gmra.mrb[0].mxu0 %v1523
        %v1584 = vpop.f32.mrb[0].mxu0
        %v1585 = vadd.f32 0.0, %v1584
        %v1586 = vpop.f32.mrb[0].mxu0
        %v1587 = vpop.f32.mrb[0].mxu0
        %v1588 = vadd.f32 0.0, %v1587
        %v1589 = vpop.f32.mrb[0].mxu0
        %1590 = vmatprep.mubr.bf16.mxu0 0
        %1591 = vmatmul.mubr.bf16.gmra.mrb[0].mxu0 %v1526
        %v1592 = vpop.f32.mrb[0].mxu0
        %v1593 = vadd.f32 0.0, %v1592
        %v1594 = vpop.f32.mrb[0].mxu0
        %v1595 = vpop.f32.mrb[0].mxu0
        %v1596 = vadd.f32 0.0, %v1595
        %v1597 = vpop.f32.mrb[0].mxu0
        %1598 = vmatprep.mubr.bf16.mxu0 0
        %1599 = vmatmul.mubr.bf16.gmra.mrb[0].mxu0 %v1529
        %v1600 = vpop.f32.mrb[0].mxu0
        %v1601 = vadd.f32 0.0, %v1600
        %v1602 = vpop.f32.mrb[0].mxu0
        %v1603 = vpop.f32.mrb[0].mxu0
        %v1604 = vadd.f32 0.0, %v1603
        %v1605 = vpop.f32.mrb[0].mxu0
        %1606 = vmatprep.mubr.bf16.mxu0 0
        %1607 = vmatmul.mubr.bf16.gmra.mrb[0].mxu0 %v1532
        %v1608 = vpop.f32.mrb[0].mxu0
        %v1609 = vadd.f32 0.0, %v1608
        %v1610 = vpop.f32.mrb[0].mxu0
        %v1611 = vpop.f32.mrb[0].mxu0
        %v1612 = vadd.f32 0.0, %v1611
        %v1613 = vpop.f32.mrb[0].mxu0
        %1614 = vdwg.mxu0
        %v1615 = vpack.c.bf16 %v1572, %v1569
        %v1616 = vpack.c.bf16 %v1580, %v1577
        %v1617 = vpack.c.bf16 %v1588, %v1585
        %v1618 = vpack.c.bf16 %v1596, %v1593
        %v1619 = vpack.c.bf16 %v1604, %v1601
        %v1620 = vpack.c.bf16 %v1612, %v1609
        %v1633 = vunpack.c.l.b16 %v766
        %v1634 = vunpack.c.l.b16 %v767
        %v1635 = vunpack.c.l.b16 %v768
        %v1636 = vunpack.c.l.b16 %v769
        %v1637 = vunpack.c.l.b16 %v770
        %v1638 = vunpack.c.l.b16 %v771
        %v1639 = vunpack.c.l.b16 %v772
        %v1640 = vunpack.c.l.b16 %v773
        %v1641 = vunpack.c.l.b16 %v774
        %v1642 = vunpack.c.l.b16 %v775
        %v1643 = vunpack.c.l.b16 %v776
        %v1644 = vunpack.c.l.b16 %v777
        %v1645 = vpack.c.b16 %v1634, %v1633
        %v1646 = vpack.c.b16 %v1636, %v1635
        %v1647 = vpack.c.b16 %v1638, %v1637
        %v1648 = vpack.c.b16 %v1640, %v1639
        %v1649 = vpack.c.b16 %v1642, %v1641
        %v1650 = vpack.c.b16 %v1644, %v1643
        %v1652 = vsel %vm1245, %v1645, 0
        %v1655 = vsel %vm1245, %v1646, 0
        %v1658 = vsel %vm1245, %v1647, 0
        %v1661 = vsel %vm1245, %v1648, 0
        %v1664 = vsel %vm1245, %v1649, 0
        %v1667 = vsel %vm1245, %v1650, 0
        %1669 = vmatprep.subr.bf16.mxu0 0
        %1670 = vmatpush1.bf16.msra.mxu0 %v1128
        %1671 = vmatprep.subr.bf16.mxu0 0
        %1672 = vmatpush1.bf16.msra.mxu0 %v1129
        %1673 = vmatprep.subr.bf16.mxu0 0
        %1674 = vmatpush1.bf16.msra.mxu0 %v1130
        %1675 = vmatprep.subr.bf16.mxu0 0
        %1676 = vmatpush1.bf16.msra.mxu0 %v1131
        %1677 = vmatprep.subr.bf16.mxu0 0
        %1678 = vmatpush1.bf16.msra.mxu0 %v1132
        %1679 = vmatprep.subr.bf16.mxu0 0
        %1680 = vmatpush1.bf16.msra.mxu0 %v1133
        %1681 = vmatprep.subr.bf16.mxu0 0
        %1682 = vmatpush1.bf16.msra.mxu0 0
        %1683 = vmatprep.subr.bf16.mxu0 0
        %1684 = vmatpush1.bf16.msra.mxu0 0
        %1685 = vmatprep.subr.bf16.mxu0 0
        %1686 = vmatpush1.bf16.msra.mxu0 0
        %1687 = vmatprep.subr.bf16.mxu0 0
        %1688 = vmatpush1.bf16.msra.mxu0 0
        %1689 = vmatprep.subr.bf16.mxu0 0
        %1690 = vmatpush1.bf16.msra.mxu0 0
        %1691 = vmatprep.subr.bf16.mxu0 0
        %1692 = vmatpush1.bf16.msra.mxu0 0
        %1693 = vmatprep.subr.bf16.mxu0 0
        %1694 = vmatpush1.bf16.msra.mxu0 0
        %1695 = vmatprep.subr.bf16.mxu0 0
        %1696 = vmatpush1.bf16.msra.mxu0 0
        %1697 = vmatprep.subr.bf16.mxu0 0
        %1698 = vmatpush1.bf16.msra.mxu0 0
        %1699 = vmatprep.subr.bf16.mxu0 0
        %1700 = vmatpush1.bf16.msra.mxu0 0
        %1701 = vmatprep.mubr.bf16.mxu0 0
        %1702 = vmatmul.mubr.bf16.gmra.mrb[0].mxu0 %v1652
        %v1703 = vpop.f32.mrb[0].mxu0
        %v1704 = vadd.f32 0.0, %v1703
        %v1705 = vpop.f32.mrb[0].mxu0
        %v1706 = vpop.f32.mrb[0].mxu0
        %v1707 = vadd.f32 0.0, %v1706
        %v1708 = vpop.f32.mrb[0].mxu0
        %1709 = vmatprep.mubr.bf16.mxu0 0
        %1710 = vmatmul.mubr.bf16.gmra.mrb[0].mxu0 %v1655
        %v1711 = vpop.f32.mrb[0].mxu0
        %v1712 = vadd.f32 0.0, %v1711
        %v1713 = vpop.f32.mrb[0].mxu0
        %v1714 = vpop.f32.mrb[0].mxu0
        %v1715 = vadd.f32 0.0, %v1714
        %v1716 = vpop.f32.mrb[0].mxu0
        %1717 = vmatprep.mubr.bf16.mxu0 0
        %1718 = vmatmul.mubr.bf16.gmra.mrb[0].mxu0 %v1658
        %v1719 = vpop.f32.mrb[0].mxu0
        %v1720 = vadd.f32 0.0, %v1719
        %v1721 = vpop.f32.mrb[0].mxu0
        %v1722 = vpop.f32.mrb[0].mxu0
        %v1723 = vadd.f32 0.0, %v1722
        %v1724 = vpop.f32.mrb[0].mxu0
        %1725 = vmatprep.mubr.bf16.mxu0 0
        %1726 = vmatmul.mubr.bf16.gmra.mrb[0].mxu0 %v1661
        %v1727 = vpop.f32.mrb[0].mxu0
        %v1728 = vadd.f32 0.0, %v1727
        %v1729 = vpop.f32.mrb[0].mxu0
        %v1730 = vpop.f32.mrb[0].mxu0
        %v1731 = vadd.f32 0.0, %v1730
        %v1732 = vpop.f32.mrb[0].mxu0
        %1733 = vmatprep.mubr.bf16.mxu0 0
        %1734 = vmatmul.mubr.bf16.gmra.mrb[0].mxu0 %v1664
        %v1735 = vpop.f32.mrb[0].mxu0
        %v1736 = vadd.f32 0.0, %v1735
        %v1737 = vpop.f32.mrb[0].mxu0
        %v1738 = vpop.f32.mrb[0].mxu0
        %v1739 = vadd.f32 0.0, %v1738
        %v1740 = vpop.f32.mrb[0].mxu0
        %1741 = vmatprep.mubr.bf16.mxu0 0
        %1742 = vmatmul.mubr.bf16.gmra.mrb[0].mxu0 %v1667
        %v1743 = vpop.f32.mrb[0].mxu0
        %v1744 = vadd.f32 0.0, %v1743
        %v1745 = vpop.f32.mrb[0].mxu0
        %v1746 = vpop.f32.mrb[0].mxu0
        %v1747 = vadd.f32 0.0, %v1746
        %v1748 = vpop.f32.mrb[0].mxu0
        %1749 = vdwg.mxu0
        %v1750 = vpack.c.bf16 %v1707, %v1704
        %v1751 = vpack.c.bf16 %v1715, %v1712
        %v1752 = vpack.c.bf16 %v1723, %v1720
        %v1753 = vpack.c.bf16 %v1731, %v1728
        %v1754 = vpack.c.bf16 %v1739, %v1736
        %v1755 = vpack.c.bf16 %v1747, %v1744
        %1762 = vrot.lane.b32.xlu0 %v1345, 32
        %v1763 = vpop.permute.xlu0 %1762
        %1764 = vrot.lane.b32.xlu0 %v1346, 32
        %v1765 = vpop.permute.xlu0 %1764
        %1766 = vrot.lane.b32.xlu0 %v1347, 32
        %v1767 = vpop.permute.xlu0 %1766
        %1768 = vrot.lane.b32.xlu0 %v1348, 32
        %v1769 = vpop.permute.xlu0 %1768
        %1770 = vrot.lane.b32.xlu0 %v1349, 32
        %v1771 = vpop.permute.xlu0 %1770
        %1772 = vrot.lane.b32.xlu0 %v1350, 32
        %v1773 = vpop.permute.xlu0 %1772
        %1780 = vrot.lane.b32.xlu0 %v1480, 64
        %v1781 = vpop.permute.xlu0 %1780
        %1782 = vrot.lane.b32.xlu0 %v1481, 64
        %v1783 = vpop.permute.xlu0 %1782
        %1784 = vrot.lane.b32.xlu0 %v1482, 64
        %v1785 = vpop.permute.xlu0 %1784
        %1786 = vrot.lane.b32.xlu0 %v1483, 64
        %v1787 = vpop.permute.xlu0 %1786
        %1788 = vrot.lane.b32.xlu0 %v1484, 64
        %v1789 = vpop.permute.xlu0 %1788
        %1790 = vrot.lane.b32.xlu0 %v1485, 64
        %v1791 = vpop.permute.xlu0 %1790
        %1798 = vrot.lane.b32.xlu0 %v1615, 96
        %v1799 = vpop.permute.xlu0 %1798
        %1800 = vrot.lane.b32.xlu0 %v1616, 96
        %v1801 = vpop.permute.xlu0 %1800
        %1802 = vrot.lane.b32.xlu0 %v1617, 96
        %v1803 = vpop.permute.xlu0 %1802
        %1804 = vrot.lane.b32.xlu0 %v1618, 96
        %v1805 = vpop.permute.xlu0 %1804
        %1806 = vrot.lane.b32.xlu0 %v1619, 96
        %v1807 = vpop.permute.xlu0 %1806
        %1808 = vrot.lane.b32.xlu0 %v1620, 96
        %v1809 = vpop.permute.xlu0 %1808
        %v1812 = vsel %vm826, %v1128, %v1763
        %v1815 = vsel %vm826, %v1129, %v1765
        %v1818 = vsel %vm826, %v1130, %v1767
        %v1821 = vsel %vm826, %v1131, %v1769
        %v1824 = vsel %vm826, %v1132, %v1771
        %v1827 = vsel %vm826, %v1133, %v1773
        %v1829 = vsel %vm884, %v1812, %v1781
        %v1831 = vsel %vm884, %v1815, %v1783
        %v1833 = vsel %vm884, %v1818, %v1785
        %v1835 = vsel %vm884, %v1821, %v1787
        %v1837 = vsel %vm884, %v1824, %v1789
        %v1839 = vsel %vm884, %v1827, %v1791
        %v1841 = vsel %vm1245, %v1829, %v1799
        %v1844 = vsel %vm1245, %v1831, %v1801
        %v1847 = vsel %vm1245, %v1833, %v1803
        %v1850 = vsel %vm1245, %v1835, %v1805
        %v1853 = vsel %vm1245, %v1837, %v1807
        %v1856 = vsel %vm1245, %v1839, %v1809
        %v1858 = vld [vmem:[%s8] sm:$0xf]
        %v1859 = vld [vmem:[%s8 + $0x4] sm:$0xf]
        %v1860 = vld [vmem:[%s8 + $0x8] sm:$0xf]
        %v1861 = vld [vmem:[%s8 + $0xc] sm:$0xf]
        %v1862 = vld [vmem:[%s8 + $0x10] sm:$0xf]
        %v1863 = vld [vmem:[%s8 + $0x14] sm:$0xf]
        %v1864 = vld [vmem:[%s8 + $0x18] sm:$0xf]
        %v1865 = vld [vmem:[%s8 + $0x1c] sm:$0xf]
        %v1866 = vld [vmem:[%s8 + $0x20] sm:$0xf]
        %v1867 = vld [vmem:[%s8 + $0x24] sm:$0xf]
        %v1868 = vld [vmem:[%s8 + $0x28] sm:$0xf]
        %v1869 = vld [vmem:[%s8 + $0x2c] sm:$0xf]
        %v1870 = vld [vmem:[%s8 + $0x30] sm:$0xf]
        %v1871 = vld [vmem:[%s8 + $0x34] sm:$0xf]
        %v1872 = vld [vmem:[%s8 + $0x38] sm:$0xf]
        %v1873 = vld [vmem:[%s8 + $0x3c] sm:$0xf]
        %v1874 = vld [vmem:[%s8 + $0x40] sm:$0xf]
        %v1875 = vld [vmem:[%s8 + $0x44] sm:$0xf]
        %v1876 = vld [vmem:[%s8 + $0x48] sm:$0xf]
        %v1877 = vld [vmem:[%s8 + $0x4c] sm:$0xf]
        %v1878 = vld [vmem:[#allocation11] sm:$0x1]
        %v1880 = vlaneseq
        %v1881 = vshrl.u32 %v1880, 7
        %v1882 = vsub.s32 0, %v1881
        %v1883 = vrot.slane %v1878, %v1882
        %v1885 = vmul.f32 %v718, %v1883
        %v1886 = vmul.f32 %v719, %v1883
        %v1887 = vmul.f32 %v720, %v1883
        %v1888 = vmul.f32 %v721, %v1883
        %v1889 = vmul.f32 %v722, %v1883
        %v1890 = vmul.f32 %v723, %v1883
        %v1891 = vmul.f32 %v724, %v1883
        %v1892 = vmul.f32 %v725, %v1883
        %v1893 = vmul.f32 %v726, %v1883
        %v1894 = vmul.f32 %v727, %v1883
        %v1895 = vmul.f32 %v728, %v1883
        %v1896 = vmul.f32 %v729, %v1883
        %v1917 = vunpack.c.l.b16 %v1858
        %v1918 = vunpack.c.l.b16 %v1859
        %v1919 = vunpack.c.l.b16 %v1860
        %v1920 = vunpack.c.l.b16 %v1861
        %v1921 = vunpack.c.l.b16 %v1862
        %v1922 = vunpack.c.l.b16 %v1863
        %v1923 = vunpack.c.l.b16 %v1864
        %v1924 = vunpack.c.l.b16 %v1865
        %v1925 = vunpack.c.l.b16 %v1866
        %v1926 = vunpack.c.l.b16 %v1867
        %v1927 = vunpack.c.l.b16 %v1868
        %v1928 = vunpack.c.l.b16 %v1869
        %v1929 = vunpack.c.l.b16 %v1870
        %v1930 = vunpack.c.l.b16 %v1871
        %v1931 = vunpack.c.l.b16 %v1872
        %v1932 = vunpack.c.l.b16 %v1873
        %v1933 = vunpack.c.l.b16 %v1874
        %v1934 = vunpack.c.l.b16 %v1875
        %v1935 = vunpack.c.l.b16 %v1876
        %v1936 = vunpack.c.l.b16 %v1877
        %v1937 = vpack.c.b16 %v1918, %v1917
        %v1938 = vpack.c.b16 %v1920, %v1919
        %v1939 = vpack.c.b16 %v1922, %v1921
        %v1940 = vpack.c.b16 %v1924, %v1923
        %v1941 = vpack.c.b16 %v1926, %v1925
        %v1942 = vpack.c.b16 %v1928, %v1927
        %v1943 = vpack.c.b16 %v1930, %v1929
        %v1944 = vpack.c.b16 %v1932, %v1931
        %v1945 = vpack.c.b16 %v1934, %v1933
        %v1946 = vpack.c.b16 %v1936, %v1935
        %v1958 = vsel %vm826, %v1750, 0
        %v1961 = vsel %vm826, %v1751, 0
        %v1964 = vsel %vm826, %v1752, 0
        %v1967 = vsel %vm826, %v1753, 0
        %v1970 = vsel %vm826, %v1754, 0
        %v1973 = vsel %vm826, %v1755, 0
        %1975 = vmatprep.subr.bf16.mxu0 0
        %1976 = vmatpush1.bf16.msra.mxu0 %v1937
        %1977 = vmatprep.subr.bf16.mxu0 0
        %1978 = vmatpush1.bf16.msra.mxu0 %v1938
        %1979 = vmatprep.subr.bf16.mxu0 0
        %1980 = vmatpush1.bf16.msra.mxu0 %v1939
        %1981 = vmatprep.subr.bf16.mxu0 0
        %1982 = vmatpush1.bf16.msra.mxu0 %v1940
        %1983 = vmatprep.subr.bf16.mxu0 0
        %1984 = vmatpush1.bf16.msra.mxu0 %v1941
        %1985 = vmatprep.subr.bf16.mxu0 0
        %1986 = vmatpush1.bf16.msra.mxu0 %v1942
        %1987 = vmatprep.subr.bf16.mxu0 0
        %1988 = vmatpush1.bf16.msra.mxu0 %v1943
        %1989 = vmatprep.subr.bf16.mxu0 0
        %1990 = vmatpush1.bf16.msra.mxu0 %v1944
        %1991 = vmatprep.subr.bf16.mxu0 0
        %1992 = vmatpush1.bf16.msra.mxu0 %v1945
        %1993 = vmatprep.subr.bf16.mxu0 0
        %1994 = vmatpush1.bf16.msra.mxu0 %v1946
        %1995 = vmatprep.subr.bf16.mxu0 0
        %1996 = vmatpush1.bf16.msra.mxu0 0
        %1997 = vmatprep.subr.bf16.mxu0 0
        %1998 = vmatpush1.bf16.msra.mxu0 0
        %1999 = vmatprep.subr.bf16.mxu0 0
        %2000 = vmatpush1.bf16.msra.mxu0 0
        %2001 = vmatprep.subr.bf16.mxu0 0
        %2002 = vmatpush1.bf16.msra.mxu0 0
        %2003 = vmatprep.subr.bf16.mxu0 0
        %2004 = vmatpush1.bf16.msra.mxu0 0
        %2005 = vmatprep.subr.bf16.mxu0 0
        %2006 = vmatpush1.bf16.msra.mxu0 0
        %2007 = vmatprep.mubr.bf16.mxu0 %v1958
        %2008 = vmatmul.mubr.bf16.gmra.mrb[0].mxu0 %v1841
        %v2009 = vpop.f32.mrb[0].mxu0
        %v2010 = vadd.f32 %v1885, %v2009
        %v2011 = vpop.f32.mrb[0].mxu0
        %v2012 = vpop.f32.mrb[0].mxu0
        %v2013 = vadd.f32 %v1886, %v2012
        %v2014 = vpop.f32.mrb[0].mxu0
        %2015 = vmatprep.mubr.bf16.mxu0 %v1961
        %2016 = vmatmul.mubr.bf16.gmra.mrb[0].mxu0 %v1844
        %v2017 = vpop.f32.mrb[0].mxu0
        %v2018 = vadd.f32 %v1887, %v2017
        %v2019 = vpop.f32.mrb[0].mxu0
        %v2020 = vpop.f32.mrb[0].mxu0
        %v2021 = vadd.f32 %v1888, %v2020
        %v2022 = vpop.f32.mrb[0].mxu0
        %2023 = vmatprep.mubr.bf16.mxu0 %v1964
        %2024 = vmatmul.mubr.bf16.gmra.mrb[0].mxu0 %v1847
        %v2025 = vpop.f32.mrb[0].mxu0
        %v2026 = vadd.f32 %v1889, %v2025
        %v2027 = vpop.f32.mrb[0].mxu0
        %v2028 = vpop.f32.mrb[0].mxu0
        %v2029 = vadd.f32 %v1890, %v2028
        %v2030 = vpop.f32.mrb[0].mxu0
        %2031 = vmatprep.mubr.bf16.mxu0 %v1967
        %2032 = vmatmul.mubr.bf16.gmra.mrb[0].mxu0 %v1850
        %v2033 = vpop.f32.mrb[0].mxu0
        %v2034 = vadd.f32 %v1891, %v2033
        %v2035 = vpop.f32.mrb[0].mxu0
        %v2036 = vpop.f32.mrb[0].mxu0
        %v2037 = vadd.f32 %v1892, %v2036
        %v2038 = vpop.f32.mrb[0].mxu0
        %2039 = vmatprep.mubr.bf16.mxu0 %v1970
        %2040 = vmatmul.mubr.bf16.gmra.mrb[0].mxu0 %v1853
        %v2041 = vpop.f32.mrb[0].mxu0
        %v2042 = vadd.f32 %v1893, %v2041
        %v2043 = vpop.f32.mrb[0].mxu0
        %v2044 = vpop.f32.mrb[0].mxu0
        %v2045 = vadd.f32 %v1894, %v2044
        %v2046 = vpop.f32.mrb[0].mxu0
        %2047 = vmatprep.mubr.bf16.mxu0 %v1973
        %2048 = vmatmul.mubr.bf16.gmra.mrb[0].mxu0 %v1856
        %v2049 = vpop.f32.mrb[0].mxu0
        %v2050 = vadd.f32 %v1895, %v2049
        %v2051 = vpop.f32.mrb[0].mxu0
        %v2052 = vpop.f32.mrb[0].mxu0
        %v2053 = vadd.f32 %v1896, %v2052
        %v2054 = vpop.f32.mrb[0].mxu0
        %2055 = vdwg.mxu0
        %v2056 = vld [vmem:[#allocation10] sm:$0x1]
        %v2058 = vlaneseq
        %v2059 = vshrl.u32 %v2058, 7
        %v2060 = vsub.s32 0, %v2059
        %v2061 = vrot.slane %v2056, %v2060
        %v2063 = vadd.f32 %v2010, %v2061
        %v2064 = vadd.f32 %v2013, %v2061
        %v2065 = vadd.f32 %v2018, %v2061
        %v2066 = vadd.f32 %v2021, %v2061
        %v2067 = vadd.f32 %v2026, %v2061
        %v2068 = vadd.f32 %v2029, %v2061
        %v2069 = vadd.f32 %v2034, %v2061
        %v2070 = vadd.f32 %v2037, %v2061
        %v2071 = vadd.f32 %v2042, %v2061
        %v2072 = vadd.f32 %v2045, %v2061
        %v2073 = vadd.f32 %v2050, %v2061
        %v2074 = vadd.f32 %v2053, %v2061
        %2085 = vrot.lane.b32.xlu0 %v2065, 32
        %v2086 = vpop.permute.xlu0 %2085
        %2087 = vrot.lane.b32.xlu0 %v2066, 32
        %v2088 = vpop.permute.xlu0 %2087
        %2089 = vrot.lane.b32.xlu0 %v2067, 32
        %v2090 = vpop.permute.xlu0 %2089
        %2091 = vrot.lane.b32.xlu0 %v2068, 32
        %v2092 = vpop.permute.xlu0 %2091
        %2093 = vrot.lane.b32.xlu0 %v2069, 32
        %v2094 = vpop.permute.xlu0 %2093
        %2095 = vrot.lane.b32.xlu0 %v2070, 32
        %v2096 = vpop.permute.xlu0 %2095
        %2097 = vrot.lane.b32.xlu0 %v2071, 32
        %v2098 = vpop.permute.xlu0 %2097
        %2099 = vrot.lane.b32.xlu0 %v2072, 32
        %v2100 = vpop.permute.xlu0 %2099
        %2101 = vrot.lane.b32.xlu0 %v2073, 32
        %v2102 = vpop.permute.xlu0 %2101
        %2103 = vrot.lane.b32.xlu0 %v2074, 32
        %v2104 = vpop.permute.xlu0 %2103
        %v2115 = vsel %vm826, %v2063, %v2086
        %v2116 = vsel %vm826, %v2064, %v2088
        %v2117 = vsel %vm826, %v2065, %v2090
        %v2118 = vsel %vm826, %v2066, %v2092
        %v2119 = vsel %vm826, %v2067, %v2094
        %v2120 = vsel %vm826, %v2068, %v2096
        %v2121 = vsel %vm826, %v2069, %v2098
        %v2122 = vsel %vm826, %v2070, %v2100
        %v2123 = vsel %vm826, %v2071, %v2102
        %v2124 = vsel %vm826, %v2072, %v2104
        %v2125 = vpack.c.bf16 %v2116, %v2115
        %v2126 = vpack.c.bf16 %v2118, %v2117
        %v2127 = vpack.c.bf16 %v2120, %v2119
        %v2128 = vpack.c.bf16 %v2122, %v2121
        %v2129 = vpack.c.bf16 %v2124, %v2123
        %s2130 = scalar_lea.vmem %s4, 32
        %v2131 = vld [vmem:[%s2130] sm:$0xf]
        %v2132 = vld [vmem:[%s2130 + $0x4] sm:$0xf]
        %v2133 = vld [vmem:[%s2130 + $0x8] sm:$0xf]
        %v2134 = vld [vmem:[%s2130 + $0xc] sm:$0xf]
        %v2135 = vld [vmem:[%s2130 + $0x10] sm:$0xf]
        %v2136 = vld [vmem:[%s2130 + $0x14] sm:$0xf]
        %v2137 = vld [vmem:[%s2130 + $0x18] sm:$0xf]
        %v2138 = vld [vmem:[%s2130 + $0x1c] sm:$0xf]
        %s2139 = scalar_lea.vmem [#allocation5], 1
        %v2140 = vld [vmem:[%s2139] sm:$0x1]
        %v2142 = vlaneseq
        %v2143 = vshrl.u32 %v2142, 7
        %v2144 = vsub.s32 0, %v2143
        %v2145 = vrot.slane %v2140, %v2144
        %v2155 = vunpack.c.l.b16 %v2131
        %v2156 = vunpack.c.l.b16 %v2132
        %v2157 = vunpack.c.l.b16 %v2133
        %v2158 = vunpack.c.l.b16 %v2134
        %v2159 = vunpack.c.l.b16 %v2135
        %v2160 = vunpack.c.l.b16 %v2136
        %v2161 = vunpack.c.l.b16 %v2137
        %v2162 = vunpack.c.l.b16 %v2138
        %v2163 = vpack.c.b16 %v2156, %v2155
        %v2164 = vpack.c.b16 %v2158, %v2157
        %v2165 = vpack.c.b16 %v2160, %v2159
        %v2166 = vpack.c.b16 %v2162, %v2161
        %v2172 = vsel %vm884, %v2125, 0
        %v2175 = vsel %vm884, %v2126, 0
        %v2178 = vsel %vm884, %v2127, 0
        %v2181 = vsel %vm884, %v2128, 0
        %v2184 = vsel %vm884, %v2129, 0
        %2186 = vmatprep.subr.bf16.mxu0 0
        %2187 = vmatpush1.bf16.msra.mxu0 %v2163
        %2188 = vmatprep.subr.bf16.mxu0 0
        %2189 = vmatpush1.bf16.msra.mxu0 %v2164
        %2190 = vmatprep.subr.bf16.mxu0 0
        %2191 = vmatpush1.bf16.msra.mxu0 %v2165
        %2192 = vmatprep.subr.bf16.mxu0 0
        %2193 = vmatpush1.bf16.msra.mxu0 %v2166
        %2194 = vmatprep.subr.bf16.mxu0 0
        %2195 = vmatpush1.bf16.msra.mxu0 0
        %2196 = vmatprep.subr.bf16.mxu0 0
        %2197 = vmatpush1.bf16.msra.mxu0 0
        %2198 = vmatprep.subr.bf16.mxu0 0
        %2199 = vmatpush1.bf16.msra.mxu0 0
        %2200 = vmatprep.subr.bf16.mxu0 0
        %2201 = vmatpush1.bf16.msra.mxu0 0
        %2202 = vmatprep.subr.bf16.mxu0 0
        %2203 = vmatpush1.bf16.msra.mxu0 0
        %2204 = vmatprep.subr.bf16.mxu0 0
        %2205 = vmatpush1.bf16.msra.mxu0 0
        %2206 = vmatprep.subr.bf16.mxu0 0
        %2207 = vmatpush1.bf16.msra.mxu0 0
        %2208 = vmatprep.subr.bf16.mxu0 0
        %2209 = vmatpush1.bf16.msra.mxu0 0
        %2210 = vmatprep.subr.bf16.mxu0 0
        %2211 = vmatpush1.bf16.msra.mxu0 0
        %2212 = vmatprep.subr.bf16.mxu0 0
        %2213 = vmatpush1.bf16.msra.mxu0 0
        %2214 = vmatprep.subr.bf16.mxu0 0
        %2215 = vmatpush1.bf16.msra.mxu0 0
        %2216 = vmatprep.subr.bf16.mxu0 0
        %2217 = vmatpush1.bf16.msra.mxu0 0
        %2218 = vmatprep.mubr.bf16.mxu0 0
        %2219 = vmatmul.mubr.bf16.gmra.mrb[0].mxu0 %v2172
        %v2220 = vpop.f32.mrb[0].mxu0
        %v2221 = vadd.f32 %v2145, %v2220
        %v2222 = vpop.f32.mrb[0].mxu0
        %v2223 = vpop.f32.mrb[0].mxu0
        %v2224 = vadd.f32 %v2145, %v2223
        %v2225 = vpop.f32.mrb[0].mxu0
        %2226 = vmatprep.mubr.bf16.mxu0 0
        %2227 = vmatmul.mubr.bf16.gmra.mrb[0].mxu0 %v2175
        %v2228 = vpop.f32.mrb[0].mxu0
        %v2229 = vadd.f32 %v2145, %v2228
        %v2230 = vpop.f32.mrb[0].mxu0
        %v2231 = vpop.f32.mrb[0].mxu0
        %v2232 = vadd.f32 %v2145, %v2231
        %v2233 = vpop.f32.mrb[0].mxu0
        %2234 = vmatprep.mubr.bf16.mxu0 0
        %2235 = vmatmul.mubr.bf16.gmra.mrb[0].mxu0 %v2178
        %v2236 = vpop.f32.mrb[0].mxu0
        %v2237 = vadd.f32 %v2145, %v2236
        %v2238 = vpop.f32.mrb[0].mxu0
        %v2239 = vpop.f32.mrb[0].mxu0
        %v2240 = vadd.f32 %v2145, %v2239
        %v2241 = vpop.f32.mrb[0].mxu0
        %2242 = vmatprep.mubr.bf16.mxu0 0
        %2243 = vmatmul.mubr.bf16.gmra.mrb[0].mxu0 %v2181
        %v2244 = vpop.f32.mrb[0].mxu0
        %v2245 = vadd.f32 %v2145, %v2244
        %v2246 = vpop.f32.mrb[0].mxu0
        %v2247 = vpop.f32.mrb[0].mxu0
        %v2248 = vadd.f32 %v2145, %v2247
        %v2249 = vpop.f32.mrb[0].mxu0
        %2250 = vmatprep.mubr.bf16.mxu0 0
        %2251 = vmatmul.mubr.bf16.gmra.mrb[0].mxu0 %v2184
        %v2252 = vpop.f32.mrb[0].mxu0
        %v2253 = vadd.f32 %v2145, %v2252
        %v2254 = vpop.f32.mrb[0].mxu0
        %v2255 = vpop.f32.mrb[0].mxu0
        %v2256 = vadd.f32 %v2145, %v2255
        %v2257 = vpop.f32.mrb[0].mxu0
        %2258 = vdwg.mxu0
        %v2259 = vtanh.pop %v2221
        %v2260 = vtanh.pop %v2224
        %v2261 = vtanh.pop %v2229
        %v2262 = vtanh.pop %v2232
        %v2263 = vtanh.pop %v2237
        %v2264 = vtanh.pop %v2240
        %v2265 = vtanh.pop %v2245
        %v2266 = vtanh.pop %v2248
        %v2267 = vtanh.pop %v2253
        %v2268 = vtanh.pop %v2256
        %v2269 = vxor.u32 %v2221, 2147483648
        %v2270 = vxor.u32 %v2224, 2147483648
        %v2271 = vxor.u32 %v2229, 2147483648
        %v2272 = vxor.u32 %v2232, 2147483648
        %v2273 = vxor.u32 %v2237, 2147483648
        %v2274 = vxor.u32 %v2240, 2147483648
        %v2275 = vxor.u32 %v2245, 2147483648
        %v2276 = vxor.u32 %v2248, 2147483648
        %v2277 = vxor.u32 %v2253, 2147483648
        %v2278 = vxor.u32 %v2256, 2147483648
        %v2279 = vmul.f32 %v2269, 1.442695
        %v2280 = vpow.pop %v2279
        %v2281 = vmul.f32 %v2270, 1.442695
        %v2282 = vpow.pop %v2281
        %v2283 = vmul.f32 %v2271, 1.442695
        %v2284 = vpow.pop %v2283
        %v2285 = vmul.f32 %v2272, 1.442695
        %v2286 = vpow.pop %v2285
        %v2287 = vmul.f32 %v2273, 1.442695
        %v2288 = vpow.pop %v2287
        %v2289 = vmul.f32 %v2274, 1.442695
        %v2290 = vpow.pop %v2289
        %v2291 = vmul.f32 %v2275, 1.442695
        %v2292 = vpow.pop %v2291
        %v2293 = vmul.f32 %v2276, 1.442695
        %v2294 = vpow.pop %v2293
        %v2295 = vmul.f32 %v2277, 1.442695
        %v2296 = vpow.pop %v2295
        %v2297 = vmul.f32 %v2278, 1.442695
        %v2298 = vpow.pop %v2297
        %v2299 = vadd.f32 %v2280, 1.0
        %v2300 = vadd.f32 %v2282, 1.0
        %v2301 = vadd.f32 %v2284, 1.0
        %v2302 = vadd.f32 %v2286, 1.0
        %v2303 = vadd.f32 %v2288, 1.0
        %v2304 = vadd.f32 %v2290, 1.0
        %v2305 = vadd.f32 %v2292, 1.0
        %v2306 = vadd.f32 %v2294, 1.0
        %v2307 = vadd.f32 %v2296, 1.0
        %v2308 = vadd.f32 %v2298, 1.0
        %v2309 = vrcp.pop %v2299
        %v2310 = vmul.f32 1.0, %v2309
        %v2311 = vrcp.pop %v2300
        %v2312 = vmul.f32 1.0, %v2311
        %v2313 = vrcp.pop %v2301
        %v2314 = vmul.f32 1.0, %v2313
        %v2315 = vrcp.pop %v2302
        %v2316 = vmul.f32 1.0, %v2315
        %v2317 = vrcp.pop %v2303
        %v2318 = vmul.f32 1.0, %v2317
        %v2319 = vrcp.pop %v2304
        %v2320 = vmul.f32 1.0, %v2319
        %v2321 = vrcp.pop %v2305
        %v2322 = vmul.f32 1.0, %v2321
        %v2323 = vrcp.pop %v2306
        %v2324 = vmul.f32 1.0, %v2323
        %v2325 = vrcp.pop %v2307
        %v2326 = vmul.f32 1.0, %v2325
        %v2327 = vrcp.pop %v2308
        %v2328 = vmul.f32 1.0, %v2327
        %2339 = vrot.lane.b32.xlu0 %v2310, 96
        %v2340 = vpop.permute.xlu0 %2339
        %2341 = vrot.lane.b32.xlu0 %v2312, 96
        %v2342 = vpop.permute.xlu0 %2341
        %2343 = vrot.lane.b32.xlu0 %v2314, 96
        %v2344 = vpop.permute.xlu0 %2343
        %2345 = vrot.lane.b32.xlu0 %v2316, 96
        %v2346 = vpop.permute.xlu0 %2345
        %2347 = vrot.lane.b32.xlu0 %v2318, 96
        %v2348 = vpop.permute.xlu0 %2347
        %2349 = vrot.lane.b32.xlu0 %v2320, 96
        %v2350 = vpop.permute.xlu0 %2349
        %2351 = vrot.lane.b32.xlu0 %v2322, 96
        %v2352 = vpop.permute.xlu0 %2351
        %2353 = vrot.lane.b32.xlu0 %v2324, 96
        %v2354 = vpop.permute.xlu0 %2353
        %2355 = vrot.lane.b32.xlu0 %v2326, 96
        %v2356 = vpop.permute.xlu0 %2355
        %2357 = vrot.lane.b32.xlu0 %v2328, 96
        %v2358 = vpop.permute.xlu0 %2357
        %v2369 = vmul.f32 %v2259, %v2340
        %v2370 = vmul.f32 %v2260, %v2342
        %v2371 = vmul.f32 %v2261, %v2344
        %v2372 = vmul.f32 %v2262, %v2346
        %v2373 = vmul.f32 %v2263, %v2348
        %v2374 = vmul.f32 %v2264, %v2350
        %v2375 = vmul.f32 %v2265, %v2352
        %v2376 = vmul.f32 %v2266, %v2354
        %v2377 = vmul.f32 %v2267, %v2356
        %v2378 = vmul.f32 %v2268, %v2358
        %v2379 = vpack.c.bf16 %v2370, %v2369
        %v2380 = vpack.c.bf16 %v2372, %v2371
        %v2381 = vpack.c.bf16 %v2374, %v2373
        %v2382 = vpack.c.bf16 %v2376, %v2375
        %v2383 = vpack.c.bf16 %v2378, %v2377
        %v2384 = vpack.c.bf16 %v2378, %v2378
        %s2385 = scalar_lea.vmem [#allocation7], 32
        %v2386 = vld [vmem:[%s2385] sm:$0xff]
        %v2387 = vld [vmem:[%s2385 + $0x8] sm:$0xff]
        %v2388 = vld [vmem:[%s2385 + $0x10] sm:$0xff]
        %v2389 = vld [vmem:[%s2385 + $0x18] sm:$0xff]
        %s2390 = scalar_lea.vmem [#allocation8], 2
        %v2391 = vld [vmem:[%s2390] sm:$0x3]
        %v2393 = vlaneseq
        %v2394 = vshrl.u32 %v2393, 7
        %v2395 = vsub.s32 0, %v2394
        %v2396 = vrot.slane %v2391, %v2395
        %v2397 = vlaneseq
        %v2398 = vshrl.u32 %v2397, 7
        %v2399 = vsub.s32 1, %v2398
        %v2400 = vrot.slane %v2391, %v2399
        %v2407 = vunpack.c.l.b16 %v2386
        %v2408 = vunpack.c.h.b16 %v2386
        %v2409 = vunpack.c.l.b16 %v2387
        %v2410 = vunpack.c.h.b16 %v2387
        %v2411 = vunpack.c.l.b16 %v2388
        %v2412 = vunpack.c.h.b16 %v2388
        %v2413 = vunpack.c.l.b16 %v2389
        %v2414 = vunpack.c.h.b16 %v2389
        %v2415 = vpack.c.b16 %v2409, %v2407
        %v2416 = vpack.c.b16 %v2410, %v2408
        %v2417 = vpack.c.b16 %v2413, %v2411
        %v2418 = vpack.c.b16 %v2414, %v2412
        %v2424 = vsel %vm826, %v2384, 0
        %2426 = vmatprep.subr.bf16.mxu0 %v2416
        %2427 = vmatpush1.bf16.msra.mxu0 %v2415
        %2428 = vmatprep.subr.bf16.mxu0 %v2418
        %2429 = vmatpush1.bf16.msra.mxu0 %v2417
        %2430 = vmatprep.subr.bf16.mxu0 0
        %2431 = vmatpush1.bf16.msra.mxu0 0
        %2432 = vmatprep.subr.bf16.mxu0 0
        %2433 = vmatpush1.bf16.msra.mxu0 0
        %2434 = vmatprep.subr.bf16.mxu0 0
        %2435 = vmatpush1.bf16.msra.mxu0 0
        %2436 = vmatprep.subr.bf16.mxu0 0
        %2437 = vmatpush1.bf16.msra.mxu0 0
        %2438 = vmatprep.subr.bf16.mxu0 0
        %2439 = vmatpush1.bf16.msra.mxu0 0
        %2440 = vmatprep.subr.bf16.mxu0 0
        %2441 = vmatpush1.bf16.msra.mxu0 0
        %2442 = vmatprep.subr.bf16.mxu0 0
        %2443 = vmatpush1.bf16.msra.mxu0 0
        %2444 = vmatprep.subr.bf16.mxu0 0
        %2445 = vmatpush1.bf16.msra.mxu0 0
        %2446 = vmatprep.subr.bf16.mxu0 0
        %2447 = vmatpush1.bf16.msra.mxu0 0
        %2448 = vmatprep.subr.bf16.mxu0 0
        %2449 = vmatpush1.bf16.msra.mxu0 0
        %2450 = vmatprep.subr.bf16.mxu0 0
        %2451 = vmatpush1.bf16.msra.mxu0 0
        %2452 = vmatprep.subr.bf16.mxu0 0
        %2453 = vmatpush1.bf16.msra.mxu0 0
        %2454 = vmatprep.subr.bf16.mxu0 0
        %2455 = vmatpush1.bf16.msra.mxu0 0
        %2456 = vmatprep.subr.bf16.mxu0 0
        %2457 = vmatpush1.bf16.msra.mxu0 0
        %2458 = vmatprep.mubr.bf16.mxu0 0
        %2459 = vmatmul.mubr.bf16.gmra.mrb[0].mxu0 %v2424
        %v2460 = vpop.f32.mrb[0].mxu0
        %v2461 = vadd.f32 %v2396, %v2460
        %v2462 = vpop.f32.mrb[0].mxu0
        %v2463 = vadd.f32 %v2400, %v2462
        %v2464 = vpop.f32.mrb[0].mxu0
        %v2465 = vpop.f32.mrb[0].mxu0
        %2466 = vdwg.mxu0
        %v2467 = vadd.f32 %v1209, %v2461
        %v2468 = vadd.f32 %v1211, %v2463
        %vm2469 = vcmask 654336
        %v2470 = vsel %vm2469, %v1239, 0
        %v2472 = vsel %vm2469, %v1240, 0
        %v2474 = vsel %vm2469, %v1241, 0
        %v2476 = vsel %vm2469, %v1242, 0
        %v2478 = vsel %vm2469, %v1243, 0
        %2480 = vmatprep.subr.bf16.mxu0 0
        %2481 = vmatpush1.bf16.msra.mxu0 %v2379
        %2482 = vmatprep.subr.bf16.mxu0 0
        %2483 = vmatpush1.bf16.msra.mxu0 %v2380
        %2484 = vmatprep.subr.bf16.mxu0 0
        %2485 = vmatpush1.bf16.msra.mxu0 %v2381
        %2486 = vmatprep.subr.bf16.mxu0 0
        %2487 = vmatpush1.bf16.msra.mxu0 %v2382
        %2488 = vmatprep.subr.bf16.mxu0 0
        %2489 = vmatpush1.bf16.msra.mxu0 %v2383
        %2490 = vmatprep.subr.bf16.mxu0 0
        %2491 = vmatpush1.bf16.msra.mxu0 0
        %2492 = vmatprep.subr.bf16.mxu0 0
        %2493 = vmatpush1.bf16.msra.mxu0 0
        %2494 = vmatprep.subr.bf16.mxu0 0
        %2495 = vmatpush1.bf16.msra.mxu0 0
        %2496 = vmatprep.subr.bf16.mxu0 0
        %2497 = vmatpush1.bf16.msra.mxu0 0
        %2498 = vmatprep.subr.bf16.mxu0 0
        %2499 = vmatpush1.bf16.msra.mxu0 0
        %2500 = vmatprep.subr.bf16.mxu0 0
        %2501 = vmatpush1.bf16.msra.mxu0 0
        %2502 = vmatprep.subr.bf16.mxu0 0
        %2503 = vmatpush1.bf16.msra.mxu0 0
        %2504 = vmatprep.subr.bf16.mxu0 0
        %2505 = vmatpush1.bf16.msra.mxu0 0
        %2506 = vmatprep.subr.bf16.mxu0 0
        %2507 = vmatpush1.bf16.msra.mxu0 0
        %2508 = vmatprep.subr.bf16.mxu0 0
        %2509 = vmatpush1.bf16.msra.mxu0 0
        %2510 = vmatprep.subr.bf16.mxu0 0
        %2511 = vmatpush1.bf16.msra.mxu0 0
        %2512 = vmatprep.mubr.bf16.mxu0 0
        %2513 = vmatmul.mubr.bf16.gmra.mrb[0].mxu0 %v2470
        %v2514 = vpop.f32.mrb[0].mxu0
        %v2515 = vadd.f32 0.0, %v2514
        %v2516 = vpop.f32.mrb[0].mxu0
        %v2517 = vpop.f32.mrb[0].mxu0
        %v2518 = vadd.f32 0.0, %v2517
        %v2519 = vpop.f32.mrb[0].mxu0
        %2520 = vmatprep.mubr.bf16.mxu0 0
        %2521 = vmatmul.mubr.bf16.gmra.mrb[0].mxu0 %v2472
        %v2522 = vpop.f32.mrb[0].mxu0
        %v2523 = vadd.f32 0.0, %v2522
        %v2524 = vpop.f32.mrb[0].mxu0
        %v2525 = vpop.f32.mrb[0].mxu0
        %v2526 = vadd.f32 0.0, %v2525
        %v2527 = vpop.f32.mrb[0].mxu0
        %2528 = vmatprep.mubr.bf16.mxu0 0
        %2529 = vmatmul.mubr.bf16.gmra.mrb[0].mxu0 %v2474
        %v2530 = vpop.f32.mrb[0].mxu0
        %v2531 = vadd.f32 0.0, %v2530
        %v2532 = vpop.f32.mrb[0].mxu0
        %v2533 = vpop.f32.mrb[0].mxu0
        %v2534 = vadd.f32 0.0, %v2533
        %v2535 = vpop.f32.mrb[0].mxu0
        %2536 = vmatprep.mubr.bf16.mxu0 0
        %2537 = vmatmul.mubr.bf16.gmra.mrb[0].mxu0 %v2476
        %v2538 = vpop.f32.mrb[0].mxu0
        %v2539 = vadd.f32 0.0, %v2538
        %v2540 = vpop.f32.mrb[0].mxu0
        %v2541 = vpop.f32.mrb[0].mxu0
        %v2542 = vadd.f32 0.0, %v2541
        %v2543 = vpop.f32.mrb[0].mxu0
        %2544 = vmatprep.mubr.bf16.mxu0 0
        %2545 = vmatmul.mubr.bf16.gmra.mrb[0].mxu0 %v2478
        %v2546 = vpop.f32.mrb[0].mxu0
        %v2547 = vadd.f32 0.0, %v2546
        %v2548 = vpop.f32.mrb[0].mxu0
        %v2549 = vpop.f32.mrb[0].mxu0
        %v2550 = vadd.f32 0.0, %v2549
        %v2551 = vpop.f32.mrb[0].mxu0
        %2552 = vdwg.mxu0
        %v2553 = vpack.c.bf16 %v2518, %v2515
        %v2554 = vpack.c.bf16 %v2526, %v2523
        %v2555 = vpack.c.bf16 %v2534, %v2531
        %v2556 = vpack.c.bf16 %v2542, %v2539
        %v2557 = vpack.c.bf16 %v2550, %v2547
        %v2558 = vsel %vm2469, %v1375, 0
        %v2560 = vsel %vm2469, %v1376, 0
        %v2562 = vsel %vm2469, %v1377, 0
        %v2564 = vsel %vm2469, %v1378, 0
        %v2566 = vsel %vm2469, %v1379, 0
        %2568 = vmatprep.subr.bf16.mxu0 0
        %2569 = vmatpush1.bf16.msra.mxu0 %v2379
        %2570 = vmatprep.subr.bf16.mxu0 0
        %2571 = vmatpush1.bf16.msra.mxu0 %v2380
        %2572 = vmatprep.subr.bf16.mxu0 0
        %2573 = vmatpush1.bf16.msra.mxu0 %v2381
        %2574 = vmatprep.subr.bf16.mxu0 0
        %2575 = vmatpush1.bf16.msra.mxu0 %v2382
        %2576 = vmatprep.subr.bf16.mxu0 0
        %2577 = vmatpush1.bf16.msra.mxu0 %v2383
        %2578 = vmatprep.subr.bf16.mxu0 0
        %2579 = vmatpush1.bf16.msra.mxu0 0
        %2580 = vmatprep.subr.bf16.mxu0 0
        %2581 = vmatpush1.bf16.msra.mxu0 0
        %2582 = vmatprep.subr.bf16.mxu0 0
        %2583 = vmatpush1.bf16.msra.mxu0 0
        %2584 = vmatprep.subr.bf16.mxu0 0
        %2585 = vmatpush1.bf16.msra.mxu0 0
        %2586 = vmatprep.subr.bf16.mxu0 0
        %2587 = vmatpush1.bf16.msra.mxu0 0
        %2588 = vmatprep.subr.bf16.mxu0 0
        %2589 = vmatpush1.bf16.msra.mxu0 0
        %2590 = vmatprep.subr.bf16.mxu0 0
        %2591 = vmatpush1.bf16.msra.mxu0 0
        %2592 = vmatprep.subr.bf16.mxu0 0
        %2593 = vmatpush1.bf16.msra.mxu0 0
        %2594 = vmatprep.subr.bf16.mxu0 0
        %2595 = vmatpush1.bf16.msra.mxu0 0
        %2596 = vmatprep.subr.bf16.mxu0 0
        %2597 = vmatpush1.bf16.msra.mxu0 0
        %2598 = vmatprep.subr.bf16.mxu0 0
        %2599 = vmatpush1.bf16.msra.mxu0 0
        %2600 = vmatprep.mubr.bf16.mxu0 0
        %2601 = vmatmul.mubr.bf16.gmra.mrb[0].mxu0 %v2558
        %v2602 = vpop.f32.mrb[0].mxu0
        %v2603 = vadd.f32 0.0, %v2602
        %v2604 = vpop.f32.mrb[0].mxu0
        %v2605 = vpop.f32.mrb[0].mxu0
        %v2606 = vadd.f32 0.0, %v2605
        %v2607 = vpop.f32.mrb[0].mxu0
        %2608 = vmatprep.mubr.bf16.mxu0 0
        %2609 = vmatmul.mubr.bf16.gmra.mrb[0].mxu0 %v2560
        %v2610 = vpop.f32.mrb[0].mxu0
        %v2611 = vadd.f32 0.0, %v2610
        %v2612 = vpop.f32.mrb[0].mxu0
        %v2613 = vpop.f32.mrb[0].mxu0
        %v2614 = vadd.f32 0.0, %v2613
        %v2615 = vpop.f32.mrb[0].mxu0
        %2616 = vmatprep.mubr.bf16.mxu0 0
        %2617 = vmatmul.mubr.bf16.gmra.mrb[0].mxu0 %v2562
        %v2618 = vpop.f32.mrb[0].mxu0
        %v2619 = vadd.f32 0.0, %v2618
        %v2620 = vpop.f32.mrb[0].mxu0
        %v2621 = vpop.f32.mrb[0].mxu0
        %v2622 = vadd.f32 0.0, %v2621
        %v2623 = vpop.f32.mrb[0].mxu0
        %2624 = vmatprep.mubr.bf16.mxu0 0
        %2625 = vmatmul.mubr.bf16.gmra.mrb[0].mxu0 %v2564
        %v2626 = vpop.f32.mrb[0].mxu0
        %v2627 = vadd.f32 0.0, %v2626
        %v2628 = vpop.f32.mrb[0].mxu0
        %v2629 = vpop.f32.mrb[0].mxu0
        %v2630 = vadd.f32 0.0, %v2629
        %v2631 = vpop.f32.mrb[0].mxu0
        %2632 = vmatprep.mubr.bf16.mxu0 0
        %2633 = vmatmul.mubr.bf16.gmra.mrb[0].mxu0 %v2566
        %v2634 = vpop.f32.mrb[0].mxu0
        %v2635 = vadd.f32 0.0, %v2634
        %v2636 = vpop.f32.mrb[0].mxu0
        %v2637 = vpop.f32.mrb[0].mxu0
        %v2638 = vadd.f32 0.0, %v2637
        %v2639 = vpop.f32.mrb[0].mxu0
        %2640 = vdwg.mxu0
        %v2641 = vpack.c.bf16 %v2606, %v2603
        %v2642 = vpack.c.bf16 %v2614, %v2611
        %v2643 = vpack.c.bf16 %v2622, %v2619
        %v2644 = vpack.c.bf16 %v2630, %v2627
        %v2645 = vpack.c.bf16 %v2638, %v2635
        %v2646 = vsel %vm2469, %v1510, 0
        %v2648 = vsel %vm2469, %v1511, 0
        %v2650 = vsel %vm2469, %v1512, 0
        %v2652 = vsel %vm2469, %v1513, 0
        %v2654 = vsel %vm2469, %v1514, 0
        %2656 = vmatprep.subr.bf16.mxu0 0
        %2657 = vmatpush1.bf16.msra.mxu0 %v2379
        %2658 = vmatprep.subr.bf16.mxu0 0
        %2659 = vmatpush1.bf16.msra.mxu0 %v2380
        %2660 = vmatprep.subr.bf16.mxu0 0
        %2661 = vmatpush1.bf16.msra.mxu0 %v2381
        %2662 = vmatprep.subr.bf16.mxu0 0
        %2663 = vmatpush1.bf16.msra.mxu0 %v2382
        %2664 = vmatprep.subr.bf16.mxu0 0
        %2665 = vmatpush1.bf16.msra.mxu0 %v2383
        %2666 = vmatprep.subr.bf16.mxu0 0
        %2667 = vmatpush1.bf16.msra.mxu0 0
        %2668 = vmatprep.subr.bf16.mxu0 0
        %2669 = vmatpush1.bf16.msra.mxu0 0
        %2670 = vmatprep.subr.bf16.mxu0 0
        %2671 = vmatpush1.bf16.msra.mxu0 0
        %2672 = vmatprep.subr.bf16.mxu0 0
        %2673 = vmatpush1.bf16.msra.mxu0 0
        %2674 = vmatprep.subr.bf16.mxu0 0
        %2675 = vmatpush1.bf16.msra.mxu0 0
        %2676 = vmatprep.subr.bf16.mxu0 0
        %2677 = vmatpush1.bf16.msra.mxu0 0
        %2678 = vmatprep.subr.bf16.mxu0 0
        %2679 = vmatpush1.bf16.msra.mxu0 0
        %2680 = vmatprep.subr.bf16.mxu0 0
        %2681 = vmatpush1.bf16.msra.mxu0 0
        %2682 = vmatprep.subr.bf16.mxu0 0
        %2683 = vmatpush1.bf16.msra.mxu0 0
        %2684 = vmatprep.subr.bf16.mxu0 0
        %2685 = vmatpush1.bf16.msra.mxu0 0
        %2686 = vmatprep.subr.bf16.mxu0 0
        %2687 = vmatpush1.bf16.msra.mxu0 0
        %2688 = vmatprep.mubr.bf16.mxu0 0
        %2689 = vmatmul.mubr.bf16.gmra.mrb[0].mxu0 %v2646
        %v2690 = vpop.f32.mrb[0].mxu0
        %v2691 = vadd.f32 0.0, %v2690
        %v2692 = vpop.f32.mrb[0].mxu0
        %v2693 = vpop.f32.mrb[0].mxu0
        %v2694 = vadd.f32 0.0, %v2693
        %v2695 = vpop.f32.mrb[0].mxu0
        %2696 = vmatprep.mubr.bf16.mxu0 0
        %2697 = vmatmul.mubr.bf16.gmra.mrb[0].mxu0 %v2648
        %v2698 = vpop.f32.mrb[0].mxu0
        %v2699 = vadd.f32 0.0, %v2698
        %v2700 = vpop.f32.mrb[0].mxu0
        %v2701 = vpop.f32.mrb[0].mxu0
        %v2702 = vadd.f32 0.0, %v2701
        %v2703 = vpop.f32.mrb[0].mxu0
        %2704 = vmatprep.mubr.bf16.mxu0 0
        %2705 = vmatmul.mubr.bf16.gmra.mrb[0].mxu0 %v2650
        %v2706 = vpop.f32.mrb[0].mxu0
        %v2707 = vadd.f32 0.0, %v2706
        %v2708 = vpop.f32.mrb[0].mxu0
        %v2709 = vpop.f32.mrb[0].mxu0
        %v2710 = vadd.f32 0.0, %v2709
        %v2711 = vpop.f32.mrb[0].mxu0
        %2712 = vmatprep.mubr.bf16.mxu0 0
        %2713 = vmatmul.mubr.bf16.gmra.mrb[0].mxu0 %v2652
        %v2714 = vpop.f32.mrb[0].mxu0
        %v2715 = vadd.f32 0.0, %v2714
        %v2716 = vpop.f32.mrb[0].mxu0
        %v2717 = vpop.f32.mrb[0].mxu0
        %v2718 = vadd.f32 0.0, %v2717
        %v2719 = vpop.f32.mrb[0].mxu0
        %2720 = vmatprep.mubr.bf16.mxu0 0
        %2721 = vmatmul.mubr.bf16.gmra.mrb[0].mxu0 %v2654
        %v2722 = vpop.f32.mrb[0].mxu0
        %v2723 = vadd.f32 0.0, %v2722
        %v2724 = vpop.f32.mrb[0].mxu0
        %v2725 = vpop.f32.mrb[0].mxu0
        %v2726 = vadd.f32 0.0, %v2725
        %v2727 = vpop.f32.mrb[0].mxu0
        %2728 = vdwg.mxu0
        %v2729 = vpack.c.bf16 %v2694, %v2691
        %v2730 = vpack.c.bf16 %v2702, %v2699
        %v2731 = vpack.c.bf16 %v2710, %v2707
        %v2732 = vpack.c.bf16 %v2718, %v2715
        %v2733 = vpack.c.bf16 %v2726, %v2723
        %v2734 = vsel %vm2469, %v1645, 0
        %v2736 = vsel %vm2469, %v1646, 0
        %v2738 = vsel %vm2469, %v1647, 0
        %v2740 = vsel %vm2469, %v1648, 0
        %v2742 = vsel %vm2469, %v1649, 0
        %2744 = vmatprep.subr.bf16.mxu0 0
        %2745 = vmatpush1.bf16.msra.mxu0 %v2379
        %2746 = vmatprep.subr.bf16.mxu0 0
        %2747 = vmatpush1.bf16.msra.mxu0 %v2380
        %2748 = vmatprep.subr.bf16.mxu0 0
        %2749 = vmatpush1.bf16.msra.mxu0 %v2381
        %2750 = vmatprep.subr.bf16.mxu0 0
        %2751 = vmatpush1.bf16.msra.mxu0 %v2382
        %2752 = vmatprep.subr.bf16.mxu0 0
        %2753 = vmatpush1.bf16.msra.mxu0 %v2383
        %2754 = vmatprep.subr.bf16.mxu0 0
        %2755 = vmatpush1.bf16.msra.mxu0 0
        %2756 = vmatprep.subr.bf16.mxu0 0
        %2757 = vmatpush1.bf16.msra.mxu0 0
        %2758 = vmatprep.subr.bf16.mxu0 0
        %2759 = vmatpush1.bf16.msra.mxu0 0
        %2760 = vmatprep.subr.bf16.mxu0 0
        %2761 = vmatpush1.bf16.msra.mxu0 0
        %2762 = vmatprep.subr.bf16.mxu0 0
        %2763 = vmatpush1.bf16.msra.mxu0 0
        %2764 = vmatprep.subr.bf16.mxu0 0
        %2765 = vmatpush1.bf16.msra.mxu0 0
        %2766 = vmatprep.subr.bf16.mxu0 0
        %2767 = vmatpush1.bf16.msra.mxu0 0
        %2768 = vmatprep.subr.bf16.mxu0 0
        %2769 = vmatpush1.bf16.msra.mxu0 0
        %2770 = vmatprep.subr.bf16.mxu0 0
        %2771 = vmatpush1.bf16.msra.mxu0 0
        %2772 = vmatprep.subr.bf16.mxu0 0
        %2773 = vmatpush1.bf16.msra.mxu0 0
        %2774 = vmatprep.subr.bf16.mxu0 0
        %2775 = vmatpush1.bf16.msra.mxu0 0
        %2776 = vmatprep.mubr.bf16.mxu0 0
        %2777 = vmatmul.mubr.bf16.gmra.mrb[0].mxu0 %v2734
        %v2778 = vpop.f32.mrb[0].mxu0
        %v2779 = vadd.f32 0.0, %v2778
        %v2780 = vpop.f32.mrb[0].mxu0
        %v2781 = vpop.f32.mrb[0].mxu0
        %v2782 = vadd.f32 0.0, %v2781
        %v2783 = vpop.f32.mrb[0].mxu0
        %2784 = vmatprep.mubr.bf16.mxu0 0
        %2785 = vmatmul.mubr.bf16.gmra.mrb[0].mxu0 %v2736
        %v2786 = vpop.f32.mrb[0].mxu0
        %v2787 = vadd.f32 0.0, %v2786
        %v2788 = vpop.f32.mrb[0].mxu0
        %v2789 = vpop.f32.mrb[0].mxu0
        %v2790 = vadd.f32 0.0, %v2789
        %v2791 = vpop.f32.mrb[0].mxu0
        %2792 = vmatprep.mubr.bf16.mxu0 0
        %2793 = vmatmul.mubr.bf16.gmra.mrb[0].mxu0 %v2738
        %v2794 = vpop.f32.mrb[0].mxu0
        %v2795 = vadd.f32 0.0, %v2794
        %v2796 = vpop.f32.mrb[0].mxu0
        %v2797 = vpop.f32.mrb[0].mxu0
        %v2798 = vadd.f32 0.0, %v2797
        %v2799 = vpop.f32.mrb[0].mxu0
        %2800 = vmatprep.mubr.bf16.mxu0 0
        %2801 = vmatmul.mubr.bf16.gmra.mrb[0].mxu0 %v2740
        %v2802 = vpop.f32.mrb[0].mxu0
        %v2803 = vadd.f32 0.0, %v2802
        %v2804 = vpop.f32.mrb[0].mxu0
        %v2805 = vpop.f32.mrb[0].mxu0
        %v2806 = vadd.f32 0.0, %v2805
        %v2807 = vpop.f32.mrb[0].mxu0
        %2808 = vmatprep.mubr.bf16.mxu0 0
        %2809 = vmatmul.mubr.bf16.gmra.mrb[0].mxu0 %v2742
        %v2810 = vpop.f32.mrb[0].mxu0
        %v2811 = vadd.f32 0.0, %v2810
        %v2812 = vpop.f32.mrb[0].mxu0
        %v2813 = vpop.f32.mrb[0].mxu0
        %v2814 = vadd.f32 0.0, %v2813
        %v2815 = vpop.f32.mrb[0].mxu0
        %2816 = vdwg.mxu0
        %v2817 = vpack.c.bf16 %v2782, %v2779
        %v2818 = vpack.c.bf16 %v2790, %v2787
        %v2819 = vpack.c.bf16 %v2798, %v2795
        %v2820 = vpack.c.bf16 %v2806, %v2803
        %v2821 = vpack.c.bf16 %v2814, %v2811
        %2827 = vrot.lane.b32.xlu0 %v2553, 32
        %v2828 = vpop.permute.xlu0 %2827
        %2829 = vrot.lane.b32.xlu0 %v2554, 32
        %v2830 = vpop.permute.xlu0 %2829
        %2831 = vrot.lane.b32.xlu0 %v2555, 32
        %v2832 = vpop.permute.xlu0 %2831
        %2833 = vrot.lane.b32.xlu0 %v2556, 32
        %v2834 = vpop.permute.xlu0 %2833
        %2835 = vrot.lane.b32.xlu0 %v2557, 32
        %v2836 = vpop.permute.xlu0 %2835
        %2842 = vrot.lane.b32.xlu0 %v2641, 64
        %v2843 = vpop.permute.xlu0 %2842
        %2844 = vrot.lane.b32.xlu0 %v2642, 64
        %v2845 = vpop.permute.xlu0 %2844
        %2846 = vrot.lane.b32.xlu0 %v2643, 64
        %v2847 = vpop.permute.xlu0 %2846
        %2848 = vrot.lane.b32.xlu0 %v2644, 64
        %v2849 = vpop.permute.xlu0 %2848
        %2850 = vrot.lane.b32.xlu0 %v2645, 64
        %v2851 = vpop.permute.xlu0 %2850
        %2857 = vrot.lane.b32.xlu0 %v2729, 96
        %v2858 = vpop.permute.xlu0 %2857
        %2859 = vrot.lane.b32.xlu0 %v2730, 96
        %v2860 = vpop.permute.xlu0 %2859
        %2861 = vrot.lane.b32.xlu0 %v2731, 96
        %v2862 = vpop.permute.xlu0 %2861
        %2863 = vrot.lane.b32.xlu0 %v2732, 96
        %v2864 = vpop.permute.xlu0 %2863
        %2865 = vrot.lane.b32.xlu0 %v2733, 96
        %v2866 = vpop.permute.xlu0 %2865
        %v2869 = vsel %vm826, %v2379, %v2828
        %v2872 = vsel %vm826, %v2380, %v2830
        %v2875 = vsel %vm826, %v2381, %v2832
        %v2878 = vsel %vm826, %v2382, %v2834
        %v2881 = vsel %vm826, %v2383, %v2836
        %v2883 = vsel %vm884, %v2869, %v2843
        %v2885 = vsel %vm884, %v2872, %v2845
        %v2887 = vsel %vm884, %v2875, %v2847
        %v2889 = vsel %vm884, %v2878, %v2849
        %v2891 = vsel %vm884, %v2881, %v2851
        %v2893 = vsel %vm1245, %v2883, %v2858
        %v2896 = vsel %vm1245, %v2885, %v2860
        %v2899 = vsel %vm1245, %v2887, %v2862
        %v2902 = vsel %vm1245, %v2889, %v2864
        %v2905 = vsel %vm1245, %v2891, %v2866
        %s2907 = scalar_lea.vmem %s8, 80
        %v2908 = vld [vmem:[%s2907] sm:$0xf]
        %v2909 = vld [vmem:[%s2907 + $0x4] sm:$0xf]
        %v2910 = vld [vmem:[%s2907 + $0x8] sm:$0xf]
        %v2911 = vld [vmem:[%s2907 + $0xc] sm:$0xf]
        %v2912 = vld [vmem:[%s2907 + $0x10] sm:$0xf]
        %v2913 = vld [vmem:[%s2907 + $0x14] sm:$0xf]
        %v2914 = vld [vmem:[%s2907 + $0x18] sm:$0xf]
        %v2915 = vld [vmem:[%s2907 + $0x1c] sm:$0xf]
        %v2916 = vld [vmem:[%s2907 + $0x20] sm:$0xf]
        %v2917 = vld [vmem:[%s2907 + $0x24] sm:$0xf]
        %v2918 = vld [vmem:[%s2907 + $0x28] sm:$0xf]
        %v2919 = vld [vmem:[%s2907 + $0x2c] sm:$0xf]
        %v2920 = vld [vmem:[%s2907 + $0x30] sm:$0xf]
        %v2921 = vld [vmem:[%s2907 + $0x34] sm:$0xf]
        %v2922 = vld [vmem:[%s2907 + $0x38] sm:$0xf]
        %v2923 = vld [vmem:[%s2907 + $0x3c] sm:$0xf]
        %v2924 = vld [vmem:[%s2907 + $0x40] sm:$0xf]
        %v2925 = vld [vmem:[%s2907 + $0x44] sm:$0xf]
        %v2926 = vld [vmem:[%s2907 + $0x48] sm:$0xf]
        %v2927 = vld [vmem:[%s2907 + $0x4c] sm:$0xf]
        %s2928 = scalar_lea.vmem [#allocation11], 1
        %v2929 = vld [vmem:[%s2928] sm:$0x1]
        %v2931 = vlaneseq
        %v2932 = vshrl.u32 %v2931, 7
        %v2933 = vsub.s32 0, %v2932
        %v2934 = vrot.slane %v2929, %v2933
        %v2936 = vmul.f32 %v2065, %v2934
        %v2937 = vmul.f32 %v2066, %v2934
        %v2938 = vmul.f32 %v2067, %v2934
        %v2939 = vmul.f32 %v2068, %v2934
        %v2940 = vmul.f32 %v2069, %v2934
        %v2941 = vmul.f32 %v2070, %v2934
        %v2942 = vmul.f32 %v2071, %v2934
        %v2943 = vmul.f32 %v2072, %v2934
        %v2944 = vmul.f32 %v2073, %v2934
        %v2945 = vmul.f32 %v2074, %v2934
        %v2966 = vunpack.c.l.b16 %v2908
        %v2967 = vunpack.c.l.b16 %v2909
        %v2968 = vunpack.c.l.b16 %v2910
        %v2969 = vunpack.c.l.b16 %v2911
        %v2970 = vunpack.c.l.b16 %v2912
        %v2971 = vunpack.c.l.b16 %v2913
        %v2972 = vunpack.c.l.b16 %v2914
        %v2973 = vunpack.c.l.b16 %v2915
        %v2974 = vunpack.c.l.b16 %v2916
        %v2975 = vunpack.c.l.b16 %v2917
        %v2976 = vunpack.c.l.b16 %v2918
        %v2977 = vunpack.c.l.b16 %v2919
        %v2978 = vunpack.c.l.b16 %v2920
        %v2979 = vunpack.c.l.b16 %v2921
        %v2980 = vunpack.c.l.b16 %v2922
        %v2981 = vunpack.c.l.b16 %v2923
        %v2982 = vunpack.c.l.b16 %v2924
        %v2983 = vunpack.c.l.b16 %v2925
        %v2984 = vunpack.c.l.b16 %v2926
        %v2985 = vunpack.c.l.b16 %v2927
        %v2986 = vpack.c.b16 %v2967, %v2966
        %v2987 = vpack.c.b16 %v2969, %v2968
        %v2988 = vpack.c.b16 %v2971, %v2970
        %v2989 = vpack.c.b16 %v2973, %v2972
        %v2990 = vpack.c.b16 %v2975, %v2974
        %v2991 = vpack.c.b16 %v2977, %v2976
        %v2992 = vpack.c.b16 %v2979, %v2978
        %v2993 = vpack.c.b16 %v2981, %v2980
        %v2994 = vpack.c.b16 %v2983, %v2982
        %v2995 = vpack.c.b16 %v2985, %v2984
        %v3007 = vsel %vm826, %v2817, 0
        %v3010 = vsel %vm826, %v2818, 0
        %v3013 = vsel %vm826, %v2819, 0
        %v3016 = vsel %vm826, %v2820, 0
        %v3019 = vsel %vm826, %v2821, 0
        %3021 = vmatprep.subr.bf16.mxu0 0
        %3022 = vmatpush1.bf16.msra.mxu0 %v2986
        %3023 = vmatprep.subr.bf16.mxu0 0
        %3024 = vmatpush1.bf16.msra.mxu0 %v2987
        %3025 = vmatprep.subr.bf16.mxu0 0
        %3026 = vmatpush1.bf16.msra.mxu0 %v2988
        %3027 = vmatprep.subr.bf16.mxu0 0
        %3028 = vmatpush1.bf16.msra.mxu0 %v2989
        %3029 = vmatprep.subr.bf16.mxu0 0
        %3030 = vmatpush1.bf16.msra.mxu0 %v2990
        %3031 = vmatprep.subr.bf16.mxu0 0
        %3032 = vmatpush1.bf16.msra.mxu0 %v2991
        %3033 = vmatprep.subr.bf16.mxu0 0
        %3034 = vmatpush1.bf16.msra.mxu0 %v2992
        %3035 = vmatprep.subr.bf16.mxu0 0
        %3036 = vmatpush1.bf16.msra.mxu0 %v2993
        %3037 = vmatprep.subr.bf16.mxu0 0
        %3038 = vmatpush1.bf16.msra.mxu0 %v2994
        %3039 = vmatprep.subr.bf16.mxu0 0
        %3040 = vmatpush1.bf16.msra.mxu0 %v2995
        %3041 = vmatprep.subr.bf16.mxu0 0
        %3042 = vmatpush1.bf16.msra.mxu0 0
        %3043 = vmatprep.subr.bf16.mxu0 0
        %3044 = vmatpush1.bf16.msra.mxu0 0
        %3045 = vmatprep.subr.bf16.mxu0 0
        %3046 = vmatpush1.bf16.msra.mxu0 0
        %3047 = vmatprep.subr.bf16.mxu0 0
        %3048 = vmatpush1.bf16.msra.mxu0 0
        %3049 = vmatprep.subr.bf16.mxu0 0
        %3050 = vmatpush1.bf16.msra.mxu0 0
        %3051 = vmatprep.subr.bf16.mxu0 0
        %3052 = vmatpush1.bf16.msra.mxu0 0
        %3053 = vmatprep.mubr.bf16.mxu0 %v3007
        %3054 = vmatmul.mubr.bf16.gmra.mrb[0].mxu0 %v2893
        %v3055 = vpop.f32.mrb[0].mxu0
        %v3056 = vadd.f32 %v2936, %v3055
        %v3057 = vpop.f32.mrb[0].mxu0
        %v3058 = vpop.f32.mrb[0].mxu0
        %v3059 = vadd.f32 %v2937, %v3058
        %v3060 = vpop.f32.mrb[0].mxu0
        %3061 = vmatprep.mubr.bf16.mxu0 %v3010
        %3062 = vmatmul.mubr.bf16.gmra.mrb[0].mxu0 %v2896
        %v3063 = vpop.f32.mrb[0].mxu0
        %v3064 = vadd.f32 %v2938, %v3063
        %v3065 = vpop.f32.mrb[0].mxu0
        %v3066 = vpop.f32.mrb[0].mxu0
        %v3067 = vadd.f32 %v2939, %v3066
        %v3068 = vpop.f32.mrb[0].mxu0
        %3069 = vmatprep.mubr.bf16.mxu0 %v3013
        %3070 = vmatmul.mubr.bf16.gmra.mrb[0].mxu0 %v2899
        %v3071 = vpop.f32.mrb[0].mxu0
        %v3072 = vadd.f32 %v2940, %v3071
        %v3073 = vpop.f32.mrb[0].mxu0
        %v3074 = vpop.f32.mrb[0].mxu0
        %v3075 = vadd.f32 %v2941, %v3074
        %v3076 = vpop.f32.mrb[0].mxu0
        %3077 = vmatprep.mubr.bf16.mxu0 %v3016
        %3078 = vmatmul.mubr.bf16.gmra.mrb[0].mxu0 %v2902
        %v3079 = vpop.f32.mrb[0].mxu0
        %v3080 = vadd.f32 %v2942, %v3079
        %v3081 = vpop.f32.mrb[0].mxu0
        %v3082 = vpop.f32.mrb[0].mxu0
        %v3083 = vadd.f32 %v2943, %v3082
        %v3084 = vpop.f32.mrb[0].mxu0
        %3085 = vmatprep.mubr.bf16.mxu0 %v3019
        %3086 = vmatmul.mubr.bf16.gmra.mrb[0].mxu0 %v2905
        %v3087 = vpop.f32.mrb[0].mxu0
        %v3088 = vadd.f32 %v2944, %v3087
        %v3089 = vpop.f32.mrb[0].mxu0
        %v3090 = vpop.f32.mrb[0].mxu0
        %v3091 = vadd.f32 %v2945, %v3090
        %v3092 = vpop.f32.mrb[0].mxu0
        %3093 = vdwg.mxu0
        %s3094 = scalar_lea.vmem [#allocation10], 1
        %v3095 = vld [vmem:[%s3094] sm:$0x1]
        %v3097 = vlaneseq
        %v3098 = vshrl.u32 %v3097, 7
        %v3099 = vsub.s32 0, %v3098
        %v3100 = vrot.slane %v3095, %v3099
        %v3102 = vadd.f32 %v3056, %v3100
        %v3103 = vadd.f32 %v3059, %v3100
        %v3104 = vadd.f32 %v3064, %v3100
        %v3105 = vadd.f32 %v3067, %v3100
        %v3106 = vadd.f32 %v3072, %v3100
        %v3107 = vadd.f32 %v3075, %v3100
        %v3108 = vadd.f32 %v3080, %v3100
        %v3109 = vadd.f32 %v3083, %v3100
        %v3110 = vadd.f32 %v3088, %v3100
        %v3111 = vadd.f32 %v3091, %v3100
        %3121 = vrot.lane.b32.xlu0 %v3103, 32
        %v3122 = vpop.permute.xlu0 %3121
        %3123 = vrot.lane.b32.xlu0 %v3104, 32
        %v3124 = vpop.permute.xlu0 %3123
        %3125 = vrot.lane.b32.xlu0 %v3105, 32
        %v3126 = vpop.permute.xlu0 %3125
        %3127 = vrot.lane.b32.xlu0 %v3106, 32
        %v3128 = vpop.permute.xlu0 %3127
        %3129 = vrot.lane.b32.xlu0 %v3107, 32
        %v3130 = vpop.permute.xlu0 %3129
        %3131 = vrot.lane.b32.xlu0 %v3108, 32
        %v3132 = vpop.permute.xlu0 %3131
        %3133 = vrot.lane.b32.xlu0 %v3109, 32
        %v3134 = vpop.permute.xlu0 %3133
        %3135 = vrot.lane.b32.xlu0 %v3110, 32
        %v3136 = vpop.permute.xlu0 %3135
        %3137 = vrot.lane.b32.xlu0 %v3111, 32
        %v3138 = vpop.permute.xlu0 %3137
        %v3148 = vsel %vm826, %v3102, %v3122
        %v3149 = vsel %vm826, %v3103, %v3124
        %v3150 = vsel %vm826, %v3104, %v3126
        %v3151 = vsel %vm826, %v3105, %v3128
        %v3152 = vsel %vm826, %v3106, %v3130
        %v3153 = vsel %vm826, %v3107, %v3132
        %v3154 = vsel %vm826, %v3108, %v3134
        %v3155 = vsel %vm826, %v3109, %v3136
        %v3156 = vsel %vm826, %v3110, %v3138
        %v3157 = vpack.c.bf16 %v3149, %v3148
        %v3158 = vpack.c.bf16 %v3151, %v3150
        %v3159 = vpack.c.bf16 %v3153, %v3152
        %v3160 = vpack.c.bf16 %v3155, %v3154
        %v3161 = vpack.c.bf16 %v3156, %v3156
        %s3162 = scalar_lea.vmem %s4, 64
        %v3163 = vld [vmem:[%s3162] sm:$0xf]
        %v3164 = vld [vmem:[%s3162 + $0x4] sm:$0xf]
        %v3165 = vld [vmem:[%s3162 + $0x8] sm:$0xf]
        %v3166 = vld [vmem:[%s3162 + $0xc] sm:$0xf]
        %v3167 = vld [vmem:[%s3162 + $0x10] sm:$0xf]
        %v3168 = vld [vmem:[%s3162 + $0x14] sm:$0xf]
        %v3169 = vld [vmem:[%s3162 + $0x18] sm:$0xf]
        %v3170 = vld [vmem:[%s3162 + $0x1c] sm:$0xf]
        %s3171 = scalar_lea.vmem [#allocation5], 2
        %v3172 = vld [vmem:[%s3171] sm:$0x1]
        %v3174 = vlaneseq
        %v3175 = vshrl.u32 %v3174, 7
        %v3176 = vsub.s32 0, %v3175
        %v3177 = vrot.slane %v3172, %v3176
        %v3187 = vunpack.c.l.b16 %v3163
        %v3188 = vunpack.c.l.b16 %v3164
        %v3189 = vunpack.c.l.b16 %v3165
        %v3190 = vunpack.c.l.b16 %v3166
        %v3191 = vunpack.c.l.b16 %v3167
        %v3192 = vunpack.c.l.b16 %v3168
        %v3193 = vunpack.c.l.b16 %v3169
        %v3194 = vunpack.c.l.b16 %v3170
        %v3195 = vpack.c.b16 %v3188, %v3187
        %v3196 = vpack.c.b16 %v3190, %v3189
        %v3197 = vpack.c.b16 %v3192, %v3191
        %v3198 = vpack.c.b16 %v3194, %v3193
        %v3204 = vsel %vm884, %v3157, 0
        %v3207 = vsel %vm884, %v3158, 0
        %v3210 = vsel %vm884, %v3159, 0
        %v3213 = vsel %vm884, %v3160, 0
        %v3216 = vsel %vm884, %v3161, 0
        %3218 = vmatprep.subr.bf16.mxu0 0
        %3219 = vmatpush1.bf16.msra.mxu0 %v3195
        %3220 = vmatprep.subr.bf16.mxu0 0
        %3221 = vmatpush1.bf16.msra.mxu0 %v3196
        %3222 = vmatprep.subr.bf16.mxu0 0
        %3223 = vmatpush1.bf16.msra.mxu0 %v3197
        %3224 = vmatprep.subr.bf16.mxu0 0
        %3225 = vmatpush1.bf16.msra.mxu0 %v3198
        %3226 = vmatprep.subr.bf16.mxu0 0
        %3227 = vmatpush1.bf16.msra.mxu0 0
        %3228 = vmatprep.subr.bf16.mxu0 0
        %3229 = vmatpush1.bf16.msra.mxu0 0
        %3230 = vmatprep.subr.bf16.mxu0 0
        %3231 = vmatpush1.bf16.msra.mxu0 0
        %3232 = vmatprep.subr.bf16.mxu0 0
        %3233 = vmatpush1.bf16.msra.mxu0 0
        %3234 = vmatprep.subr.bf16.mxu0 0
        %3235 = vmatpush1.bf16.msra.mxu0 0
        %3236 = vmatprep.subr.bf16.mxu0 0
        %3237 = vmatpush1.bf16.msra.mxu0 0
        %3238 = vmatprep.subr.bf16.mxu0 0
        %3239 = vmatpush1.bf16.msra.mxu0 0
        %3240 = vmatprep.subr.bf16.mxu0 0
        %3241 = vmatpush1.bf16.msra.mxu0 0
        %3242 = vmatprep.subr.bf16.mxu0 0
        %3243 = vmatpush1.bf16.msra.mxu0 0
        %3244 = vmatprep.subr.bf16.mxu0 0
        %3245 = vmatpush1.bf16.msra.mxu0 0
        %3246 = vmatprep.subr.bf16.mxu0 0
        %3247 = vmatpush1.bf16.msra.mxu0 0
        %3248 = vmatprep.subr.bf16.mxu0 0
        %3249 = vmatpush1.bf16.msra.mxu0 0
        %3250 = vmatprep.mubr.bf16.mxu0 0
        %3251 = vmatmul.mubr.bf16.gmra.mrb[0].mxu0 %v3204
        %v3252 = vpop.f32.mrb[0].mxu0
        %v3253 = vadd.f32 %v3177, %v3252
        %v3254 = vpop.f32.mrb[0].mxu0
        %v3255 = vpop.f32.mrb[0].mxu0
        %v3256 = vadd.f32 %v3177, %v3255
        %v3257 = vpop.f32.mrb[0].mxu0
        %3258 = vmatprep.mubr.bf16.mxu0 0
        %3259 = vmatmul.mubr.bf16.gmra.mrb[0].mxu0 %v3207
        %v3260 = vpop.f32.mrb[0].mxu0
        %v3261 = vadd.f32 %v3177, %v3260
        %v3262 = vpop.f32.mrb[0].mxu0
        %v3263 = vpop.f32.mrb[0].mxu0
        %v3264 = vadd.f32 %v3177, %v3263
        %v3265 = vpop.f32.mrb[0].mxu0
        %3266 = vmatprep.mubr.bf16.mxu0 0
        %3267 = vmatmul.mubr.bf16.gmra.mrb[0].mxu0 %v3210
        %v3268 = vpop.f32.mrb[0].mxu0
        %v3269 = vadd.f32 %v3177, %v3268
        %v3270 = vpop.f32.mrb[0].mxu0
        %v3271 = vpop.f32.mrb[0].mxu0
        %v3272 = vadd.f32 %v3177, %v3271
        %v3273 = vpop.f32.mrb[0].mxu0
        %3274 = vmatprep.mubr.bf16.mxu0 0
        %3275 = vmatmul.mubr.bf16.gmra.mrb[0].mxu0 %v3213
        %v3276 = vpop.f32.mrb[0].mxu0
        %v3277 = vadd.f32 %v3177, %v3276
        %v3278 = vpop.f32.mrb[0].mxu0
        %v3279 = vpop.f32.mrb[0].mxu0
        %v3280 = vadd.f32 %v3177, %v3279
        %v3281 = vpop.f32.mrb[0].mxu0
        %3282 = vmatprep.mubr.bf16.mxu0 0
        %3283 = vmatmul.mubr.bf16.gmra.mrb[0].mxu0 %v3216
        %v3284 = vpop.f32.mrb[0].mxu0
        %v3285 = vadd.f32 %v3177, %v3284
        %v3286 = vpop.f32.mrb[0].mxu0
        %v3287 = vpop.f32.mrb[0].mxu0
        %v3288 = vpop.f32.mrb[0].mxu0
        %3289 = vdwg.mxu0
        %v3290 = vtanh.pop %v3253
        %v3291 = vtanh.pop %v3256
        %v3292 = vtanh.pop %v3261
        %v3293 = vtanh.pop %v3264
        %v3294 = vtanh.pop %v3269
        %v3295 = vtanh.pop %v3272
        %v3296 = vtanh.pop %v3277
        %v3297 = vtanh.pop %v3280
        %v3298 = vtanh.pop %v3285
        %v3299 = vxor.u32 %v3253, 2147483648
        %v3300 = vxor.u32 %v3256, 2147483648
        %v3301 = vxor.u32 %v3261, 2147483648
        %v3302 = vxor.u32 %v3264, 2147483648
        %v3303 = vxor.u32 %v3269, 2147483648
        %v3304 = vxor.u32 %v3272, 2147483648
        %v3305 = vxor.u32 %v3277, 2147483648
        %v3306 = vxor.u32 %v3280, 2147483648
        %v3307 = vxor.u32 %v3285, 2147483648
        %v3308 = vmul.f32 %v3299, 1.442695
        %v3309 = vpow.pop %v3308
        %v3310 = vmul.f32 %v3300, 1.442695
        %v3311 = vpow.pop %v3310
        %v3312 = vmul.f32 %v3301, 1.442695
        %v3313 = vpow.pop %v3312
        %v3314 = vmul.f32 %v3302, 1.442695
        %v3315 = vpow.pop %v3314
        %v3316 = vmul.f32 %v3303, 1.442695
        %v3317 = vpow.pop %v3316
        %v3318 = vmul.f32 %v3304, 1.442695
        %v3319 = vpow.pop %v3318
        %v3320 = vmul.f32 %v3305, 1.442695
        %v3321 = vpow.pop %v3320
        %v3322 = vmul.f32 %v3306, 1.442695
        %v3323 = vpow.pop %v3322
        %v3324 = vmul.f32 %v3307, 1.442695
        %v3325 = vpow.pop %v3324
        %v3326 = vadd.f32 %v3309, 1.0
        %v3327 = vadd.f32 %v3311, 1.0
        %v3328 = vadd.f32 %v3313, 1.0
        %v3329 = vadd.f32 %v3315, 1.0
        %v3330 = vadd.f32 %v3317, 1.0
        %v3331 = vadd.f32 %v3319, 1.0
        %v3332 = vadd.f32 %v3321, 1.0
        %v3333 = vadd.f32 %v3323, 1.0
        %v3334 = vadd.f32 %v3325, 1.0
        %v3335 = vrcp.pop %v3326
        %v3336 = vmul.f32 1.0, %v3335
        %v3337 = vrcp.pop %v3327
        %v3338 = vmul.f32 1.0, %v3337
        %v3339 = vrcp.pop %v3328
        %v3340 = vmul.f32 1.0, %v3339
        %v3341 = vrcp.pop %v3329
        %v3342 = vmul.f32 1.0, %v3341
        %v3343 = vrcp.pop %v3330
        %v3344 = vmul.f32 1.0, %v3343
        %v3345 = vrcp.pop %v3331
        %v3346 = vmul.f32 1.0, %v3345
        %v3347 = vrcp.pop %v3332
        %v3348 = vmul.f32 1.0, %v3347
        %v3349 = vrcp.pop %v3333
        %v3350 = vmul.f32 1.0, %v3349
        %v3351 = vrcp.pop %v3334
        %v3352 = vmul.f32 1.0, %v3351
        %3362 = vrot.lane.b32.xlu0 %v3336, 96
        %v3363 = vpop.permute.xlu0 %3362
        %3364 = vrot.lane.b32.xlu0 %v3338, 96
        %v3365 = vpop.permute.xlu0 %3364
        %3366 = vrot.lane.b32.xlu0 %v3340, 96
        %v3367 = vpop.permute.xlu0 %3366
        %3368 = vrot.lane.b32.xlu0 %v3342, 96
        %v3369 = vpop.permute.xlu0 %3368
        %3370 = vrot.lane.b32.xlu0 %v3344, 96
        %v3371 = vpop.permute.xlu0 %3370
        %3372 = vrot.lane.b32.xlu0 %v3346, 96
        %v3373 = vpop.permute.xlu0 %3372
        %3374 = vrot.lane.b32.xlu0 %v3348, 96
        %v3375 = vpop.permute.xlu0 %3374
        %3376 = vrot.lane.b32.xlu0 %v3350, 96
        %v3377 = vpop.permute.xlu0 %3376
        %3378 = vrot.lane.b32.xlu0 %v3352, 96
        %v3379 = vpop.permute.xlu0 %3378
        %v3389 = vmul.f32 %v3290, %v3363
        %v3390 = vmul.f32 %v3291, %v3365
        %v3391 = vmul.f32 %v3292, %v3367
        %v3392 = vmul.f32 %v3293, %v3369
        %v3393 = vmul.f32 %v3294, %v3371
        %v3394 = vmul.f32 %v3295, %v3373
        %v3395 = vmul.f32 %v3296, %v3375
        %v3396 = vmul.f32 %v3297, %v3377
        %v3397 = vmul.f32 %v3298, %v3379
        %v3398 = vpack.c.bf16 %v3390, %v3389
        %v3399 = vpack.c.bf16 %v3392, %v3391
        %v3400 = vpack.c.bf16 %v3394, %v3393
        %v3401 = vpack.c.bf16 %v3396, %v3395
        %v3402 = vpack.c.bf16 %v3397, %v3397
        %s3403 = scalar_lea.vmem [#allocation7], 64
        %v3404 = vld [vmem:[%s3403] sm:$0xff]
        %v3405 = vld [vmem:[%s3403 + $0x8] sm:$0xff]
        %v3406 = vld [vmem:[%s3403 + $0x10] sm:$0xff]
        %v3407 = vld [vmem:[%s3403 + $0x18] sm:$0xff]
        %s3408 = scalar_lea.vmem [#allocation8], 4
        %v3409 = vld [vmem:[%s3408] sm:$0x3]
        %v3411 = vlaneseq
        %v3412 = vshrl.u32 %v3411, 7
        %v3413 = vsub.s32 0, %v3412
        %v3414 = vrot.slane %v3409, %v3413
        %v3415 = vlaneseq
        %v3416 = vshrl.u32 %v3415, 7
        %v3417 = vsub.s32 1, %v3416
        %v3418 = vrot.slane %v3409, %v3417
        %v3425 = vunpack.c.l.b16 %v3404
        %v3426 = vunpack.c.h.b16 %v3404
        %v3427 = vunpack.c.l.b16 %v3405
        %v3428 = vunpack.c.h.b16 %v3405
        %v3429 = vunpack.c.l.b16 %v3406
        %v3430 = vunpack.c.h.b16 %v3406
        %v3431 = vunpack.c.l.b16 %v3407
        %v3432 = vunpack.c.h.b16 %v3407
        %v3433 = vpack.c.b16 %v3427, %v3425
        %v3434 = vpack.c.b16 %v3428, %v3426
        %v3435 = vpack.c.b16 %v3431, %v3429
        %v3436 = vpack.c.b16 %v3432, %v3430
        %v3442 = vsel %vm826, %v3402, 0
        %3444 = vmatprep.subr.bf16.mxu0 %v3434
        %3445 = vmatpush1.bf16.msra.mxu0 %v3433
        %3446 = vmatprep.subr.bf16.mxu0 %v3436
        %3447 = vmatpush1.bf16.msra.mxu0 %v3435
        %3448 = vmatprep.subr.bf16.mxu0 0
        %3449 = vmatpush1.bf16.msra.mxu0 0
        %3450 = vmatprep.subr.bf16.mxu0 0
        %3451 = vmatpush1.bf16.msra.mxu0 0
        %3452 = vmatprep.subr.bf16.mxu0 0
        %3453 = vmatpush1.bf16.msra.mxu0 0
        %3454 = vmatprep.subr.bf16.mxu0 0
        %3455 = vmatpush1.bf16.msra.mxu0 0
        %3456 = vmatprep.subr.bf16.mxu0 0
        %3457 = vmatpush1.bf16.msra.mxu0 0
        %3458 = vmatprep.subr.bf16.mxu0 0
        %3459 = vmatpush1.bf16.msra.mxu0 0
        %3460 = vmatprep.subr.bf16.mxu0 0
        %3461 = vmatpush1.bf16.msra.mxu0 0
        %3462 = vmatprep.subr.bf16.mxu0 0
        %3463 = vmatpush1.bf16.msra.mxu0 0
        %3464 = vmatprep.subr.bf16.mxu0 0
        %3465 = vmatpush1.bf16.msra.mxu0 0
        %3466 = vmatprep.subr.bf16.mxu0 0
        %3467 = vmatpush1.bf16.msra.mxu0 0
        %3468 = vmatprep.subr.bf16.mxu0 0
        %3469 = vmatpush1.bf16.msra.mxu0 0
        %3470 = vmatprep.subr.bf16.mxu0 0
        %3471 = vmatpush1.bf16.msra.mxu0 0
        %3472 = vmatprep.subr.bf16.mxu0 0
        %3473 = vmatpush1.bf16.msra.mxu0 0
        %3474 = vmatprep.subr.bf16.mxu0 0
        %3475 = vmatpush1.bf16.msra.mxu0 0
        %3476 = vmatprep.mubr.bf16.mxu0 0
        %3477 = vmatmul.mubr.bf16.gmra.mrb[0].mxu0 %v3442
        %v3478 = vpop.f32.mrb[0].mxu0
        %v3479 = vadd.f32 %v3414, %v3478
        %v3480 = vpop.f32.mrb[0].mxu0
        %v3481 = vadd.f32 %v3418, %v3480
        %v3482 = vpop.f32.mrb[0].mxu0
        %v3483 = vpop.f32.mrb[0].mxu0
        %3484 = vdwg.mxu0
        %v3485 = vadd.f32 %v2467, %v3479
        %v3486 = vadd.f32 %v2468, %v3481
        %v3487 = vpack.c.b16 %v1235, %v1235
        %vm3488 = vcmask 588800
        %v3489 = vsel %vm3488, %v1239, 0
        %v3491 = vsel %vm3488, %v1240, 0
        %v3493 = vsel %vm3488, %v1241, 0
        %v3495 = vsel %vm3488, %v1242, 0
        %v3498 = vsel %vm3488, %v3487, 0
        %vm3500 = vcmask 1043456
        %v3501 = vsel %vm3500, %v3402, 0
        %3503 = vmatprep.subr.bf16.mxu0 0
        %3504 = vmatpush1.bf16.msra.mxu0 %v3398
        %3505 = vmatprep.subr.bf16.mxu0 0
        %3506 = vmatpush1.bf16.msra.mxu0 %v3399
        %3507 = vmatprep.subr.bf16.mxu0 0
        %3508 = vmatpush1.bf16.msra.mxu0 %v3400
        %3509 = vmatprep.subr.bf16.mxu0 0
        %3510 = vmatpush1.bf16.msra.mxu0 %v3401
        %3511 = vmatprep.subr.bf16.mxu0 0
        %3512 = vmatpush1.bf16.msra.mxu0 %v3501
        %3513 = vmatprep.subr.bf16.mxu0 0
        %3514 = vmatpush1.bf16.msra.mxu0 0
        %3515 = vmatprep.subr.bf16.mxu0 0
        %3516 = vmatpush1.bf16.msra.mxu0 0
        %3517 = vmatprep.subr.bf16.mxu0 0
        %3518 = vmatpush1.bf16.msra.mxu0 0
        %3519 = vmatprep.subr.bf16.mxu0 0
        %3520 = vmatpush1.bf16.msra.mxu0 0
        %3521 = vmatprep.subr.bf16.mxu0 0
        %3522 = vmatpush1.bf16.msra.mxu0 0
        %3523 = vmatprep.subr.bf16.mxu0 0
        %3524 = vmatpush1.bf16.msra.mxu0 0
        %3525 = vmatprep.subr.bf16.mxu0 0
        %3526 = vmatpush1.bf16.msra.mxu0 0
        %3527 = vmatprep.subr.bf16.mxu0 0
        %3528 = vmatpush1.bf16.msra.mxu0 0
        %3529 = vmatprep.subr.bf16.mxu0 0
        %3530 = vmatpush1.bf16.msra.mxu0 0
        %3531 = vmatprep.subr.bf16.mxu0 0
        %3532 = vmatpush1.bf16.msra.mxu0 0
        %3533 = vmatprep.subr.bf16.mxu0 0
        %3534 = vmatpush1.bf16.msra.mxu0 0
        %3535 = vmatprep.mubr.bf16.mxu0 0
        %3536 = vmatmul.mubr.bf16.gmra.mrb[0].mxu0 %v3489
        %v3537 = vpop.f32.mrb[0].mxu0
        %v3538 = vadd.f32 0.0, %v3537
        %v3539 = vpop.f32.mrb[0].mxu0
        %v3540 = vpop.f32.mrb[0].mxu0
        %v3541 = vadd.f32 0.0, %v3540
        %v3542 = vpop.f32.mrb[0].mxu0
        %3543 = vmatprep.mubr.bf16.mxu0 0
        %3544 = vmatmul.mubr.bf16.gmra.mrb[0].mxu0 %v3491
        %v3545 = vpop.f32.mrb[0].mxu0
        %v3546 = vadd.f32 0.0, %v3545
        %v3547 = vpop.f32.mrb[0].mxu0
        %v3548 = vpop.f32.mrb[0].mxu0
        %v3549 = vadd.f32 0.0, %v3548
        %v3550 = vpop.f32.mrb[0].mxu0
        %3551 = vmatprep.mubr.bf16.mxu0 0
        %3552 = vmatmul.mubr.bf16.gmra.mrb[0].mxu0 %v3493
        %v3553 = vpop.f32.mrb[0].mxu0
        %v3554 = vadd.f32 0.0, %v3553
        %v3555 = vpop.f32.mrb[0].mxu0
        %v3556 = vpop.f32.mrb[0].mxu0
        %v3557 = vadd.f32 0.0, %v3556
        %v3558 = vpop.f32.mrb[0].mxu0
        %3559 = vmatprep.mubr.bf16.mxu0 0
        %3560 = vmatmul.mubr.bf16.gmra.mrb[0].mxu0 %v3495
        %v3561 = vpop.f32.mrb[0].mxu0
        %v3562 = vadd.f32 0.0, %v3561
        %v3563 = vpop.f32.mrb[0].mxu0
        %v3564 = vpop.f32.mrb[0].mxu0
        %v3565 = vadd.f32 0.0, %v3564
        %v3566 = vpop.f32.mrb[0].mxu0
        %3567 = vmatprep.mubr.bf16.mxu0 0
        %3568 = vmatmul.mubr.bf16.gmra.mrb[0].mxu0 %v3498
        %v3569 = vpop.f32.mrb[0].mxu0
        %v3570 = vadd.f32 0.0, %v3569
        %v3571 = vpop.f32.mrb[0].mxu0
        %v3572 = vpop.f32.mrb[0].mxu0
        %v3573 = vpop.f32.mrb[0].mxu0
        %3574 = vdwg.mxu0
        %v3575 = vpack.c.bf16 %v3541, %v3538
        %v3576 = vpack.c.bf16 %v3549, %v3546
        %v3577 = vpack.c.bf16 %v3557, %v3554
        %v3578 = vpack.c.bf16 %v3565, %v3562
        %v3579 = vpack.c.bf16 %v3570, %v3570
        %v3580 = vpack.c.b16 %v1371, %v1371
        %v3581 = vsel %vm3488, %v1375, 0
        %v3583 = vsel %vm3488, %v1376, 0
        %v3585 = vsel %vm3488, %v1377, 0
        %v3587 = vsel %vm3488, %v1378, 0
        %v3590 = vsel %vm3488, %v3580, 0
        %3592 = vmatprep.subr.bf16.mxu0 0
        %3593 = vmatpush1.bf16.msra.mxu0 %v3398
        %3594 = vmatprep.subr.bf16.mxu0 0
        %3595 = vmatpush1.bf16.msra.mxu0 %v3399
        %3596 = vmatprep.subr.bf16.mxu0 0
        %3597 = vmatpush1.bf16.msra.mxu0 %v3400
        %3598 = vmatprep.subr.bf16.mxu0 0
        %3599 = vmatpush1.bf16.msra.mxu0 %v3401
        %3600 = vmatprep.subr.bf16.mxu0 0
        %3601 = vmatpush1.bf16.msra.mxu0 %v3501
        %3602 = vmatprep.subr.bf16.mxu0 0
        %3603 = vmatpush1.bf16.msra.mxu0 0
        %3604 = vmatprep.subr.bf16.mxu0 0
        %3605 = vmatpush1.bf16.msra.mxu0 0
        %3606 = vmatprep.subr.bf16.mxu0 0
        %3607 = vmatpush1.bf16.msra.mxu0 0
        %3608 = vmatprep.subr.bf16.mxu0 0
        %3609 = vmatpush1.bf16.msra.mxu0 0
        %3610 = vmatprep.subr.bf16.mxu0 0
        %3611 = vmatpush1.bf16.msra.mxu0 0
        %3612 = vmatprep.subr.bf16.mxu0 0
        %3613 = vmatpush1.bf16.msra.mxu0 0
        %3614 = vmatprep.subr.bf16.mxu0 0
        %3615 = vmatpush1.bf16.msra.mxu0 0
        %3616 = vmatprep.subr.bf16.mxu0 0
        %3617 = vmatpush1.bf16.msra.mxu0 0
        %3618 = vmatprep.subr.bf16.mxu0 0
        %3619 = vmatpush1.bf16.msra.mxu0 0
        %3620 = vmatprep.subr.bf16.mxu0 0
        %3621 = vmatpush1.bf16.msra.mxu0 0
        %3622 = vmatprep.subr.bf16.mxu0 0
        %3623 = vmatpush1.bf16.msra.mxu0 0
        %3624 = vmatprep.mubr.bf16.mxu0 0
        %3625 = vmatmul.mubr.bf16.gmra.mrb[0].mxu0 %v3581
        %v3626 = vpop.f32.mrb[0].mxu0
        %v3627 = vadd.f32 0.0, %v3626
        %v3628 = vpop.f32.mrb[0].mxu0
        %v3629 = vpop.f32.mrb[0].mxu0
        %v3630 = vadd.f32 0.0, %v3629
        %v3631 = vpop.f32.mrb[0].mxu0
        %3632 = vmatprep.mubr.bf16.mxu0 0
        %3633 = vmatmul.mubr.bf16.gmra.mrb[0].mxu0 %v3583
        %v3634 = vpop.f32.mrb[0].mxu0
        %v3635 = vadd.f32 0.0, %v3634
        %v3636 = vpop.f32.mrb[0].mxu0
        %v3637 = vpop.f32.mrb[0].mxu0
        %v3638 = vadd.f32 0.0, %v3637
        %v3639 = vpop.f32.mrb[0].mxu0
        %3640 = vmatprep.mubr.bf16.mxu0 0
        %3641 = vmatmul.mubr.bf16.gmra.mrb[0].mxu0 %v3585
        %v3642 = vpop.f32.mrb[0].mxu0
        %v3643 = vadd.f32 0.0, %v3642
        %v3644 = vpop.f32.mrb[0].mxu0
        %v3645 = vpop.f32.mrb[0].mxu0
        %v3646 = vadd.f32 0.0, %v3645
        %v3647 = vpop.f32.mrb[0].mxu0
        %3648 = vmatprep.mubr.bf16.mxu0 0
        %3649 = vmatmul.mubr.bf16.gmra.mrb[0].mxu0 %v3587
        %v3650 = vpop.f32.mrb[0].mxu0
        %v3651 = vadd.f32 0.0, %v3650
        %v3652 = vpop.f32.mrb[0].mxu0
        %v3653 = vpop.f32.mrb[0].mxu0
        %v3654 = vadd.f32 0.0, %v3653
        %v3655 = vpop.f32.mrb[0].mxu0
        %3656 = vmatprep.mubr.bf16.mxu0 0
        %3657 = vmatmul.mubr.bf16.gmra.mrb[0].mxu0 %v3590
        %v3658 = vpop.f32.mrb[0].mxu0
        %v3659 = vadd.f32 0.0, %v3658
        %v3660 = vpop.f32.mrb[0].mxu0
        %v3661 = vpop.f32.mrb[0].mxu0
        %v3662 = vpop.f32.mrb[0].mxu0
        %3663 = vdwg.mxu0
        %v3664 = vpack.c.bf16 %v3630, %v3627
        %v3665 = vpack.c.bf16 %v3638, %v3635
        %v3666 = vpack.c.bf16 %v3646, %v3643
        %v3667 = vpack.c.bf16 %v3654, %v3651
        %v3668 = vpack.c.bf16 %v3659, %v3659
        %v3669 = vpack.c.b16 %v1506, %v1506
        %v3670 = vsel %vm3488, %v1510, 0
        %v3672 = vsel %vm3488, %v1511, 0
        %v3674 = vsel %vm3488, %v1512, 0
        %v3676 = vsel %vm3488, %v1513, 0
        %v3679 = vsel %vm3488, %v3669, 0
        %3681 = vmatprep.subr.bf16.mxu0 0
        %3682 = vmatpush1.bf16.msra.mxu0 %v3398
        %3683 = vmatprep.subr.bf16.mxu0 0
        %3684 = vmatpush1.bf16.msra.mxu0 %v3399
        %3685 = vmatprep.subr.bf16.mxu0 0
        %3686 = vmatpush1.bf16.msra.mxu0 %v3400
        %3687 = vmatprep.subr.bf16.mxu0 0
        %3688 = vmatpush1.bf16.msra.mxu0 %v3401
        %3689 = vmatprep.subr.bf16.mxu0 0
        %3690 = vmatpush1.bf16.msra.mxu0 %v3501
        %3691 = vmatprep.subr.bf16.mxu0 0
        %3692 = vmatpush1.bf16.msra.mxu0 0
        %3693 = vmatprep.subr.bf16.mxu0 0
        %3694 = vmatpush1.bf16.msra.mxu0 0
        %3695 = vmatprep.subr.bf16.mxu0 0
        %3696 = vmatpush1.bf16.msra.mxu0 0
        %3697 = vmatprep.subr.bf16.mxu0 0
        %3698 = vmatpush1.bf16.msra.mxu0 0
        %3699 = vmatprep.subr.bf16.mxu0 0
        %3700 = vmatpush1.bf16.msra.mxu0 0
        %3701 = vmatprep.subr.bf16.mxu0 0
        %3702 = vmatpush1.bf16.msra.mxu0 0
        %3703 = vmatprep.subr.bf16.mxu0 0
        %3704 = vmatpush1.bf16.msra.mxu0 0
        %3705 = vmatprep.subr.bf16.mxu0 0
        %3706 = vmatpush1.bf16.msra.mxu0 0
        %3707 = vmatprep.subr.bf16.mxu0 0
        %3708 = vmatpush1.bf16.msra.mxu0 0
        %3709 = vmatprep.subr.bf16.mxu0 0
        %3710 = vmatpush1.bf16.msra.mxu0 0
        %3711 = vmatprep.subr.bf16.mxu0 0
        %3712 = vmatpush1.bf16.msra.mxu0 0
        %3713 = vmatprep.mubr.bf16.mxu0 0
        %3714 = vmatmul.mubr.bf16.gmra.mrb[0].mxu0 %v3670
        %v3715 = vpop.f32.mrb[0].mxu0
        %v3716 = vadd.f32 0.0, %v3715
        %v3717 = vpop.f32.mrb[0].mxu0
        %v3718 = vpop.f32.mrb[0].mxu0
        %v3719 = vadd.f32 0.0, %v3718
        %v3720 = vpop.f32.mrb[0].mxu0
        %3721 = vmatprep.mubr.bf16.mxu0 0
        %3722 = vmatmul.mubr.bf16.gmra.mrb[0].mxu0 %v3672
        %v3723 = vpop.f32.mrb[0].mxu0
        %v3724 = vadd.f32 0.0, %v3723
        %v3725 = vpop.f32.mrb[0].mxu0
        %v3726 = vpop.f32.mrb[0].mxu0
        %v3727 = vadd.f32 0.0, %v3726
        %v3728 = vpop.f32.mrb[0].mxu0
        %3729 = vmatprep.mubr.bf16.mxu0 0
        %3730 = vmatmul.mubr.bf16.gmra.mrb[0].mxu0 %v3674
        %v3731 = vpop.f32.mrb[0].mxu0
        %v3732 = vadd.f32 0.0, %v3731
        %v3733 = vpop.f32.mrb[0].mxu0
        %v3734 = vpop.f32.mrb[0].mxu0
        %v3735 = vadd.f32 0.0, %v3734
        %v3736 = vpop.f32.mrb[0].mxu0
        %3737 = vmatprep.mubr.bf16.mxu0 0
        %3738 = vmatmul.mubr.bf16.gmra.mrb[0].mxu0 %v3676
        %v3739 = vpop.f32.mrb[0].mxu0
        %v3740 = vadd.f32 0.0, %v3739
        %v3741 = vpop.f32.mrb[0].mxu0
        %v3742 = vpop.f32.mrb[0].mxu0
        %v3743 = vadd.f32 0.0, %v3742
        %v3744 = vpop.f32.mrb[0].mxu0
        %3745 = vmatprep.mubr.bf16.mxu0 0
        %3746 = vmatmul.mubr.bf16.gmra.mrb[0].mxu0 %v3679
        %v3747 = vpop.f32.mrb[0].mxu0
        %v3748 = vadd.f32 0.0, %v3747
        %v3749 = vpop.f32.mrb[0].mxu0
        %v3750 = vpop.f32.mrb[0].mxu0
        %v3751 = vpop.f32.mrb[0].mxu0
        %3752 = vdwg.mxu0
        %v3753 = vpack.c.bf16 %v3719, %v3716
        %v3754 = vpack.c.bf16 %v3727, %v3724
        %v3755 = vpack.c.bf16 %v3735, %v3732
        %v3756 = vpack.c.bf16 %v3743, %v3740
        %v3757 = vpack.c.bf16 %v3748, %v3748
        %v3758 = vpack.c.b16 %v1641, %v1641
        %v3759 = vsel %vm3488, %v1645, 0
        %v3761 = vsel %vm3488, %v1646, 0
        %v3763 = vsel %vm3488, %v1647, 0
        %v3765 = vsel %vm3488, %v1648, 0
        %v3768 = vsel %vm3488, %v3758, 0
        %3770 = vmatprep.subr.bf16.mxu0 0
        %3771 = vmatpush1.bf16.msra.mxu0 %v3398
        %3772 = vmatprep.subr.bf16.mxu0 0
        %3773 = vmatpush1.bf16.msra.mxu0 %v3399
        %3774 = vmatprep.subr.bf16.mxu0 0
        %3775 = vmatpush1.bf16.msra.mxu0 %v3400
        %3776 = vmatprep.subr.bf16.mxu0 0
        %3777 = vmatpush1.bf16.msra.mxu0 %v3401
        %3778 = vmatprep.subr.bf16.mxu0 0
        %3779 = vmatpush1.bf16.msra.mxu0 %v3501
        %3780 = vmatprep.subr.bf16.mxu0 0
        %3781 = vmatpush1.bf16.msra.mxu0 0
        %3782 = vmatprep.subr.bf16.mxu0 0
        %3783 = vmatpush1.bf16.msra.mxu0 0
        %3784 = vmatprep.subr.bf16.mxu0 0
        %3785 = vmatpush1.bf16.msra.mxu0 0
        %3786 = vmatprep.subr.bf16.mxu0 0
        %3787 = vmatpush1.bf16.msra.mxu0 0
        %3788 = vmatprep.subr.bf16.mxu0 0
        %3789 = vmatpush1.bf16.msra.mxu0 0
        %3790 = vmatprep.subr.bf16.mxu0 0
        %3791 = vmatpush1.bf16.msra.mxu0 0
        %3792 = vmatprep.subr.bf16.mxu0 0
        %3793 = vmatpush1.bf16.msra.mxu0 0
        %3794 = vmatprep.subr.bf16.mxu0 0
        %3795 = vmatpush1.bf16.msra.mxu0 0
        %3796 = vmatprep.subr.bf16.mxu0 0
        %3797 = vmatpush1.bf16.msra.mxu0 0
        %3798 = vmatprep.subr.bf16.mxu0 0
        %3799 = vmatpush1.bf16.msra.mxu0 0
        %3800 = vmatprep.subr.bf16.mxu0 0
        %3801 = vmatpush1.bf16.msra.mxu0 0
        %3802 = vmatprep.mubr.bf16.mxu0 0
        %3803 = vmatmul.mubr.bf16.gmra.mrb[0].mxu0 %v3759
        %v3804 = vpop.f32.mrb[0].mxu0
        %v3805 = vadd.f32 0.0, %v3804
        %v3806 = vpop.f32.mrb[0].mxu0
        %v3807 = vpop.f32.mrb[0].mxu0
        %v3808 = vadd.f32 0.0, %v3807
        %v3809 = vpop.f32.mrb[0].mxu0
        %3810 = vmatprep.mubr.bf16.mxu0 0
        %3811 = vmatmul.mubr.bf16.gmra.mrb[0].mxu0 %v3761
        %v3812 = vpop.f32.mrb[0].mxu0
        %v3813 = vadd.f32 0.0, %v3812
        %v3814 = vpop.f32.mrb[0].mxu0
        %v3815 = vpop.f32.mrb[0].mxu0
        %v3816 = vadd.f32 0.0, %v3815
        %v3817 = vpop.f32.mrb[0].mxu0
        %3818 = vmatprep.mubr.bf16.mxu0 0
        %3819 = vmatmul.mubr.bf16.gmra.mrb[0].mxu0 %v3763
        %v3820 = vpop.f32.mrb[0].mxu0
        %v3821 = vadd.f32 0.0, %v3820
        %v3822 = vpop.f32.mrb[0].mxu0
        %v3823 = vpop.f32.mrb[0].mxu0
        %v3824 = vadd.f32 0.0, %v3823
        %v3825 = vpop.f32.mrb[0].mxu0
        %3826 = vmatprep.mubr.bf16.mxu0 0
        %3827 = vmatmul.mubr.bf16.gmra.mrb[0].mxu0 %v3765
        %v3828 = vpop.f32.mrb[0].mxu0
        %v3829 = vadd.f32 0.0, %v3828
        %v3830 = vpop.f32.mrb[0].mxu0
        %v3831 = vpop.f32.mrb[0].mxu0
        %v3832 = vadd.f32 0.0, %v3831
        %v3833 = vpop.f32.mrb[0].mxu0
        %3834 = vmatprep.mubr.bf16.mxu0 0
        %3835 = vmatmul.mubr.bf16.gmra.mrb[0].mxu0 %v3768
        %v3836 = vpop.f32.mrb[0].mxu0
        %v3837 = vadd.f32 0.0, %v3836
        %v3838 = vpop.f32.mrb[0].mxu0
        %v3839 = vpop.f32.mrb[0].mxu0
        %v3840 = vpop.f32.mrb[0].mxu0
        %3841 = vdwg.mxu0
        %v3842 = vpack.c.bf16 %v3808, %v3805
        %v3843 = vpack.c.bf16 %v3816, %v3813
        %v3844 = vpack.c.bf16 %v3824, %v3821
        %v3845 = vpack.c.bf16 %v3832, %v3829
        %v3846 = vpack.c.bf16 %v3837, %v3837
        %3852 = vrot.lane.b32.xlu0 %v3575, 32
        %v3853 = vpop.permute.xlu0 %3852
        %3854 = vrot.lane.b32.xlu0 %v3576, 32
        %v3855 = vpop.permute.xlu0 %3854
        %3856 = vrot.lane.b32.xlu0 %v3577, 32
        %v3857 = vpop.permute.xlu0 %3856
        %3858 = vrot.lane.b32.xlu0 %v3578, 32
        %v3859 = vpop.permute.xlu0 %3858
        %3860 = vrot.lane.b32.xlu0 %v3579, 32
        %v3861 = vpop.permute.xlu0 %3860
        %3867 = vrot.lane.b32.xlu0 %v3664, 64
        %v3868 = vpop.permute.xlu0 %3867
        %3869 = vrot.lane.b32.xlu0 %v3665, 64
        %v3870 = vpop.permute.xlu0 %3869
        %3871 = vrot.lane.b32.xlu0 %v3666, 64
        %v3872 = vpop.permute.xlu0 %3871
        %3873 = vrot.lane.b32.xlu0 %v3667, 64
        %v3874 = vpop.permute.xlu0 %3873
        %3875 = vrot.lane.b32.xlu0 %v3668, 64
        %v3876 = vpop.permute.xlu0 %3875
        %3882 = vrot.lane.b32.xlu0 %v3753, 96
        %v3883 = vpop.permute.xlu0 %3882
        %3884 = vrot.lane.b32.xlu0 %v3754, 96
        %v3885 = vpop.permute.xlu0 %3884
        %3886 = vrot.lane.b32.xlu0 %v3755, 96
        %v3887 = vpop.permute.xlu0 %3886
        %3888 = vrot.lane.b32.xlu0 %v3756, 96
        %v3889 = vpop.permute.xlu0 %3888
        %3890 = vrot.lane.b32.xlu0 %v3757, 96
        %v3891 = vpop.permute.xlu0 %3890
        %v3894 = vsel %vm826, %v3398, %v3853
        %v3897 = vsel %vm826, %v3399, %v3855
        %v3900 = vsel %vm826, %v3400, %v3857
        %v3903 = vsel %vm826, %v3401, %v3859
        %v3905 = vsel %vm826, %v3402, %v3861
        %v3907 = vsel %vm884, %v3894, %v3868
        %v3909 = vsel %vm884, %v3897, %v3870
        %v3911 = vsel %vm884, %v3900, %v3872
        %v3913 = vsel %vm884, %v3903, %v3874
        %v3915 = vsel %vm884, %v3905, %v3876
        %v3917 = vsel %vm1245, %v3907, %v3883
        %v3920 = vsel %vm1245, %v3909, %v3885
        %v3923 = vsel %vm1245, %v3911, %v3887
        %v3926 = vsel %vm1245, %v3913, %v3889
        %v3929 = vsel %vm1245, %v3915, %v3891
        %s3931 = scalar_lea.vmem %s8, 160
        %v3932 = vld [vmem:[%s3931] sm:$0xf]
        %v3933 = vld [vmem:[%s3931 + $0x4] sm:$0xf]
        %v3934 = vld [vmem:[%s3931 + $0x8] sm:$0xf]
        %v3935 = vld [vmem:[%s3931 + $0xc] sm:$0xf]
        %v3936 = vld [vmem:[%s3931 + $0x10] sm:$0xf]
        %v3937 = vld [vmem:[%s3931 + $0x14] sm:$0xf]
        %v3938 = vld [vmem:[%s3931 + $0x18] sm:$0xf]
        %v3939 = vld [vmem:[%s3931 + $0x1c] sm:$0xf]
        %v3940 = vld [vmem:[%s3931 + $0x20] sm:$0xf]
        %v3941 = vld [vmem:[%s3931 + $0x24] sm:$0xf]
        %v3942 = vld [vmem:[%s3931 + $0x28] sm:$0xf]
        %v3943 = vld [vmem:[%s3931 + $0x2c] sm:$0xf]
        %v3944 = vld [vmem:[%s3931 + $0x30] sm:$0xf]
        %v3945 = vld [vmem:[%s3931 + $0x34] sm:$0xf]
        %v3946 = vld [vmem:[%s3931 + $0x38] sm:$0xf]
        %v3947 = vld [vmem:[%s3931 + $0x3c] sm:$0xf]
        %v3948 = vld [vmem:[%s3931 + $0x40] sm:$0xf]
        %v3949 = vld [vmem:[%s3931 + $0x44] sm:$0xf]
        %v3950 = vld [vmem:[%s3931 + $0x48] sm:$0xf]
        %v3951 = vld [vmem:[%s3931 + $0x4c] sm:$0xf]
        %s3952 = scalar_lea.vmem [#allocation11], 2
        %v3953 = vld [vmem:[%s3952] sm:$0x1]
        %v3955 = vlaneseq
        %v3956 = vshrl.u32 %v3955, 7
        %v3957 = vsub.s32 0, %v3956
        %v3958 = vrot.slane %v3953, %v3957
        %v3960 = vmul.f32 %v3103, %v3958
        %v3961 = vmul.f32 %v3104, %v3958
        %v3962 = vmul.f32 %v3105, %v3958
        %v3963 = vmul.f32 %v3106, %v3958
        %v3964 = vmul.f32 %v3107, %v3958
        %v3965 = vmul.f32 %v3108, %v3958
        %v3966 = vmul.f32 %v3109, %v3958
        %v3967 = vmul.f32 %v3110, %v3958
        %v3968 = vmul.f32 %v3111, %v3958
        %v3989 = vunpack.c.l.b16 %v3932
        %v3990 = vunpack.c.l.b16 %v3933
        %v3991 = vunpack.c.l.b16 %v3934
        %v3992 = vunpack.c.l.b16 %v3935
        %v3993 = vunpack.c.l.b16 %v3936
        %v3994 = vunpack.c.l.b16 %v3937
        %v3995 = vunpack.c.l.b16 %v3938
        %v3996 = vunpack.c.l.b16 %v3939
        %v3997 = vunpack.c.l.b16 %v3940
        %v3998 = vunpack.c.l.b16 %v3941
        %v3999 = vunpack.c.l.b16 %v3942
        %v4000 = vunpack.c.l.b16 %v3943
        %v4001 = vunpack.c.l.b16 %v3944
        %v4002 = vunpack.c.l.b16 %v3945
        %v4003 = vunpack.c.l.b16 %v3946
        %v4004 = vunpack.c.l.b16 %v3947
        %v4005 = vunpack.c.l.b16 %v3948
        %v4006 = vunpack.c.l.b16 %v3949
        %v4007 = vunpack.c.l.b16 %v3950
        %v4008 = vunpack.c.l.b16 %v3951
        %v4009 = vpack.c.b16 %v3990, %v3989
        %v4010 = vpack.c.b16 %v3992, %v3991
        %v4011 = vpack.c.b16 %v3994, %v3993
        %v4012 = vpack.c.b16 %v3996, %v3995
        %v4013 = vpack.c.b16 %v3998, %v3997
        %v4014 = vpack.c.b16 %v4000, %v3999
        %v4015 = vpack.c.b16 %v4002, %v4001
        %v4016 = vpack.c.b16 %v4004, %v4003
        %v4017 = vpack.c.b16 %v4006, %v4005
        %v4018 = vpack.c.b16 %v4008, %v4007
        %v4030 = vsel %vm826, %v3842, 0
        %v4033 = vsel %vm826, %v3843, 0
        %v4036 = vsel %vm826, %v3844, 0
        %v4039 = vsel %vm826, %v3845, 0
        %v4042 = vsel %vm826, %v3846, 0
        %4044 = vmatprep.subr.bf16.mxu0 0
        %4045 = vmatpush1.bf16.msra.mxu0 %v4009
        %4046 = vmatprep.subr.bf16.mxu0 0
        %4047 = vmatpush1.bf16.msra.mxu0 %v4010
        %4048 = vmatprep.subr.bf16.mxu0 0
        %4049 = vmatpush1.bf16.msra.mxu0 %v4011
        %4050 = vmatprep.subr.bf16.mxu0 0
        %4051 = vmatpush1.bf16.msra.mxu0 %v4012
        %4052 = vmatprep.subr.bf16.mxu0 0
        %4053 = vmatpush1.bf16.msra.mxu0 %v4013
        %4054 = vmatprep.subr.bf16.mxu0 0
        %4055 = vmatpush1.bf16.msra.mxu0 %v4014
        %4056 = vmatprep.subr.bf16.mxu0 0
        %4057 = vmatpush1.bf16.msra.mxu0 %v4015
        %4058 = vmatprep.subr.bf16.mxu0 0
        %4059 = vmatpush1.bf16.msra.mxu0 %v4016
        %4060 = vmatprep.subr.bf16.mxu0 0
        %4061 = vmatpush1.bf16.msra.mxu0 %v4017
        %4062 = vmatprep.subr.bf16.mxu0 0
        %4063 = vmatpush1.bf16.msra.mxu0 %v4018
        %4064 = vmatprep.subr.bf16.mxu0 0
        %4065 = vmatpush1.bf16.msra.mxu0 0
        %4066 = vmatprep.subr.bf16.mxu0 0
        %4067 = vmatpush1.bf16.msra.mxu0 0
        %4068 = vmatprep.subr.bf16.mxu0 0
        %4069 = vmatpush1.bf16.msra.mxu0 0
        %4070 = vmatprep.subr.bf16.mxu0 0
        %4071 = vmatpush1.bf16.msra.mxu0 0
        %4072 = vmatprep.subr.bf16.mxu0 0
        %4073 = vmatpush1.bf16.msra.mxu0 0
        %4074 = vmatprep.subr.bf16.mxu0 0
        %4075 = vmatpush1.bf16.msra.mxu0 0
        %4076 = vmatprep.mubr.bf16.mxu0 %v4030
        %4077 = vmatmul.mubr.bf16.gmra.mrb[0].mxu0 %v3917
        %v4078 = vpop.f32.mrb[0].mxu0
        %v4079 = vadd.f32 %v3960, %v4078
        %v4080 = vpop.f32.mrb[0].mxu0
        %v4081 = vpop.f32.mrb[0].mxu0
        %v4082 = vadd.f32 %v3961, %v4081
        %v4083 = vpop.f32.mrb[0].mxu0
        %4084 = vmatprep.mubr.bf16.mxu0 %v4033
        %4085 = vmatmul.mubr.bf16.gmra.mrb[0].mxu0 %v3920
        %v4086 = vpop.f32.mrb[0].mxu0
        %v4087 = vadd.f32 %v3962, %v4086
        %v4088 = vpop.f32.mrb[0].mxu0
        %v4089 = vpop.f32.mrb[0].mxu0
        %v4090 = vadd.f32 %v3963, %v4089
        %v4091 = vpop.f32.mrb[0].mxu0
        %4092 = vmatprep.mubr.bf16.mxu0 %v4036
        %4093 = vmatmul.mubr.bf16.gmra.mrb[0].mxu0 %v3923
        %v4094 = vpop.f32.mrb[0].mxu0
        %v4095 = vadd.f32 %v3964, %v4094
        %v4096 = vpop.f32.mrb[0].mxu0
        %v4097 = vpop.f32.mrb[0].mxu0
        %v4098 = vadd.f32 %v3965, %v4097
        %v4099 = vpop.f32.mrb[0].mxu0
        %4100 = vmatprep.mubr.bf16.mxu0 %v4039
        %4101 = vmatmul.mubr.bf16.gmra.mrb[0].mxu0 %v3926
        %v4102 = vpop.f32.mrb[0].mxu0
        %v4103 = vadd.f32 %v3966, %v4102
        %v4104 = vpop.f32.mrb[0].mxu0
        %v4105 = vpop.f32.mrb[0].mxu0
        %v4106 = vadd.f32 %v3967, %v4105
        %v4107 = vpop.f32.mrb[0].mxu0
        %4108 = vmatprep.mubr.bf16.mxu0 %v4042
        %4109 = vmatmul.mubr.bf16.gmra.mrb[0].mxu0 %v3929
        %v4110 = vpop.f32.mrb[0].mxu0
        %v4111 = vadd.f32 %v3968, %v4110
        %v4112 = vpop.f32.mrb[0].mxu0
        %v4113 = vpop.f32.mrb[0].mxu0
        %v4114 = vpop.f32.mrb[0].mxu0
        %4115 = vdwg.mxu0
        %s4116 = scalar_lea.vmem [#allocation10], 2
        %v4117 = vld [vmem:[%s4116] sm:$0x1]
        %v4119 = vlaneseq
        %v4120 = vshrl.u32 %v4119, 7
        %v4121 = vsub.s32 0, %v4120
        %v4122 = vrot.slane %v4117, %v4121
        %v4124 = vadd.f32 %v4079, %v4122
        %v4125 = vadd.f32 %v4082, %v4122
        %v4126 = vadd.f32 %v4087, %v4122
        %v4127 = vadd.f32 %v4090, %v4122
        %v4128 = vadd.f32 %v4095, %v4122
        %v4129 = vadd.f32 %v4098, %v4122
        %v4130 = vadd.f32 %v4103, %v4122
        %v4131 = vadd.f32 %v4106, %v4122
        %v4132 = vadd.f32 %v4111, %v4122
        %4140 = vrot.lane.b32.xlu0 %v4126, 32
        %v4141 = vpop.permute.xlu0 %4140
        %4142 = vrot.lane.b32.xlu0 %v4127, 32
        %v4143 = vpop.permute.xlu0 %4142
        %4144 = vrot.lane.b32.xlu0 %v4128, 32
        %v4145 = vpop.permute.xlu0 %4144
        %4146 = vrot.lane.b32.xlu0 %v4129, 32
        %v4147 = vpop.permute.xlu0 %4146
        %4148 = vrot.lane.b32.xlu0 %v4130, 32
        %v4149 = vpop.permute.xlu0 %4148
        %4150 = vrot.lane.b32.xlu0 %v4131, 32
        %v4151 = vpop.permute.xlu0 %4150
        %4152 = vrot.lane.b32.xlu0 %v4132, 32
        %v4153 = vpop.permute.xlu0 %4152
        %v4161 = vsel %vm826, %v4124, %v4141
        %v4162 = vsel %vm826, %v4125, %v4143
        %v4163 = vsel %vm826, %v4126, %v4145
        %v4164 = vsel %vm826, %v4127, %v4147
        %v4165 = vsel %vm826, %v4128, %v4149
        %v4166 = vsel %vm826, %v4129, %v4151
        %v4167 = vsel %vm826, %v4130, %v4153
        %v4168 = vpack.c.bf16 %v4162, %v4161
        %v4169 = vpack.c.bf16 %v4164, %v4163
        %v4170 = vpack.c.bf16 %v4166, %v4165
        %v4171 = vpack.c.bf16 %v4167, %v4167
        %s4172 = scalar_lea.vmem %s4, 96
        %v4173 = vld [vmem:[%s4172] sm:$0xf]
        %v4174 = vld [vmem:[%s4172 + $0x4] sm:$0xf]
        %v4175 = vld [vmem:[%s4172 + $0x8] sm:$0xf]
        %v4176 = vld [vmem:[%s4172 + $0xc] sm:$0xf]
        %v4177 = vld [vmem:[%s4172 + $0x10] sm:$0xf]
        %v4178 = vld [vmem:[%s4172 + $0x14] sm:$0xf]
        %v4179 = vld [vmem:[%s4172 + $0x18] sm:$0xf]
        %v4180 = vld [vmem:[%s4172 + $0x1c] sm:$0xf]
        %s4181 = scalar_lea.vmem [#allocation5], 3
        %v4182 = vld [vmem:[%s4181] sm:$0x1]
        %v4184 = vlaneseq
        %v4185 = vshrl.u32 %v4184, 7
        %v4186 = vsub.s32 0, %v4185
        %v4187 = vrot.slane %v4182, %v4186
        %v4197 = vunpack.c.l.b16 %v4173
        %v4198 = vunpack.c.l.b16 %v4174
        %v4199 = vunpack.c.l.b16 %v4175
        %v4200 = vunpack.c.l.b16 %v4176
        %v4201 = vunpack.c.l.b16 %v4177
        %v4202 = vunpack.c.l.b16 %v4178
        %v4203 = vunpack.c.l.b16 %v4179
        %v4204 = vunpack.c.l.b16 %v4180
        %v4205 = vpack.c.b16 %v4198, %v4197
        %v4206 = vpack.c.b16 %v4200, %v4199
        %v4207 = vpack.c.b16 %v4202, %v4201
        %v4208 = vpack.c.b16 %v4204, %v4203
        %v4214 = vsel %vm884, %v4168, 0
        %v4217 = vsel %vm884, %v4169, 0
        %v4220 = vsel %vm884, %v4170, 0
        %v4223 = vsel %vm884, %v4171, 0
        %4225 = vmatprep.subr.bf16.mxu0 0
        %4226 = vmatpush1.bf16.msra.mxu0 %v4205
        %4227 = vmatprep.subr.bf16.mxu0 0
        %4228 = vmatpush1.bf16.msra.mxu0 %v4206
        %4229 = vmatprep.subr.bf16.mxu0 0
        %4230 = vmatpush1.bf16.msra.mxu0 %v4207
        %4231 = vmatprep.subr.bf16.mxu0 0
        %4232 = vmatpush1.bf16.msra.mxu0 %v4208
        %4233 = vmatprep.subr.bf16.mxu0 0
        %4234 = vmatpush1.bf16.msra.mxu0 0
        %4235 = vmatprep.subr.bf16.mxu0 0
        %4236 = vmatpush1.bf16.msra.mxu0 0
        %4237 = vmatprep.subr.bf16.mxu0 0
        %4238 = vmatpush1.bf16.msra.mxu0 0
        %4239 = vmatprep.subr.bf16.mxu0 0
        %4240 = vmatpush1.bf16.msra.mxu0 0
        %4241 = vmatprep.subr.bf16.mxu0 0
        %4242 = vmatpush1.bf16.msra.mxu0 0
        %4243 = vmatprep.subr.bf16.mxu0 0
        %4244 = vmatpush1.bf16.msra.mxu0 0
        %4245 = vmatprep.subr.bf16.mxu0 0
        %4246 = vmatpush1.bf16.msra.mxu0 0
        %4247 = vmatprep.subr.bf16.mxu0 0
        %4248 = vmatpush1.bf16.msra.mxu0 0
        %4249 = vmatprep.subr.bf16.mxu0 0
        %4250 = vmatpush1.bf16.msra.mxu0 0
        %4251 = vmatprep.subr.bf16.mxu0 0
        %4252 = vmatpush1.bf16.msra.mxu0 0
        %4253 = vmatprep.subr.bf16.mxu0 0
        %4254 = vmatpush1.bf16.msra.mxu0 0
        %4255 = vmatprep.subr.bf16.mxu0 0
        %4256 = vmatpush1.bf16.msra.mxu0 0
        %4257 = vmatprep.mubr.bf16.mxu0 0
        %4258 = vmatmul.mubr.bf16.gmra.mrb[0].mxu0 %v4214
        %v4259 = vpop.f32.mrb[0].mxu0
        %v4260 = vadd.f32 %v4187, %v4259
        %v4261 = vpop.f32.mrb[0].mxu0
        %v4262 = vpop.f32.mrb[0].mxu0
        %v4263 = vadd.f32 %v4187, %v4262
        %v4264 = vpop.f32.mrb[0].mxu0
        %4265 = vmatprep.mubr.bf16.mxu0 0
        %4266 = vmatmul.mubr.bf16.gmra.mrb[0].mxu0 %v4217
        %v4267 = vpop.f32.mrb[0].mxu0
        %v4268 = vadd.f32 %v4187, %v4267
        %v4269 = vpop.f32.mrb[0].mxu0
        %v4270 = vpop.f32.mrb[0].mxu0
        %v4271 = vadd.f32 %v4187, %v4270
        %v4272 = vpop.f32.mrb[0].mxu0
        %4273 = vmatprep.mubr.bf16.mxu0 0
        %4274 = vmatmul.mubr.bf16.gmra.mrb[0].mxu0 %v4220
        %v4275 = vpop.f32.mrb[0].mxu0
        %v4276 = vadd.f32 %v4187, %v4275
        %v4277 = vpop.f32.mrb[0].mxu0
        %v4278 = vpop.f32.mrb[0].mxu0
        %v4279 = vadd.f32 %v4187, %v4278
        %v4280 = vpop.f32.mrb[0].mxu0
        %4281 = vmatprep.mubr.bf16.mxu0 0
        %4282 = vmatmul.mubr.bf16.gmra.mrb[0].mxu0 %v4223
        %v4283 = vpop.f32.mrb[0].mxu0
        %v4284 = vadd.f32 %v4187, %v4283
        %v4285 = vpop.f32.mrb[0].mxu0
        %v4286 = vpop.f32.mrb[0].mxu0
        %v4287 = vpop.f32.mrb[0].mxu0
        %4288 = vdwg.mxu0
        %v4289 = vtanh.pop %v4260
        %v4290 = vtanh.pop %v4263
        %v4291 = vtanh.pop %v4268
        %v4292 = vtanh.pop %v4271
        %v4293 = vtanh.pop %v4276
        %v4294 = vtanh.pop %v4279
        %v4295 = vtanh.pop %v4284
        %v4296 = vxor.u32 %v4260, 2147483648
        %v4297 = vxor.u32 %v4263, 2147483648
        %v4298 = vxor.u32 %v4268, 2147483648
        %v4299 = vxor.u32 %v4271, 2147483648
        %v4300 = vxor.u32 %v4276, 2147483648
        %v4301 = vxor.u32 %v4279, 2147483648
        %v4302 = vxor.u32 %v4284, 2147483648
        %v4303 = vmul.f32 %v4296, 1.442695
        %v4304 = vpow.pop %v4303
        %v4305 = vmul.f32 %v4297, 1.442695
        %v4306 = vpow.pop %v4305
        %v4307 = vmul.f32 %v4298, 1.442695
        %v4308 = vpow.pop %v4307
        %v4309 = vmul.f32 %v4299, 1.442695
        %v4310 = vpow.pop %v4309
        %v4311 = vmul.f32 %v4300, 1.442695
        %v4312 = vpow.pop %v4311
        %v4313 = vmul.f32 %v4301, 1.442695
        %v4314 = vpow.pop %v4313
        %v4315 = vmul.f32 %v4302, 1.442695
        %v4316 = vpow.pop %v4315
        %v4317 = vadd.f32 %v4304, 1.0
        %v4318 = vadd.f32 %v4306, 1.0
        %v4319 = vadd.f32 %v4308, 1.0
        %v4320 = vadd.f32 %v4310, 1.0
        %v4321 = vadd.f32 %v4312, 1.0
        %v4322 = vadd.f32 %v4314, 1.0
        %v4323 = vadd.f32 %v4316, 1.0
        %v4324 = vrcp.pop %v4317
        %v4325 = vmul.f32 1.0, %v4324
        %v4326 = vrcp.pop %v4318
        %v4327 = vmul.f32 1.0, %v4326
        %v4328 = vrcp.pop %v4319
        %v4329 = vmul.f32 1.0, %v4328
        %v4330 = vrcp.pop %v4320
        %v4331 = vmul.f32 1.0, %v4330
        %v4332 = vrcp.pop %v4321
        %v4333 = vmul.f32 1.0, %v4332
        %v4334 = vrcp.pop %v4322
        %v4335 = vmul.f32 1.0, %v4334
        %v4336 = vrcp.pop %v4323
        %v4337 = vmul.f32 1.0, %v4336
        %4345 = vrot.lane.b32.xlu0 %v4325, 96
        %v4346 = vpop.permute.xlu0 %4345
        %4347 = vrot.lane.b32.xlu0 %v4327, 96
        %v4348 = vpop.permute.xlu0 %4347
        %4349 = vrot.lane.b32.xlu0 %v4329, 96
        %v4350 = vpop.permute.xlu0 %4349
        %4351 = vrot.lane.b32.xlu0 %v4331, 96
        %v4352 = vpop.permute.xlu0 %4351
        %4353 = vrot.lane.b32.xlu0 %v4333, 96
        %v4354 = vpop.permute.xlu0 %4353
        %4355 = vrot.lane.b32.xlu0 %v4335, 96
        %v4356 = vpop.permute.xlu0 %4355
        %4357 = vrot.lane.b32.xlu0 %v4337, 96
        %v4358 = vpop.permute.xlu0 %4357
        %v4366 = vmul.f32 %v4289, %v4346
        %v4367 = vmul.f32 %v4290, %v4348
        %v4368 = vmul.f32 %v4291, %v4350
        %v4369 = vmul.f32 %v4292, %v4352
        %v4370 = vmul.f32 %v4293, %v4354
        %v4371 = vmul.f32 %v4294, %v4356
        %v4372 = vmul.f32 %v4295, %v4358
        %v4373 = vpack.c.bf16 %v4367, %v4366
        %v4374 = vpack.c.bf16 %v4369, %v4368
        %v4375 = vpack.c.bf16 %v4371, %v4370
        %v4376 = vpack.c.bf16 %v4372, %v4372
        %s4377 = scalar_lea.vmem [#allocation7], 96
        %v4378 = vld [vmem:[%s4377] sm:$0xff]
        %v4379 = vld [vmem:[%s4377 + $0x8] sm:$0xff]
        %v4380 = vld [vmem:[%s4377 + $0x10] sm:$0xff]
        %v4381 = vld [vmem:[%s4377 + $0x18] sm:$0xff]
        %s4382 = scalar_lea.vmem [#allocation8], 6
        %v4383 = vld [vmem:[%s4382] sm:$0x3]
        %v4385 = vlaneseq
        %v4386 = vshrl.u32 %v4385, 7
        %v4387 = vsub.s32 0, %v4386
        %v4388 = vrot.slane %v4383, %v4387
        %v4389 = vlaneseq
        %v4390 = vshrl.u32 %v4389, 7
        %v4391 = vsub.s32 1, %v4390
        %v4392 = vrot.slane %v4383, %v4391
        %v4399 = vunpack.c.l.b16 %v4378
        %v4400 = vunpack.c.h.b16 %v4378
        %v4401 = vunpack.c.l.b16 %v4379
        %v4402 = vunpack.c.h.b16 %v4379
        %v4403 = vunpack.c.l.b16 %v4380
        %v4404 = vunpack.c.h.b16 %v4380
        %v4405 = vunpack.c.l.b16 %v4381
        %v4406 = vunpack.c.h.b16 %v4381
        %v4407 = vpack.c.b16 %v4401, %v4399
        %v4408 = vpack.c.b16 %v4402, %v4400
        %v4409 = vpack.c.b16 %v4405, %v4403
        %v4410 = vpack.c.b16 %v4406, %v4404
        %v4416 = vsel %vm826, %v4376, 0
        %4418 = vmatprep.subr.bf16.mxu0 %v4408
        %4419 = vmatpush1.bf16.msra.mxu0 %v4407
        %4420 = vmatprep.subr.bf16.mxu0 %v4410
        %4421 = vmatpush1.bf16.msra.mxu0 %v4409
        %4422 = vmatprep.subr.bf16.mxu0 0
        %4423 = vmatpush1.bf16.msra.mxu0 0
        %4424 = vmatprep.subr.bf16.mxu0 0
        %4425 = vmatpush1.bf16.msra.mxu0 0
        %4426 = vmatprep.subr.bf16.mxu0 0
        %4427 = vmatpush1.bf16.msra.mxu0 0
        %4428 = vmatprep.subr.bf16.mxu0 0
        %4429 = vmatpush1.bf16.msra.mxu0 0
        %4430 = vmatprep.subr.bf16.mxu0 0
        %4431 = vmatpush1.bf16.msra.mxu0 0
        %4432 = vmatprep.subr.bf16.mxu0 0
        %4433 = vmatpush1.bf16.msra.mxu0 0
        %4434 = vmatprep.subr.bf16.mxu0 0
        %4435 = vmatpush1.bf16.msra.mxu0 0
        %4436 = vmatprep.subr.bf16.mxu0 0
        %4437 = vmatpush1.bf16.msra.mxu0 0
        %4438 = vmatprep.subr.bf16.mxu0 0
        %4439 = vmatpush1.bf16.msra.mxu0 0
        %4440 = vmatprep.subr.bf16.mxu0 0
        %4441 = vmatpush1.bf16.msra.mxu0 0
        %4442 = vmatprep.subr.bf16.mxu0 0
        %4443 = vmatpush1.bf16.msra.mxu0 0
        %4444 = vmatprep.subr.bf16.mxu0 0
        %4445 = vmatpush1.bf16.msra.mxu0 0
        %4446 = vmatprep.subr.bf16.mxu0 0
        %4447 = vmatpush1.bf16.msra.mxu0 0
        %4448 = vmatprep.subr.bf16.mxu0 0
        %4449 = vmatpush1.bf16.msra.mxu0 0
        %4450 = vmatprep.mubr.bf16.mxu0 0
        %4451 = vmatmul.mubr.bf16.gmra.mrb[0].mxu0 %v4416
        %v4452 = vpop.f32.mrb[0].mxu0
        %v4453 = vadd.f32 %v4388, %v4452
        %v4454 = vpop.f32.mrb[0].mxu0
        %v4455 = vadd.f32 %v4392, %v4454
        %v4456 = vpop.f32.mrb[0].mxu0
        %v4457 = vpop.f32.mrb[0].mxu0
        %4458 = vdwg.mxu0
        %v4459 = vadd.f32 %v3485, %v4453
        %v4460 = vadd.f32 %v3486, %v4455
        %v4461 = vpack.c.b16 %v1233, %v1233
        %vm4462 = vcmask 457728
        %v4463 = vsel %vm4462, %v1239, 0
        %v4465 = vsel %vm4462, %v1240, 0
        %v4467 = vsel %vm4462, %v1241, 0
        %v4470 = vsel %vm4462, %v4461, 0
        %v4472 = vsel %vm3500, %v4376, 0
        %4474 = vmatprep.subr.bf16.mxu0 0
        %4475 = vmatpush1.bf16.msra.mxu0 %v4373
        %4476 = vmatprep.subr.bf16.mxu0 0
        %4477 = vmatpush1.bf16.msra.mxu0 %v4374
        %4478 = vmatprep.subr.bf16.mxu0 0
        %4479 = vmatpush1.bf16.msra.mxu0 %v4375
        %4480 = vmatprep.subr.bf16.mxu0 0
        %4481 = vmatpush1.bf16.msra.mxu0 %v4472
        %4482 = vmatprep.subr.bf16.mxu0 0
        %4483 = vmatpush1.bf16.msra.mxu0 0
        %4484 = vmatprep.subr.bf16.mxu0 0
        %4485 = vmatpush1.bf16.msra.mxu0 0
        %4486 = vmatprep.subr.bf16.mxu0 0
        %4487 = vmatpush1.bf16.msra.mxu0 0
        %4488 = vmatprep.subr.bf16.mxu0 0
        %4489 = vmatpush1.bf16.msra.mxu0 0
        %4490 = vmatprep.subr.bf16.mxu0 0
        %4491 = vmatpush1.bf16.msra.mxu0 0
        %4492 = vmatprep.subr.bf16.mxu0 0
        %4493 = vmatpush1.bf16.msra.mxu0 0
        %4494 = vmatprep.subr.bf16.mxu0 0
        %4495 = vmatpush1.bf16.msra.mxu0 0
        %4496 = vmatprep.subr.bf16.mxu0 0
        %4497 = vmatpush1.bf16.msra.mxu0 0
        %4498 = vmatprep.subr.bf16.mxu0 0
        %4499 = vmatpush1.bf16.msra.mxu0 0
        %4500 = vmatprep.subr.bf16.mxu0 0
        %4501 = vmatpush1.bf16.msra.mxu0 0
        %4502 = vmatprep.subr.bf16.mxu0 0
        %4503 = vmatpush1.bf16.msra.mxu0 0
        %4504 = vmatprep.subr.bf16.mxu0 0
        %4505 = vmatpush1.bf16.msra.mxu0 0
        %4506 = vmatprep.mubr.bf16.mxu0 0
        %4507 = vmatmul.mubr.bf16.gmra.mrb[0].mxu0 %v4463
        %v4508 = vpop.f32.mrb[0].mxu0
        %v4509 = vadd.f32 0.0, %v4508
        %v4510 = vpop.f32.mrb[0].mxu0
        %v4511 = vpop.f32.mrb[0].mxu0
        %v4512 = vadd.f32 0.0, %v4511
        %v4513 = vpop.f32.mrb[0].mxu0
        %4514 = vmatprep.mubr.bf16.mxu0 0
        %4515 = vmatmul.mubr.bf16.gmra.mrb[0].mxu0 %v4465
        %v4516 = vpop.f32.mrb[0].mxu0
        %v4517 = vadd.f32 0.0, %v4516
        %v4518 = vpop.f32.mrb[0].mxu0
        %v4519 = vpop.f32.mrb[0].mxu0
        %v4520 = vadd.f32 0.0, %v4519
        %v4521 = vpop.f32.mrb[0].mxu0
        %4522 = vmatprep.mubr.bf16.mxu0 0
        %4523 = vmatmul.mubr.bf16.gmra.mrb[0].mxu0 %v4467
        %v4524 = vpop.f32.mrb[0].mxu0
        %v4525 = vadd.f32 0.0, %v4524
        %v4526 = vpop.f32.mrb[0].mxu0
        %v4527 = vpop.f32.mrb[0].mxu0
        %v4528 = vadd.f32 0.0, %v4527
        %v4529 = vpop.f32.mrb[0].mxu0
        %4530 = vmatprep.mubr.bf16.mxu0 0
        %4531 = vmatmul.mubr.bf16.gmra.mrb[0].mxu0 %v4470
        %v4532 = vpop.f32.mrb[0].mxu0
        %v4533 = vadd.f32 0.0, %v4532
        %v4534 = vpop.f32.mrb[0].mxu0
        %v4535 = vpop.f32.mrb[0].mxu0
        %v4536 = vpop.f32.mrb[0].mxu0
        %4537 = vdwg.mxu0
        %v4538 = vpack.c.bf16 %v4512, %v4509
        %v4539 = vpack.c.bf16 %v4520, %v4517
        %v4540 = vpack.c.bf16 %v4528, %v4525
        %v4541 = vpack.c.bf16 %v4533, %v4533
        %v4542 = vpack.c.b16 %v1369, %v1369
        %v4543 = vsel %vm4462, %v1375, 0
        %v4545 = vsel %vm4462, %v1376, 0
        %v4547 = vsel %vm4462, %v1377, 0
        %v4550 = vsel %vm4462, %v4542, 0
        %4552 = vmatprep.subr.bf16.mxu0 0
        %4553 = vmatpush1.bf16.msra.mxu0 %v4373
        %4554 = vmatprep.subr.bf16.mxu0 0
        %4555 = vmatpush1.bf16.msra.mxu0 %v4374
        %4556 = vmatprep.subr.bf16.mxu0 0
        %4557 = vmatpush1.bf16.msra.mxu0 %v4375
        %4558 = vmatprep.subr.bf16.mxu0 0
        %4559 = vmatpush1.bf16.msra.mxu0 %v4472
        %4560 = vmatprep.subr.bf16.mxu0 0
        %4561 = vmatpush1.bf16.msra.mxu0 0
        %4562 = vmatprep.subr.bf16.mxu0 0
        %4563 = vmatpush1.bf16.msra.mxu0 0
        %4564 = vmatprep.subr.bf16.mxu0 0
        %4565 = vmatpush1.bf16.msra.mxu0 0
        %4566 = vmatprep.subr.bf16.mxu0 0
        %4567 = vmatpush1.bf16.msra.mxu0 0
        %4568 = vmatprep.subr.bf16.mxu0 0
        %4569 = vmatpush1.bf16.msra.mxu0 0
        %4570 = vmatprep.subr.bf16.mxu0 0
        %4571 = vmatpush1.bf16.msra.mxu0 0
        %4572 = vmatprep.subr.bf16.mxu0 0
        %4573 = vmatpush1.bf16.msra.mxu0 0
        %4574 = vmatprep.subr.bf16.mxu0 0
        %4575 = vmatpush1.bf16.msra.mxu0 0
        %4576 = vmatprep.subr.bf16.mxu0 0
        %4577 = vmatpush1.bf16.msra.mxu0 0
        %4578 = vmatprep.subr.bf16.mxu0 0
        %4579 = vmatpush1.bf16.msra.mxu0 0
        %4580 = vmatprep.subr.bf16.mxu0 0
        %4581 = vmatpush1.bf16.msra.mxu0 0
        %4582 = vmatprep.subr.bf16.mxu0 0
        %4583 = vmatpush1.bf16.msra.mxu0 0
        %4584 = vmatprep.mubr.bf16.mxu0 0
        %4585 = vmatmul.mubr.bf16.gmra.mrb[0].mxu0 %v4543
        %v4586 = vpop.f32.mrb[0].mxu0
        %v4587 = vadd.f32 0.0, %v4586
        %v4588 = vpop.f32.mrb[0].mxu0
        %v4589 = vpop.f32.mrb[0].mxu0
        %v4590 = vadd.f32 0.0, %v4589
        %v4591 = vpop.f32.mrb[0].mxu0
        %4592 = vmatprep.mubr.bf16.mxu0 0
        %4593 = vmatmul.mubr.bf16.gmra.mrb[0].mxu0 %v4545
        %v4594 = vpop.f32.mrb[0].mxu0
        %v4595 = vadd.f32 0.0, %v4594
        %v4596 = vpop.f32.mrb[0].mxu0
        %v4597 = vpop.f32.mrb[0].mxu0
        %v4598 = vadd.f32 0.0, %v4597
        %v4599 = vpop.f32.mrb[0].mxu0
        %4600 = vmatprep.mubr.bf16.mxu0 0
        %4601 = vmatmul.mubr.bf16.gmra.mrb[0].mxu0 %v4547
        %v4602 = vpop.f32.mrb[0].mxu0
        %v4603 = vadd.f32 0.0, %v4602
        %v4604 = vpop.f32.mrb[0].mxu0
        %v4605 = vpop.f32.mrb[0].mxu0
        %v4606 = vadd.f32 0.0, %v4605
        %v4607 = vpop.f32.mrb[0].mxu0
        %4608 = vmatprep.mubr.bf16.mxu0 0
        %4609 = vmatmul.mubr.bf16.gmra.mrb[0].mxu0 %v4550
        %v4610 = vpop.f32.mrb[0].mxu0
        %v4611 = vadd.f32 0.0, %v4610
        %v4612 = vpop.f32.mrb[0].mxu0
        %v4613 = vpop.f32.mrb[0].mxu0
        %v4614 = vpop.f32.mrb[0].mxu0
        %4615 = vdwg.mxu0
        %v4616 = vpack.c.bf16 %v4590, %v4587
        %v4617 = vpack.c.bf16 %v4598, %v4595
        %v4618 = vpack.c.bf16 %v4606, %v4603
        %v4619 = vpack.c.bf16 %v4611, %v4611
        %v4620 = vpack.c.b16 %v1504, %v1504
        %v4621 = vsel %vm4462, %v1510, 0
        %v4623 = vsel %vm4462, %v1511, 0
        %v4625 = vsel %vm4462, %v1512, 0
        %v4628 = vsel %vm4462, %v4620, 0
        %4630 = vmatprep.subr.bf16.mxu0 0
        %4631 = vmatpush1.bf16.msra.mxu0 %v4373
        %4632 = vmatprep.subr.bf16.mxu0 0
        %4633 = vmatpush1.bf16.msra.mxu0 %v4374
        %4634 = vmatprep.subr.bf16.mxu0 0
        %4635 = vmatpush1.bf16.msra.mxu0 %v4375
        %4636 = vmatprep.subr.bf16.mxu0 0
        %4637 = vmatpush1.bf16.msra.mxu0 %v4472
        %4638 = vmatprep.subr.bf16.mxu0 0
        %4639 = vmatpush1.bf16.msra.mxu0 0
        %4640 = vmatprep.subr.bf16.mxu0 0
        %4641 = vmatpush1.bf16.msra.mxu0 0
        %4642 = vmatprep.subr.bf16.mxu0 0
        %4643 = vmatpush1.bf16.msra.mxu0 0
        %4644 = vmatprep.subr.bf16.mxu0 0
        %4645 = vmatpush1.bf16.msra.mxu0 0
        %4646 = vmatprep.subr.bf16.mxu0 0
        %4647 = vmatpush1.bf16.msra.mxu0 0
        %4648 = vmatprep.subr.bf16.mxu0 0
        %4649 = vmatpush1.bf16.msra.mxu0 0
        %4650 = vmatprep.subr.bf16.mxu0 0
        %4651 = vmatpush1.bf16.msra.mxu0 0
        %4652 = vmatprep.subr.bf16.mxu0 0
        %4653 = vmatpush1.bf16.msra.mxu0 0
        %4654 = vmatprep.subr.bf16.mxu0 0
        %4655 = vmatpush1.bf16.msra.mxu0 0
        %4656 = vmatprep.subr.bf16.mxu0 0
        %4657 = vmatpush1.bf16.msra.mxu0 0
        %4658 = vmatprep.subr.bf16.mxu0 0
        %4659 = vmatpush1.bf16.msra.mxu0 0
        %4660 = vmatprep.subr.bf16.mxu0 0
        %4661 = vmatpush1.bf16.msra.mxu0 0
        %4662 = vmatprep.mubr.bf16.mxu0 0
        %4663 = vmatmul.mubr.bf16.gmra.mrb[0].mxu0 %v4621
        %v4664 = vpop.f32.mrb[0].mxu0
        %v4665 = vadd.f32 0.0, %v4664
        %v4666 = vpop.f32.mrb[0].mxu0
        %v4667 = vpop.f32.mrb[0].mxu0
        %v4668 = vadd.f32 0.0, %v4667
        %v4669 = vpop.f32.mrb[0].mxu0
        %4670 = vmatprep.mubr.bf16.mxu0 0
        %4671 = vmatmul.mubr.bf16.gmra.mrb[0].mxu0 %v4623
        %v4672 = vpop.f32.mrb[0].mxu0
        %v4673 = vadd.f32 0.0, %v4672
        %v4674 = vpop.f32.mrb[0].mxu0
        %v4675 = vpop.f32.mrb[0].mxu0
        %v4676 = vadd.f32 0.0, %v4675
        %v4677 = vpop.f32.mrb[0].mxu0
        %4678 = vmatprep.mubr.bf16.mxu0 0
        %4679 = vmatmul.mubr.bf16.gmra.mrb[0].mxu0 %v4625
        %v4680 = vpop.f32.mrb[0].mxu0
        %v4681 = vadd.f32 0.0, %v4680
        %v4682 = vpop.f32.mrb[0].mxu0
        %v4683 = vpop.f32.mrb[0].mxu0
        %v4684 = vadd.f32 0.0, %v4683
        %v4685 = vpop.f32.mrb[0].mxu0
        %4686 = vmatprep.mubr.bf16.mxu0 0
        %4687 = vmatmul.mubr.bf16.gmra.mrb[0].mxu0 %v4628
        %v4688 = vpop.f32.mrb[0].mxu0
        %v4689 = vadd.f32 0.0, %v4688
        %v4690 = vpop.f32.mrb[0].mxu0
        %v4691 = vpop.f32.mrb[0].mxu0
        %v4692 = vpop.f32.mrb[0].mxu0
        %4693 = vdwg.mxu0
        %v4694 = vpack.c.bf16 %v4668, %v4665
        %v4695 = vpack.c.bf16 %v4676, %v4673
        %v4696 = vpack.c.bf16 %v4684, %v4681
        %v4697 = vpack.c.bf16 %v4689, %v4689
        %v4698 = vpack.c.b16 %v1639, %v1639
        %v4699 = vsel %vm4462, %v1645, 0
        %v4701 = vsel %vm4462, %v1646, 0
        %v4703 = vsel %vm4462, %v1647, 0
        %v4706 = vsel %vm4462, %v4698, 0
        %4708 = vmatprep.subr.bf16.mxu0 0
        %4709 = vmatpush1.bf16.msra.mxu0 %v4373
        %4710 = vmatprep.subr.bf16.mxu0 0
        %4711 = vmatpush1.bf16.msra.mxu0 %v4374
        %4712 = vmatprep.subr.bf16.mxu0 0
        %4713 = vmatpush1.bf16.msra.mxu0 %v4375
        %4714 = vmatprep.subr.bf16.mxu0 0
        %4715 = vmatpush1.bf16.msra.mxu0 %v4472
        %4716 = vmatprep.subr.bf16.mxu0 0
        %4717 = vmatpush1.bf16.msra.mxu0 0
        %4718 = vmatprep.subr.bf16.mxu0 0
        %4719 = vmatpush1.bf16.msra.mxu0 0
        %4720 = vmatprep.subr.bf16.mxu0 0
        %4721 = vmatpush1.bf16.msra.mxu0 0
        %4722 = vmatprep.subr.bf16.mxu0 0
        %4723 = vmatpush1.bf16.msra.mxu0 0
        %4724 = vmatprep.subr.bf16.mxu0 0
        %4725 = vmatpush1.bf16.msra.mxu0 0
        %4726 = vmatprep.subr.bf16.mxu0 0
        %4727 = vmatpush1.bf16.msra.mxu0 0
        %4728 = vmatprep.subr.bf16.mxu0 0
        %4729 = vmatpush1.bf16.msra.mxu0 0
        %4730 = vmatprep.subr.bf16.mxu0 0
        %4731 = vmatpush1.bf16.msra.mxu0 0
        %4732 = vmatprep.subr.bf16.mxu0 0
        %4733 = vmatpush1.bf16.msra.mxu0 0
        %4734 = vmatprep.subr.bf16.mxu0 0
        %4735 = vmatpush1.bf16.msra.mxu0 0
        %4736 = vmatprep.subr.bf16.mxu0 0
        %4737 = vmatpush1.bf16.msra.mxu0 0
        %4738 = vmatprep.subr.bf16.mxu0 0
        %4739 = vmatpush1.bf16.msra.mxu0 0
        %4740 = vmatprep.mubr.bf16.mxu0 0
        %4741 = vmatmul.mubr.bf16.gmra.mrb[0].mxu0 %v4699
        %v4742 = vpop.f32.mrb[0].mxu0
        %v4743 = vadd.f32 0.0, %v4742
        %v4744 = vpop.f32.mrb[0].mxu0
        %v4745 = vpop.f32.mrb[0].mxu0
        %v4746 = vadd.f32 0.0, %v4745
        %v4747 = vpop.f32.mrb[0].mxu0
        %4748 = vmatprep.mubr.bf16.mxu0 0
        %4749 = vmatmul.mubr.bf16.gmra.mrb[0].mxu0 %v4701
        %v4750 = vpop.f32.mrb[0].mxu0
        %v4751 = vadd.f32 0.0, %v4750
        %v4752 = vpop.f32.mrb[0].mxu0
        %v4753 = vpop.f32.mrb[0].mxu0
        %v4754 = vadd.f32 0.0, %v4753
        %v4755 = vpop.f32.mrb[0].mxu0
        %4756 = vmatprep.mubr.bf16.mxu0 0
        %4757 = vmatmul.mubr.bf16.gmra.mrb[0].mxu0 %v4703
        %v4758 = vpop.f32.mrb[0].mxu0
        %v4759 = vadd.f32 0.0, %v4758
        %v4760 = vpop.f32.mrb[0].mxu0
        %v4761 = vpop.f32.mrb[0].mxu0
        %v4762 = vadd.f32 0.0, %v4761
        %v4763 = vpop.f32.mrb[0].mxu0
        %4764 = vmatprep.mubr.bf16.mxu0 0
        %4765 = vmatmul.mubr.bf16.gmra.mrb[0].mxu0 %v4706
        %v4766 = vpop.f32.mrb[0].mxu0
        %v4767 = vadd.f32 0.0, %v4766
        %v4768 = vpop.f32.mrb[0].mxu0
        %v4769 = vpop.f32.mrb[0].mxu0
        %v4770 = vpop.f32.mrb[0].mxu0
        %4771 = vdwg.mxu0
        %v4772 = vpack.c.bf16 %v4746, %v4743
        %v4773 = vpack.c.bf16 %v4754, %v4751
        %v4774 = vpack.c.bf16 %v4762, %v4759
        %v4775 = vpack.c.bf16 %v4767, %v4767
        %4780 = vrot.lane.b32.xlu0 %v4538, 32
        %v4781 = vpop.permute.xlu0 %4780
        %4782 = vrot.lane.b32.xlu0 %v4539, 32
        %v4783 = vpop.permute.xlu0 %4782
        %4784 = vrot.lane.b32.xlu0 %v4540, 32
        %v4785 = vpop.permute.xlu0 %4784
        %4786 = vrot.lane.b32.xlu0 %v4541, 32
        %v4787 = vpop.permute.xlu0 %4786
        %4792 = vrot.lane.b32.xlu0 %v4616, 64
        %v4793 = vpop.permute.xlu0 %4792
        %4794 = vrot.lane.b32.xlu0 %v4617, 64
        %v4795 = vpop.permute.xlu0 %4794
        %4796 = vrot.lane.b32.xlu0 %v4618, 64
        %v4797 = vpop.permute.xlu0 %4796
        %4798 = vrot.lane.b32.xlu0 %v4619, 64
        %v4799 = vpop.permute.xlu0 %4798
        %4804 = vrot.lane.b32.xlu0 %v4694, 96
        %v4805 = vpop.permute.xlu0 %4804
        %4806 = vrot.lane.b32.xlu0 %v4695, 96
        %v4807 = vpop.permute.xlu0 %4806
        %4808 = vrot.lane.b32.xlu0 %v4696, 96
        %v4809 = vpop.permute.xlu0 %4808
        %4810 = vrot.lane.b32.xlu0 %v4697, 96
        %v4811 = vpop.permute.xlu0 %4810
        %v4814 = vsel %vm826, %v4373, %v4781
        %v4817 = vsel %vm826, %v4374, %v4783
        %v4820 = vsel %vm826, %v4375, %v4785
        %v4822 = vsel %vm826, %v4376, %v4787
        %v4824 = vsel %vm884, %v4814, %v4793
        %v4826 = vsel %vm884, %v4817, %v4795
        %v4828 = vsel %vm884, %v4820, %v4797
        %v4830 = vsel %vm884, %v4822, %v4799
        %v4832 = vsel %vm1245, %v4824, %v4805
        %v4835 = vsel %vm1245, %v4826, %v4807
        %v4838 = vsel %vm1245, %v4828, %v4809
        %v4841 = vsel %vm1245, %v4830, %v4811
        %s4843 = scalar_lea.vmem %s8, 240
        %v4844 = vld [vmem:[%s4843] sm:$0xf]
        %v4845 = vld [vmem:[%s4843 + $0x4] sm:$0xf]
        %v4846 = vld [vmem:[%s4843 + $0x8] sm:$0xf]
        %v4847 = vld [vmem:[%s4843 + $0xc] sm:$0xf]
        %v4848 = vld [vmem:[%s4843 + $0x10] sm:$0xf]
        %v4849 = vld [vmem:[%s4843 + $0x14] sm:$0xf]
        %v4850 = vld [vmem:[%s4843 + $0x18] sm:$0xf]
        %v4851 = vld [vmem:[%s4843 + $0x1c] sm:$0xf]
        %v4852 = vld [vmem:[%s4843 + $0x20] sm:$0xf]
        %v4853 = vld [vmem:[%s4843 + $0x24] sm:$0xf]
        %v4854 = vld [vmem:[%s4843 + $0x28] sm:$0xf]
        %v4855 = vld [vmem:[%s4843 + $0x2c] sm:$0xf]
        %v4856 = vld [vmem:[%s4843 + $0x30] sm:$0xf]
        %v4857 = vld [vmem:[%s4843 + $0x34] sm:$0xf]
        %v4858 = vld [vmem:[%s4843 + $0x38] sm:$0xf]
        %v4859 = vld [vmem:[%s4843 + $0x3c] sm:$0xf]
        %v4860 = vld [vmem:[%s4843 + $0x40] sm:$0xf]
        %v4861 = vld [vmem:[%s4843 + $0x44] sm:$0xf]
        %v4862 = vld [vmem:[%s4843 + $0x48] sm:$0xf]
        %v4863 = vld [vmem:[%s4843 + $0x4c] sm:$0xf]
        %s4864 = scalar_lea.vmem [#allocation11], 3
        %v4865 = vld [vmem:[%s4864] sm:$0x1]
        %v4867 = vlaneseq
        %v4868 = vshrl.u32 %v4867, 7
        %v4869 = vsub.s32 0, %v4868
        %v4870 = vrot.slane %v4865, %v4869
        %v4872 = vmul.f32 %v4126, %v4870
        %v4873 = vmul.f32 %v4127, %v4870
        %v4874 = vmul.f32 %v4128, %v4870
        %v4875 = vmul.f32 %v4129, %v4870
        %v4876 = vmul.f32 %v4130, %v4870
        %v4877 = vmul.f32 %v4131, %v4870
        %v4878 = vmul.f32 %v4132, %v4870
        %v4899 = vunpack.c.l.b16 %v4844
        %v4900 = vunpack.c.l.b16 %v4845
        %v4901 = vunpack.c.l.b16 %v4846
        %v4902 = vunpack.c.l.b16 %v4847
        %v4903 = vunpack.c.l.b16 %v4848
        %v4904 = vunpack.c.l.b16 %v4849
        %v4905 = vunpack.c.l.b16 %v4850
        %v4906 = vunpack.c.l.b16 %v4851
        %v4907 = vunpack.c.l.b16 %v4852
        %v4908 = vunpack.c.l.b16 %v4853
        %v4909 = vunpack.c.l.b16 %v4854
        %v4910 = vunpack.c.l.b16 %v4855
        %v4911 = vunpack.c.l.b16 %v4856
        %v4912 = vunpack.c.l.b16 %v4857
        %v4913 = vunpack.c.l.b16 %v4858
        %v4914 = vunpack.c.l.b16 %v4859
        %v4915 = vunpack.c.l.b16 %v4860
        %v4916 = vunpack.c.l.b16 %v4861
        %v4917 = vunpack.c.l.b16 %v4862
        %v4918 = vunpack.c.l.b16 %v4863
        %v4919 = vpack.c.b16 %v4900, %v4899
        %v4920 = vpack.c.b16 %v4902, %v4901
        %v4921 = vpack.c.b16 %v4904, %v4903
        %v4922 = vpack.c.b16 %v4906, %v4905
        %v4923 = vpack.c.b16 %v4908, %v4907
        %v4924 = vpack.c.b16 %v4910, %v4909
        %v4925 = vpack.c.b16 %v4912, %v4911
        %v4926 = vpack.c.b16 %v4914, %v4913
        %v4927 = vpack.c.b16 %v4916, %v4915
        %v4928 = vpack.c.b16 %v4918, %v4917
        %v4940 = vsel %vm826, %v4772, 0
        %v4943 = vsel %vm826, %v4773, 0
        %v4946 = vsel %vm826, %v4774, 0
        %v4949 = vsel %vm826, %v4775, 0
        %4951 = vmatprep.subr.bf16.mxu0 0
        %4952 = vmatpush1.bf16.msra.mxu0 %v4919
        %4953 = vmatprep.subr.bf16.mxu0 0
        %4954 = vmatpush1.bf16.msra.mxu0 %v4920
        %4955 = vmatprep.subr.bf16.mxu0 0
        %4956 = vmatpush1.bf16.msra.mxu0 %v4921
        %4957 = vmatprep.subr.bf16.mxu0 0
        %4958 = vmatpush1.bf16.msra.mxu0 %v4922
        %4959 = vmatprep.subr.bf16.mxu0 0
        %4960 = vmatpush1.bf16.msra.mxu0 %v4923
        %4961 = vmatprep.subr.bf16.mxu0 0
        %4962 = vmatpush1.bf16.msra.mxu0 %v4924
        %4963 = vmatprep.subr.bf16.mxu0 0
        %4964 = vmatpush1.bf16.msra.mxu0 %v4925
        %4965 = vmatprep.subr.bf16.mxu0 0
        %4966 = vmatpush1.bf16.msra.mxu0 %v4926
        %4967 = vmatprep.subr.bf16.mxu0 0
        %4968 = vmatpush1.bf16.msra.mxu0 %v4927
        %4969 = vmatprep.subr.bf16.mxu0 0
        %4970 = vmatpush1.bf16.msra.mxu0 %v4928
        %4971 = vmatprep.subr.bf16.mxu0 0
        %4972 = vmatpush1.bf16.msra.mxu0 0
        %4973 = vmatprep.subr.bf16.mxu0 0
        %4974 = vmatpush1.bf16.msra.mxu0 0
        %4975 = vmatprep.subr.bf16.mxu0 0
        %4976 = vmatpush1.bf16.msra.mxu0 0
        %4977 = vmatprep.subr.bf16.mxu0 0
        %4978 = vmatpush1.bf16.msra.mxu0 0
        %4979 = vmatprep.subr.bf16.mxu0 0
        %4980 = vmatpush1.bf16.msra.mxu0 0
        %4981 = vmatprep.subr.bf16.mxu0 0
        %4982 = vmatpush1.bf16.msra.mxu0 0
        %4983 = vmatprep.mubr.bf16.mxu0 %v4940
        %4984 = vmatmul.mubr.bf16.gmra.mrb[0].mxu0 %v4832
        %v4985 = vpop.f32.mrb[0].mxu0
        %v4986 = vadd.f32 %v4872, %v4985
        %v4987 = vpop.f32.mrb[0].mxu0
        %v4988 = vpop.f32.mrb[0].mxu0
        %v4989 = vadd.f32 %v4873, %v4988
        %v4990 = vpop.f32.mrb[0].mxu0
        %4991 = vmatprep.mubr.bf16.mxu0 %v4943
        %4992 = vmatmul.mubr.bf16.gmra.mrb[0].mxu0 %v4835
        %v4993 = vpop.f32.mrb[0].mxu0
        %v4994 = vadd.f32 %v4874, %v4993
        %v4995 = vpop.f32.mrb[0].mxu0
        %v4996 = vpop.f32.mrb[0].mxu0
        %v4997 = vadd.f32 %v4875, %v4996
        %v4998 = vpop.f32.mrb[0].mxu0
        %4999 = vmatprep.mubr.bf16.mxu0 %v4946
        %5000 = vmatmul.mubr.bf16.gmra.mrb[0].mxu0 %v4838
        %v5001 = vpop.f32.mrb[0].mxu0
        %v5002 = vadd.f32 %v4876, %v5001
        %v5003 = vpop.f32.mrb[0].mxu0
        %v5004 = vpop.f32.mrb[0].mxu0
        %v5005 = vadd.f32 %v4877, %v5004
        %v5006 = vpop.f32.mrb[0].mxu0
        %5007 = vmatprep.mubr.bf16.mxu0 %v4949
        %5008 = vmatmul.mubr.bf16.gmra.mrb[0].mxu0 %v4841
        %v5009 = vpop.f32.mrb[0].mxu0
        %v5010 = vadd.f32 %v4878, %v5009
        %v5011 = vpop.f32.mrb[0].mxu0
        %v5012 = vpop.f32.mrb[0].mxu0
        %v5013 = vpop.f32.mrb[0].mxu0
        %5014 = vdwg.mxu0
        %s5015 = scalar_lea.vmem [#allocation10], 3
        %v5016 = vld [vmem:[%s5015] sm:$0x1]
        %v5018 = vlaneseq
        %v5019 = vshrl.u32 %v5018, 7
        %v5020 = vsub.s32 0, %v5019
        %v5021 = vrot.slane %v5016, %v5020
        %v5023 = vadd.f32 %v4986, %v5021
        %v5024 = vadd.f32 %v4989, %v5021
        %v5025 = vadd.f32 %v4994, %v5021
        %v5026 = vadd.f32 %v4997, %v5021
        %v5027 = vadd.f32 %v5002, %v5021
        %v5028 = vadd.f32 %v5005, %v5021
        %v5029 = vadd.f32 %v5010, %v5021
        %5036 = vrot.lane.b32.xlu0 %v5024, 32
        %v5037 = vpop.permute.xlu0 %5036
        %5038 = vrot.lane.b32.xlu0 %v5025, 32
        %v5039 = vpop.permute.xlu0 %5038
        %5040 = vrot.lane.b32.xlu0 %v5026, 32
        %v5041 = vpop.permute.xlu0 %5040
        %5042 = vrot.lane.b32.xlu0 %v5027, 32
        %v5043 = vpop.permute.xlu0 %5042
        %5044 = vrot.lane.b32.xlu0 %v5028, 32
        %v5045 = vpop.permute.xlu0 %5044
        %5046 = vrot.lane.b32.xlu0 %v5029, 32
        %v5047 = vpop.permute.xlu0 %5046
        %v5054 = vsel %vm826, %v5023, %v5037
        %v5055 = vsel %vm826, %v5024, %v5039
        %v5056 = vsel %vm826, %v5025, %v5041
        %v5057 = vsel %vm826, %v5026, %v5043
        %v5058 = vsel %vm826, %v5027, %v5045
        %v5059 = vsel %vm826, %v5028, %v5047
        %v5060 = vpack.c.bf16 %v5055, %v5054
        %v5061 = vpack.c.bf16 %v5057, %v5056
        %v5062 = vpack.c.bf16 %v5059, %v5058
        %s5063 = scalar_lea.vmem %s4, 128
        %v5064 = vld [vmem:[%s5063] sm:$0xf]
        %v5065 = vld [vmem:[%s5063 + $0x4] sm:$0xf]
        %v5066 = vld [vmem:[%s5063 + $0x8] sm:$0xf]
        %v5067 = vld [vmem:[%s5063 + $0xc] sm:$0xf]
        %v5068 = vld [vmem:[%s5063 + $0x10] sm:$0xf]
        %v5069 = vld [vmem:[%s5063 + $0x14] sm:$0xf]
        %v5070 = vld [vmem:[%s5063 + $0x18] sm:$0xf]
        %v5071 = vld [vmem:[%s5063 + $0x1c] sm:$0xf]
        %s5072 = scalar_lea.vmem [#allocation5], 4
        %v5073 = vld [vmem:[%s5072] sm:$0x1]
        %v5075 = vlaneseq
        %v5076 = vshrl.u32 %v5075, 7
        %v5077 = vsub.s32 0, %v5076
        %v5078 = vrot.slane %v5073, %v5077
        %v5088 = vunpack.c.l.b16 %v5064
        %v5089 = vunpack.c.l.b16 %v5065
        %v5090 = vunpack.c.l.b16 %v5066
        %v5091 = vunpack.c.l.b16 %v5067
        %v5092 = vunpack.c.l.b16 %v5068
        %v5093 = vunpack.c.l.b16 %v5069
        %v5094 = vunpack.c.l.b16 %v5070
        %v5095 = vunpack.c.l.b16 %v5071
        %v5096 = vpack.c.b16 %v5089, %v5088
        %v5097 = vpack.c.b16 %v5091, %v5090
        %v5098 = vpack.c.b16 %v5093, %v5092
        %v5099 = vpack.c.b16 %v5095, %v5094
        %v5105 = vsel %vm884, %v5060, 0
        %v5108 = vsel %vm884, %v5061, 0
        %v5111 = vsel %vm884, %v5062, 0
        %5113 = vmatprep.subr.bf16.mxu0 0
        %5114 = vmatpush1.bf16.msra.mxu0 %v5096
        %5115 = vmatprep.subr.bf16.mxu0 0
        %5116 = vmatpush1.bf16.msra.mxu0 %v5097
        %5117 = vmatprep.subr.bf16.mxu0 0
        %5118 = vmatpush1.bf16.msra.mxu0 %v5098
        %5119 = vmatprep.subr.bf16.mxu0 0
        %5120 = vmatpush1.bf16.msra.mxu0 %v5099
        %5121 = vmatprep.subr.bf16.mxu0 0
        %5122 = vmatpush1.bf16.msra.mxu0 0
        %5123 = vmatprep.subr.bf16.mxu0 0
        %5124 = vmatpush1.bf16.msra.mxu0 0
        %5125 = vmatprep.subr.bf16.mxu0 0
        %5126 = vmatpush1.bf16.msra.mxu0 0
        %5127 = vmatprep.subr.bf16.mxu0 0
        %5128 = vmatpush1.bf16.msra.mxu0 0
        %5129 = vmatprep.subr.bf16.mxu0 0
        %5130 = vmatpush1.bf16.msra.mxu0 0
        %5131 = vmatprep.subr.bf16.mxu0 0
        %5132 = vmatpush1.bf16.msra.mxu0 0
        %5133 = vmatprep.subr.bf16.mxu0 0
        %5134 = vmatpush1.bf16.msra.mxu0 0
        %5135 = vmatprep.subr.bf16.mxu0 0
        %5136 = vmatpush1.bf16.msra.mxu0 0
        %5137 = vmatprep.subr.bf16.mxu0 0
        %5138 = vmatpush1.bf16.msra.mxu0 0
        %5139 = vmatprep.subr.bf16.mxu0 0
        %5140 = vmatpush1.bf16.msra.mxu0 0
        %5141 = vmatprep.subr.bf16.mxu0 0
        %5142 = vmatpush1.bf16.msra.mxu0 0
        %5143 = vmatprep.subr.bf16.mxu0 0
        %5144 = vmatpush1.bf16.msra.mxu0 0
        %5145 = vmatprep.mubr.bf16.mxu0 0
        %5146 = vmatmul.mubr.bf16.gmra.mrb[0].mxu0 %v5105
        %v5147 = vpop.f32.mrb[0].mxu0
        %v5148 = vadd.f32 %v5078, %v5147
        %v5149 = vpop.f32.mrb[0].mxu0
        %v5150 = vpop.f32.mrb[0].mxu0
        %v5151 = vadd.f32 %v5078, %v5150
        %v5152 = vpop.f32.mrb[0].mxu0
        %5153 = vmatprep.mubr.bf16.mxu0 0
        %5154 = vmatmul.mubr.bf16.gmra.mrb[0].mxu0 %v5108
        %v5155 = vpop.f32.mrb[0].mxu0
        %v5156 = vadd.f32 %v5078, %v5155
        %v5157 = vpop.f32.mrb[0].mxu0
        %v5158 = vpop.f32.mrb[0].mxu0
        %v5159 = vadd.f32 %v5078, %v5158
        %v5160 = vpop.f32.mrb[0].mxu0
        %5161 = vmatprep.mubr.bf16.mxu0 0
        %5162 = vmatmul.mubr.bf16.gmra.mrb[0].mxu0 %v5111
        %v5163 = vpop.f32.mrb[0].mxu0
        %v5164 = vadd.f32 %v5078, %v5163
        %v5165 = vpop.f32.mrb[0].mxu0
        %v5166 = vpop.f32.mrb[0].mxu0
        %v5167 = vadd.f32 %v5078, %v5166
        %v5168 = vpop.f32.mrb[0].mxu0
        %5169 = vdwg.mxu0
        %v5170 = vtanh.pop %v5148
        %v5171 = vtanh.pop %v5151
        %v5172 = vtanh.pop %v5156
        %v5173 = vtanh.pop %v5159
        %v5174 = vtanh.pop %v5164
        %v5175 = vtanh.pop %v5167
        %v5176 = vxor.u32 %v5148, 2147483648
        %v5177 = vxor.u32 %v5151, 2147483648
        %v5178 = vxor.u32 %v5156, 2147483648
        %v5179 = vxor.u32 %v5159, 2147483648
        %v5180 = vxor.u32 %v5164, 2147483648
        %v5181 = vxor.u32 %v5167, 2147483648
        %v5182 = vmul.f32 %v5176, 1.442695
        %v5183 = vpow.pop %v5182
        %v5184 = vmul.f32 %v5177, 1.442695
        %v5185 = vpow.pop %v5184
        %v5186 = vmul.f32 %v5178, 1.442695
        %v5187 = vpow.pop %v5186
        %v5188 = vmul.f32 %v5179, 1.442695
        %v5189 = vpow.pop %v5188
        %v5190 = vmul.f32 %v5180, 1.442695
        %v5191 = vpow.pop %v5190
        %v5192 = vmul.f32 %v5181, 1.442695
        %v5193 = vpow.pop %v5192
        %v5194 = vadd.f32 %v5183, 1.0
        %v5195 = vadd.f32 %v5185, 1.0
        %v5196 = vadd.f32 %v5187, 1.0
        %v5197 = vadd.f32 %v5189, 1.0
        %v5198 = vadd.f32 %v5191, 1.0
        %v5199 = vadd.f32 %v5193, 1.0
        %v5200 = vrcp.pop %v5194
        %v5201 = vmul.f32 1.0, %v5200
        %v5202 = vrcp.pop %v5195
        %v5203 = vmul.f32 1.0, %v5202
        %v5204 = vrcp.pop %v5196
        %v5205 = vmul.f32 1.0, %v5204
        %v5206 = vrcp.pop %v5197
        %v5207 = vmul.f32 1.0, %v5206
        %v5208 = vrcp.pop %v5198
        %v5209 = vmul.f32 1.0, %v5208
        %v5210 = vrcp.pop %v5199
        %v5211 = vmul.f32 1.0, %v5210
        %5218 = vrot.lane.b32.xlu0 %v5201, 96
        %v5219 = vpop.permute.xlu0 %5218
        %5220 = vrot.lane.b32.xlu0 %v5203, 96
        %v5221 = vpop.permute.xlu0 %5220
        %5222 = vrot.lane.b32.xlu0 %v5205, 96
        %v5223 = vpop.permute.xlu0 %5222
        %5224 = vrot.lane.b32.xlu0 %v5207, 96
        %v5225 = vpop.permute.xlu0 %5224
        %5226 = vrot.lane.b32.xlu0 %v5209, 96
        %v5227 = vpop.permute.xlu0 %5226
        %5228 = vrot.lane.b32.xlu0 %v5211, 96
        %v5229 = vpop.permute.xlu0 %5228
        %v5236 = vmul.f32 %v5170, %v5219
        %v5237 = vmul.f32 %v5171, %v5221
        %v5238 = vmul.f32 %v5172, %v5223
        %v5239 = vmul.f32 %v5173, %v5225
        %v5240 = vmul.f32 %v5174, %v5227
        %v5241 = vmul.f32 %v5175, %v5229
        %v5242 = vpack.c.bf16 %v5237, %v5236
        %v5243 = vpack.c.bf16 %v5239, %v5238
        %v5244 = vpack.c.bf16 %v5241, %v5240
        %v5245 = vpack.c.bf16 %v5241, %v5241
        %s5246 = scalar_lea.vmem [#allocation7], 128
        %v5247 = vld [vmem:[%s5246] sm:$0xff]
        %v5248 = vld [vmem:[%s5246 + $0x8] sm:$0xff]
        %v5249 = vld [vmem:[%s5246 + $0x10] sm:$0xff]
        %v5250 = vld [vmem:[%s5246 + $0x18] sm:$0xff]
        %s5251 = scalar_lea.vmem [#allocation8], 8
        %v5252 = vld [vmem:[%s5251] sm:$0x3]
        %v5254 = vlaneseq
        %v5255 = vshrl.u32 %v5254, 7
        %v5256 = vsub.s32 0, %v5255
        %v5257 = vrot.slane %v5252, %v5256
        %v5258 = vlaneseq
        %v5259 = vshrl.u32 %v5258, 7
        %v5260 = vsub.s32 1, %v5259
        %v5261 = vrot.slane %v5252, %v5260
        %v5268 = vunpack.c.l.b16 %v5247
        %v5269 = vunpack.c.h.b16 %v5247
        %v5270 = vunpack.c.l.b16 %v5248
        %v5271 = vunpack.c.h.b16 %v5248
        %v5272 = vunpack.c.l.b16 %v5249
        %v5273 = vunpack.c.h.b16 %v5249
        %v5274 = vunpack.c.l.b16 %v5250
        %v5275 = vunpack.c.h.b16 %v5250
        %v5276 = vpack.c.b16 %v5270, %v5268
        %v5277 = vpack.c.b16 %v5271, %v5269
        %v5278 = vpack.c.b16 %v5274, %v5272
        %v5279 = vpack.c.b16 %v5275, %v5273
        %v5285 = vsel %vm826, %v5245, 0
        %5287 = vmatprep.subr.bf16.mxu0 %v5277
        %5288 = vmatpush1.bf16.msra.mxu0 %v5276
        %5289 = vmatprep.subr.bf16.mxu0 %v5279
        %5290 = vmatpush1.bf16.msra.mxu0 %v5278
        %5291 = vmatprep.subr.bf16.mxu0 0
        %5292 = vmatpush1.bf16.msra.mxu0 0
        %5293 = vmatprep.subr.bf16.mxu0 0
        %5294 = vmatpush1.bf16.msra.mxu0 0
        %5295 = vmatprep.subr.bf16.mxu0 0
        %5296 = vmatpush1.bf16.msra.mxu0 0
        %5297 = vmatprep.subr.bf16.mxu0 0
        %5298 = vmatpush1.bf16.msra.mxu0 0
        %5299 = vmatprep.subr.bf16.mxu0 0
        %5300 = vmatpush1.bf16.msra.mxu0 0
        %5301 = vmatprep.subr.bf16.mxu0 0
        %5302 = vmatpush1.bf16.msra.mxu0 0
        %5303 = vmatprep.subr.bf16.mxu0 0
        %5304 = vmatpush1.bf16.msra.mxu0 0
        %5305 = vmatprep.subr.bf16.mxu0 0
        %5306 = vmatpush1.bf16.msra.mxu0 0
        %5307 = vmatprep.subr.bf16.mxu0 0
        %5308 = vmatpush1.bf16.msra.mxu0 0
        %5309 = vmatprep.subr.bf16.mxu0 0
        %5310 = vmatpush1.bf16.msra.mxu0 0
        %5311 = vmatprep.subr.bf16.mxu0 0
        %5312 = vmatpush1.bf16.msra.mxu0 0
        %5313 = vmatprep.subr.bf16.mxu0 0
        %5314 = vmatpush1.bf16.msra.mxu0 0
        %5315 = vmatprep.subr.bf16.mxu0 0
        %5316 = vmatpush1.bf16.msra.mxu0 0
        %5317 = vmatprep.subr.bf16.mxu0 0
        %5318 = vmatpush1.bf16.msra.mxu0 0
        %5319 = vmatprep.mubr.bf16.mxu0 0
        %5320 = vmatmul.mubr.bf16.gmra.mrb[0].mxu0 %v5285
        %v5321 = vpop.f32.mrb[0].mxu0
        %v5322 = vadd.f32 %v5257, %v5321
        %v5323 = vpop.f32.mrb[0].mxu0
        %v5324 = vadd.f32 %v5261, %v5323
        %v5325 = vpop.f32.mrb[0].mxu0
        %v5326 = vpop.f32.mrb[0].mxu0
        %5327 = vdwg.mxu0
        %v5328 = vadd.f32 %v4459, %v5322
        %v5329 = vadd.f32 %v4460, %v5324
        %vm5330 = vcmask 392192
        %v5331 = vsel %vm5330, %v1239, 0
        %v5333 = vsel %vm5330, %v1240, 0
        %v5335 = vsel %vm5330, %v1241, 0
        %5337 = vmatprep.subr.bf16.mxu0 0
        %5338 = vmatpush1.bf16.msra.mxu0 %v5242
        %5339 = vmatprep.subr.bf16.mxu0 0
        %5340 = vmatpush1.bf16.msra.mxu0 %v5243
        %5341 = vmatprep.subr.bf16.mxu0 0
        %5342 = vmatpush1.bf16.msra.mxu0 %v5244
        %5343 = vmatprep.subr.bf16.mxu0 0
        %5344 = vmatpush1.bf16.msra.mxu0 0
        %5345 = vmatprep.subr.bf16.mxu0 0
        %5346 = vmatpush1.bf16.msra.mxu0 0
        %5347 = vmatprep.subr.bf16.mxu0 0
        %5348 = vmatpush1.bf16.msra.mxu0 0
        %5349 = vmatprep.subr.bf16.mxu0 0
        %5350 = vmatpush1.bf16.msra.mxu0 0
        %5351 = vmatprep.subr.bf16.mxu0 0
        %5352 = vmatpush1.bf16.msra.mxu0 0
        %5353 = vmatprep.subr.bf16.mxu0 0
        %5354 = vmatpush1.bf16.msra.mxu0 0
        %5355 = vmatprep.subr.bf16.mxu0 0
        %5356 = vmatpush1.bf16.msra.mxu0 0
        %5357 = vmatprep.subr.bf16.mxu0 0
        %5358 = vmatpush1.bf16.msra.mxu0 0
        %5359 = vmatprep.subr.bf16.mxu0 0
        %5360 = vmatpush1.bf16.msra.mxu0 0
        %5361 = vmatprep.subr.bf16.mxu0 0
        %5362 = vmatpush1.bf16.msra.mxu0 0
        %5363 = vmatprep.subr.bf16.mxu0 0
        %5364 = vmatpush1.bf16.msra.mxu0 0
        %5365 = vmatprep.subr.bf16.mxu0 0
        %5366 = vmatpush1.bf16.msra.mxu0 0
        %5367 = vmatprep.subr.bf16.mxu0 0
        %5368 = vmatpush1.bf16.msra.mxu0 0
        %5369 = vmatprep.mubr.bf16.mxu0 0
        %5370 = vmatmul.mubr.bf16.gmra.mrb[0].mxu0 %v5331
        %v5371 = vpop.f32.mrb[0].mxu0
        %v5372 = vadd.f32 0.0, %v5371
        %v5373 = vpop.f32.mrb[0].mxu0
        %v5374 = vpop.f32.mrb[0].mxu0
        %v5375 = vadd.f32 0.0, %v5374
        %v5376 = vpop.f32.mrb[0].mxu0
        %5377 = vmatprep.mubr.bf16.mxu0 0
        %5378 = vmatmul.mubr.bf16.gmra.mrb[0].mxu0 %v5333
        %v5379 = vpop.f32.mrb[0].mxu0
        %v5380 = vadd.f32 0.0, %v5379
        %v5381 = vpop.f32.mrb[0].mxu0
        %v5382 = vpop.f32.mrb[0].mxu0
        %v5383 = vadd.f32 0.0, %v5382
        %v5384 = vpop.f32.mrb[0].mxu0
        %5385 = vmatprep.mubr.bf16.mxu0 0
        %5386 = vmatmul.mubr.bf16.gmra.mrb[0].mxu0 %v5335
        %v5387 = vpop.f32.mrb[0].mxu0
        %v5388 = vadd.f32 0.0, %v5387
        %v5389 = vpop.f32.mrb[0].mxu0
        %v5390 = vpop.f32.mrb[0].mxu0
        %v5391 = vadd.f32 0.0, %v5390
        %v5392 = vpop.f32.mrb[0].mxu0
        %5393 = vdwg.mxu0
        %v5394 = vpack.c.bf16 %v5375, %v5372
        %v5395 = vpack.c.bf16 %v5383, %v5380
        %v5396 = vpack.c.bf16 %v5391, %v5388
        %v5397 = vsel %vm5330, %v1375, 0
        %v5399 = vsel %vm5330, %v1376, 0
        %v5401 = vsel %vm5330, %v1377, 0
        %5403 = vmatprep.subr.bf16.mxu0 0
        %5404 = vmatpush1.bf16.msra.mxu0 %v5242
        %5405 = vmatprep.subr.bf16.mxu0 0
        %5406 = vmatpush1.bf16.msra.mxu0 %v5243
        %5407 = vmatprep.subr.bf16.mxu0 0
        %5408 = vmatpush1.bf16.msra.mxu0 %v5244
        %5409 = vmatprep.subr.bf16.mxu0 0
        %5410 = vmatpush1.bf16.msra.mxu0 0
        %5411 = vmatprep.subr.bf16.mxu0 0
        %5412 = vmatpush1.bf16.msra.mxu0 0
        %5413 = vmatprep.subr.bf16.mxu0 0
        %5414 = vmatpush1.bf16.msra.mxu0 0
        %5415 = vmatprep.subr.bf16.mxu0 0
        %5416 = vmatpush1.bf16.msra.mxu0 0
        %5417 = vmatprep.subr.bf16.mxu0 0
        %5418 = vmatpush1.bf16.msra.mxu0 0
        %5419 = vmatprep.subr.bf16.mxu0 0
        %5420 = vmatpush1.bf16.msra.mxu0 0
        %5421 = vmatprep.subr.bf16.mxu0 0
        %5422 = vmatpush1.bf16.msra.mxu0 0
        %5423 = vmatprep.subr.bf16.mxu0 0
        %5424 = vmatpush1.bf16.msra.mxu0 0
        %5425 = vmatprep.subr.bf16.mxu0 0
        %5426 = vmatpush1.bf16.msra.mxu0 0
        %5427 = vmatprep.subr.bf16.mxu0 0
        %5428 = vmatpush1.bf16.msra.mxu0 0
        %5429 = vmatprep.subr.bf16.mxu0 0
        %5430 = vmatpush1.bf16.msra.mxu0 0
        %5431 = vmatprep.subr.bf16.mxu0 0
        %5432 = vmatpush1.bf16.msra.mxu0 0
        %5433 = vmatprep.subr.bf16.mxu0 0
        %5434 = vmatpush1.bf16.msra.mxu0 0
        %5435 = vmatprep.mubr.bf16.mxu0 0
        %5436 = vmatmul.mubr.bf16.gmra.mrb[0].mxu0 %v5397
        %v5437 = vpop.f32.mrb[0].mxu0
        %v5438 = vadd.f32 0.0, %v5437
        %v5439 = vpop.f32.mrb[0].mxu0
        %v5440 = vpop.f32.mrb[0].mxu0
        %v5441 = vadd.f32 0.0, %v5440
        %v5442 = vpop.f32.mrb[0].mxu0
        %5443 = vmatprep.mubr.bf16.mxu0 0
        %5444 = vmatmul.mubr.bf16.gmra.mrb[0].mxu0 %v5399
        %v5445 = vpop.f32.mrb[0].mxu0
        %v5446 = vadd.f32 0.0, %v5445
        %v5447 = vpop.f32.mrb[0].mxu0
        %v5448 = vpop.f32.mrb[0].mxu0
        %v5449 = vadd.f32 0.0, %v5448
        %v5450 = vpop.f32.mrb[0].mxu0
        %5451 = vmatprep.mubr.bf16.mxu0 0
        %5452 = vmatmul.mubr.bf16.gmra.mrb[0].mxu0 %v5401
        %v5453 = vpop.f32.mrb[0].mxu0
        %v5454 = vadd.f32 0.0, %v5453
        %v5455 = vpop.f32.mrb[0].mxu0
        %v5456 = vpop.f32.mrb[0].mxu0
        %v5457 = vadd.f32 0.0, %v5456
        %v5458 = vpop.f32.mrb[0].mxu0
        %5459 = vdwg.mxu0
        %v5460 = vpack.c.bf16 %v5441, %v5438
        %v5461 = vpack.c.bf16 %v5449, %v5446
        %v5462 = vpack.c.bf16 %v5457, %v5454
        %v5463 = vsel %vm5330, %v1510, 0
        %v5465 = vsel %vm5330, %v1511, 0
        %v5467 = vsel %vm5330, %v1512, 0
        %5469 = vmatprep.subr.bf16.mxu0 0
        %5470 = vmatpush1.bf16.msra.mxu0 %v5242
        %5471 = vmatprep.subr.bf16.mxu0 0
        %5472 = vmatpush1.bf16.msra.mxu0 %v5243
        %5473 = vmatprep.subr.bf16.mxu0 0
        %5474 = vmatpush1.bf16.msra.mxu0 %v5244
        %5475 = vmatprep.subr.bf16.mxu0 0
        %5476 = vmatpush1.bf16.msra.mxu0 0
        %5477 = vmatprep.subr.bf16.mxu0 0
        %5478 = vmatpush1.bf16.msra.mxu0 0
        %5479 = vmatprep.subr.bf16.mxu0 0
        %5480 = vmatpush1.bf16.msra.mxu0 0
        %5481 = vmatprep.subr.bf16.mxu0 0
        %5482 = vmatpush1.bf16.msra.mxu0 0
        %5483 = vmatprep.subr.bf16.mxu0 0
        %5484 = vmatpush1.bf16.msra.mxu0 0
        %5485 = vmatprep.subr.bf16.mxu0 0
        %5486 = vmatpush1.bf16.msra.mxu0 0
        %5487 = vmatprep.subr.bf16.mxu0 0
        %5488 = vmatpush1.bf16.msra.mxu0 0
        %5489 = vmatprep.subr.bf16.mxu0 0
        %5490 = vmatpush1.bf16.msra.mxu0 0
        %5491 = vmatprep.subr.bf16.mxu0 0
        %5492 = vmatpush1.bf16.msra.mxu0 0
        %5493 = vmatprep.subr.bf16.mxu0 0
        %5494 = vmatpush1.bf16.msra.mxu0 0
        %5495 = vmatprep.subr.bf16.mxu0 0
        %5496 = vmatpush1.bf16.msra.mxu0 0
        %5497 = vmatprep.subr.bf16.mxu0 0
        %5498 = vmatpush1.bf16.msra.mxu0 0
        %5499 = vmatprep.subr.bf16.mxu0 0
        %5500 = vmatpush1.bf16.msra.mxu0 0
        %5501 = vmatprep.mubr.bf16.mxu0 0
        %5502 = vmatmul.mubr.bf16.gmra.mrb[0].mxu0 %v5463
        %v5503 = vpop.f32.mrb[0].mxu0
        %v5504 = vadd.f32 0.0, %v5503
        %v5505 = vpop.f32.mrb[0].mxu0
        %v5506 = vpop.f32.mrb[0].mxu0
        %v5507 = vadd.f32 0.0, %v5506
        %v5508 = vpop.f32.mrb[0].mxu0
        %5509 = vmatprep.mubr.bf16.mxu0 0
        %5510 = vmatmul.mubr.bf16.gmra.mrb[0].mxu0 %v5465
        %v5511 = vpop.f32.mrb[0].mxu0
        %v5512 = vadd.f32 0.0, %v5511
        %v5513 = vpop.f32.mrb[0].mxu0
        %v5514 = vpop.f32.mrb[0].mxu0
        %v5515 = vadd.f32 0.0, %v5514
        %v5516 = vpop.f32.mrb[0].mxu0
        %5517 = vmatprep.mubr.bf16.mxu0 0
        %5518 = vmatmul.mubr.bf16.gmra.mrb[0].mxu0 %v5467
        %v5519 = vpop.f32.mrb[0].mxu0
        %v5520 = vadd.f32 0.0, %v5519
        %v5521 = vpop.f32.mrb[0].mxu0
        %v5522 = vpop.f32.mrb[0].mxu0
        %v5523 = vadd.f32 0.0, %v5522
        %v5524 = vpop.f32.mrb[0].mxu0
        %5525 = vdwg.mxu0
        %v5526 = vpack.c.bf16 %v5507, %v5504
        %v5527 = vpack.c.bf16 %v5515, %v5512
        %v5528 = vpack.c.bf16 %v5523, %v5520
        %v5529 = vsel %vm5330, %v1645, 0
        %v5531 = vsel %vm5330, %v1646, 0
        %v5533 = vsel %vm5330, %v1647, 0
        %5535 = vmatprep.subr.bf16.mxu0 0
        %5536 = vmatpush1.bf16.msra.mxu0 %v5242
        %5537 = vmatprep.subr.bf16.mxu0 0
        %5538 = vmatpush1.bf16.msra.mxu0 %v5243
        %5539 = vmatprep.subr.bf16.mxu0 0
        %5540 = vmatpush1.bf16.msra.mxu0 %v5244
        %5541 = vmatprep.subr.bf16.mxu0 0
        %5542 = vmatpush1.bf16.msra.mxu0 0
        %5543 = vmatprep.subr.bf16.mxu0 0
        %5544 = vmatpush1.bf16.msra.mxu0 0
        %5545 = vmatprep.subr.bf16.mxu0 0
        %5546 = vmatpush1.bf16.msra.mxu0 0
        %5547 = vmatprep.subr.bf16.mxu0 0
        %5548 = vmatpush1.bf16.msra.mxu0 0
        %5549 = vmatprep.subr.bf16.mxu0 0
        %5550 = vmatpush1.bf16.msra.mxu0 0
        %5551 = vmatprep.subr.bf16.mxu0 0
        %5552 = vmatpush1.bf16.msra.mxu0 0
        %5553 = vmatprep.subr.bf16.mxu0 0
        %5554 = vmatpush1.bf16.msra.mxu0 0
        %5555 = vmatprep.subr.bf16.mxu0 0
        %5556 = vmatpush1.bf16.msra.mxu0 0
        %5557 = vmatprep.subr.bf16.mxu0 0
        %5558 = vmatpush1.bf16.msra.mxu0 0
        %5559 = vmatprep.subr.bf16.mxu0 0
        %5560 = vmatpush1.bf16.msra.mxu0 0
        %5561 = vmatprep.subr.bf16.mxu0 0
        %5562 = vmatpush1.bf16.msra.mxu0 0
        %5563 = vmatprep.subr.bf16.mxu0 0
        %5564 = vmatpush1.bf16.msra.mxu0 0
        %5565 = vmatprep.subr.bf16.mxu0 0
        %5566 = vmatpush1.bf16.msra.mxu0 0
        %5567 = vmatprep.mubr.bf16.mxu0 0
        %5568 = vmatmul.mubr.bf16.gmra.mrb[0].mxu0 %v5529
        %v5569 = vpop.f32.mrb[0].mxu0
        %v5570 = vadd.f32 0.0, %v5569
        %v5571 = vpop.f32.mrb[0].mxu0
        %v5572 = vpop.f32.mrb[0].mxu0
        %v5573 = vadd.f32 0.0, %v5572
        %v5574 = vpop.f32.mrb[0].mxu0
        %5575 = vmatprep.mubr.bf16.mxu0 0
        %5576 = vmatmul.mubr.bf16.gmra.mrb[0].mxu0 %v5531
        %v5577 = vpop.f32.mrb[0].mxu0
        %v5578 = vadd.f32 0.0, %v5577
        %v5579 = vpop.f32.mrb[0].mxu0
        %v5580 = vpop.f32.mrb[0].mxu0
        %v5581 = vadd.f32 0.0, %v5580
        %v5582 = vpop.f32.mrb[0].mxu0
        %5583 = vmatprep.mubr.bf16.mxu0 0
        %5584 = vmatmul.mubr.bf16.gmra.mrb[0].mxu0 %v5533
        %v5585 = vpop.f32.mrb[0].mxu0
        %v5586 = vadd.f32 0.0, %v5585
        %v5587 = vpop.f32.mrb[0].mxu0
        %v5588 = vpop.f32.mrb[0].mxu0
        %v5589 = vadd.f32 0.0, %v5588
        %v5590 = vpop.f32.mrb[0].mxu0
        %5591 = vdwg.mxu0
        %v5592 = vpack.c.bf16 %v5573, %v5570
        %v5593 = vpack.c.bf16 %v5581, %v5578
        %v5594 = vpack.c.bf16 %v5589, %v5586
        %5598 = vrot.lane.b32.xlu0 %v5394, 32
        %v5599 = vpop.permute.xlu0 %5598
        %5600 = vrot.lane.b32.xlu0 %v5395, 32
        %v5601 = vpop.permute.xlu0 %5600
        %5602 = vrot.lane.b32.xlu0 %v5396, 32
        %v5603 = vpop.permute.xlu0 %5602
        %5607 = vrot.lane.b32.xlu0 %v5460, 64
        %v5608 = vpop.permute.xlu0 %5607
        %5609 = vrot.lane.b32.xlu0 %v5461, 64
        %v5610 = vpop.permute.xlu0 %5609
        %5611 = vrot.lane.b32.xlu0 %v5462, 64
        %v5612 = vpop.permute.xlu0 %5611
        %5616 = vrot.lane.b32.xlu0 %v5526, 96
        %v5617 = vpop.permute.xlu0 %5616
        %5618 = vrot.lane.b32.xlu0 %v5527, 96
        %v5619 = vpop.permute.xlu0 %5618
        %5620 = vrot.lane.b32.xlu0 %v5528, 96
        %v5621 = vpop.permute.xlu0 %5620
        %v5624 = vsel %vm826, %v5242, %v5599
        %v5627 = vsel %vm826, %v5243, %v5601
        %v5630 = vsel %vm826, %v5244, %v5603
        %v5632 = vsel %vm884, %v5624, %v5608
        %v5634 = vsel %vm884, %v5627, %v5610
        %v5636 = vsel %vm884, %v5630, %v5612
        %v5638 = vsel %vm1245, %v5632, %v5617
        %v5641 = vsel %vm1245, %v5634, %v5619
        %v5644 = vsel %vm1245, %v5636, %v5621
        %s5646 = scalar_lea.vmem %s8, 320
        %v5647 = vld [vmem:[%s5646] sm:$0xf]
        %v5648 = vld [vmem:[%s5646 + $0x4] sm:$0xf]
        %v5649 = vld [vmem:[%s5646 + $0x8] sm:$0xf]
        %v5650 = vld [vmem:[%s5646 + $0xc] sm:$0xf]
        %v5651 = vld [vmem:[%s5646 + $0x10] sm:$0xf]
        %v5652 = vld [vmem:[%s5646 + $0x14] sm:$0xf]
        %v5653 = vld [vmem:[%s5646 + $0x18] sm:$0xf]
        %v5654 = vld [vmem:[%s5646 + $0x1c] sm:$0xf]
        %v5655 = vld [vmem:[%s5646 + $0x20] sm:$0xf]
        %v5656 = vld [vmem:[%s5646 + $0x24] sm:$0xf]
        %v5657 = vld [vmem:[%s5646 + $0x28] sm:$0xf]
        %v5658 = vld [vmem:[%s5646 + $0x2c] sm:$0xf]
        %v5659 = vld [vmem:[%s5646 + $0x30] sm:$0xf]
        %v5660 = vld [vmem:[%s5646 + $0x34] sm:$0xf]
        %v5661 = vld [vmem:[%s5646 + $0x38] sm:$0xf]
        %v5662 = vld [vmem:[%s5646 + $0x3c] sm:$0xf]
        %v5663 = vld [vmem:[%s5646 + $0x40] sm:$0xf]
        %v5664 = vld [vmem:[%s5646 + $0x44] sm:$0xf]
        %v5665 = vld [vmem:[%s5646 + $0x48] sm:$0xf]
        %v5666 = vld [vmem:[%s5646 + $0x4c] sm:$0xf]
        %s5667 = scalar_lea.vmem [#allocation11], 4
        %v5668 = vld [vmem:[%s5667] sm:$0x1]
        %v5670 = vlaneseq
        %v5671 = vshrl.u32 %v5670, 7
        %v5672 = vsub.s32 0, %v5671
        %v5673 = vrot.slane %v5668, %v5672
        %v5675 = vmul.f32 %v5024, %v5673
        %v5676 = vmul.f32 %v5025, %v5673
        %v5677 = vmul.f32 %v5026, %v5673
        %v5678 = vmul.f32 %v5027, %v5673
        %v5679 = vmul.f32 %v5028, %v5673
        %v5680 = vmul.f32 %v5029, %v5673
        %v5701 = vunpack.c.l.b16 %v5647
        %v5702 = vunpack.c.l.b16 %v5648
        %v5703 = vunpack.c.l.b16 %v5649
        %v5704 = vunpack.c.l.b16 %v5650
        %v5705 = vunpack.c.l.b16 %v5651
        %v5706 = vunpack.c.l.b16 %v5652
        %v5707 = vunpack.c.l.b16 %v5653
        %v5708 = vunpack.c.l.b16 %v5654
        %v5709 = vunpack.c.l.b16 %v5655
        %v5710 = vunpack.c.l.b16 %v5656
        %v5711 = vunpack.c.l.b16 %v5657
        %v5712 = vunpack.c.l.b16 %v5658
        %v5713 = vunpack.c.l.b16 %v5659
        %v5714 = vunpack.c.l.b16 %v5660
        %v5715 = vunpack.c.l.b16 %v5661
        %v5716 = vunpack.c.l.b16 %v5662
        %v5717 = vunpack.c.l.b16 %v5663
        %v5718 = vunpack.c.l.b16 %v5664
        %v5719 = vunpack.c.l.b16 %v5665
        %v5720 = vunpack.c.l.b16 %v5666
        %v5721 = vpack.c.b16 %v5702, %v5701
        %v5722 = vpack.c.b16 %v5704, %v5703
        %v5723 = vpack.c.b16 %v5706, %v5705
        %v5724 = vpack.c.b16 %v5708, %v5707
        %v5725 = vpack.c.b16 %v5710, %v5709
        %v5726 = vpack.c.b16 %v5712, %v5711
        %v5727 = vpack.c.b16 %v5714, %v5713
        %v5728 = vpack.c.b16 %v5716, %v5715
        %v5729 = vpack.c.b16 %v5718, %v5717
        %v5730 = vpack.c.b16 %v5720, %v5719
        %v5742 = vsel %vm826, %v5592, 0
        %v5745 = vsel %vm826, %v5593, 0
        %v5748 = vsel %vm826, %v5594, 0
        %5750 = vmatprep.subr.bf16.mxu0 0
        %5751 = vmatpush1.bf16.msra.mxu0 %v5721
        %5752 = vmatprep.subr.bf16.mxu0 0
        %5753 = vmatpush1.bf16.msra.mxu0 %v5722
        %5754 = vmatprep.subr.bf16.mxu0 0
        %5755 = vmatpush1.bf16.msra.mxu0 %v5723
        %5756 = vmatprep.subr.bf16.mxu0 0
        %5757 = vmatpush1.bf16.msra.mxu0 %v5724
        %5758 = vmatprep.subr.bf16.mxu0 0
        %5759 = vmatpush1.bf16.msra.mxu0 %v5725
        %5760 = vmatprep.subr.bf16.mxu0 0
        %5761 = vmatpush1.bf16.msra.mxu0 %v5726
        %5762 = vmatprep.subr.bf16.mxu0 0
        %5763 = vmatpush1.bf16.msra.mxu0 %v5727
        %5764 = vmatprep.subr.bf16.mxu0 0
        %5765 = vmatpush1.bf16.msra.mxu0 %v5728
        %5766 = vmatprep.subr.bf16.mxu0 0
        %5767 = vmatpush1.bf16.msra.mxu0 %v5729
        %5768 = vmatprep.subr.bf16.mxu0 0
        %5769 = vmatpush1.bf16.msra.mxu0 %v5730
        %5770 = vmatprep.subr.bf16.mxu0 0
        %5771 = vmatpush1.bf16.msra.mxu0 0
        %5772 = vmatprep.subr.bf16.mxu0 0
        %5773 = vmatpush1.bf16.msra.mxu0 0
        %5774 = vmatprep.subr.bf16.mxu0 0
        %5775 = vmatpush1.bf16.msra.mxu0 0
        %5776 = vmatprep.subr.bf16.mxu0 0
        %5777 = vmatpush1.bf16.msra.mxu0 0
        %5778 = vmatprep.subr.bf16.mxu0 0
        %5779 = vmatpush1.bf16.msra.mxu0 0
        %5780 = vmatprep.subr.bf16.mxu0 0
        %5781 = vmatpush1.bf16.msra.mxu0 0
        %5782 = vmatprep.mubr.bf16.mxu0 %v5742
        %5783 = vmatmul.mubr.bf16.gmra.mrb[0].mxu0 %v5638
        %v5784 = vpop.f32.mrb[0].mxu0
        %v5785 = vadd.f32 %v5675, %v5784
        %v5786 = vpop.f32.mrb[0].mxu0
        %v5787 = vpop.f32.mrb[0].mxu0
        %v5788 = vadd.f32 %v5676, %v5787
        %v5789 = vpop.f32.mrb[0].mxu0
        %5790 = vmatprep.mubr.bf16.mxu0 %v5745
        %5791 = vmatmul.mubr.bf16.gmra.mrb[0].mxu0 %v5641
        %v5792 = vpop.f32.mrb[0].mxu0
        %v5793 = vadd.f32 %v5677, %v5792
        %v5794 = vpop.f32.mrb[0].mxu0
        %v5795 = vpop.f32.mrb[0].mxu0
        %v5796 = vadd.f32 %v5678, %v5795
        %v5797 = vpop.f32.mrb[0].mxu0
        %5798 = vmatprep.mubr.bf16.mxu0 %v5748
        %5799 = vmatmul.mubr.bf16.gmra.mrb[0].mxu0 %v5644
        %v5800 = vpop.f32.mrb[0].mxu0
        %v5801 = vadd.f32 %v5679, %v5800
        %v5802 = vpop.f32.mrb[0].mxu0
        %v5803 = vpop.f32.mrb[0].mxu0
        %v5804 = vadd.f32 %v5680, %v5803
        %v5805 = vpop.f32.mrb[0].mxu0
        %5806 = vdwg.mxu0
        %s5807 = scalar_lea.vmem [#allocation10], 4
        %v5808 = vld [vmem:[%s5807] sm:$0x1]
        %v5810 = vlaneseq
        %v5811 = vshrl.u32 %v5810, 7
        %v5812 = vsub.s32 0, %v5811
        %v5813 = vrot.slane %v5808, %v5812
        %v5815 = vadd.f32 %v5785, %v5813
        %v5816 = vadd.f32 %v5788, %v5813
        %v5817 = vadd.f32 %v5793, %v5813
        %v5818 = vadd.f32 %v5796, %v5813
        %v5819 = vadd.f32 %v5801, %v5813
        %v5820 = vadd.f32 %v5804, %v5813
        %5825 = vrot.lane.b32.xlu0 %v5817, 32
        %v5826 = vpop.permute.xlu0 %5825
        %5827 = vrot.lane.b32.xlu0 %v5818, 32
        %v5828 = vpop.permute.xlu0 %5827
        %5829 = vrot.lane.b32.xlu0 %v5819, 32
        %v5830 = vpop.permute.xlu0 %5829
        %5831 = vrot.lane.b32.xlu0 %v5820, 32
        %v5832 = vpop.permute.xlu0 %5831
        %v5837 = vsel %vm826, %v5815, %v5826
        %v5838 = vsel %vm826, %v5816, %v5828
        %v5839 = vsel %vm826, %v5817, %v5830
        %v5840 = vsel %vm826, %v5818, %v5832
        %v5841 = vpack.c.bf16 %v5838, %v5837
        %v5842 = vpack.c.bf16 %v5840, %v5839
        %s5843 = scalar_lea.vmem %s4, 160
        %v5844 = vld [vmem:[%s5843] sm:$0xf]
        %v5845 = vld [vmem:[%s5843 + $0x4] sm:$0xf]
        %v5846 = vld [vmem:[%s5843 + $0x8] sm:$0xf]
        %v5847 = vld [vmem:[%s5843 + $0xc] sm:$0xf]
        %v5848 = vld [vmem:[%s5843 + $0x10] sm:$0xf]
        %v5849 = vld [vmem:[%s5843 + $0x14] sm:$0xf]
        %v5850 = vld [vmem:[%s5843 + $0x18] sm:$0xf]
        %v5851 = vld [vmem:[%s5843 + $0x1c] sm:$0xf]
        %s5852 = scalar_lea.vmem [#allocation5], 5
        %v5853 = vld [vmem:[%s5852] sm:$0x1]
        %v5855 = vlaneseq
        %v5856 = vshrl.u32 %v5855, 7
        %v5857 = vsub.s32 0, %v5856
        %v5858 = vrot.slane %v5853, %v5857
        %v5868 = vunpack.c.l.b16 %v5844
        %v5869 = vunpack.c.l.b16 %v5845
        %v5870 = vunpack.c.l.b16 %v5846
        %v5871 = vunpack.c.l.b16 %v5847
        %v5872 = vunpack.c.l.b16 %v5848
        %v5873 = vunpack.c.l.b16 %v5849
        %v5874 = vunpack.c.l.b16 %v5850
        %v5875 = vunpack.c.l.b16 %v5851
        %v5876 = vpack.c.b16 %v5869, %v5868
        %v5877 = vpack.c.b16 %v5871, %v5870
        %v5878 = vpack.c.b16 %v5873, %v5872
        %v5879 = vpack.c.b16 %v5875, %v5874
        %v5885 = vsel %vm884, %v5841, 0
        %v5888 = vsel %vm884, %v5842, 0
        %5890 = vmatprep.subr.bf16.mxu0 0
        %5891 = vmatpush1.bf16.msra.mxu0 %v5876
        %5892 = vmatprep.subr.bf16.mxu0 0
        %5893 = vmatpush1.bf16.msra.mxu0 %v5877
        %5894 = vmatprep.subr.bf16.mxu0 0
        %5895 = vmatpush1.bf16.msra.mxu0 %v5878
        %5896 = vmatprep.subr.bf16.mxu0 0
        %5897 = vmatpush1.bf16.msra.mxu0 %v5879
        %5898 = vmatprep.subr.bf16.mxu0 0
        %5899 = vmatpush1.bf16.msra.mxu0 0
        %5900 = vmatprep.subr.bf16.mxu0 0
        %5901 = vmatpush1.bf16.msra.mxu0 0
        %5902 = vmatprep.subr.bf16.mxu0 0
        %5903 = vmatpush1.bf16.msra.mxu0 0
        %5904 = vmatprep.subr.bf16.mxu0 0
        %5905 = vmatpush1.bf16.msra.mxu0 0
        %5906 = vmatprep.subr.bf16.mxu0 0
        %5907 = vmatpush1.bf16.msra.mxu0 0
        %5908 = vmatprep.subr.bf16.mxu0 0
        %5909 = vmatpush1.bf16.msra.mxu0 0
        %5910 = vmatprep.subr.bf16.mxu0 0
        %5911 = vmatpush1.bf16.msra.mxu0 0
        %5912 = vmatprep.subr.bf16.mxu0 0
        %5913 = vmatpush1.bf16.msra.mxu0 0
        %5914 = vmatprep.subr.bf16.mxu0 0
        %5915 = vmatpush1.bf16.msra.mxu0 0
        %5916 = vmatprep.subr.bf16.mxu0 0
        %5917 = vmatpush1.bf16.msra.mxu0 0
        %5918 = vmatprep.subr.bf16.mxu0 0
        %5919 = vmatpush1.bf16.msra.mxu0 0
        %5920 = vmatprep.subr.bf16.mxu0 0
        %5921 = vmatpush1.bf16.msra.mxu0 0
        %5922 = vmatprep.mubr.bf16.mxu0 0
        %5923 = vmatmul.mubr.bf16.gmra.mrb[0].mxu0 %v5885
        %v5924 = vpop.f32.mrb[0].mxu0
        %v5925 = vadd.f32 %v5858, %v5924
        %v5926 = vpop.f32.mrb[0].mxu0
        %v5927 = vpop.f32.mrb[0].mxu0
        %v5928 = vadd.f32 %v5858, %v5927
        %v5929 = vpop.f32.mrb[0].mxu0
        %5930 = vmatprep.mubr.bf16.mxu0 0
        %5931 = vmatmul.mubr.bf16.gmra.mrb[0].mxu0 %v5888
        %v5932 = vpop.f32.mrb[0].mxu0
        %v5933 = vadd.f32 %v5858, %v5932
        %v5934 = vpop.f32.mrb[0].mxu0
        %v5935 = vpop.f32.mrb[0].mxu0
        %v5936 = vadd.f32 %v5858, %v5935
        %v5937 = vpop.f32.mrb[0].mxu0
        %5938 = vdwg.mxu0
        %v5939 = vtanh.pop %v5925
        %v5940 = vtanh.pop %v5928
        %v5941 = vtanh.pop %v5933
        %v5942 = vtanh.pop %v5936
        %v5943 = vxor.u32 %v5925, 2147483648
        %v5944 = vxor.u32 %v5928, 2147483648
        %v5945 = vxor.u32 %v5933, 2147483648
        %v5946 = vxor.u32 %v5936, 2147483648
        %v5947 = vmul.f32 %v5943, 1.442695
        %v5948 = vpow.pop %v5947
        %v5949 = vmul.f32 %v5944, 1.442695
        %v5950 = vpow.pop %v5949
        %v5951 = vmul.f32 %v5945, 1.442695
        %v5952 = vpow.pop %v5951
        %v5953 = vmul.f32 %v5946, 1.442695
        %v5954 = vpow.pop %v5953
        %v5955 = vadd.f32 %v5948, 1.0
        %v5956 = vadd.f32 %v5950, 1.0
        %v5957 = vadd.f32 %v5952, 1.0
        %v5958 = vadd.f32 %v5954, 1.0
        %v5959 = vrcp.pop %v5955
        %v5960 = vmul.f32 1.0, %v5959
        %v5961 = vrcp.pop %v5956
        %v5962 = vmul.f32 1.0, %v5961
        %v5963 = vrcp.pop %v5957
        %v5964 = vmul.f32 1.0, %v5963
        %v5965 = vrcp.pop %v5958
        %v5966 = vmul.f32 1.0, %v5965
        %5971 = vrot.lane.b32.xlu0 %v5960, 96
        %v5972 = vpop.permute.xlu0 %5971
        %5973 = vrot.lane.b32.xlu0 %v5962, 96
        %v5974 = vpop.permute.xlu0 %5973
        %5975 = vrot.lane.b32.xlu0 %v5964, 96
        %v5976 = vpop.permute.xlu0 %5975
        %5977 = vrot.lane.b32.xlu0 %v5966, 96
        %v5978 = vpop.permute.xlu0 %5977
        %v5983 = vmul.f32 %v5939, %v5972
        %v5984 = vmul.f32 %v5940, %v5974
        %v5985 = vmul.f32 %v5941, %v5976
        %v5986 = vmul.f32 %v5942, %v5978
        %v5987 = vpack.c.bf16 %v5984, %v5983
        %v5988 = vpack.c.bf16 %v5986, %v5985
        %v5989 = vpack.c.bf16 %v5986, %v5986
        %s5990 = scalar_lea.vmem [#allocation7], 160
        %v5991 = vld [vmem:[%s5990] sm:$0xff]
        %v5992 = vld [vmem:[%s5990 + $0x8] sm:$0xff]
        %v5993 = vld [vmem:[%s5990 + $0x10] sm:$0xff]
        %v5994 = vld [vmem:[%s5990 + $0x18] sm:$0xff]
        %s5995 = scalar_lea.vmem [#allocation8], 10
        %v5996 = vld [vmem:[%s5995] sm:$0x3]
        %v5998 = vlaneseq
        %v5999 = vshrl.u32 %v5998, 7
        %v6000 = vsub.s32 0, %v5999
        %v6001 = vrot.slane %v5996, %v6000
        %v6002 = vlaneseq
        %v6003 = vshrl.u32 %v6002, 7
        %v6004 = vsub.s32 1, %v6003
        %v6005 = vrot.slane %v5996, %v6004
        %v6012 = vunpack.c.l.b16 %v5991
        %v6013 = vunpack.c.h.b16 %v5991
        %v6014 = vunpack.c.l.b16 %v5992
        %v6015 = vunpack.c.h.b16 %v5992
        %v6016 = vunpack.c.l.b16 %v5993
        %v6017 = vunpack.c.h.b16 %v5993
        %v6018 = vunpack.c.l.b16 %v5994
        %v6019 = vunpack.c.h.b16 %v5994
        %v6020 = vpack.c.b16 %v6014, %v6012
        %v6021 = vpack.c.b16 %v6015, %v6013
        %v6022 = vpack.c.b16 %v6018, %v6016
        %v6023 = vpack.c.b16 %v6019, %v6017
        %v6029 = vsel %vm826, %v5989, 0
        %6031 = vmatprep.subr.bf16.mxu0 %v6021
        %6032 = vmatpush1.bf16.msra.mxu0 %v6020
        %6033 = vmatprep.subr.bf16.mxu0 %v6023
        %6034 = vmatpush1.bf16.msra.mxu0 %v6022
        %6035 = vmatprep.subr.bf16.mxu0 0
        %6036 = vmatpush1.bf16.msra.mxu0 0
        %6037 = vmatprep.subr.bf16.mxu0 0
        %6038 = vmatpush1.bf16.msra.mxu0 0
        %6039 = vmatprep.subr.bf16.mxu0 0
        %6040 = vmatpush1.bf16.msra.mxu0 0
        %6041 = vmatprep.subr.bf16.mxu0 0
        %6042 = vmatpush1.bf16.msra.mxu0 0
        %6043 = vmatprep.subr.bf16.mxu0 0
        %6044 = vmatpush1.bf16.msra.mxu0 0
        %6045 = vmatprep.subr.bf16.mxu0 0
        %6046 = vmatpush1.bf16.msra.mxu0 0
        %6047 = vmatprep.subr.bf16.mxu0 0
        %6048 = vmatpush1.bf16.msra.mxu0 0
        %6049 = vmatprep.subr.bf16.mxu0 0
        %6050 = vmatpush1.bf16.msra.mxu0 0
        %6051 = vmatprep.subr.bf16.mxu0 0
        %6052 = vmatpush1.bf16.msra.mxu0 0
        %6053 = vmatprep.subr.bf16.mxu0 0
        %6054 = vmatpush1.bf16.msra.mxu0 0
        %6055 = vmatprep.subr.bf16.mxu0 0
        %6056 = vmatpush1.bf16.msra.mxu0 0
        %6057 = vmatprep.subr.bf16.mxu0 0
        %6058 = vmatpush1.bf16.msra.mxu0 0
        %6059 = vmatprep.subr.bf16.mxu0 0
        %6060 = vmatpush1.bf16.msra.mxu0 0
        %6061 = vmatprep.subr.bf16.mxu0 0
        %6062 = vmatpush1.bf16.msra.mxu0 0
        %6063 = vmatprep.mubr.bf16.mxu0 0
        %6064 = vmatmul.mubr.bf16.gmra.mrb[0].mxu0 %v6029
        %v6065 = vpop.f32.mrb[0].mxu0
        %v6066 = vadd.f32 %v6001, %v6065
        %v6067 = vpop.f32.mrb[0].mxu0
        %v6068 = vadd.f32 %v6005, %v6067
        %v6069 = vpop.f32.mrb[0].mxu0
        %v6070 = vpop.f32.mrb[0].mxu0
        %6071 = vdwg.mxu0
        %v6072 = vadd.f32 %v5328, %v6066
        %v6073 = vadd.f32 %v5329, %v6068
        %v6074 = vsel %vm826, %v1239, 0
        %v6076 = vsel %vm826, %v1240, 0
        %6078 = vmatprep.subr.bf16.mxu0 0
        %6079 = vmatpush1.bf16.msra.mxu0 %v5987
        %6080 = vmatprep.subr.bf16.mxu0 0
        %6081 = vmatpush1.bf16.msra.mxu0 %v5988
        %6082 = vmatprep.subr.bf16.mxu0 0
        %6083 = vmatpush1.bf16.msra.mxu0 0
        %6084 = vmatprep.subr.bf16.mxu0 0
        %6085 = vmatpush1.bf16.msra.mxu0 0
        %6086 = vmatprep.subr.bf16.mxu0 0
        %6087 = vmatpush1.bf16.msra.mxu0 0
        %6088 = vmatprep.subr.bf16.mxu0 0
        %6089 = vmatpush1.bf16.msra.mxu0 0
        %6090 = vmatprep.subr.bf16.mxu0 0
        %6091 = vmatpush1.bf16.msra.mxu0 0
        %6092 = vmatprep.subr.bf16.mxu0 0
        %6093 = vmatpush1.bf16.msra.mxu0 0
        %6094 = vmatprep.subr.bf16.mxu0 0
        %6095 = vmatpush1.bf16.msra.mxu0 0
        %6096 = vmatprep.subr.bf16.mxu0 0
        %6097 = vmatpush1.bf16.msra.mxu0 0
        %6098 = vmatprep.subr.bf16.mxu0 0
        %6099 = vmatpush1.bf16.msra.mxu0 0
        %6100 = vmatprep.subr.bf16.mxu0 0
        %6101 = vmatpush1.bf16.msra.mxu0 0
        %6102 = vmatprep.subr.bf16.mxu0 0
        %6103 = vmatpush1.bf16.msra.mxu0 0
        %6104 = vmatprep.subr.bf16.mxu0 0
        %6105 = vmatpush1.bf16.msra.mxu0 0
        %6106 = vmatprep.subr.bf16.mxu0 0
        %6107 = vmatpush1.bf16.msra.mxu0 0
        %6108 = vmatprep.subr.bf16.mxu0 0
        %6109 = vmatpush1.bf16.msra.mxu0 0
        %6110 = vmatprep.mubr.bf16.mxu0 0
        %6111 = vmatmul.mubr.bf16.gmra.mrb[0].mxu0 %v6074
        %v6112 = vpop.f32.mrb[0].mxu0
        %v6113 = vadd.f32 0.0, %v6112
        %v6114 = vpop.f32.mrb[0].mxu0
        %v6115 = vpop.f32.mrb[0].mxu0
        %v6116 = vadd.f32 0.0, %v6115
        %v6117 = vpop.f32.mrb[0].mxu0
        %6118 = vmatprep.mubr.bf16.mxu0 0
        %6119 = vmatmul.mubr.bf16.gmra.mrb[0].mxu0 %v6076
        %v6120 = vpop.f32.mrb[0].mxu0
        %v6121 = vadd.f32 0.0, %v6120
        %v6122 = vpop.f32.mrb[0].mxu0
        %v6123 = vpop.f32.mrb[0].mxu0
        %v6124 = vadd.f32 0.0, %v6123
        %v6125 = vpop.f32.mrb[0].mxu0
        %6126 = vdwg.mxu0
        %v6127 = vpack.c.bf16 %v6116, %v6113
        %v6128 = vpack.c.bf16 %v6124, %v6121
        %v6129 = vsel %vm826, %v1375, 0
        %v6131 = vsel %vm826, %v1376, 0
        %6133 = vmatprep.subr.bf16.mxu0 0
        %6134 = vmatpush1.bf16.msra.mxu0 %v5987
        %6135 = vmatprep.subr.bf16.mxu0 0
        %6136 = vmatpush1.bf16.msra.mxu0 %v5988
        %6137 = vmatprep.subr.bf16.mxu0 0
        %6138 = vmatpush1.bf16.msra.mxu0 0
        %6139 = vmatprep.subr.bf16.mxu0 0
        %6140 = vmatpush1.bf16.msra.mxu0 0
        %6141 = vmatprep.subr.bf16.mxu0 0
        %6142 = vmatpush1.bf16.msra.mxu0 0
        %6143 = vmatprep.subr.bf16.mxu0 0
        %6144 = vmatpush1.bf16.msra.mxu0 0
        %6145 = vmatprep.subr.bf16.mxu0 0
        %6146 = vmatpush1.bf16.msra.mxu0 0
        %6147 = vmatprep.subr.bf16.mxu0 0
        %6148 = vmatpush1.bf16.msra.mxu0 0
        %6149 = vmatprep.subr.bf16.mxu0 0
        %6150 = vmatpush1.bf16.msra.mxu0 0
        %6151 = vmatprep.subr.bf16.mxu0 0
        %6152 = vmatpush1.bf16.msra.mxu0 0
        %6153 = vmatprep.subr.bf16.mxu0 0
        %6154 = vmatpush1.bf16.msra.mxu0 0
        %6155 = vmatprep.subr.bf16.mxu0 0
        %6156 = vmatpush1.bf16.msra.mxu0 0
        %6157 = vmatprep.subr.bf16.mxu0 0
        %6158 = vmatpush1.bf16.msra.mxu0 0
        %6159 = vmatprep.subr.bf16.mxu0 0
        %6160 = vmatpush1.bf16.msra.mxu0 0
        %6161 = vmatprep.subr.bf16.mxu0 0
        %6162 = vmatpush1.bf16.msra.mxu0 0
        %6163 = vmatprep.subr.bf16.mxu0 0
        %6164 = vmatpush1.bf16.msra.mxu0 0
        %6165 = vmatprep.mubr.bf16.mxu0 0
        %6166 = vmatmul.mubr.bf16.gmra.mrb[0].mxu0 %v6129
        %v6167 = vpop.f32.mrb[0].mxu0
        %v6168 = vadd.f32 0.0, %v6167
        %v6169 = vpop.f32.mrb[0].mxu0
        %v6170 = vpop.f32.mrb[0].mxu0
        %v6171 = vadd.f32 0.0, %v6170
        %v6172 = vpop.f32.mrb[0].mxu0
        %6173 = vmatprep.mubr.bf16.mxu0 0
        %6174 = vmatmul.mubr.bf16.gmra.mrb[0].mxu0 %v6131
        %v6175 = vpop.f32.mrb[0].mxu0
        %v6176 = vadd.f32 0.0, %v6175
        %v6177 = vpop.f32.mrb[0].mxu0
        %v6178 = vpop.f32.mrb[0].mxu0
        %v6179 = vadd.f32 0.0, %v6178
        %v6180 = vpop.f32.mrb[0].mxu0
        %6181 = vdwg.mxu0
        %v6182 = vpack.c.bf16 %v6171, %v6168
        %v6183 = vpack.c.bf16 %v6179, %v6176
        %v6184 = vsel %vm826, %v1510, 0
        %v6186 = vsel %vm826, %v1511, 0
        %6188 = vmatprep.subr.bf16.mxu0 0
        %6189 = vmatpush1.bf16.msra.mxu0 %v5987
        %6190 = vmatprep.subr.bf16.mxu0 0
        %6191 = vmatpush1.bf16.msra.mxu0 %v5988
        %6192 = vmatprep.subr.bf16.mxu0 0
        %6193 = vmatpush1.bf16.msra.mxu0 0
        %6194 = vmatprep.subr.bf16.mxu0 0
        %6195 = vmatpush1.bf16.msra.mxu0 0
        %6196 = vmatprep.subr.bf16.mxu0 0
        %6197 = vmatpush1.bf16.msra.mxu0 0
        %6198 = vmatprep.subr.bf16.mxu0 0
        %6199 = vmatpush1.bf16.msra.mxu0 0
        %6200 = vmatprep.subr.bf16.mxu0 0
        %6201 = vmatpush1.bf16.msra.mxu0 0
        %6202 = vmatprep.subr.bf16.mxu0 0
        %6203 = vmatpush1.bf16.msra.mxu0 0
        %6204 = vmatprep.subr.bf16.mxu0 0
        %6205 = vmatpush1.bf16.msra.mxu0 0
        %6206 = vmatprep.subr.bf16.mxu0 0
        %6207 = vmatpush1.bf16.msra.mxu0 0
        %6208 = vmatprep.subr.bf16.mxu0 0
        %6209 = vmatpush1.bf16.msra.mxu0 0
        %6210 = vmatprep.subr.bf16.mxu0 0
        %6211 = vmatpush1.bf16.msra.mxu0 0
        %6212 = vmatprep.subr.bf16.mxu0 0
        %6213 = vmatpush1.bf16.msra.mxu0 0
        %6214 = vmatprep.subr.bf16.mxu0 0
        %6215 = vmatpush1.bf16.msra.mxu0 0
        %6216 = vmatprep.subr.bf16.mxu0 0
        %6217 = vmatpush1.bf16.msra.mxu0 0
        %6218 = vmatprep.subr.bf16.mxu0 0
        %6219 = vmatpush1.bf16.msra.mxu0 0
        %6220 = vmatprep.mubr.bf16.mxu0 0
        %6221 = vmatmul.mubr.bf16.gmra.mrb[0].mxu0 %v6184
        %v6222 = vpop.f32.mrb[0].mxu0
        %v6223 = vadd.f32 0.0, %v6222
        %v6224 = vpop.f32.mrb[0].mxu0
        %v6225 = vpop.f32.mrb[0].mxu0
        %v6226 = vadd.f32 0.0, %v6225
        %v6227 = vpop.f32.mrb[0].mxu0
        %6228 = vmatprep.mubr.bf16.mxu0 0
        %6229 = vmatmul.mubr.bf16.gmra.mrb[0].mxu0 %v6186
        %v6230 = vpop.f32.mrb[0].mxu0
        %v6231 = vadd.f32 0.0, %v6230
        %v6232 = vpop.f32.mrb[0].mxu0
        %v6233 = vpop.f32.mrb[0].mxu0
        %v6234 = vadd.f32 0.0, %v6233
        %v6235 = vpop.f32.mrb[0].mxu0
        %6236 = vdwg.mxu0
        %v6237 = vpack.c.bf16 %v6226, %v6223
        %v6238 = vpack.c.bf16 %v6234, %v6231
        %v6239 = vsel %vm826, %v1645, 0
        %v6241 = vsel %vm826, %v1646, 0
        %6243 = vmatprep.subr.bf16.mxu0 0
        %6244 = vmatpush1.bf16.msra.mxu0 %v5987
        %6245 = vmatprep.subr.bf16.mxu0 0
        %6246 = vmatpush1.bf16.msra.mxu0 %v5988
        %6247 = vmatprep.subr.bf16.mxu0 0
        %6248 = vmatpush1.bf16.msra.mxu0 0
        %6249 = vmatprep.subr.bf16.mxu0 0
        %6250 = vmatpush1.bf16.msra.mxu0 0
        %6251 = vmatprep.subr.bf16.mxu0 0
        %6252 = vmatpush1.bf16.msra.mxu0 0
        %6253 = vmatprep.subr.bf16.mxu0 0
        %6254 = vmatpush1.bf16.msra.mxu0 0
        %6255 = vmatprep.subr.bf16.mxu0 0
        %6256 = vmatpush1.bf16.msra.mxu0 0
        %6257 = vmatprep.subr.bf16.mxu0 0
        %6258 = vmatpush1.bf16.msra.mxu0 0
        %6259 = vmatprep.subr.bf16.mxu0 0
        %6260 = vmatpush1.bf16.msra.mxu0 0
        %6261 = vmatprep.subr.bf16.mxu0 0
        %6262 = vmatpush1.bf16.msra.mxu0 0
        %6263 = vmatprep.subr.bf16.mxu0 0
        %6264 = vmatpush1.bf16.msra.mxu0 0
        %6265 = vmatprep.subr.bf16.mxu0 0
        %6266 = vmatpush1.bf16.msra.mxu0 0
        %6267 = vmatprep.subr.bf16.mxu0 0
        %6268 = vmatpush1.bf16.msra.mxu0 0
        %6269 = vmatprep.subr.bf16.mxu0 0
        %6270 = vmatpush1.bf16.msra.mxu0 0
        %6271 = vmatprep.subr.bf16.mxu0 0
        %6272 = vmatpush1.bf16.msra.mxu0 0
        %6273 = vmatprep.subr.bf16.mxu0 0
        %6274 = vmatpush1.bf16.msra.mxu0 0
        %6275 = vmatprep.mubr.bf16.mxu0 0
        %6276 = vmatmul.mubr.bf16.gmra.mrb[0].mxu0 %v6239
        %v6277 = vpop.f32.mrb[0].mxu0
        %v6278 = vadd.f32 0.0, %v6277
        %v6279 = vpop.f32.mrb[0].mxu0
        %v6280 = vpop.f32.mrb[0].mxu0
        %v6281 = vadd.f32 0.0, %v6280
        %v6282 = vpop.f32.mrb[0].mxu0
        %6283 = vmatprep.mubr.bf16.mxu0 0
        %6284 = vmatmul.mubr.bf16.gmra.mrb[0].mxu0 %v6241
        %v6285 = vpop.f32.mrb[0].mxu0
        %v6286 = vadd.f32 0.0, %v6285
        %v6287 = vpop.f32.mrb[0].mxu0
        %v6288 = vpop.f32.mrb[0].mxu0
        %v6289 = vadd.f32 0.0, %v6288
        %v6290 = vpop.f32.mrb[0].mxu0
        %6291 = vdwg.mxu0
        %v6292 = vpack.c.bf16 %v6281, %v6278
        %v6293 = vpack.c.bf16 %v6289, %v6286
        %6296 = vrot.lane.b32.xlu0 %v6127, 32
        %v6297 = vpop.permute.xlu0 %6296
        %6298 = vrot.lane.b32.xlu0 %v6128, 32
        %v6299 = vpop.permute.xlu0 %6298
        %6302 = vrot.lane.b32.xlu0 %v6182, 64
        %v6303 = vpop.permute.xlu0 %6302
        %6304 = vrot.lane.b32.xlu0 %v6183, 64
        %v6305 = vpop.permute.xlu0 %6304
        %6308 = vrot.lane.b32.xlu0 %v6237, 96
        %v6309 = vpop.permute.xlu0 %6308
        %6310 = vrot.lane.b32.xlu0 %v6238, 96
        %v6311 = vpop.permute.xlu0 %6310
        %v6314 = vsel %vm826, %v5987, %v6297
        %v6317 = vsel %vm826, %v5988, %v6299
        %v6319 = vsel %vm884, %v6314, %v6303
        %v6321 = vsel %vm884, %v6317, %v6305
        %v6323 = vsel %vm1245, %v6319, %v6309
        %v6326 = vsel %vm1245, %v6321, %v6311
        %s6328 = scalar_lea.vmem %s8, 400
        %v6329 = vld [vmem:[%s6328] sm:$0xf]
        %v6330 = vld [vmem:[%s6328 + $0x4] sm:$0xf]
        %v6331 = vld [vmem:[%s6328 + $0x8] sm:$0xf]
        %v6332 = vld [vmem:[%s6328 + $0xc] sm:$0xf]
        %v6333 = vld [vmem:[%s6328 + $0x10] sm:$0xf]
        %v6334 = vld [vmem:[%s6328 + $0x14] sm:$0xf]
        %v6335 = vld [vmem:[%s6328 + $0x18] sm:$0xf]
        %v6336 = vld [vmem:[%s6328 + $0x1c] sm:$0xf]
        %v6337 = vld [vmem:[%s6328 + $0x20] sm:$0xf]
        %v6338 = vld [vmem:[%s6328 + $0x24] sm:$0xf]
        %v6339 = vld [vmem:[%s6328 + $0x28] sm:$0xf]
        %v6340 = vld [vmem:[%s6328 + $0x2c] sm:$0xf]
        %v6341 = vld [vmem:[%s6328 + $0x30] sm:$0xf]
        %v6342 = vld [vmem:[%s6328 + $0x34] sm:$0xf]
        %v6343 = vld [vmem:[%s6328 + $0x38] sm:$0xf]
        %v6344 = vld [vmem:[%s6328 + $0x3c] sm:$0xf]
        %v6345 = vld [vmem:[%s6328 + $0x40] sm:$0xf]
        %v6346 = vld [vmem:[%s6328 + $0x44] sm:$0xf]
        %v6347 = vld [vmem:[%s6328 + $0x48] sm:$0xf]
        %v6348 = vld [vmem:[%s6328 + $0x4c] sm:$0xf]
        %s6349 = scalar_lea.vmem [#allocation11], 5
        %v6350 = vld [vmem:[%s6349] sm:$0x1]
        %v6352 = vlaneseq
        %v6353 = vshrl.u32 %v6352, 7
        %v6354 = vsub.s32 0, %v6353
        %v6355 = vrot.slane %v6350, %v6354
        %v6357 = vmul.f32 %v5817, %v6355
        %v6358 = vmul.f32 %v5818, %v6355
        %v6359 = vmul.f32 %v5819, %v6355
        %v6360 = vmul.f32 %v5820, %v6355
        %v6381 = vunpack.c.l.b16 %v6329
        %v6382 = vunpack.c.l.b16 %v6330
        %v6383 = vunpack.c.l.b16 %v6331
        %v6384 = vunpack.c.l.b16 %v6332
        %v6385 = vunpack.c.l.b16 %v6333
        %v6386 = vunpack.c.l.b16 %v6334
        %v6387 = vunpack.c.l.b16 %v6335
        %v6388 = vunpack.c.l.b16 %v6336
        %v6389 = vunpack.c.l.b16 %v6337
        %v6390 = vunpack.c.l.b16 %v6338
        %v6391 = vunpack.c.l.b16 %v6339
        %v6392 = vunpack.c.l.b16 %v6340
        %v6393 = vunpack.c.l.b16 %v6341
        %v6394 = vunpack.c.l.b16 %v6342
        %v6395 = vunpack.c.l.b16 %v6343
        %v6396 = vunpack.c.l.b16 %v6344
        %v6397 = vunpack.c.l.b16 %v6345
        %v6398 = vunpack.c.l.b16 %v6346
        %v6399 = vunpack.c.l.b16 %v6347
        %v6400 = vunpack.c.l.b16 %v6348
        %v6401 = vpack.c.b16 %v6382, %v6381
        %v6402 = vpack.c.b16 %v6384, %v6383
        %v6403 = vpack.c.b16 %v6386, %v6385
        %v6404 = vpack.c.b16 %v6388, %v6387
        %v6405 = vpack.c.b16 %v6390, %v6389
        %v6406 = vpack.c.b16 %v6392, %v6391
        %v6407 = vpack.c.b16 %v6394, %v6393
        %v6408 = vpack.c.b16 %v6396, %v6395
        %v6409 = vpack.c.b16 %v6398, %v6397
        %v6410 = vpack.c.b16 %v6400, %v6399
        %v6422 = vsel %vm826, %v6292, 0
        %v6425 = vsel %vm826, %v6293, 0
        %6427 = vmatprep.subr.bf16.mxu0 0
        %6428 = vmatpush1.bf16.msra.mxu0 %v6401
        %6429 = vmatprep.subr.bf16.mxu0 0
        %6430 = vmatpush1.bf16.msra.mxu0 %v6402
        %6431 = vmatprep.subr.bf16.mxu0 0
        %6432 = vmatpush1.bf16.msra.mxu0 %v6403
        %6433 = vmatprep.subr.bf16.mxu0 0
        %6434 = vmatpush1.bf16.msra.mxu0 %v6404
        %6435 = vmatprep.subr.bf16.mxu0 0
        %6436 = vmatpush1.bf16.msra.mxu0 %v6405
        %6437 = vmatprep.subr.bf16.mxu0 0
        %6438 = vmatpush1.bf16.msra.mxu0 %v6406
        %6439 = vmatprep.subr.bf16.mxu0 0
        %6440 = vmatpush1.bf16.msra.mxu0 %v6407
        %6441 = vmatprep.subr.bf16.mxu0 0
        %6442 = vmatpush1.bf16.msra.mxu0 %v6408
        %6443 = vmatprep.subr.bf16.mxu0 0
        %6444 = vmatpush1.bf16.msra.mxu0 %v6409
        %6445 = vmatprep.subr.bf16.mxu0 0
        %6446 = vmatpush1.bf16.msra.mxu0 %v6410
        %6447 = vmatprep.subr.bf16.mxu0 0
        %6448 = vmatpush1.bf16.msra.mxu0 0
        %6449 = vmatprep.subr.bf16.mxu0 0
        %6450 = vmatpush1.bf16.msra.mxu0 0
        %6451 = vmatprep.subr.bf16.mxu0 0
        %6452 = vmatpush1.bf16.msra.mxu0 0
        %6453 = vmatprep.subr.bf16.mxu0 0
        %6454 = vmatpush1.bf16.msra.mxu0 0
        %6455 = vmatprep.subr.bf16.mxu0 0
        %6456 = vmatpush1.bf16.msra.mxu0 0
        %6457 = vmatprep.subr.bf16.mxu0 0
        %6458 = vmatpush1.bf16.msra.mxu0 0
        %6459 = vmatprep.mubr.bf16.mxu0 %v6422
        %6460 = vmatmul.mubr.bf16.gmra.mrb[0].mxu0 %v6323
        %v6461 = vpop.f32.mrb[0].mxu0
        %v6462 = vadd.f32 %v6357, %v6461
        %v6463 = vpop.f32.mrb[0].mxu0
        %v6464 = vpop.f32.mrb[0].mxu0
        %v6465 = vadd.f32 %v6358, %v6464
        %v6466 = vpop.f32.mrb[0].mxu0
        %6467 = vmatprep.mubr.bf16.mxu0 %v6425
        %6468 = vmatmul.mubr.bf16.gmra.mrb[0].mxu0 %v6326
        %v6469 = vpop.f32.mrb[0].mxu0
        %v6470 = vadd.f32 %v6359, %v6469
        %v6471 = vpop.f32.mrb[0].mxu0
        %v6472 = vpop.f32.mrb[0].mxu0
        %v6473 = vadd.f32 %v6360, %v6472
        %v6474 = vpop.f32.mrb[0].mxu0
        %6475 = vdwg.mxu0
        %s6476 = scalar_lea.vmem [#allocation10], 5
        %v6477 = vld [vmem:[%s6476] sm:$0x1]
        %v6479 = vlaneseq
        %v6480 = vshrl.u32 %v6479, 7
        %v6481 = vsub.s32 0, %v6480
        %v6482 = vrot.slane %v6477, %v6481
        %v6484 = vadd.f32 %v6462, %v6482
        %v6485 = vadd.f32 %v6465, %v6482
        %v6486 = vadd.f32 %v6470, %v6482
        %v6487 = vadd.f32 %v6473, %v6482
        %6491 = vrot.lane.b32.xlu0 %v6485, 32
        %v6492 = vpop.permute.xlu0 %6491
        %6493 = vrot.lane.b32.xlu0 %v6486, 32
        %v6494 = vpop.permute.xlu0 %6493
        %6495 = vrot.lane.b32.xlu0 %v6487, 32
        %v6496 = vpop.permute.xlu0 %6495
        %v6500 = vsel %vm826, %v6484, %v6492
        %v6501 = vsel %vm826, %v6485, %v6494
        %v6502 = vsel %vm826, %v6486, %v6496
        %v6503 = vpack.c.bf16 %v6501, %v6500
        %v6504 = vpack.c.bf16 %v6502, %v6502
        %s6505 = scalar_lea.vmem %s4, 192
        %v6506 = vld [vmem:[%s6505] sm:$0xf]
        %v6507 = vld [vmem:[%s6505 + $0x4] sm:$0xf]
        %v6508 = vld [vmem:[%s6505 + $0x8] sm:$0xf]
        %v6509 = vld [vmem:[%s6505 + $0xc] sm:$0xf]
        %v6510 = vld [vmem:[%s6505 + $0x10] sm:$0xf]
        %v6511 = vld [vmem:[%s6505 + $0x14] sm:$0xf]
        %v6512 = vld [vmem:[%s6505 + $0x18] sm:$0xf]
        %v6513 = vld [vmem:[%s6505 + $0x1c] sm:$0xf]
        %s6514 = scalar_lea.vmem [#allocation5], 6
        %v6515 = vld [vmem:[%s6514] sm:$0x1]
        %v6517 = vlaneseq
        %v6518 = vshrl.u32 %v6517, 7
        %v6519 = vsub.s32 0, %v6518
        %v6520 = vrot.slane %v6515, %v6519
        %v6530 = vunpack.c.l.b16 %v6506
        %v6531 = vunpack.c.l.b16 %v6507
        %v6532 = vunpack.c.l.b16 %v6508
        %v6533 = vunpack.c.l.b16 %v6509
        %v6534 = vunpack.c.l.b16 %v6510
        %v6535 = vunpack.c.l.b16 %v6511
        %v6536 = vunpack.c.l.b16 %v6512
        %v6537 = vunpack.c.l.b16 %v6513
        %v6538 = vpack.c.b16 %v6531, %v6530
        %v6539 = vpack.c.b16 %v6533, %v6532
        %v6540 = vpack.c.b16 %v6535, %v6534
        %v6541 = vpack.c.b16 %v6537, %v6536
        %v6547 = vsel %vm884, %v6503, 0
        %v6550 = vsel %vm884, %v6504, 0
        %6552 = vmatprep.subr.bf16.mxu0 0
        %6553 = vmatpush1.bf16.msra.mxu0 %v6538
        %6554 = vmatprep.subr.bf16.mxu0 0
        %6555 = vmatpush1.bf16.msra.mxu0 %v6539
        %6556 = vmatprep.subr.bf16.mxu0 0
        %6557 = vmatpush1.bf16.msra.mxu0 %v6540
        %6558 = vmatprep.subr.bf16.mxu0 0
        %6559 = vmatpush1.bf16.msra.mxu0 %v6541
        %6560 = vmatprep.subr.bf16.mxu0 0
        %6561 = vmatpush1.bf16.msra.mxu0 0
        %6562 = vmatprep.subr.bf16.mxu0 0
        %6563 = vmatpush1.bf16.msra.mxu0 0
        %6564 = vmatprep.subr.bf16.mxu0 0
        %6565 = vmatpush1.bf16.msra.mxu0 0
        %6566 = vmatprep.subr.bf16.mxu0 0
        %6567 = vmatpush1.bf16.msra.mxu0 0
        %6568 = vmatprep.subr.bf16.mxu0 0
        %6569 = vmatpush1.bf16.msra.mxu0 0
        %6570 = vmatprep.subr.bf16.mxu0 0
        %6571 = vmatpush1.bf16.msra.mxu0 0
        %6572 = vmatprep.subr.bf16.mxu0 0
        %6573 = vmatpush1.bf16.msra.mxu0 0
        %6574 = vmatprep.subr.bf16.mxu0 0
        %6575 = vmatpush1.bf16.msra.mxu0 0
        %6576 = vmatprep.subr.bf16.mxu0 0
        %6577 = vmatpush1.bf16.msra.mxu0 0
        %6578 = vmatprep.subr.bf16.mxu0 0
        %6579 = vmatpush1.bf16.msra.mxu0 0
        %6580 = vmatprep.subr.bf16.mxu0 0
        %6581 = vmatpush1.bf16.msra.mxu0 0
        %6582 = vmatprep.subr.bf16.mxu0 0
        %6583 = vmatpush1.bf16.msra.mxu0 0
        %6584 = vmatprep.mubr.bf16.mxu0 0
        %6585 = vmatmul.mubr.bf16.gmra.mrb[0].mxu0 %v6547
        %v6586 = vpop.f32.mrb[0].mxu0
        %v6587 = vadd.f32 %v6520, %v6586
        %v6588 = vpop.f32.mrb[0].mxu0
        %v6589 = vpop.f32.mrb[0].mxu0
        %v6590 = vadd.f32 %v6520, %v6589
        %v6591 = vpop.f32.mrb[0].mxu0
        %6592 = vmatprep.mubr.bf16.mxu0 0
        %6593 = vmatmul.mubr.bf16.gmra.mrb[0].mxu0 %v6550
        %v6594 = vpop.f32.mrb[0].mxu0
        %v6595 = vadd.f32 %v6520, %v6594
        %v6596 = vpop.f32.mrb[0].mxu0
        %v6597 = vpop.f32.mrb[0].mxu0
        %v6598 = vpop.f32.mrb[0].mxu0
        %6599 = vdwg.mxu0
        %v6600 = vtanh.pop %v6587
        %v6601 = vtanh.pop %v6590
        %v6602 = vtanh.pop %v6595
        %v6603 = vxor.u32 %v6587, 2147483648
        %v6604 = vxor.u32 %v6590, 2147483648
        %v6605 = vxor.u32 %v6595, 2147483648
        %v6606 = vmul.f32 %v6603, 1.442695
        %v6607 = vpow.pop %v6606
        %v6608 = vmul.f32 %v6604, 1.442695
        %v6609 = vpow.pop %v6608
        %v6610 = vmul.f32 %v6605, 1.442695
        %v6611 = vpow.pop %v6610
        %v6612 = vadd.f32 %v6607, 1.0
        %v6613 = vadd.f32 %v6609, 1.0
        %v6614 = vadd.f32 %v6611, 1.0
        %v6615 = vrcp.pop %v6612
        %v6616 = vmul.f32 1.0, %v6615
        %v6617 = vrcp.pop %v6613
        %v6618 = vmul.f32 1.0, %v6617
        %v6619 = vrcp.pop %v6614
        %v6620 = vmul.f32 1.0, %v6619
        %6624 = vrot.lane.b32.xlu0 %v6616, 96
        %v6625 = vpop.permute.xlu0 %6624
        %6626 = vrot.lane.b32.xlu0 %v6618, 96
        %v6627 = vpop.permute.xlu0 %6626
        %6628 = vrot.lane.b32.xlu0 %v6620, 96
        %v6629 = vpop.permute.xlu0 %6628
        %v6633 = vmul.f32 %v6600, %v6625
        %v6634 = vmul.f32 %v6601, %v6627
        %v6635 = vmul.f32 %v6602, %v6629
        %v6636 = vpack.c.bf16 %v6634, %v6633
        %v6637 = vpack.c.bf16 %v6635, %v6635
        %s6638 = scalar_lea.vmem [#allocation7], 192
        %v6639 = vld [vmem:[%s6638] sm:$0xff]
        %v6640 = vld [vmem:[%s6638 + $0x8] sm:$0xff]
        %v6641 = vld [vmem:[%s6638 + $0x10] sm:$0xff]
        %v6642 = vld [vmem:[%s6638 + $0x18] sm:$0xff]
        %s6643 = scalar_lea.vmem [#allocation8], 12
        %v6644 = vld [vmem:[%s6643] sm:$0x3]
        %v6646 = vlaneseq
        %v6647 = vshrl.u32 %v6646, 7
        %v6648 = vsub.s32 0, %v6647
        %v6649 = vrot.slane %v6644, %v6648
        %v6650 = vlaneseq
        %v6651 = vshrl.u32 %v6650, 7
        %v6652 = vsub.s32 1, %v6651
        %v6653 = vrot.slane %v6644, %v6652
        %v6660 = vunpack.c.l.b16 %v6639
        %v6661 = vunpack.c.h.b16 %v6639
        %v6662 = vunpack.c.l.b16 %v6640
        %v6663 = vunpack.c.h.b16 %v6640
        %v6664 = vunpack.c.l.b16 %v6641
        %v6665 = vunpack.c.h.b16 %v6641
        %v6666 = vunpack.c.l.b16 %v6642
        %v6667 = vunpack.c.h.b16 %v6642
        %v6668 = vpack.c.b16 %v6662, %v6660
        %v6669 = vpack.c.b16 %v6663, %v6661
        %v6670 = vpack.c.b16 %v6666, %v6664
        %v6671 = vpack.c.b16 %v6667, %v6665
        %v6677 = vsel %vm826, %v6637, 0
        %6679 = vmatprep.subr.bf16.mxu0 %v6669
        %6680 = vmatpush1.bf16.msra.mxu0 %v6668
        %6681 = vmatprep.subr.bf16.mxu0 %v6671
        %6682 = vmatpush1.bf16.msra.mxu0 %v6670
        %6683 = vmatprep.subr.bf16.mxu0 0
        %6684 = vmatpush1.bf16.msra.mxu0 0
        %6685 = vmatprep.subr.bf16.mxu0 0
        %6686 = vmatpush1.bf16.msra.mxu0 0
        %6687 = vmatprep.subr.bf16.mxu0 0
        %6688 = vmatpush1.bf16.msra.mxu0 0
        %6689 = vmatprep.subr.bf16.mxu0 0
        %6690 = vmatpush1.bf16.msra.mxu0 0
        %6691 = vmatprep.subr.bf16.mxu0 0
        %6692 = vmatpush1.bf16.msra.mxu0 0
        %6693 = vmatprep.subr.bf16.mxu0 0
        %6694 = vmatpush1.bf16.msra.mxu0 0
        %6695 = vmatprep.subr.bf16.mxu0 0
        %6696 = vmatpush1.bf16.msra.mxu0 0
        %6697 = vmatprep.subr.bf16.mxu0 0
        %6698 = vmatpush1.bf16.msra.mxu0 0
        %6699 = vmatprep.subr.bf16.mxu0 0
        %6700 = vmatpush1.bf16.msra.mxu0 0
        %6701 = vmatprep.subr.bf16.mxu0 0
        %6702 = vmatpush1.bf16.msra.mxu0 0
        %6703 = vmatprep.subr.bf16.mxu0 0
        %6704 = vmatpush1.bf16.msra.mxu0 0
        %6705 = vmatprep.subr.bf16.mxu0 0
        %6706 = vmatpush1.bf16.msra.mxu0 0
        %6707 = vmatprep.subr.bf16.mxu0 0
        %6708 = vmatpush1.bf16.msra.mxu0 0
        %6709 = vmatprep.subr.bf16.mxu0 0
        %6710 = vmatpush1.bf16.msra.mxu0 0
        %6711 = vmatprep.mubr.bf16.mxu0 0
        %6712 = vmatmul.mubr.bf16.gmra.mrb[0].mxu0 %v6677
        %v6713 = vpop.f32.mrb[0].mxu0
        %v6714 = vadd.f32 %v6649, %v6713
        %v6715 = vpop.f32.mrb[0].mxu0
        %v6716 = vadd.f32 %v6653, %v6715
        %v6717 = vpop.f32.mrb[0].mxu0
        %v6718 = vpop.f32.mrb[0].mxu0
        %6719 = vdwg.mxu0
        %v6720 = vadd.f32 %v6072, %v6714
        %v6721 = vadd.f32 %v6073, %v6716
        %v6722 = vpack.c.b16 %v1229, %v1229
        %vm6723 = vcmask 195584
        %v6724 = vsel %vm6723, %v1239, 0
        %v6727 = vsel %vm6723, %v6722, 0
        %v6729 = vsel %vm3500, %v6637, 0
        %6731 = vmatprep.subr.bf16.mxu0 0
        %6732 = vmatpush1.bf16.msra.mxu0 %v6636
        %6733 = vmatprep.subr.bf16.mxu0 0
        %6734 = vmatpush1.bf16.msra.mxu0 %v6729
        %6735 = vmatprep.subr.bf16.mxu0 0
        %6736 = vmatpush1.bf16.msra.mxu0 0
        %6737 = vmatprep.subr.bf16.mxu0 0
        %6738 = vmatpush1.bf16.msra.mxu0 0
        %6739 = vmatprep.subr.bf16.mxu0 0
        %6740 = vmatpush1.bf16.msra.mxu0 0
        %6741 = vmatprep.subr.bf16.mxu0 0
        %6742 = vmatpush1.bf16.msra.mxu0 0
        %6743 = vmatprep.subr.bf16.mxu0 0
        %6744 = vmatpush1.bf16.msra.mxu0 0
        %6745 = vmatprep.subr.bf16.mxu0 0
        %6746 = vmatpush1.bf16.msra.mxu0 0
        %6747 = vmatprep.subr.bf16.mxu0 0
        %6748 = vmatpush1.bf16.msra.mxu0 0
        %6749 = vmatprep.subr.bf16.mxu0 0
        %6750 = vmatpush1.bf16.msra.mxu0 0
        %6751 = vmatprep.subr.bf16.mxu0 0
        %6752 = vmatpush1.bf16.msra.mxu0 0
        %6753 = vmatprep.subr.bf16.mxu0 0
        %6754 = vmatpush1.bf16.msra.mxu0 0
        %6755 = vmatprep.subr.bf16.mxu0 0
        %6756 = vmatpush1.bf16.msra.mxu0 0
        %6757 = vmatprep.subr.bf16.mxu0 0
        %6758 = vmatpush1.bf16.msra.mxu0 0
        %6759 = vmatprep.subr.bf16.mxu0 0
        %6760 = vmatpush1.bf16.msra.mxu0 0
        %6761 = vmatprep.subr.bf16.mxu0 0
        %6762 = vmatpush1.bf16.msra.mxu0 0
        %6763 = vmatprep.mubr.bf16.mxu0 0
        %6764 = vmatmul.mubr.bf16.gmra.mrb[0].mxu0 %v6724
        %v6765 = vpop.f32.mrb[0].mxu0
        %v6766 = vadd.f32 0.0, %v6765
        %v6767 = vpop.f32.mrb[0].mxu0
        %v6768 = vpop.f32.mrb[0].mxu0
        %v6769 = vadd.f32 0.0, %v6768
        %v6770 = vpop.f32.mrb[0].mxu0
        %6771 = vmatprep.mubr.bf16.mxu0 0
        %6772 = vmatmul.mubr.bf16.gmra.mrb[0].mxu0 %v6727
        %v6773 = vpop.f32.mrb[0].mxu0
        %v6774 = vadd.f32 0.0, %v6773
        %v6775 = vpop.f32.mrb[0].mxu0
        %v6776 = vpop.f32.mrb[0].mxu0
        %v6777 = vpop.f32.mrb[0].mxu0
        %6778 = vdwg.mxu0
        %v6779 = vpack.c.bf16 %v6769, %v6766
        %v6780 = vpack.c.bf16 %v6774, %v6774
        %v6781 = vpack.c.b16 %v1365, %v1365
        %v6782 = vsel %vm6723, %v1375, 0
        %v6785 = vsel %vm6723, %v6781, 0
        %6787 = vmatprep.subr.bf16.mxu0 0
        %6788 = vmatpush1.bf16.msra.mxu0 %v6636
        %6789 = vmatprep.subr.bf16.mxu0 0
        %6790 = vmatpush1.bf16.msra.mxu0 %v6729
        %6791 = vmatprep.subr.bf16.mxu0 0
        %6792 = vmatpush1.bf16.msra.mxu0 0
        %6793 = vmatprep.subr.bf16.mxu0 0
        %6794 = vmatpush1.bf16.msra.mxu0 0
        %6795 = vmatprep.subr.bf16.mxu0 0
        %6796 = vmatpush1.bf16.msra.mxu0 0
        %6797 = vmatprep.subr.bf16.mxu0 0
        %6798 = vmatpush1.bf16.msra.mxu0 0
        %6799 = vmatprep.subr.bf16.mxu0 0
        %6800 = vmatpush1.bf16.msra.mxu0 0
        %6801 = vmatprep.subr.bf16.mxu0 0
        %6802 = vmatpush1.bf16.msra.mxu0 0
        %6803 = vmatprep.subr.bf16.mxu0 0
        %6804 = vmatpush1.bf16.msra.mxu0 0
        %6805 = vmatprep.subr.bf16.mxu0 0
        %6806 = vmatpush1.bf16.msra.mxu0 0
        %6807 = vmatprep.subr.bf16.mxu0 0
        %6808 = vmatpush1.bf16.msra.mxu0 0
        %6809 = vmatprep.subr.bf16.mxu0 0
        %6810 = vmatpush1.bf16.msra.mxu0 0
        %6811 = vmatprep.subr.bf16.mxu0 0
        %6812 = vmatpush1.bf16.msra.mxu0 0
        %6813 = vmatprep.subr.bf16.mxu0 0
        %6814 = vmatpush1.bf16.msra.mxu0 0
        %6815 = vmatprep.subr.bf16.mxu0 0
        %6816 = vmatpush1.bf16.msra.mxu0 0
        %6817 = vmatprep.subr.bf16.mxu0 0
        %6818 = vmatpush1.bf16.msra.mxu0 0
        %6819 = vmatprep.mubr.bf16.mxu0 0
        %6820 = vmatmul.mubr.bf16.gmra.mrb[0].mxu0 %v6782
        %v6821 = vpop.f32.mrb[0].mxu0
        %v6822 = vadd.f32 0.0, %v6821
        %v6823 = vpop.f32.mrb[0].mxu0
        %v6824 = vpop.f32.mrb[0].mxu0
        %v6825 = vadd.f32 0.0, %v6824
        %v6826 = vpop.f32.mrb[0].mxu0
        %6827 = vmatprep.mubr.bf16.mxu0 0
        %6828 = vmatmul.mubr.bf16.gmra.mrb[0].mxu0 %v6785
        %v6829 = vpop.f32.mrb[0].mxu0
        %v6830 = vadd.f32 0.0, %v6829
        %v6831 = vpop.f32.mrb[0].mxu0
        %v6832 = vpop.f32.mrb[0].mxu0
        %v6833 = vpop.f32.mrb[0].mxu0
        %6834 = vdwg.mxu0
        %v6835 = vpack.c.bf16 %v6825, %v6822
        %v6836 = vpack.c.bf16 %v6830, %v6830
        %v6837 = vpack.c.b16 %v1500, %v1500
        %v6838 = vsel %vm6723, %v1510, 0
        %v6841 = vsel %vm6723, %v6837, 0
        %6843 = vmatprep.subr.bf16.mxu0 0
        %6844 = vmatpush1.bf16.msra.mxu0 %v6636
        %6845 = vmatprep.subr.bf16.mxu0 0
        %6846 = vmatpush1.bf16.msra.mxu0 %v6729
        %6847 = vmatprep.subr.bf16.mxu0 0
        %6848 = vmatpush1.bf16.msra.mxu0 0
        %6849 = vmatprep.subr.bf16.mxu0 0
        %6850 = vmatpush1.bf16.msra.mxu0 0
        %6851 = vmatprep.subr.bf16.mxu0 0
        %6852 = vmatpush1.bf16.msra.mxu0 0
        %6853 = vmatprep.subr.bf16.mxu0 0
        %6854 = vmatpush1.bf16.msra.mxu0 0
        %6855 = vmatprep.subr.bf16.mxu0 0
        %6856 = vmatpush1.bf16.msra.mxu0 0
        %6857 = vmatprep.subr.bf16.mxu0 0
        %6858 = vmatpush1.bf16.msra.mxu0 0
        %6859 = vmatprep.subr.bf16.mxu0 0
        %6860 = vmatpush1.bf16.msra.mxu0 0
        %6861 = vmatprep.subr.bf16.mxu0 0
        %6862 = vmatpush1.bf16.msra.mxu0 0
        %6863 = vmatprep.subr.bf16.mxu0 0
        %6864 = vmatpush1.bf16.msra.mxu0 0
        %6865 = vmatprep.subr.bf16.mxu0 0
        %6866 = vmatpush1.bf16.msra.mxu0 0
        %6867 = vmatprep.subr.bf16.mxu0 0
        %6868 = vmatpush1.bf16.msra.mxu0 0
        %6869 = vmatprep.subr.bf16.mxu0 0
        %6870 = vmatpush1.bf16.msra.mxu0 0
        %6871 = vmatprep.subr.bf16.mxu0 0
        %6872 = vmatpush1.bf16.msra.mxu0 0
        %6873 = vmatprep.subr.bf16.mxu0 0
        %6874 = vmatpush1.bf16.msra.mxu0 0
        %6875 = vmatprep.mubr.bf16.mxu0 0
        %6876 = vmatmul.mubr.bf16.gmra.mrb[0].mxu0 %v6838
        %v6877 = vpop.f32.mrb[0].mxu0
        %v6878 = vadd.f32 0.0, %v6877
        %v6879 = vpop.f32.mrb[0].mxu0
        %v6880 = vpop.f32.mrb[0].mxu0
        %v6881 = vadd.f32 0.0, %v6880
        %v6882 = vpop.f32.mrb[0].mxu0
        %6883 = vmatprep.mubr.bf16.mxu0 0
        %6884 = vmatmul.mubr.bf16.gmra.mrb[0].mxu0 %v6841
        %v6885 = vpop.f32.mrb[0].mxu0
        %v6886 = vadd.f32 0.0, %v6885
        %v6887 = vpop.f32.mrb[0].mxu0
        %v6888 = vpop.f32.mrb[0].mxu0
        %v6889 = vpop.f32.mrb[0].mxu0
        %6890 = vdwg.mxu0
        %v6891 = vpack.c.bf16 %v6881, %v6878
        %v6892 = vpack.c.bf16 %v6886, %v6886
        %v6893 = vpack.c.b16 %v1635, %v1635
        %v6894 = vsel %vm6723, %v1645, 0
        %v6897 = vsel %vm6723, %v6893, 0
        %6899 = vmatprep.subr.bf16.mxu0 0
        %6900 = vmatpush1.bf16.msra.mxu0 %v6636
        %6901 = vmatprep.subr.bf16.mxu0 0
        %6902 = vmatpush1.bf16.msra.mxu0 %v6729
        %6903 = vmatprep.subr.bf16.mxu0 0
        %6904 = vmatpush1.bf16.msra.mxu0 0
        %6905 = vmatprep.subr.bf16.mxu0 0
        %6906 = vmatpush1.bf16.msra.mxu0 0
        %6907 = vmatprep.subr.bf16.mxu0 0
        %6908 = vmatpush1.bf16.msra.mxu0 0
        %6909 = vmatprep.subr.bf16.mxu0 0
        %6910 = vmatpush1.bf16.msra.mxu0 0
        %6911 = vmatprep.subr.bf16.mxu0 0
        %6912 = vmatpush1.bf16.msra.mxu0 0
        %6913 = vmatprep.subr.bf16.mxu0 0
        %6914 = vmatpush1.bf16.msra.mxu0 0
        %6915 = vmatprep.subr.bf16.mxu0 0
        %6916 = vmatpush1.bf16.msra.mxu0 0
        %6917 = vmatprep.subr.bf16.mxu0 0
        %6918 = vmatpush1.bf16.msra.mxu0 0
        %6919 = vmatprep.subr.bf16.mxu0 0
        %6920 = vmatpush1.bf16.msra.mxu0 0
        %6921 = vmatprep.subr.bf16.mxu0 0
        %6922 = vmatpush1.bf16.msra.mxu0 0
        %6923 = vmatprep.subr.bf16.mxu0 0
        %6924 = vmatpush1.bf16.msra.mxu0 0
        %6925 = vmatprep.subr.bf16.mxu0 0
        %6926 = vmatpush1.bf16.msra.mxu0 0
        %6927 = vmatprep.subr.bf16.mxu0 0
        %6928 = vmatpush1.bf16.msra.mxu0 0
        %6929 = vmatprep.subr.bf16.mxu0 0
        %6930 = vmatpush1.bf16.msra.mxu0 0
        %6931 = vmatprep.mubr.bf16.mxu0 0
        %6932 = vmatmul.mubr.bf16.gmra.mrb[0].mxu0 %v6894
        %v6933 = vpop.f32.mrb[0].mxu0
        %v6934 = vadd.f32 0.0, %v6933
        %v6935 = vpop.f32.mrb[0].mxu0
        %v6936 = vpop.f32.mrb[0].mxu0
        %v6937 = vadd.f32 0.0, %v6936
        %v6938 = vpop.f32.mrb[0].mxu0
        %6939 = vmatprep.mubr.bf16.mxu0 0
        %6940 = vmatmul.mubr.bf16.gmra.mrb[0].mxu0 %v6897
        %v6941 = vpop.f32.mrb[0].mxu0
        %v6942 = vadd.f32 0.0, %v6941
        %v6943 = vpop.f32.mrb[0].mxu0
        %v6944 = vpop.f32.mrb[0].mxu0
        %v6945 = vpop.f32.mrb[0].mxu0
        %6946 = vdwg.mxu0
        %v6947 = vpack.c.bf16 %v6937, %v6934
        %v6948 = vpack.c.bf16 %v6942, %v6942
        %6951 = vrot.lane.b32.xlu0 %v6779, 32
        %v6952 = vpop.permute.xlu0 %6951
        %6953 = vrot.lane.b32.xlu0 %v6780, 32
        %v6954 = vpop.permute.xlu0 %6953
        %6957 = vrot.lane.b32.xlu0 %v6835, 64
        %v6958 = vpop.permute.xlu0 %6957
        %6959 = vrot.lane.b32.xlu0 %v6836, 64
        %v6960 = vpop.permute.xlu0 %6959
        %6963 = vrot.lane.b32.xlu0 %v6891, 96
        %v6964 = vpop.permute.xlu0 %6963
        %6965 = vrot.lane.b32.xlu0 %v6892, 96
        %v6966 = vpop.permute.xlu0 %6965
        %v6969 = vsel %vm826, %v6636, %v6952
        %v6971 = vsel %vm826, %v6637, %v6954
        %v6973 = vsel %vm884, %v6969, %v6958
        %v6975 = vsel %vm884, %v6971, %v6960
        %v6977 = vsel %vm1245, %v6973, %v6964
        %v6980 = vsel %vm1245, %v6975, %v6966
        %s6982 = scalar_lea.vmem %s8, 480
        %v6983 = vld [vmem:[%s6982] sm:$0xf]
        %v6984 = vld [vmem:[%s6982 + $0x4] sm:$0xf]
        %v6985 = vld [vmem:[%s6982 + $0x8] sm:$0xf]
        %v6986 = vld [vmem:[%s6982 + $0xc] sm:$0xf]
        %v6987 = vld [vmem:[%s6982 + $0x10] sm:$0xf]
        %v6988 = vld [vmem:[%s6982 + $0x14] sm:$0xf]
        %v6989 = vld [vmem:[%s6982 + $0x18] sm:$0xf]
        %v6990 = vld [vmem:[%s6982 + $0x1c] sm:$0xf]
        %v6991 = vld [vmem:[%s6982 + $0x20] sm:$0xf]
        %v6992 = vld [vmem:[%s6982 + $0x24] sm:$0xf]
        %v6993 = vld [vmem:[%s6982 + $0x28] sm:$0xf]
        %v6994 = vld [vmem:[%s6982 + $0x2c] sm:$0xf]
        %v6995 = vld [vmem:[%s6982 + $0x30] sm:$0xf]
        %v6996 = vld [vmem:[%s6982 + $0x34] sm:$0xf]
        %v6997 = vld [vmem:[%s6982 + $0x38] sm:$0xf]
        %v6998 = vld [vmem:[%s6982 + $0x3c] sm:$0xf]
        %v6999 = vld [vmem:[%s6982 + $0x40] sm:$0xf]
        %v7000 = vld [vmem:[%s6982 + $0x44] sm:$0xf]
        %v7001 = vld [vmem:[%s6982 + $0x48] sm:$0xf]
        %v7002 = vld [vmem:[%s6982 + $0x4c] sm:$0xf]
        %s7003 = scalar_lea.vmem [#allocation11], 6
        %v7004 = vld [vmem:[%s7003] sm:$0x1]
        %v7006 = vlaneseq
        %v7007 = vshrl.u32 %v7006, 7
        %v7008 = vsub.s32 0, %v7007
        %v7009 = vrot.slane %v7004, %v7008
        %v7011 = vmul.f32 %v6485, %v7009
        %v7012 = vmul.f32 %v6487, %v7009
        %v7033 = vunpack.c.l.b16 %v6983
        %v7034 = vunpack.c.l.b16 %v6984
        %v7035 = vunpack.c.l.b16 %v6985
        %v7036 = vunpack.c.l.b16 %v6986
        %v7037 = vunpack.c.l.b16 %v6987
        %v7038 = vunpack.c.l.b16 %v6988
        %v7039 = vunpack.c.l.b16 %v6989
        %v7040 = vunpack.c.l.b16 %v6990
        %v7041 = vunpack.c.l.b16 %v6991
        %v7042 = vunpack.c.l.b16 %v6992
        %v7043 = vunpack.c.l.b16 %v6993
        %v7044 = vunpack.c.l.b16 %v6994
        %v7045 = vunpack.c.l.b16 %v6995
        %v7046 = vunpack.c.l.b16 %v6996
        %v7047 = vunpack.c.l.b16 %v6997
        %v7048 = vunpack.c.l.b16 %v6998
        %v7049 = vunpack.c.l.b16 %v6999
        %v7050 = vunpack.c.l.b16 %v7000
        %v7051 = vunpack.c.l.b16 %v7001
        %v7052 = vunpack.c.l.b16 %v7002
        %v7053 = vpack.c.b16 %v7034, %v7033
        %v7054 = vpack.c.b16 %v7036, %v7035
        %v7055 = vpack.c.b16 %v7038, %v7037
        %v7056 = vpack.c.b16 %v7040, %v7039
        %v7057 = vpack.c.b16 %v7042, %v7041
        %v7058 = vpack.c.b16 %v7044, %v7043
        %v7059 = vpack.c.b16 %v7046, %v7045
        %v7060 = vpack.c.b16 %v7048, %v7047
        %v7061 = vpack.c.b16 %v7050, %v7049
        %v7062 = vpack.c.b16 %v7052, %v7051
        %v7074 = vsel %vm826, %v6947, 0
        %v7077 = vsel %vm826, %v6948, 0
        %7079 = vmatprep.subr.bf16.mxu0 0
        %7080 = vmatpush1.bf16.msra.mxu0 %v7053
        %7081 = vmatprep.subr.bf16.mxu0 0
        %7082 = vmatpush1.bf16.msra.mxu0 %v7054
        %7083 = vmatprep.subr.bf16.mxu0 0
        %7084 = vmatpush1.bf16.msra.mxu0 %v7055
        %7085 = vmatprep.subr.bf16.mxu0 0
        %7086 = vmatpush1.bf16.msra.mxu0 %v7056
        %7087 = vmatprep.subr.bf16.mxu0 0
        %7088 = vmatpush1.bf16.msra.mxu0 %v7057
        %7089 = vmatprep.subr.bf16.mxu0 0
        %7090 = vmatpush1.bf16.msra.mxu0 %v7058
        %7091 = vmatprep.subr.bf16.mxu0 0
        %7092 = vmatpush1.bf16.msra.mxu0 %v7059
        %7093 = vmatprep.subr.bf16.mxu0 0
        %7094 = vmatpush1.bf16.msra.mxu0 %v7060
        %7095 = vmatprep.subr.bf16.mxu0 0
        %7096 = vmatpush1.bf16.msra.mxu0 %v7061
        %7097 = vmatprep.subr.bf16.mxu0 0
        %7098 = vmatpush1.bf16.msra.mxu0 %v7062
        %7099 = vmatprep.subr.bf16.mxu0 0
        %7100 = vmatpush1.bf16.msra.mxu0 0
        %7101 = vmatprep.subr.bf16.mxu0 0
        %7102 = vmatpush1.bf16.msra.mxu0 0
        %7103 = vmatprep.subr.bf16.mxu0 0
        %7104 = vmatpush1.bf16.msra.mxu0 0
        %7105 = vmatprep.subr.bf16.mxu0 0
        %7106 = vmatpush1.bf16.msra.mxu0 0
        %7107 = vmatprep.subr.bf16.mxu0 0
        %7108 = vmatpush1.bf16.msra.mxu0 0
        %7109 = vmatprep.subr.bf16.mxu0 0
        %7110 = vmatpush1.bf16.msra.mxu0 0
        %7111 = vmatprep.mubr.bf16.mxu0 %v7074
        %7112 = vmatmul.mubr.bf16.gmra.mrb[0].mxu0 %v6977
        %v7113 = vpop.f32.mrb[0].mxu0
        %v7114 = vadd.f32 %v7011, %v7113
        %v7115 = vpop.f32.mrb[0].mxu0
        %v7116 = vpop.f32.mrb[0].mxu0
        %v7117 = vpop.f32.mrb[0].mxu0
        %7118 = vmatprep.mubr.bf16.mxu0 %v7077
        %7119 = vmatmul.mubr.bf16.gmra.mrb[0].mxu0 %v6980
        %v7120 = vpop.f32.mrb[0].mxu0
        %v7121 = vadd.f32 %v7012, %v7120
        %v7122 = vpop.f32.mrb[0].mxu0
        %v7123 = vpop.f32.mrb[0].mxu0
        %v7124 = vpop.f32.mrb[0].mxu0
        %7125 = vdwg.mxu0
        %s7126 = scalar_lea.vmem [#allocation10], 6
        %v7127 = vld [vmem:[%s7126] sm:$0x1]
        %v7129 = vlaneseq
        %v7130 = vshrl.u32 %v7129, 7
        %v7131 = vsub.s32 0, %v7130
        %v7132 = vrot.slane %v7127, %v7131
        %v7134 = vadd.f32 %v7114, %v7132
        %v7135 = vadd.f32 %v7121, %v7132
        %7137 = vrot.lane.b32.xlu0 %v7135, 32
        %v7138 = vpop.permute.xlu0 %7137
        %v7140 = vsel %vm826, %v7134, %v7138
        %v7141 = vpack.c.bf16 %v7140, %v7140
        %s7142 = scalar_lea.vmem %s4, 224
        %v7143 = vld [vmem:[%s7142] sm:$0xf]
        %v7144 = vld [vmem:[%s7142 + $0x4] sm:$0xf]
        %v7145 = vld [vmem:[%s7142 + $0x8] sm:$0xf]
        %v7146 = vld [vmem:[%s7142 + $0xc] sm:$0xf]
        %v7147 = vld [vmem:[%s7142 + $0x10] sm:$0xf]
        %v7148 = vld [vmem:[%s7142 + $0x14] sm:$0xf]
        %v7149 = vld [vmem:[%s7142 + $0x18] sm:$0xf]
        %v7150 = vld [vmem:[%s7142 + $0x1c] sm:$0xf]
        %s7151 = scalar_lea.vmem [#allocation5], 7
        %v7152 = vld [vmem:[%s7151] sm:$0x1]
        %v7154 = vlaneseq
        %v7155 = vshrl.u32 %v7154, 7
        %v7156 = vsub.s32 0, %v7155
        %v7157 = vrot.slane %v7152, %v7156
        %v7167 = vunpack.c.l.b16 %v7143
        %v7168 = vunpack.c.l.b16 %v7144
        %v7169 = vunpack.c.l.b16 %v7145
        %v7170 = vunpack.c.l.b16 %v7146
        %v7171 = vunpack.c.l.b16 %v7147
        %v7172 = vunpack.c.l.b16 %v7148
        %v7173 = vunpack.c.l.b16 %v7149
        %v7174 = vunpack.c.l.b16 %v7150
        %v7175 = vpack.c.b16 %v7168, %v7167
        %v7176 = vpack.c.b16 %v7170, %v7169
        %v7177 = vpack.c.b16 %v7172, %v7171
        %v7178 = vpack.c.b16 %v7174, %v7173
        %v7184 = vsel %vm884, %v7141, 0
        %7186 = vmatprep.subr.bf16.mxu0 0
        %7187 = vmatpush1.bf16.msra.mxu0 %v7175
        %7188 = vmatprep.subr.bf16.mxu0 0
        %7189 = vmatpush1.bf16.msra.mxu0 %v7176
        %7190 = vmatprep.subr.bf16.mxu0 0
        %7191 = vmatpush1.bf16.msra.mxu0 %v7177
        %7192 = vmatprep.subr.bf16.mxu0 0
        %7193 = vmatpush1.bf16.msra.mxu0 %v7178
        %7194 = vmatprep.subr.bf16.mxu0 0
        %7195 = vmatpush1.bf16.msra.mxu0 0
        %7196 = vmatprep.subr.bf16.mxu0 0
        %7197 = vmatpush1.bf16.msra.mxu0 0
        %7198 = vmatprep.subr.bf16.mxu0 0
        %7199 = vmatpush1.bf16.msra.mxu0 0
        %7200 = vmatprep.subr.bf16.mxu0 0
        %7201 = vmatpush1.bf16.msra.mxu0 0
        %7202 = vmatprep.subr.bf16.mxu0 0
        %7203 = vmatpush1.bf16.msra.mxu0 0
        %7204 = vmatprep.subr.bf16.mxu0 0
        %7205 = vmatpush1.bf16.msra.mxu0 0
        %7206 = vmatprep.subr.bf16.mxu0 0
        %7207 = vmatpush1.bf16.msra.mxu0 0
        %7208 = vmatprep.subr.bf16.mxu0 0
        %7209 = vmatpush1.bf16.msra.mxu0 0
        %7210 = vmatprep.subr.bf16.mxu0 0
        %7211 = vmatpush1.bf16.msra.mxu0 0
        %7212 = vmatprep.subr.bf16.mxu0 0
        %7213 = vmatpush1.bf16.msra.mxu0 0
        %7214 = vmatprep.subr.bf16.mxu0 0
        %7215 = vmatpush1.bf16.msra.mxu0 0
        %7216 = vmatprep.subr.bf16.mxu0 0
        %7217 = vmatpush1.bf16.msra.mxu0 0
        %7218 = vmatprep.mubr.bf16.mxu0 0
        %7219 = vmatmul.mubr.bf16.gmra.mrb[0].mxu0 %v7184
        %v7220 = vpop.f32.mrb[0].mxu0
        %v7221 = vadd.f32 %v7157, %v7220
        %v7222 = vpop.f32.mrb[0].mxu0
        %v7223 = vpop.f32.mrb[0].mxu0
        %v7224 = vpop.f32.mrb[0].mxu0
        %7225 = vdwg.mxu0
        %v7226 = vtanh.pop %v7221
        %v7227 = vxor.u32 %v7221, 2147483648
        %v7228 = vmul.f32 %v7227, 1.442695
        %v7229 = vpow.pop %v7228
        %v7230 = vadd.f32 %v7229, 1.0
        %v7231 = vrcp.pop %v7230
        %v7232 = vmul.f32 1.0, %v7231
        %7234 = vrot.lane.b32.xlu0 %v7232, 96
        %v7235 = vpop.permute.xlu0 %7234
        %v7237 = vmul.f32 %v7226, %v7235
        %v7238 = vpack.c.bf16 %v7237, %v7237
        %s7239 = scalar_lea.vmem [#allocation7], 224
        %v7240 = vld [vmem:[%s7239] sm:$0xff]
        %v7241 = vld [vmem:[%s7239 + $0x8] sm:$0xff]
        %v7242 = vld [vmem:[%s7239 + $0x10] sm:$0xff]
        %v7243 = vld [vmem:[%s7239 + $0x18] sm:$0xff]
        %s7244 = scalar_lea.vmem [#allocation8], 14
        %v7245 = vld [vmem:[%s7244] sm:$0x3]
        %v7247 = vlaneseq
        %v7248 = vshrl.u32 %v7247, 7
        %v7249 = vsub.s32 0, %v7248
        %v7250 = vrot.slane %v7245, %v7249
        %v7251 = vlaneseq
        %v7252 = vshrl.u32 %v7251, 7
        %v7253 = vsub.s32 1, %v7252
        %v7254 = vrot.slane %v7245, %v7253
        %v7261 = vunpack.c.l.b16 %v7240
        %v7262 = vunpack.c.h.b16 %v7240
        %v7263 = vunpack.c.l.b16 %v7241
        %v7264 = vunpack.c.h.b16 %v7241
        %v7265 = vunpack.c.l.b16 %v7242
        %v7266 = vunpack.c.h.b16 %v7242
        %v7267 = vunpack.c.l.b16 %v7243
        %v7268 = vunpack.c.h.b16 %v7243
        %v7269 = vpack.c.b16 %v7263, %v7261
        %v7270 = vpack.c.b16 %v7264, %v7262
        %v7271 = vpack.c.b16 %v7267, %v7265
        %v7272 = vpack.c.b16 %v7268, %v7266
        %v7278 = vsel %vm826, %v7238, 0
        %7280 = vmatprep.subr.bf16.mxu0 %v7270
        %7281 = vmatpush1.bf16.msra.mxu0 %v7269
        %7282 = vmatprep.subr.bf16.mxu0 %v7272
        %7283 = vmatpush1.bf16.msra.mxu0 %v7271
        %7284 = vmatprep.subr.bf16.mxu0 0
        %7285 = vmatpush1.bf16.msra.mxu0 0
        %7286 = vmatprep.subr.bf16.mxu0 0
        %7287 = vmatpush1.bf16.msra.mxu0 0
        %7288 = vmatprep.subr.bf16.mxu0 0
        %7289 = vmatpush1.bf16.msra.mxu0 0
        %7290 = vmatprep.subr.bf16.mxu0 0
        %7291 = vmatpush1.bf16.msra.mxu0 0
        %7292 = vmatprep.subr.bf16.mxu0 0
        %7293 = vmatpush1.bf16.msra.mxu0 0
        %7294 = vmatprep.subr.bf16.mxu0 0
        %7295 = vmatpush1.bf16.msra.mxu0 0
        %7296 = vmatprep.subr.bf16.mxu0 0
        %7297 = vmatpush1.bf16.msra.mxu0 0
        %7298 = vmatprep.subr.bf16.mxu0 0
        %7299 = vmatpush1.bf16.msra.mxu0 0
        %7300 = vmatprep.subr.bf16.mxu0 0
        %7301 = vmatpush1.bf16.msra.mxu0 0
        %7302 = vmatprep.subr.bf16.mxu0 0
        %7303 = vmatpush1.bf16.msra.mxu0 0
        %7304 = vmatprep.subr.bf16.mxu0 0
        %7305 = vmatpush1.bf16.msra.mxu0 0
        %7306 = vmatprep.subr.bf16.mxu0 0
        %7307 = vmatpush1.bf16.msra.mxu0 0
        %7308 = vmatprep.subr.bf16.mxu0 0
        %7309 = vmatpush1.bf16.msra.mxu0 0
        %7310 = vmatprep.subr.bf16.mxu0 0
        %7311 = vmatpush1.bf16.msra.mxu0 0
        %7312 = vmatprep.mubr.bf16.mxu0 0
        %7313 = vmatmul.mubr.bf16.gmra.mrb[0].mxu0 %v7278
        %v7314 = vpop.f32.mrb[0].mxu0
        %v7315 = vadd.f32 %v7250, %v7314
        %v7316 = vpop.f32.mrb[0].mxu0
        %v7317 = vadd.f32 %v7254, %v7316
        %v7318 = vpop.f32.mrb[0].mxu0
        %v7319 = vpop.f32.mrb[0].mxu0
        %7320 = vdwg.mxu0
        %v7321 = vadd.f32 %v6720, %v7315
        %v7322 = vadd.f32 %v6721, %v7317
        %v7323 = vmax.f32 %v7321, 0.0
        %v7324 = vmax.f32 %v7322, 0.0
        %v7325 = vpack.c.bf16 %v7323, %v7323
        %v7326 = vpack.c.bf16 %v7324, %v7324
        %v7327 = vld [vmem:[%s11] sm:$0xff]
        %v7328 = vld [vmem:[%s11 + $0x8] sm:$0xff]
        %v7329 = vld [vmem:[%s11 + $0x10] sm:$0xff]
        %v7330 = vld [vmem:[%s11 + $0x18] sm:$0xff]
        %v7331 = vld [vmem:[%s11 + $0x20] sm:$0xff]
        %v7332 = vld [vmem:[%s11 + $0x28] sm:$0xff]
        %v7333 = vld [vmem:[%s11 + $0x30] sm:$0xff]
        %v7334 = vld [vmem:[%s11 + $0x38] sm:$0xff]
        %v7335 = vld [vmem:[%s11 + $0x40] sm:$0xff]
        %v7336 = vld [vmem:[%s11 + $0x48] sm:$0xff]
        %v7337 = vld [vmem:[%s11 + $0x50] sm:$0xff]
        %v7338 = vld [vmem:[%s11 + $0x58] sm:$0xff]
        %v7339 = vld [vmem:[%s11 + $0x60] sm:$0xff]
        %v7340 = vld [vmem:[%s11 + $0x68] sm:$0xff]
        %v7341 = vld [vmem:[%s11 + $0x70] sm:$0xff]
        %v7342 = vld [vmem:[%s11 + $0x78] sm:$0xff]
        %v7343 = vld [vmem:[%s11 + $0x80] sm:$0xff]
        %v7344 = vld [vmem:[%s11 + $0x88] sm:$0xff]
        %v7345 = vld [vmem:[%s11 + $0x90] sm:$0xff]
        %v7346 = vld [vmem:[%s11 + $0x98] sm:$0xff]
        %v7347 = vld [vmem:[%s11 + $0xa0] sm:$0xff]
        %v7348 = vld [vmem:[%s11 + $0xa8] sm:$0xff]
        %v7349 = vld [vmem:[%s11 + $0xb0] sm:$0xff]
        %v7350 = vld [vmem:[%s11 + $0xb8] sm:$0xff]
        %v7351 = vld [vmem:[%s11 + $0xc0] sm:$0xff]
        %v7352 = vld [vmem:[%s11 + $0xc8] sm:$0xff]
        %v7353 = vld [vmem:[%s11 + $0xd0] sm:$0xff]
        %v7354 = vld [vmem:[%s11 + $0xd8] sm:$0xff]
        %v7355 = vld [vmem:[%s11 + $0xe0] sm:$0xff]
        %v7356 = vld [vmem:[%s11 + $0xe8] sm:$0xff]
        %v7357 = vld [vmem:[%s11 + $0xf0] sm:$0xff]
        %v7358 = vld [vmem:[%s11 + $0xf8] sm:$0xff]
        %v7359 = vld [vmem:[%s11 + $0x100] sm:$0xff]
        %v7360 = vld [vmem:[%s11 + $0x108] sm:$0xff]
        %v7361 = vld [vmem:[%s11 + $0x110] sm:$0xff]
        %v7362 = vld [vmem:[%s11 + $0x118] sm:$0xff]
        %v7363 = vld [vmem:[%s11 + $0x120] sm:$0xff]
        %v7364 = vld [vmem:[%s11 + $0x128] sm:$0xff]
        %v7365 = vld [vmem:[%s11 + $0x130] sm:$0xff]
        %v7366 = vld [vmem:[%s11 + $0x138] sm:$0xff]
        %v7367 = vld [vmem:[%s11 + $0x140] sm:$0xff]
        %v7368 = vld [vmem:[%s11 + $0x148] sm:$0xff]
        %v7369 = vld [vmem:[%s11 + $0x150] sm:$0xff]
        %v7370 = vld [vmem:[%s11 + $0x158] sm:$0xff]
        %v7371 = vld [vmem:[%s11 + $0x160] sm:$0xff]
        %v7372 = vld [vmem:[%s11 + $0x168] sm:$0xff]
        %v7373 = vld [vmem:[%s11 + $0x170] sm:$0xff]
        %v7374 = vld [vmem:[%s11 + $0x178] sm:$0xff]
        %v7375 = vld [vmem:[%s11 + $0x180] sm:$0xff]
        %v7376 = vld [vmem:[%s11 + $0x188] sm:$0xff]
        %v7377 = vld [vmem:[%s11 + $0x190] sm:$0xff]
        %v7378 = vld [vmem:[%s11 + $0x198] sm:$0xff]
        %v7379 = vld [vmem:[%s11 + $0x1a0] sm:$0xff]
        %v7380 = vld [vmem:[%s11 + $0x1a8] sm:$0xff]
        %v7381 = vld [vmem:[%s11 + $0x1b0] sm:$0xff]
        %v7382 = vld [vmem:[%s11 + $0x1b8] sm:$0xff]
        %v7383 = vld [vmem:[%s11 + $0x1c0] sm:$0xff]
        %v7384 = vld [vmem:[%s11 + $0x1c8] sm:$0xff]
        %v7385 = vld [vmem:[%s11 + $0x1d0] sm:$0xff]
        %v7386 = vld [vmem:[%s11 + $0x1d8] sm:$0xff]
        %v7387 = vld [vmem:[%s11 + $0x1e0] sm:$0xff]
        %v7388 = vld [vmem:[%s11 + $0x1e8] sm:$0xff]
        %v7389 = vld [vmem:[%s11 + $0x1f0] sm:$0xff]
        %v7390 = vld [vmem:[%s11 + $0x1f8] sm:$0xff]
        %v7391 = vld [vmem:[#allocation13] sm:$0xf]
        %v7393 = vlaneseq
        %v7394 = vshrl.u32 %v7393, 7
        %v7395 = vsub.s32 0, %v7394
        %v7396 = vrot.slane %v7391, %v7395
        %v7397 = vlaneseq
        %v7398 = vshrl.u32 %v7397, 7
        %v7399 = vsub.s32 1, %v7398
        %v7400 = vrot.slane %v7391, %v7399
        %v7401 = vlaneseq
        %v7402 = vshrl.u32 %v7401, 7
        %v7403 = vsub.s32 2, %v7402
        %v7404 = vrot.slane %v7391, %v7403
        %v7405 = vlaneseq
        %v7406 = vshrl.u32 %v7405, 7
        %v7407 = vsub.s32 3, %v7406
        %v7408 = vrot.slane %v7391, %v7407
        %v7477 = vunpack.c.l.b16 %v7327
        %v7478 = vunpack.c.h.b16 %v7327
        %v7479 = vunpack.c.l.b16 %v7328
        %v7480 = vunpack.c.h.b16 %v7328
        %v7481 = vunpack.c.l.b16 %v7329
        %v7482 = vunpack.c.h.b16 %v7329
        %v7483 = vunpack.c.l.b16 %v7330
        %v7484 = vunpack.c.h.b16 %v7330
        %v7485 = vunpack.c.l.b16 %v7331
        %v7486 = vunpack.c.h.b16 %v7331
        %v7487 = vunpack.c.l.b16 %v7332
        %v7488 = vunpack.c.h.b16 %v7332
        %v7489 = vunpack.c.l.b16 %v7333
        %v7490 = vunpack.c.h.b16 %v7333
        %v7491 = vunpack.c.l.b16 %v7334
        %v7492 = vunpack.c.h.b16 %v7334
        %v7493 = vunpack.c.l.b16 %v7335
        %v7494 = vunpack.c.h.b16 %v7335
        %v7495 = vunpack.c.l.b16 %v7336
        %v7496 = vunpack.c.h.b16 %v7336
        %v7497 = vunpack.c.l.b16 %v7337
        %v7498 = vunpack.c.h.b16 %v7337
        %v7499 = vunpack.c.l.b16 %v7338
        %v7500 = vunpack.c.h.b16 %v7338
        %v7501 = vunpack.c.l.b16 %v7339
        %v7502 = vunpack.c.h.b16 %v7339
        %v7503 = vunpack.c.l.b16 %v7340
        %v7504 = vunpack.c.h.b16 %v7340
        %v7505 = vunpack.c.l.b16 %v7341
        %v7506 = vunpack.c.h.b16 %v7341
        %v7507 = vunpack.c.l.b16 %v7342
        %v7508 = vunpack.c.h.b16 %v7342
        %v7509 = vunpack.c.l.b16 %v7343
        %v7510 = vunpack.c.h.b16 %v7343
        %v7511 = vunpack.c.l.b16 %v7344
        %v7512 = vunpack.c.h.b16 %v7344
        %v7513 = vunpack.c.l.b16 %v7345
        %v7514 = vunpack.c.h.b16 %v7345
        %v7515 = vunpack.c.l.b16 %v7346
        %v7516 = vunpack.c.h.b16 %v7346
        %v7517 = vunpack.c.l.b16 %v7347
        %v7518 = vunpack.c.h.b16 %v7347
        %v7519 = vunpack.c.l.b16 %v7348
        %v7520 = vunpack.c.h.b16 %v7348
        %v7521 = vunpack.c.l.b16 %v7349
        %v7522 = vunpack.c.h.b16 %v7349
        %v7523 = vunpack.c.l.b16 %v7350
        %v7524 = vunpack.c.h.b16 %v7350
        %v7525 = vunpack.c.l.b16 %v7351
        %v7526 = vunpack.c.h.b16 %v7351
        %v7527 = vunpack.c.l.b16 %v7352
        %v7528 = vunpack.c.h.b16 %v7352
        %v7529 = vunpack.c.l.b16 %v7353
        %v7530 = vunpack.c.h.b16 %v7353
        %v7531 = vunpack.c.l.b16 %v7354
        %v7532 = vunpack.c.h.b16 %v7354
        %v7533 = vunpack.c.l.b16 %v7355
        %v7534 = vunpack.c.h.b16 %v7355
        %v7535 = vunpack.c.l.b16 %v7356
        %v7536 = vunpack.c.h.b16 %v7356
        %v7537 = vunpack.c.l.b16 %v7357
        %v7538 = vunpack.c.h.b16 %v7357
        %v7539 = vunpack.c.l.b16 %v7358
        %v7540 = vunpack.c.h.b16 %v7358
        %v7541 = vunpack.c.l.b16 %v7359
        %v7542 = vunpack.c.h.b16 %v7359
        %v7543 = vunpack.c.l.b16 %v7360
        %v7544 = vunpack.c.h.b16 %v7360
        %v7545 = vunpack.c.l.b16 %v7361
        %v7546 = vunpack.c.h.b16 %v7361
        %v7547 = vunpack.c.l.b16 %v7362
        %v7548 = vunpack.c.h.b16 %v7362
        %v7549 = vunpack.c.l.b16 %v7363
        %v7550 = vunpack.c.h.b16 %v7363
        %v7551 = vunpack.c.l.b16 %v7364
        %v7552 = vunpack.c.h.b16 %v7364
        %v7553 = vunpack.c.l.b16 %v7365
        %v7554 = vunpack.c.h.b16 %v7365
        %v7555 = vunpack.c.l.b16 %v7366
        %v7556 = vunpack.c.h.b16 %v7366
        %v7557 = vunpack.c.l.b16 %v7367
        %v7558 = vunpack.c.h.b16 %v7367
        %v7559 = vunpack.c.l.b16 %v7368
        %v7560 = vunpack.c.h.b16 %v7368
        %v7561 = vunpack.c.l.b16 %v7369
        %v7562 = vunpack.c.h.b16 %v7369
        %v7563 = vunpack.c.l.b16 %v7370
        %v7564 = vunpack.c.h.b16 %v7370
        %v7565 = vunpack.c.l.b16 %v7371
        %v7566 = vunpack.c.h.b16 %v7371
        %v7567 = vunpack.c.l.b16 %v7372
        %v7568 = vunpack.c.h.b16 %v7372
        %v7569 = vunpack.c.l.b16 %v7373
        %v7570 = vunpack.c.h.b16 %v7373
        %v7571 = vunpack.c.l.b16 %v7374
        %v7572 = vunpack.c.h.b16 %v7374
        %v7573 = vunpack.c.l.b16 %v7375
        %v7574 = vunpack.c.h.b16 %v7375
        %v7575 = vunpack.c.l.b16 %v7376
        %v7576 = vunpack.c.h.b16 %v7376
        %v7577 = vunpack.c.l.b16 %v7377
        %v7578 = vunpack.c.h.b16 %v7377
        %v7579 = vunpack.c.l.b16 %v7378
        %v7580 = vunpack.c.h.b16 %v7378
        %v7581 = vunpack.c.l.b16 %v7379
        %v7582 = vunpack.c.h.b16 %v7379
        %v7583 = vunpack.c.l.b16 %v7380
        %v7584 = vunpack.c.h.b16 %v7380
        %v7585 = vunpack.c.l.b16 %v7381
        %v7586 = vunpack.c.h.b16 %v7381
        %v7587 = vunpack.c.l.b16 %v7382
        %v7588 = vunpack.c.h.b16 %v7382
        %v7589 = vunpack.c.l.b16 %v7383
        %v7590 = vunpack.c.h.b16 %v7383
        %v7591 = vunpack.c.l.b16 %v7384
        %v7592 = vunpack.c.h.b16 %v7384
        %v7593 = vunpack.c.l.b16 %v7385
        %v7594 = vunpack.c.h.b16 %v7385
        %v7595 = vunpack.c.l.b16 %v7386
        %v7596 = vunpack.c.h.b16 %v7386
        %v7597 = vunpack.c.l.b16 %v7387
        %v7598 = vunpack.c.h.b16 %v7387
        %v7599 = vunpack.c.l.b16 %v7388
        %v7600 = vunpack.c.h.b16 %v7388
        %v7601 = vunpack.c.l.b16 %v7389
        %v7602 = vunpack.c.h.b16 %v7389
        %v7603 = vunpack.c.l.b16 %v7390
        %v7604 = vunpack.c.h.b16 %v7390
        %v7605 = vpack.c.b16 %v7481, %v7477
        %v7606 = vpack.c.b16 %v7482, %v7478
        %v7607 = vpack.c.b16 %v7483, %v7479
        %v7608 = vpack.c.b16 %v7484, %v7480
        %v7609 = vpack.c.b16 %v7489, %v7485
        %v7610 = vpack.c.b16 %v7490, %v7486
        %v7611 = vpack.c.b16 %v7491, %v7487
        %v7612 = vpack.c.b16 %v7492, %v7488
        %v7613 = vpack.c.b16 %v7497, %v7493
        %v7614 = vpack.c.b16 %v7498, %v7494
        %v7615 = vpack.c.b16 %v7499, %v7495
        %v7616 = vpack.c.b16 %v7500, %v7496
        %v7617 = vpack.c.b16 %v7505, %v7501
        %v7618 = vpack.c.b16 %v7506, %v7502
        %v7619 = vpack.c.b16 %v7507, %v7503
        %v7620 = vpack.c.b16 %v7508, %v7504
        %v7621 = vpack.c.b16 %v7513, %v7509
        %v7622 = vpack.c.b16 %v7514, %v7510
        %v7623 = vpack.c.b16 %v7515, %v7511
        %v7624 = vpack.c.b16 %v7516, %v7512
        %v7625 = vpack.c.b16 %v7521, %v7517
        %v7626 = vpack.c.b16 %v7522, %v7518
        %v7627 = vpack.c.b16 %v7523, %v7519
        %v7628 = vpack.c.b16 %v7524, %v7520
        %v7629 = vpack.c.b16 %v7529, %v7525
        %v7630 = vpack.c.b16 %v7530, %v7526
        %v7631 = vpack.c.b16 %v7531, %v7527
        %v7632 = vpack.c.b16 %v7532, %v7528
        %v7633 = vpack.c.b16 %v7537, %v7533
        %v7634 = vpack.c.b16 %v7538, %v7534
        %v7635 = vpack.c.b16 %v7539, %v7535
        %v7636 = vpack.c.b16 %v7540, %v7536
        %v7637 = vpack.c.b16 %v7545, %v7541
        %v7638 = vpack.c.b16 %v7546, %v7542
        %v7639 = vpack.c.b16 %v7547, %v7543
        %v7640 = vpack.c.b16 %v7548, %v7544
        %v7641 = vpack.c.b16 %v7553, %v7549
        %v7642 = vpack.c.b16 %v7554, %v7550
        %v7643 = vpack.c.b16 %v7555, %v7551
        %v7644 = vpack.c.b16 %v7556, %v7552
        %v7645 = vpack.c.b16 %v7561, %v7557
        %v7646 = vpack.c.b16 %v7562, %v7558
        %v7647 = vpack.c.b16 %v7563, %v7559
        %v7648 = vpack.c.b16 %v7564, %v7560
        %v7649 = vpack.c.b16 %v7569, %v7565
        %v7650 = vpack.c.b16 %v7570, %v7566
        %v7651 = vpack.c.b16 %v7571, %v7567
        %v7652 = vpack.c.b16 %v7572, %v7568
        %v7653 = vpack.c.b16 %v7577, %v7573
        %v7654 = vpack.c.b16 %v7578, %v7574
        %v7655 = vpack.c.b16 %v7579, %v7575
        %v7656 = vpack.c.b16 %v7580, %v7576
        %v7657 = vpack.c.b16 %v7585, %v7581
        %v7658 = vpack.c.b16 %v7586, %v7582
        %v7659 = vpack.c.b16 %v7587, %v7583
        %v7660 = vpack.c.b16 %v7588, %v7584
        %v7661 = vpack.c.b16 %v7593, %v7589
        %v7662 = vpack.c.b16 %v7594, %v7590
        %v7663 = vpack.c.b16 %v7595, %v7591
        %v7664 = vpack.c.b16 %v7596, %v7592
        %v7665 = vpack.c.b16 %v7601, %v7597
        %v7666 = vpack.c.b16 %v7602, %v7598
        %v7667 = vpack.c.b16 %v7603, %v7599
        %v7668 = vpack.c.b16 %v7604, %v7600
        %7733 = vmatprep.subr.bf16.mxu0 %v7606
        %7734 = vmatpush1.bf16.msra.mxu0 %v7605
        %7735 = vmatprep.subr.bf16.mxu0 %v7610
        %7736 = vmatpush1.bf16.msra.mxu0 %v7609
        %7737 = vmatprep.subr.bf16.mxu0 %v7614
        %7738 = vmatpush1.bf16.msra.mxu0 %v7613
        %7739 = vmatprep.subr.bf16.mxu0 %v7618
        %7740 = vmatpush1.bf16.msra.mxu0 %v7617
        %7741 = vmatprep.subr.bf16.mxu0 %v7622
        %7742 = vmatpush1.bf16.msra.mxu0 %v7621
        %7743 = vmatprep.subr.bf16.mxu0 %v7626
        %7744 = vmatpush1.bf16.msra.mxu0 %v7625
        %7745 = vmatprep.subr.bf16.mxu0 %v7630
        %7746 = vmatpush1.bf16.msra.mxu0 %v7629
        %7747 = vmatprep.subr.bf16.mxu0 %v7634
        %7748 = vmatpush1.bf16.msra.mxu0 %v7633
        %7749 = vmatprep.subr.bf16.mxu0 %v7638
        %7750 = vmatpush1.bf16.msra.mxu0 %v7637
        %7751 = vmatprep.subr.bf16.mxu0 %v7642
        %7752 = vmatpush1.bf16.msra.mxu0 %v7641
        %7753 = vmatprep.subr.bf16.mxu0 %v7646
        %7754 = vmatpush1.bf16.msra.mxu0 %v7645
        %7755 = vmatprep.subr.bf16.mxu0 %v7650
        %7756 = vmatpush1.bf16.msra.mxu0 %v7649
        %7757 = vmatprep.subr.bf16.mxu0 %v7654
        %7758 = vmatpush1.bf16.msra.mxu0 %v7653
        %7759 = vmatprep.subr.bf16.mxu0 %v7658
        %7760 = vmatpush1.bf16.msra.mxu0 %v7657
        %7761 = vmatprep.subr.bf16.mxu0 %v7662
        %7762 = vmatpush1.bf16.msra.mxu0 %v7661
        %7763 = vmatprep.subr.bf16.mxu0 %v7666
        %7764 = vmatpush1.bf16.msra.mxu0 %v7665
        %7765 = vmatprep.mubr.bf16.mxu0 %v7326
        %7766 = vmatmul.mubr.bf16.gmra.mrb[0].mxu0 %v7325
        %v7767 = vpop.f32.mrb[0].mxu0
        %v7768 = vadd.f32 %v7396, %v7767
        %v7769 = vpop.f32.mrb[0].mxu0
        %v7770 = vadd.f32 %v7400, %v7769
        %v7771 = vpop.f32.mrb[0].mxu0
        %v7772 = vpop.f32.mrb[0].mxu0
        %7773 = vdwg.mxu0
        %7774 = vmatprep.subr.bf16.mxu0 %v7608
        %7775 = vmatpush1.bf16.msra.mxu0 %v7607
        %7776 = vmatprep.subr.bf16.mxu0 %v7612
        %7777 = vmatpush1.bf16.msra.mxu0 %v7611
        %7778 = vmatprep.subr.bf16.mxu0 %v7616
        %7779 = vmatpush1.bf16.msra.mxu0 %v7615
        %7780 = vmatprep.subr.bf16.mxu0 %v7620
        %7781 = vmatpush1.bf16.msra.mxu0 %v7619
        %7782 = vmatprep.subr.bf16.mxu0 %v7624
        %7783 = vmatpush1.bf16.msra.mxu0 %v7623
        %7784 = vmatprep.subr.bf16.mxu0 %v7628
        %7785 = vmatpush1.bf16.msra.mxu0 %v7627
        %7786 = vmatprep.subr.bf16.mxu0 %v7632
        %7787 = vmatpush1.bf16.msra.mxu0 %v7631
        %7788 = vmatprep.subr.bf16.mxu0 %v7636
        %7789 = vmatpush1.bf16.msra.mxu0 %v7635
        %7790 = vmatprep.subr.bf16.mxu0 %v7640
        %7791 = vmatpush1.bf16.msra.mxu0 %v7639
        %7792 = vmatprep.subr.bf16.mxu0 %v7644
        %7793 = vmatpush1.bf16.msra.mxu0 %v7643
        %7794 = vmatprep.subr.bf16.mxu0 %v7648
        %7795 = vmatpush1.bf16.msra.mxu0 %v7647
        %7796 = vmatprep.subr.bf16.mxu0 %v7652
        %7797 = vmatpush1.bf16.msra.mxu0 %v7651
        %7798 = vmatprep.subr.bf16.mxu0 %v7656
        %7799 = vmatpush1.bf16.msra.mxu0 %v7655
        %7800 = vmatprep.subr.bf16.mxu0 %v7660
        %7801 = vmatpush1.bf16.msra.mxu0 %v7659
        %7802 = vmatprep.subr.bf16.mxu0 %v7664
        %7803 = vmatpush1.bf16.msra.mxu0 %v7663
        %7804 = vmatprep.subr.bf16.mxu0 %v7668
        %7805 = vmatpush1.bf16.msra.mxu0 %v7667
        %7806 = vmatprep.mubr.bf16.mxu0 %v7326
        %7807 = vmatmul.mubr.bf16.gmra.mrb[0].mxu0 %v7325
        %v7808 = vpop.f32.mrb[0].mxu0
        %v7809 = vadd.f32 %v7404, %v7808
        %v7810 = vpop.f32.mrb[0].mxu0
        %v7811 = vadd.f32 %v7408, %v7810
        %v7812 = vpop.f32.mrb[0].mxu0
        %v7813 = vpop.f32.mrb[0].mxu0
        %7814 = vdwg.mxu0
        %v7815 = vmax.f32 %v7768, 0.0
        %v7816 = vmax.f32 %v7770, 0.0
        %v7817 = vmax.f32 %v7809, 0.0
        %v7818 = vmax.f32 %v7811, 0.0
        %v7819 = vpack.c.bf16 %v7815, %v7815
        %v7820 = vpack.c.bf16 %v7816, %v7816
        %v7821 = vpack.c.bf16 %v7817, %v7817
        %v7822 = vpack.c.bf16 %v7818, %v7818
        %v7823 = vld [vmem:[%s13] sm:$0xf]
        %v7824 = vld [vmem:[%s13 + $0x4] sm:$0xf]
        %v7825 = vld [vmem:[%s13 + $0x8] sm:$0xf]
        %v7826 = vld [vmem:[%s13 + $0xc] sm:$0xf]
        %v7827 = vld [vmem:[%s13 + $0x10] sm:$0xf]
        %v7828 = vld [vmem:[%s13 + $0x14] sm:$0xf]
        %v7829 = vld [vmem:[%s13 + $0x18] sm:$0xf]
        %v7830 = vld [vmem:[%s13 + $0x1c] sm:$0xf]
        %v7831 = vld [vmem:[%s13 + $0x20] sm:$0xf]
        %v7832 = vld [vmem:[%s13 + $0x24] sm:$0xf]
        %v7833 = vld [vmem:[%s13 + $0x28] sm:$0xf]
        %v7834 = vld [vmem:[%s13 + $0x2c] sm:$0xf]
        %v7835 = vld [vmem:[%s13 + $0x30] sm:$0xf]
        %v7836 = vld [vmem:[%s13 + $0x34] sm:$0xf]
        %v7837 = vld [vmem:[%s13 + $0x38] sm:$0xf]
        %v7838 = vld [vmem:[%s13 + $0x3c] sm:$0xf]
        %v7839 = vld [vmem:[%s13 + $0x40] sm:$0xf]
        %v7840 = vld [vmem:[%s13 + $0x44] sm:$0xf]
        %v7841 = vld [vmem:[%s13 + $0x48] sm:$0xf]
        %v7842 = vld [vmem:[%s13 + $0x4c] sm:$0xf]
        %v7843 = vld [vmem:[%s13 + $0x50] sm:$0xf]
        %v7844 = vld [vmem:[%s13 + $0x54] sm:$0xf]
        %v7845 = vld [vmem:[%s13 + $0x58] sm:$0xf]
        %v7846 = vld [vmem:[%s13 + $0x5c] sm:$0xf]
        %v7847 = vld [vmem:[%s13 + $0x60] sm:$0xf]
        %v7848 = vld [vmem:[%s13 + $0x64] sm:$0xf]
        %v7849 = vld [vmem:[%s13 + $0x68] sm:$0xf]
        %v7850 = vld [vmem:[%s13 + $0x6c] sm:$0xf]
        %v7851 = vld [vmem:[%s13 + $0x70] sm:$0xf]
        %v7852 = vld [vmem:[%s13 + $0x74] sm:$0xf]
        %v7853 = vld [vmem:[%s13 + $0x78] sm:$0xf]
        %v7854 = vld [vmem:[%s13 + $0x7c] sm:$0xf]
        %v7855 = vld [vmem:[%s13 + $0x80] sm:$0xf]
        %v7856 = vld [vmem:[%s13 + $0x84] sm:$0xf]
        %v7857 = vld [vmem:[%s13 + $0x88] sm:$0xf]
        %v7858 = vld [vmem:[%s13 + $0x8c] sm:$0xf]
        %v7859 = vld [vmem:[%s13 + $0x90] sm:$0xf]
        %v7860 = vld [vmem:[%s13 + $0x94] sm:$0xf]
        %v7861 = vld [vmem:[%s13 + $0x98] sm:$0xf]
        %v7862 = vld [vmem:[%s13 + $0x9c] sm:$0xf]
        %v7863 = vld [vmem:[%s13 + $0xa0] sm:$0xf]
        %v7864 = vld [vmem:[%s13 + $0xa4] sm:$0xf]
        %v7865 = vld [vmem:[%s13 + $0xa8] sm:$0xf]
        %v7866 = vld [vmem:[%s13 + $0xac] sm:$0xf]
        %v7867 = vld [vmem:[%s13 + $0xb0] sm:$0xf]
        %v7868 = vld [vmem:[%s13 + $0xb4] sm:$0xf]
        %v7869 = vld [vmem:[%s13 + $0xb8] sm:$0xf]
        %v7870 = vld [vmem:[%s13 + $0xbc] sm:$0xf]
        %v7871 = vld [vmem:[%s13 + $0xc0] sm:$0xf]
        %v7872 = vld [vmem:[%s13 + $0xc4] sm:$0xf]
        %v7873 = vld [vmem:[%s13 + $0xc8] sm:$0xf]
        %v7874 = vld [vmem:[%s13 + $0xcc] sm:$0xf]
        %v7875 = vld [vmem:[%s13 + $0xd0] sm:$0xf]
        %v7876 = vld [vmem:[%s13 + $0xd4] sm:$0xf]
        %v7877 = vld [vmem:[%s13 + $0xd8] sm:$0xf]
        %v7878 = vld [vmem:[%s13 + $0xdc] sm:$0xf]
        %v7879 = vld [vmem:[%s13 + $0xe0] sm:$0xf]
        %v7880 = vld [vmem:[%s13 + $0xe4] sm:$0xf]
        %v7881 = vld [vmem:[%s13 + $0xe8] sm:$0xf]
        %v7882 = vld [vmem:[%s13 + $0xec] sm:$0xf]
        %v7883 = vld [vmem:[%s13 + $0xf0] sm:$0xf]
        %v7884 = vld [vmem:[%s13 + $0xf4] sm:$0xf]
        %v7885 = vld [vmem:[%s13 + $0xf8] sm:$0xf]
        %v7886 = vld [vmem:[%s13 + $0xfc] sm:$0xf]
        %v7887 = vld [vmem:[%s14] sm:$0x1]
        %v7889 = vlaneseq
        %v7890 = vshrl.u32 %v7889, 7
        %v7891 = vsub.s32 0, %v7890
        %v7892 = vrot.slane %v7887, %v7891
        %v7958 = vunpack.c.l.b16 %v7823
        %v7959 = vunpack.c.l.b16 %v7824
        %v7960 = vunpack.c.l.b16 %v7825
        %v7961 = vunpack.c.l.b16 %v7826
        %v7962 = vunpack.c.l.b16 %v7827
        %v7963 = vunpack.c.l.b16 %v7828
        %v7964 = vunpack.c.l.b16 %v7829
        %v7965 = vunpack.c.l.b16 %v7830
        %v7966 = vunpack.c.l.b16 %v7831
        %v7967 = vunpack.c.l.b16 %v7832
        %v7968 = vunpack.c.l.b16 %v7833
        %v7969 = vunpack.c.l.b16 %v7834
        %v7970 = vunpack.c.l.b16 %v7835
        %v7971 = vunpack.c.l.b16 %v7836
        %v7972 = vunpack.c.l.b16 %v7837
        %v7973 = vunpack.c.l.b16 %v7838
        %v7974 = vunpack.c.l.b16 %v7839
        %v7975 = vunpack.c.l.b16 %v7840
        %v7976 = vunpack.c.l.b16 %v7841
        %v7977 = vunpack.c.l.b16 %v7842
        %v7978 = vunpack.c.l.b16 %v7843
        %v7979 = vunpack.c.l.b16 %v7844
        %v7980 = vunpack.c.l.b16 %v7845
        %v7981 = vunpack.c.l.b16 %v7846
        %v7982 = vunpack.c.l.b16 %v7847
        %v7983 = vunpack.c.l.b16 %v7848
        %v7984 = vunpack.c.l.b16 %v7849
        %v7985 = vunpack.c.l.b16 %v7850
        %v7986 = vunpack.c.l.b16 %v7851
        %v7987 = vunpack.c.l.b16 %v7852
        %v7988 = vunpack.c.l.b16 %v7853
        %v7989 = vunpack.c.l.b16 %v7854
        %v7990 = vunpack.c.l.b16 %v7855
        %v7991 = vunpack.c.l.b16 %v7856
        %v7992 = vunpack.c.l.b16 %v7857
        %v7993 = vunpack.c.l.b16 %v7858
        %v7994 = vunpack.c.l.b16 %v7859
        %v7995 = vunpack.c.l.b16 %v7860
        %v7996 = vunpack.c.l.b16 %v7861
        %v7997 = vunpack.c.l.b16 %v7862
        %v7998 = vunpack.c.l.b16 %v7863
        %v7999 = vunpack.c.l.b16 %v7864
        %v8000 = vunpack.c.l.b16 %v7865
        %v8001 = vunpack.c.l.b16 %v7866
        %v8002 = vunpack.c.l.b16 %v7867
        %v8003 = vunpack.c.l.b16 %v7868
        %v8004 = vunpack.c.l.b16 %v7869
        %v8005 = vunpack.c.l.b16 %v7870
        %v8006 = vunpack.c.l.b16 %v7871
        %v8007 = vunpack.c.l.b16 %v7872
        %v8008 = vunpack.c.l.b16 %v7873
        %v8009 = vunpack.c.l.b16 %v7874
        %v8010 = vunpack.c.l.b16 %v7875
        %v8011 = vunpack.c.l.b16 %v7876
        %v8012 = vunpack.c.l.b16 %v7877
        %v8013 = vunpack.c.l.b16 %v7878
        %v8014 = vunpack.c.l.b16 %v7879
        %v8015 = vunpack.c.l.b16 %v7880
        %v8016 = vunpack.c.l.b16 %v7881
        %v8017 = vunpack.c.l.b16 %v7882
        %v8018 = vunpack.c.l.b16 %v7883
        %v8019 = vunpack.c.l.b16 %v7884
        %v8020 = vunpack.c.l.b16 %v7885
        %v8021 = vunpack.c.l.b16 %v7886
        %v8022 = vpack.c.b16 %v7959, %v7958
        %v8023 = vpack.c.b16 %v7961, %v7960
        %v8024 = vpack.c.b16 %v7963, %v7962
        %v8025 = vpack.c.b16 %v7965, %v7964
        %v8026 = vpack.c.b16 %v7967, %v7966
        %v8027 = vpack.c.b16 %v7969, %v7968
        %v8028 = vpack.c.b16 %v7971, %v7970
        %v8029 = vpack.c.b16 %v7973, %v7972
        %v8030 = vpack.c.b16 %v7975, %v7974
        %v8031 = vpack.c.b16 %v7977, %v7976
        %v8032 = vpack.c.b16 %v7979, %v7978
        %v8033 = vpack.c.b16 %v7981, %v7980
        %v8034 = vpack.c.b16 %v7983, %v7982
        %v8035 = vpack.c.b16 %v7985, %v7984
        %v8036 = vpack.c.b16 %v7987, %v7986
        %v8037 = vpack.c.b16 %v7989, %v7988
        %v8038 = vpack.c.b16 %v7991, %v7990
        %v8039 = vpack.c.b16 %v7993, %v7992
        %v8040 = vpack.c.b16 %v7995, %v7994
        %v8041 = vpack.c.b16 %v7997, %v7996
        %v8042 = vpack.c.b16 %v7999, %v7998
        %v8043 = vpack.c.b16 %v8001, %v8000
        %v8044 = vpack.c.b16 %v8003, %v8002
        %v8045 = vpack.c.b16 %v8005, %v8004
        %v8046 = vpack.c.b16 %v8007, %v8006
        %v8047 = vpack.c.b16 %v8009, %v8008
        %v8048 = vpack.c.b16 %v8011, %v8010
        %v8049 = vpack.c.b16 %v8013, %v8012
        %v8050 = vpack.c.b16 %v8015, %v8014
        %v8051 = vpack.c.b16 %v8017, %v8016
        %v8052 = vpack.c.b16 %v8019, %v8018
        %v8053 = vpack.c.b16 %v8021, %v8020
        %8086 = vmatprep.subr.bf16.mxu0 0
        %8087 = vmatpush1.bf16.msra.mxu0 %v8022
        %8088 = vmatprep.subr.bf16.mxu0 0
        %8089 = vmatpush1.bf16.msra.mxu0 %v8023
        %8090 = vmatprep.subr.bf16.mxu0 0
        %8091 = vmatpush1.bf16.msra.mxu0 %v8024
        %8092 = vmatprep.subr.bf16.mxu0 0
        %8093 = vmatpush1.bf16.msra.mxu0 %v8025
        %8094 = vmatprep.subr.bf16.mxu0 0
        %8095 = vmatpush1.bf16.msra.mxu0 %v8026
        %8096 = vmatprep.subr.bf16.mxu0 0
        %8097 = vmatpush1.bf16.msra.mxu0 %v8027
        %8098 = vmatprep.subr.bf16.mxu0 0
        %8099 = vmatpush1.bf16.msra.mxu0 %v8028
        %8100 = vmatprep.subr.bf16.mxu0 0
        %8101 = vmatpush1.bf16.msra.mxu0 %v8029
        %8102 = vmatprep.subr.bf16.mxu0 0
        %8103 = vmatpush1.bf16.msra.mxu0 %v8030
        %8104 = vmatprep.subr.bf16.mxu0 0
        %8105 = vmatpush1.bf16.msra.mxu0 %v8031
        %8106 = vmatprep.subr.bf16.mxu0 0
        %8107 = vmatpush1.bf16.msra.mxu0 %v8032
        %8108 = vmatprep.subr.bf16.mxu0 0
        %8109 = vmatpush1.bf16.msra.mxu0 %v8033
        %8110 = vmatprep.subr.bf16.mxu0 0
        %8111 = vmatpush1.bf16.msra.mxu0 %v8034
        %8112 = vmatprep.subr.bf16.mxu0 0
        %8113 = vmatpush1.bf16.msra.mxu0 %v8035
        %8114 = vmatprep.subr.bf16.mxu0 0
        %8115 = vmatpush1.bf16.msra.mxu0 %v8036
        %8116 = vmatprep.subr.bf16.mxu0 0
        %8117 = vmatpush1.bf16.msra.mxu0 %v8037
        %8118 = vmatprep.mubr.bf16.mxu0 %v7820
        %8119 = vmatmul.mubr.bf16.gmra.mrb[0].mxu0 %v7819
        %v8120 = vpop.f32.mrb[0].mxu0
        %v8121 = vadd.f32 %v7892, %v8120
        %v8122 = vpop.f32.mrb[0].mxu0
        %v8123 = vpop.f32.mrb[0].mxu0
        %v8124 = vpop.f32.mrb[0].mxu0
        %8125 = vdwg.mxu0
        %8126 = vmatprep.subr.bf16.mxu0 0
        %8127 = vmatpush1.bf16.msra.mxu0 %v8038
        %8128 = vmatprep.subr.bf16.mxu0 0
        %8129 = vmatpush1.bf16.msra.mxu0 %v8039
        %8130 = vmatprep.subr.bf16.mxu0 0
        %8131 = vmatpush1.bf16.msra.mxu0 %v8040
        %8132 = vmatprep.subr.bf16.mxu0 0
        %8133 = vmatpush1.bf16.msra.mxu0 %v8041
        %8134 = vmatprep.subr.bf16.mxu0 0
        %8135 = vmatpush1.bf16.msra.mxu0 %v8042
        %8136 = vmatprep.subr.bf16.mxu0 0
        %8137 = vmatpush1.bf16.msra.mxu0 %v8043
        %8138 = vmatprep.subr.bf16.mxu0 0
        %8139 = vmatpush1.bf16.msra.mxu0 %v8044
        %8140 = vmatprep.subr.bf16.mxu0 0
        %8141 = vmatpush1.bf16.msra.mxu0 %v8045
        %8142 = vmatprep.subr.bf16.mxu0 0
        %8143 = vmatpush1.bf16.msra.mxu0 %v8046
        %8144 = vmatprep.subr.bf16.mxu0 0
        %8145 = vmatpush1.bf16.msra.mxu0 %v8047
        %8146 = vmatprep.subr.bf16.mxu0 0
        %8147 = vmatpush1.bf16.msra.mxu0 %v8048
        %8148 = vmatprep.subr.bf16.mxu0 0
        %8149 = vmatpush1.bf16.msra.mxu0 %v8049
        %8150 = vmatprep.subr.bf16.mxu0 0
        %8151 = vmatpush1.bf16.msra.mxu0 %v8050
        %8152 = vmatprep.subr.bf16.mxu0 0
        %8153 = vmatpush1.bf16.msra.mxu0 %v8051
        %8154 = vmatprep.subr.bf16.mxu0 0
        %8155 = vmatpush1.bf16.msra.mxu0 %v8052
        %8156 = vmatprep.subr.bf16.mxu0 0
        %8157 = vmatpush1.bf16.msra.mxu0 %v8053
        %8158 = vmatprep.mubr.bf16.mxu0 %v7822
        %8159 = vmatmul.mubr.bf16.gmra.mrb[0].mxu0 %v7821
        %v8160 = vpop.f32.mrb[0].mxu0
        %v8161 = vadd.f32 %v8121, %v8160
        %v8162 = vpop.f32.mrb[0].mxu0
        %v8163 = vpop.f32.mrb[0].mxu0
        %v8164 = vpop.f32.mrb[0].mxu0
        %8165 = vdwg.mxu0
        %vm8166 = vcmask 97280
        %8167 = vst.msk [vmem:[%s600] sm:$0xff] %vm8166, %v8161
        %s8168 = sand.u32 %s366, 1
        %s8169 = scalar_lea.sflag [#allocation4], %s8168
        %s8170 = sand.u32 %s366, 1
        %s8171 = smul.addr %s8170, 8
        %s8172 = scalar_lea.vmem [#allocation14], %s8171
        // Predicated region
        $region109: #{tpu_custom_call.1} parent=79 // pred_check
          %p8173 = pneg %p376
        $region110: #{tpu_custom_call.1} parent=79 // pred_check_branch
          %8175 = sbr.rel (%p8173) target = $region112
        $region111: #{tpu_custom_call.1} parent=79 // pred_region
          %s8177 = ssub.s32 128, 128
          %8178 = vsyncadd %s8169, %s8177
          %s8179 = smul.addr %s33, 128
          %s8180 = scalar_lea.hbm %s15, %s8179
          %s8182 = sshll.u32 %s8172, 4
          %s8183 = int_to_ptr.vmem [resolvable:$true] %s8182
          %8185 = dma.vmem_to_hbm [thread:$0]  %s8183, 128, %s8180, %s8169
        $region112: #{tpu_custom_call.1} parent=79 // pred_fallthru
          _
      $region80: #{tpu_custom_call.1} parent=5 // pred_fallthru
        _
      %p8186 = scmp.le.s32.totalorder 2, %s28
      // Predicated region
      $region113: #{tpu_custom_call.1} parent=5 // pred_check
        %p8187 = pneg %p8186
      $region114: #{tpu_custom_call.1} parent=5 // pred_check_branch
        %8189 = sbr.rel (%p8187) target = $region116
      $region115: #{tpu_custom_call.1} parent=5 // pred_region
        %s8190 = ssub.s32 %s28, 2
        // Predicated region
        $region117: #{tpu_custom_call.1} parent=115 // pred_check
          %p8191 = pneg %p382
        $region118: #{tpu_custom_call.1} parent=115 // pred_check_branch
          %8193 = sbr.rel (%p8191) target = $region120
        $region119: #{tpu_custom_call.1} parent=115 // pred_region
          %s8194 = sand.u32 %s367, 1
          %s8195 = scalar_lea.sflag [#allocation4], %s8194
          %s8196 = sand.u32 %s367, 1
          %s8197 = smul.addr %s8196, 8
          %s8198 = scalar_lea.vmem [#allocation14], %s8197
          %8199 = dma.done %s8195, 128
        $region120: #{tpu_custom_call.1} parent=115 // pred_fallthru
          _
      $region116: #{tpu_custom_call.1} parent=5 // pred_fallthru
        _
    $region6: #{tpu_custom_call.1} parent=1 // loop_footer
      %s32 = sadd.s32 1, %s28
    $region7: #{tpu_custom_call.1} parent=1 // loop_footer_branch
      %27 = sbr.rel target = $region3
    $region8: #{tpu_custom_call.1} parent=1 // loop_exit
      _
    %8200 = vsyncpa [#allocation3], 1
    %s8201 = scalar_lea.sflag [#allocation3], 1
    %8202 = vsyncpa %s8201, 1
    %8203 = vsyncpa [#allocation6], 1
    %8204 = vsyncpa [#allocation9], 1
    %8205 = vsyncpa [#allocation12], 1
    %8206 = vsyncpa [#allocation4], 1
    %s8207 = scalar_lea.sflag [#allocation4], 1
    %8208 = vsyncpa %s8207, 1

</llo_original>
